<compile_context>
chip_gen: v7x
topology: tpu7x:2x2x1
jax: 0.10.0
libtpu: 0.0.40
codegen_flags: <defaults>
</compile_context>

<pallas_src>
from functools import partial

import jax
import jax.numpy as jnp
import numpy as np
from jax.experimental import pallas as pl
from jax.experimental.pallas import tpu as pltpu

# ---------------- architecture constants (FSPEN full-band encoder) -------------
C_IN, FREQ = 2, 33
C1, K1, S1, F1 = 4, 3, 2, 16     # block 1: 33 -> 16
C2, K2, S2, F2 = 8, 2, 2, 8      # block 2: 16 -> 8
C3, K3, S3, F3 = 8, 1, 1, 8      # block 3: 8  -> 8
CG = 8                           # global 1x1 conv

F_IN = C_IN * FREQ               # 66 flattened input features
FLAT = C1 * F1                   # 64 = C1*F1 = C2*F2 = C3*F3 = CG*F3

ROW_BLOCK = 512                  # default rows (batch*frame) per grid step


def _elu(v):
    # ELU(alpha=1): x if x > 0 else exp(x) - 1   (select, so the +inf branch
    # for large positive x is never picked -> no NaN)
    return jnp.where(v > 0, v, jnp.exp(v) - 1.0)


# --------------------------------- fused kernel --------------------------------
def _full_band_encoder_kernel(x_ref, w1_ref, w2_ref, w3_ref, wg_ref, b_ref,
                              e1_ref, e2_ref, e3_ref, g_ref):
    """Layouts (tn = rows of batch*frame on the sublane axis, features on lanes):
         x_ref  : (tn, F_IN)   flattened (channel-major) input spectrum
         w*_ref : (F_IN|FLAT, FLAT)  conv layers folded to dense matrices (VMEM)
         b_ref  : (4, FLAT)    per-layer biases, already repeated over frequency
         e*_ref : (tn, FLAT)   layer outputs, flattened channel-major
         g_ref  : (tn, FLAT)   global 1x1-conv output
       Every HBM block is a contiguous chunk; all MACs go to the MXU.
    """
    def dot(a, w):
        return jnp.dot(a, w, preferred_element_type=jnp.float32,
                       precision=jax.lax.Precision.HIGHEST)

    h = x_ref[...]                                          # (tn, F_IN)
    y1 = _elu(dot(h, w1_ref[...]) + b_ref[0:1, :])          # (tn, 64)
    e1_ref[...] = y1
    y2 = _elu(dot(y1, w2_ref[...]) + b_ref[1:2, :])         # (tn, 64)
    e2_ref[...] = y2
    y3 = _elu(dot(y2, w3_ref[...]) + b_ref[2:3, :])         # (tn, 64)
    e3_ref[...] = y3
    g_ref[...] = dot(y3, wg_ref[...]) + b_ref[3:4, :]       # (tn, 64)


# --------------------------- parameter packing (host) ---------------------------
def _conv_as_matrix(w, f_in, stride):
    """Fold Conv1d weights (Cout, Cin, k) into a dense (Cin*f_in, Cout*f_out)
    matrix acting on channel-major flattened features."""
    w = np.asarray(w, np.float32)
    cout, cin, k = w.shape
    f_out = (f_in - k) // stride + 1
    m = np.zeros((cin * f_in, cout * f_out), np.float32)
    for co in range(cout):
        for ci in range(cin):
            for kk in range(k):
                for fo in range(f_out):
                    m[ci * f_in + fo * stride + kk, co * f_out + fo] = w[co, ci, kk]
    return m


def pack_params(params):
    """PyTorch-layout conv params -> (W1, W2, W3, Wg, B) dense operands."""
    w1 = _conv_as_matrix(params['enc1']['w'], FREQ, S1)      # (66, 64)
    w2 = _conv_as_matrix(params['enc2']['w'], F1, S2)        # (64, 64)
    w3 = _conv_as_matrix(params['enc3']['w'], F2, S3)        # (64, 64)
    wg = _conv_as_matrix(params['glob']['w'], F3, 1)         # (64, 64)
    b = np.stack([
        np.repeat(np.asarray(params['enc1']['b'], np.float32), F1),
        np.repeat(np.asarray(params['enc2']['b'], np.float32), F2),
        np.repeat(np.asarray(params['enc3']['b'], np.float32), F3),
        np.repeat(np.asarray(params['glob']['b'], np.float32), F3),
    ])                                                       # (4, 64)
    return (jnp.asarray(w1), jnp.asarray(w2), jnp.asarray(w3),
            jnp.asarray(wg), jnp.asarray(b))


# --------------------------------- wrapper -------------------------------------
def _round_up(v, m):
    return ((v + m - 1) // m) * m


def _full_spec(shape):
    return pl.BlockSpec(shape, lambda i: (0,) * len(shape))


@partial(jax.jit, static_argnames=("row_block",))
def full_band_encoder_forward(packed, complex_spectrum, row_block=ROW_BLOCK):
    """complex_spectrum: (batch*frame, C_IN, FREQ) f32
       returns (full_band_encodes[::-1], global_feature) like the PyTorch module."""
    w1, w2, w3, wg, b = packed
    n = complex_spectrum.shape[0]
    x = complex_spectrum.astype(jnp.float32).reshape(n, F_IN)   # free reshape

    tn = min(row_block, _round_up(n, 8))
    n_pad = _round_up(n, tn)
    if n_pad != n:
        x = jnp.pad(x, ((0, n_pad - n), (0, 0)))

    grid = (n_pad // tn,)
    e1, e2, e3, g = pl.pallas_call(
        _full_band_encoder_kernel,
        grid=grid,
        in_specs=[
            pl.BlockSpec((tn, F_IN), lambda i: (i, 0)),   # input rows
            _full_spec((F_IN, FLAT)),                     # W1 (resident, fetched once)
            _full_spec((FLAT, FLAT)),                     # W2
            _full_spec((FLAT, FLAT)),                     # W3
            _full_spec((FLAT, FLAT)),                     # Wg
            _full_spec((4, FLAT)),                        # biases
        ],
        out_specs=tuple(pl.BlockSpec((tn, FLAT), lambda i: (i, 0))
                        for _ in range(4)),
        out_shape=tuple(jax.ShapeDtypeStruct((n_pad, FLAT), jnp.float32)
                        for _ in range(4)),
        compiler_params=pltpu.CompilerParams(
            dimension_semantics=("parallel",)),
    )(x, w1, w2, w3, wg, b)

    # only free reshapes + a row-slice: outputs are already channel-major flat
    enc1 = e1[:n].reshape(n, C1, F1)
    enc2 = e2[:n].reshape(n, C2, F2)
    enc3 = e3[:n].reshape(n, C3, F3)
    glob = g[:n].reshape(n, CG, F3)
    return (enc3, enc2, enc1), glob


# --------------------------- pure-JAX reference (for checking) -----------------
def _conv1d_ref(x, w, b, stride):
    n, cin, f = x.shape
    cout, _, k = w.shape
    fout = (f - k) // stride + 1
    idx = jnp.arange(fout)[:, None] * stride + jnp.arange(k)[None, :]
    patches = x[:, :, idx]                                   # (n, cin, fout, k)
    y = jnp.einsum('ncfk,ock->nof', patches, w,
                   precision=jax.lax.Precision.HIGHEST)
    return y + b[None, :, None]


def full_band_encoder_ref(params, x):
    encodes = []
    h = x
    for name, stride in (('enc1', S1), ('enc2', S2), ('enc3', S3)):
        h = _elu(_conv1d_ref(h, params[name]['w'], params[name]['b'], stride))
        encodes.append(h)
    g = _conv1d_ref(h, params['glob']['w'], params['glob']['b'], 1)
    return encodes[::-1], g


# ------------------------------------ main --------------------------------------
if __name__ == "__main__":
    key = jax.random.PRNGKey(0)
    k_x, k1, k2, k3, k4, k5, k6, k7, k8 = jax.random.split(key, 9)

    def nrm(k, shape, scale=0.2):
        return scale * jax.random.normal(k, shape, jnp.float32)

    params = {
        'enc1': {'w': nrm(k1, (C1, C_IN, K1)), 'b': nrm(k2, (C1,))},
        'enc2': {'w': nrm(k3, (C2, C1, K2)), 'b': nrm(k4, (C2,))},
        'enc3': {'w': nrm(k5, (C3, C2, K3)), 'b': nrm(k6, (C3,))},
        'glob': {'w': nrm(k7, (CG, C3, 1)), 'b': nrm(k8, (CG,))},
    }

    batch, frames = 2, 128                       # (batch*frame, channels, frequency)
    x = jax.random.normal(k_x, (batch * frames, C_IN, FREQ), jnp.float32)

    packed = pack_params(params)
    (enc3, enc2, enc1), glob = full_band_encoder_forward(packed, x)
    jax.block_until_ready(glob)

    # correctness check against the pure-JAX reference
    (r3, r2, r1), rg = full_band_encoder_ref(params, x)
    for got, ref in ((enc1, r1), (enc2, r2), (enc3, r3), (glob, rg)):
        np.testing.assert_allclose(np.asarray(got), np.asarray(ref),
                                   rtol=1e-4, atol=1e-4)

    assert enc1.shape == (batch * frames, C1, F1)
    assert enc2.shape == (batch * frames, C2, F2)
    assert enc3.shape == (batch * frames, C3, F3)
    assert glob.shape == (batch * frames, CG, F3)
    print("KERNEL_OK")
</pallas_src>

<mosaic_0001>
module attributes {stable_mosaic.version = 11 : i64} {
  func.func @_full_band_encoder_kernel(%arg0: i32, %arg1: memref<256x66xf32, #tpu.memory_space<vmem>>, %arg2: memref<66x64xf32, #tpu.memory_space<vmem>>, %arg3: memref<64x64xf32, #tpu.memory_space<vmem>>, %arg4: memref<64x64xf32, #tpu.memory_space<vmem>>, %arg5: memref<64x64xf32, #tpu.memory_space<vmem>>, %arg6: memref<4x64xf32, #tpu.memory_space<vmem>>, %arg7: memref<256x64xf32, #tpu.memory_space<vmem>>, %arg8: memref<256x64xf32, #tpu.memory_space<vmem>>, %arg9: memref<256x64xf32, #tpu.memory_space<vmem>>, %arg10: memref<256x64xf32, #tpu.memory_space<vmem>>) attributes {dimension_semantics = [#tpu.dimension_semantics<parallel>], iteration_bounds = array<i64: 1>, scalar_prefetch = 0 : i64, scratch_operands = 0 : i64, tpu.core_type = #tpu.core_type<tc>, window_params = [{transform_indices = @transform_0, window_bounds = array<i64: 256, 66>}, {pipeline_mode = #tpu.pipeline_mode<synchronous>, transform_indices = @transform_1, window_bounds = array<i64: 66, 64>}, {pipeline_mode = #tpu.pipeline_mode<synchronous>, transform_indices = @transform_2, window_bounds = array<i64: 64, 64>}, {pipeline_mode = #tpu.pipeline_mode<synchronous>, transform_indices = @transform_3, window_bounds = array<i64: 64, 64>}, {pipeline_mode = #tpu.pipeline_mode<synchronous>, transform_indices = @transform_4, window_bounds = array<i64: 64, 64>}, {pipeline_mode = #tpu.pipeline_mode<synchronous>, transform_indices = @transform_5, window_bounds = array<i64: 4, 64>}, {transform_indices = @transform_6, window_bounds = array<i64: 256, 64>}, {transform_indices = @transform_7, window_bounds = array<i64: 256, 64>}, {transform_indices = @transform_8, window_bounds = array<i64: 256, 64>}, {transform_indices = @transform_9, window_bounds = array<i64: 256, 64>}]} {
    %c0 = arith.constant 0 : index
    %c0_0 = arith.constant 0 : index
    %0 = vector.load %arg1[%c0, %c0_0] : memref<256x66xf32, #tpu.memory_space<vmem>>, vector<256x66xf32>
    %c0_1 = arith.constant 0 : index
    %c0_2 = arith.constant 0 : index
    %1 = vector.load %arg2[%c0_1, %c0_2] : memref<66x64xf32, #tpu.memory_space<vmem>>, vector<66x64xf32>
    %cst = arith.constant dense<0.000000e+00> : vector<256x64xf32>
    %2 = tpu.matmul %0, %1, %cst {dimension_numbers = #tpu.dot_dimension_numbers<[1], [0], [0], [1], [0, 0, 1, 1], [], []>, precision = #tpu.contract_precision<fp32>} : vector<256x66xf32>, vector<66x64xf32>, vector<256x64xf32> -> vector<256x64xf32>
    %c0_3 = arith.constant 0 : index
    %c0_4 = arith.constant 0 : index
    %3 = vector.load %arg6[%c0_3, %c0_4] : memref<4x64xf32, #tpu.memory_space<vmem>>, vector<1x64xf32>
    %4 = vector.broadcast %3 : vector<1x64xf32> to vector<256x64xf32>
    %5 = arith.addf %2, %4 : vector<256x64xf32>
    %cst_5 = arith.constant 0.000000e+00 : f32
    %6 = vector.broadcast %cst_5 : f32 to vector<256x64xf32>
    %7 = arith.cmpf ogt, %5, %6 : vector<256x64xf32>
    %8 = math.exp %5 : vector<256x64xf32>
    %cst_6 = arith.constant 1.000000e+00 : f32
    %9 = vector.broadcast %cst_6 : f32 to vector<256x64xf32>
    %10 = arith.subf %8, %9 : vector<256x64xf32>
    %11 = arith.select %7, %5, %10 : vector<256x64xi1>, vector<256x64xf32>
    %c0_7 = arith.constant 0 : index
    %c0_8 = arith.constant 0 : index
    %12 = vector.load %arg7[%c0_7, %c0_8] : memref<256x64xf32, #tpu.memory_space<vmem>>, vector<256x64xf32>
    tpu.vector_store %arg7[%c0_7, %c0_8], %11 {strides = array<i32>} : memref<256x64xf32, #tpu.memory_space<vmem>>, vector<256x64xf32>,
    %c0_9 = arith.constant 0 : index
    %c0_10 = arith.constant 0 : index
    %13 = vector.load %arg3[%c0_9, %c0_10] : memref<64x64xf32, #tpu.memory_space<vmem>>, vector<64x64xf32>
    %cst_11 = arith.constant dense<0.000000e+00> : vector<256x64xf32>
    %14 = tpu.matmul %11, %13, %cst_11 {dimension_numbers = #tpu.dot_dimension_numbers<[1], [0], [0], [1], [0, 0, 1, 1], [], []>, precision = #tpu.contract_precision<fp32>} : vector<256x64xf32>, vector<64x64xf32>, vector<256x64xf32> -> vector<256x64xf32>
    %c1 = arith.constant 1 : index
    %c0_12 = arith.constant 0 : index
    %15 = vector.load %arg6[%c1, %c0_12] : memref<4x64xf32, #tpu.memory_space<vmem>>, vector<1x64xf32>
    %16 = vector.broadcast %15 : vector<1x64xf32> to vector<256x64xf32>
    %17 = arith.addf %14, %16 : vector<256x64xf32>
    %cst_13 = arith.constant 0.000000e+00 : f32
    %18 = vector.broadcast %cst_13 : f32 to vector<256x64xf32>
    %19 = arith.cmpf ogt, %17, %18 : vector<256x64xf32>
    %20 = math.exp %17 : vector<256x64xf32>
    %cst_14 = arith.constant 1.000000e+00 : f32
    %21 = vector.broadcast %cst_14 : f32 to vector<256x64xf32>
    %22 = arith.subf %20, %21 : vector<256x64xf32>
    %23 = arith.select %19, %17, %22 : vector<256x64xi1>, vector<256x64xf32>
    %c0_15 = arith.constant 0 : index
    %c0_16 = arith.constant 0 : index
    %24 = vector.load %arg8[%c0_15, %c0_16] : memref<256x64xf32, #tpu.memory_space<vmem>>, vector<256x64xf32>
    tpu.vector_store %arg8[%c0_15, %c0_16], %23 {strides = array<i32>} : memref<256x64xf32, #tpu.memory_space<vmem>>, vector<256x64xf32>,
    %c0_17 = arith.constant 0 : index
    %c0_18 = arith.constant 0 : index
    %25 = vector.load %arg4[%c0_17, %c0_18] : memref<64x64xf32, #tpu.memory_space<vmem>>, vector<64x64xf32>
    %cst_19 = arith.constant dense<0.000000e+00> : vector<256x64xf32>
    %26 = tpu.matmul %23, %25, %cst_19 {dimension_numbers = #tpu.dot_dimension_numbers<[1], [0], [0], [1], [0, 0, 1, 1], [], []>, precision = #tpu.contract_precision<fp32>} : vector<256x64xf32>, vector<64x64xf32>, vector<256x64xf32> -> vector<256x64xf32>
    %c2 = arith.constant 2 : index
    %c0_20 = arith.constant 0 : index
    %27 = vector.load %arg6[%c2, %c0_20] : memref<4x64xf32, #tpu.memory_space<vmem>>, vector<1x64xf32>
    %28 = vector.broadcast %27 : vector<1x64xf32> to vector<256x64xf32>
    %29 = arith.addf %26, %28 : vector<256x64xf32>
    %cst_21 = arith.constant 0.000000e+00 : f32
    %30 = vector.broadcast %cst_21 : f32 to vector<256x64xf32>
    %31 = arith.cmpf ogt, %29, %30 : vector<256x64xf32>
    %32 = math.exp %29 : vector<256x64xf32>
    %cst_22 = arith.constant 1.000000e+00 : f32
    %33 = vector.broadcast %cst_22 : f32 to vector<256x64xf32>
    %34 = arith.subf %32, %33 : vector<256x64xf32>
    %35 = arith.select %31, %29, %34 : vector<256x64xi1>, vector<256x64xf32>
    %c0_23 = arith.constant 0 : index
    %c0_24 = arith.constant 0 : index
    %36 = vector.load %arg9[%c0_23, %c0_24] : memref<256x64xf32, #tpu.memory_space<vmem>>, vector<256x64xf32>
    tpu.vector_store %arg9[%c0_23, %c0_24], %35 {strides = array<i32>} : memref<256x64xf32, #tpu.memory_space<vmem>>, vector<256x64xf32>,
    %c0_25 = arith.constant 0 : index
    %c0_26 = arith.constant 0 : index
    %37 = vector.load %arg5[%c0_25, %c0_26] : memref<64x64xf32, #tpu.memory_space<vmem>>, vector<64x64xf32>
    %cst_27 = arith.constant dense<0.000000e+00> : vector<256x64xf32>
    %38 = tpu.matmul %35, %37, %cst_27 {dimension_numbers = #tpu.dot_dimension_numbers<[1], [0], [0], [1], [0, 0, 1, 1], [], []>, precision = #tpu.contract_precision<fp32>} : vector<256x64xf32>, vector<64x64xf32>, vector<256x64xf32> -> vector<256x64xf32>
    %c3 = arith.constant 3 : index
    %c0_28 = arith.constant 0 : index
    %39 = vector.load %arg6[%c3, %c0_28] : memref<4x64xf32, #tpu.memory_space<vmem>>, vector<1x64xf32>
    %40 = vector.broadcast %39 : vector<1x64xf32> to vector<256x64xf32>
    %41 = arith.addf %38, %40 : vector<256x64xf32>
    %c0_29 = arith.constant 0 : index
    %c0_30 = arith.constant 0 : index
    %42 = vector.load %arg10[%c0_29, %c0_30] : memref<256x64xf32, #tpu.memory_space<vmem>>, vector<256x64xf32>
    tpu.vector_store %arg10[%c0_29, %c0_30], %41 {strides = array<i32>} : memref<256x64xf32, #tpu.memory_space<vmem>>, vector<256x64xf32>,
    return
  }
  func.func @transform_0(%arg0: i32) -> (i32, i32) {
    %c0_i32 = arith.constant 0 : i32
    %c0_i32_0 = arith.constant 0 : i32
    return %arg0, %c0_i32 : i32, i32
  }
  func.func @transform_1(%arg0: i32) -> (i32, i32) {
    %c0_i32 = arith.constant 0 : i32
    %c0_i32_0 = arith.constant 0 : i32
    %c0_i32_1 = arith.constant 0 : i32
    return %c0_i32, %c0_i32_0 : i32, i32
  }
  func.func @transform_2(%arg0: i32) -> (i32, i32) {
    %c0_i32 = arith.constant 0 : i32
    %c0_i32_0 = arith.constant 0 : i32
    %c0_i32_1 = arith.constant 0 : i32
    return %c0_i32, %c0_i32_0 : i32, i32
  }
  func.func @transform_3(%arg0: i32) -> (i32, i32) {
    %c0_i32 = arith.constant 0 : i32
    %c0_i32_0 = arith.constant 0 : i32
    %c0_i32_1 = arith.constant 0 : i32
    return %c0_i32, %c0_i32_0 : i32, i32
  }
  func.func @transform_4(%arg0: i32) -> (i32, i32) {
    %c0_i32 = arith.constant 0 : i32
    %c0_i32_0 = arith.constant 0 : i32
    %c0_i32_1 = arith.constant 0 : i32
    return %c0_i32, %c0_i32_0 : i32, i32
  }
  func.func @transform_5(%arg0: i32) -> (i32, i32) {
    %c0_i32 = arith.constant 0 : i32
    %c0_i32_0 = arith.constant 0 : i32
    %c0_i32_1 = arith.constant 0 : i32
    return %c0_i32, %c0_i32_0 : i32, i32
  }
  func.func @transform_6(%arg0: i32) -> (i32, i32) {
    %c0_i32 = arith.constant 0 : i32
    %c0_i32_0 = arith.constant 0 : i32
    return %arg0, %c0_i32 : i32, i32
  }
  func.func @transform_7(%arg0: i32) -> (i32, i32) {
    %c0_i32 = arith.constant 0 : i32
    %c0_i32_0 = arith.constant 0 : i32
    return %arg0, %c0_i32 : i32, i32
  }
  func.func @transform_8(%arg0: i32) -> (i32, i32) {
    %c0_i32 = arith.constant 0 : i32
    %c0_i32_0 = arith.constant 0 : i32
    return %arg0, %c0_i32 : i32, i32
  }
  func.func @transform_9(%arg0: i32) -> (i32, i32) {
    %c0_i32 = arith.constant 0 : i32
    %c0_i32_0 = arith.constant 0 : i32
    return %arg0, %c0_i32 : i32, i32
  }
}

</mosaic_0001>

<llo_original>
// kernel: full_band_encoder_forward.1
$region0: #{full_band_encoder_forward.1}
  #allocation0 [shape = 'u32[]', space=smem, size = 0x4, offset = 0x4, fixed_abs, tag = 'smem constant byte address 0x4 - core index']
  #allocation1 [shape = 'u32[144,128]{1,0:T(1,128)}', space=vmem, size = 0x12000, scoped, tag = 'internal scratch']
  %s0 = inlined_call_operand.vmem [shape: f32[256,66], index: 0, kind: input, shape index: {}]
  %s1 = inlined_call_operand.vmem [shape: f32[66,64], index: 1, kind: input, shape index: {}]
  %s2 = inlined_call_operand.vmem [shape: f32[64,64], index: 2, kind: input, shape index: {}]
  %s3 = inlined_call_operand.vmem [shape: f32[64,64], index: 3, kind: input, shape index: {}]
  %s4 = inlined_call_operand.vmem [shape: f32[64,64], index: 4, kind: input, shape index: {}]
  %s5 = inlined_call_operand.vmem [shape: f32[4,64], index: 5, kind: input, shape index: {}]
  %s6 = inlined_call_operand.vmem [shape: f32[256,64], index: 6, kind: output, shape index: {0}]
  %s7 = inlined_call_operand.vmem [shape: f32[256,64], index: 7, kind: output, shape index: {1}]
  %s8 = inlined_call_operand.vmem [shape: f32[256,64], index: 8, kind: output, shape index: {2}]
  %s9 = inlined_call_operand.vmem [shape: f32[256,64], index: 9, kind: output, shape index: {3}]
  %10 = xla_tuple %s6, %s7, %s8, %s9
  %s11 = sld [smem:[#allocation0]]
  $region58: #{full_band_encoder_forward.1} parent=0
    _
  %s13 = ssub.s32 1, %s11
  %s14 = scalar_select 0, %s13, %s11
  // Predicated region
  $region2: #{full_band_encoder_forward.1} parent=0 // pred_check
    _
  $region3: #{full_band_encoder_forward.1} parent=0 // pred_check_branch
    %16 = sbr.rel (0) target = $region5
  $region4: #{full_band_encoder_forward.1} parent=0 // pred_region
    _
  $region5: #{full_band_encoder_forward.1} parent=0 // pred_fallthru
    _
  // Predicated region
  $region6: #{full_band_encoder_forward.1} parent=0 // pred_check
    _
  $region7: #{full_band_encoder_forward.1} parent=0 // pred_check_branch
    %18 = sbr.rel (0) target = $region9
  $region8: #{full_band_encoder_forward.1} parent=0 // pred_region
    _
  $region9: #{full_band_encoder_forward.1} parent=0 // pred_fallthru
    _
  // Predicated region
  $region10: #{full_band_encoder_forward.1} parent=0 // pred_check
    _
  $region11: #{full_band_encoder_forward.1} parent=0 // pred_check_branch
    %20 = sbr.rel (0) target = $region13
  $region12: #{full_band_encoder_forward.1} parent=0 // pred_region
    _
  $region13: #{full_band_encoder_forward.1} parent=0 // pred_fallthru
    _
  // Predicated region
  $region14: #{full_band_encoder_forward.1} parent=0 // pred_check
    _
  $region15: #{full_band_encoder_forward.1} parent=0 // pred_check_branch
    %22 = sbr.rel (0) target = $region17
  $region16: #{full_band_encoder_forward.1} parent=0 // pred_region
    _
  $region17: #{full_band_encoder_forward.1} parent=0 // pred_fallthru
    _
  // Predicated region
  $region18: #{full_band_encoder_forward.1} parent=0 // pred_check
    _
  $region19: #{full_band_encoder_forward.1} parent=0 // pred_check_branch
    %24 = sbr.rel (0) target = $region21
  $region20: #{full_band_encoder_forward.1} parent=0 // pred_region
    _
  $region21: #{full_band_encoder_forward.1} parent=0 // pred_fallthru
    _
  // Predicated region
  $region22: #{full_band_encoder_forward.1} parent=0 // pred_check
    _
  $region23: #{full_band_encoder_forward.1} parent=0 // pred_check_branch
    %26 = sbr.rel (0) target = $region25
  $region24: #{full_band_encoder_forward.1} parent=0 // pred_region
    _
  $region25: #{full_band_encoder_forward.1} parent=0 // pred_fallthru
    _
  %v27 = vld [vmem:[%s0] sm:$0xff]
  %v28 = vld [vmem:[%s0 + $0x8] sm:$0xff]
  %v29 = vld [vmem:[%s0 + $0x10] sm:$0xff]
  %v30 = vld [vmem:[%s0 + $0x18] sm:$0xff]
  %v31 = vld [vmem:[%s0 + $0x20] sm:$0xff]
  %v32 = vld [vmem:[%s0 + $0x28] sm:$0xff]
  %v33 = vld [vmem:[%s0 + $0x30] sm:$0xff]
  %v34 = vld [vmem:[%s0 + $0x38] sm:$0xff]
  %v35 = vld [vmem:[%s0 + $0x40] sm:$0xff]
  %v36 = vld [vmem:[%s0 + $0x48] sm:$0xff]
  %v37 = vld [vmem:[%s0 + $0x50] sm:$0xff]
  %v38 = vld [vmem:[%s0 + $0x58] sm:$0xff]
  %v39 = vld [vmem:[%s0 + $0x60] sm:$0xff]
  %v40 = vld [vmem:[%s0 + $0x68] sm:$0xff]
  %v41 = vld [vmem:[%s0 + $0x70] sm:$0xff]
  %v42 = vld [vmem:[%s0 + $0x78] sm:$0xff]
  %v43 = vld [vmem:[%s0 + $0x80] sm:$0xff]
  %v44 = vld [vmem:[%s0 + $0x88] sm:$0xff]
  %v45 = vld [vmem:[%s0 + $0x90] sm:$0xff]
  %v46 = vld [vmem:[%s0 + $0x98] sm:$0xff]
  %v47 = vld [vmem:[%s0 + $0xa0] sm:$0xff]
  %v48 = vld [vmem:[%s0 + $0xa8] sm:$0xff]
  %v49 = vld [vmem:[%s0 + $0xb0] sm:$0xff]
  %v50 = vld [vmem:[%s0 + $0xb8] sm:$0xff]
  %v51 = vld [vmem:[%s0 + $0xc0] sm:$0xff]
  %v52 = vld [vmem:[%s0 + $0xc8] sm:$0xff]
  %v53 = vld [vmem:[%s0 + $0xd0] sm:$0xff]
  %v54 = vld [vmem:[%s0 + $0xd8] sm:$0xff]
  %v55 = vld [vmem:[%s0 + $0xe0] sm:$0xff]
  %v56 = vld [vmem:[%s0 + $0xe8] sm:$0xff]
  %v57 = vld [vmem:[%s0 + $0xf0] sm:$0xff]
  %v58 = vld [vmem:[%s0 + $0xf8] sm:$0xff]
  %v59 = vld [vmem:[%s1] sm:$0xff]
  %v60 = vld [vmem:[%s1 + $0x8] sm:$0xff]
  %v61 = vld [vmem:[%s1 + $0x10] sm:$0xff]
  %v62 = vld [vmem:[%s1 + $0x18] sm:$0xff]
  %v63 = vld [vmem:[%s1 + $0x20] sm:$0xff]
  %v64 = vld [vmem:[%s1 + $0x28] sm:$0xff]
  %v65 = vld [vmem:[%s1 + $0x30] sm:$0xff]
  %v66 = vld [vmem:[%s1 + $0x38] sm:$0xff]
  %v67 = vld [vmem:[%s1 + $0x40] sm:$0x3]
  %v68 = vld [vmem:[%s5] sm:$0x1]
  %v69 = vlaneseq
  %v70 = vshrl.u32 %v69, 7
  %v71 = vsub.s32 0, %v70
  %v72 = vrot.slane %v68, %v71
  %vm73 = vcmask 539648
  %v75 = vsel %vm73, %v27, 0
  %v78 = vsel %vm73, %v28, 0
  %v81 = vsel %vm73, %v29, 0
  %v84 = vsel %vm73, %v30, 0
  %v87 = vsel %vm73, %v31, 0
  %v90 = vsel %vm73, %v32, 0
  %v93 = vsel %vm73, %v33, 0
  %v96 = vsel %vm73, %v34, 0
  %v99 = vsel %vm73, %v35, 0
  %v102 = vsel %vm73, %v36, 0
  %v105 = vsel %vm73, %v37, 0
  %v108 = vsel %vm73, %v38, 0
  %v111 = vsel %vm73, %v39, 0
  %v114 = vsel %vm73, %v40, 0
  %v117 = vsel %vm73, %v41, 0
  %v120 = vsel %vm73, %v42, 0
  %v123 = vsel %vm73, %v43, 0
  %v126 = vsel %vm73, %v44, 0
  %v129 = vsel %vm73, %v45, 0
  %v132 = vsel %vm73, %v46, 0
  %v135 = vsel %vm73, %v47, 0
  %v138 = vsel %vm73, %v48, 0
  %v141 = vsel %vm73, %v49, 0
  %v144 = vsel %vm73, %v50, 0
  %v147 = vsel %vm73, %v51, 0
  %v150 = vsel %vm73, %v52, 0
  %v153 = vsel %vm73, %v53, 0
  %v156 = vsel %vm73, %v54, 0
  %v159 = vsel %vm73, %v55, 0
  %v162 = vsel %vm73, %v56, 0
  %v165 = vsel %vm73, %v57, 0
  %v168 = vsel %vm73, %v58, 0
  %vm170 = vcmask 1041408
  %v172 = vsel %vm170, %v67, 0
  %174 = vmatprep.subr.mxu0 0.0
  %v175 = vand.u32 %v59, 4294901760
  %176 = vmatpush1.msra.mxu0 %v175
  %177 = vmatprep.subr.mxu0 0.0
  %v178 = vand.u32 %v60, 4294901760
  %179 = vmatpush1.msra.mxu0 %v178
  %180 = vmatprep.subr.mxu0 0.0
  %v181 = vand.u32 %v61, 4294901760
  %182 = vmatpush1.msra.mxu0 %v181
  %183 = vmatprep.subr.mxu0 0.0
  %v184 = vand.u32 %v62, 4294901760
  %185 = vmatpush1.msra.mxu0 %v184
  %186 = vmatprep.subr.mxu0 0.0
  %v187 = vand.u32 %v63, 4294901760
  %188 = vmatpush1.msra.mxu0 %v187
  %189 = vmatprep.subr.mxu0 0.0
  %v190 = vand.u32 %v64, 4294901760
  %191 = vmatpush1.msra.mxu0 %v190
  %192 = vmatprep.subr.mxu0 0.0
  %v193 = vand.u32 %v65, 4294901760
  %194 = vmatpush1.msra.mxu0 %v193
  %195 = vmatprep.subr.mxu0 0.0
  %v196 = vand.u32 %v66, 4294901760
  %197 = vmatpush1.msra.mxu0 %v196
  %198 = vmatprep.subr.mxu0 0.0
  %v199 = vand.u32 %v172, 4294901760
  %200 = vmatpush1.msra.mxu0 %v199
  %201 = vmatprep.subr.mxu0 0.0
  %202 = vmatpush1.msra.mxu0 0.0
  %203 = vmatprep.subr.mxu0 0.0
  %204 = vmatpush1.msra.mxu0 0.0
  %205 = vmatprep.subr.mxu0 0.0
  %206 = vmatpush1.msra.mxu0 0.0
  %207 = vmatprep.subr.mxu0 0.0
  %208 = vmatpush1.msra.mxu0 0.0
  %209 = vmatprep.subr.mxu0 0.0
  %210 = vmatpush1.msra.mxu0 0.0
  %211 = vmatprep.subr.mxu0 0.0
  %212 = vmatpush1.msra.mxu0 0.0
  %213 = vmatprep.subr.mxu0 0.0
  %214 = vmatpush1.msra.mxu0 0.0
  %215 = vmatprep.subr.mxu0 0.0
  %216 = vmatpush1.msra.mxu0 0.0
  %217 = vmatprep.subr.mxu0 0.0
  %218 = vmatpush1.msra.mxu0 0.0
  %219 = vmatprep.subr.mxu0 0.0
  %220 = vmatpush1.msra.mxu0 0.0
  %221 = vmatprep.subr.mxu0 0.0
  %222 = vmatpush1.msra.mxu0 0.0
  %223 = vmatprep.subr.mxu0 0.0
  %224 = vmatpush1.msra.mxu0 0.0
  %225 = vmatprep.subr.mxu0 0.0
  %226 = vmatpush1.msra.mxu0 0.0
  %227 = vmatprep.subr.mxu0 0.0
  %228 = vmatpush1.msra.mxu0 0.0
  %229 = vmatprep.subr.mxu0 0.0
  %230 = vmatpush1.msra.mxu0 0.0
  %231 = vmatprep.subr.mxu0 0.0
  %232 = vmatpush1.msra.mxu0 0.0
  %233 = vmatprep.subr.mxu0 0.0
  %234 = vmatpush1.msra.mxu0 0.0
  %235 = vmatprep.subr.mxu0 0.0
  %236 = vmatpush1.msra.mxu0 0.0
  %237 = vmatprep.subr.mxu0 0.0
  %238 = vmatpush1.msra.mxu0 0.0
  %239 = vmatprep.subr.mxu0 0.0
  %240 = vmatpush1.msra.mxu0 0.0
  %241 = vmatprep.subr.mxu0 0.0
  %242 = vmatpush1.msra.mxu0 0.0
  %243 = vmatprep.subr.mxu0 0.0
  %244 = vmatpush1.msra.mxu0 0.0
  %245 = vmatprep.subr.mxu0 0.0
  %246 = vmatpush1.msra.mxu0 0.0
  %247 = vmatprep.mubr.f32.mxu0 0.0
  %v248 = vand.u32 %v75, 4294901760
  %v249 = vsub.f32 %v75, %v248
  %v250 = vand.u32 %v249, 4294901760
  %v251 = vsub.f32 %v249, %v250
  %v252 = vand.u32 %v251, 4294901760
  %253 = vmatmul.mubr.f32.gmra.mrb[0].mxu0 %v252
  %v254 = vpop.f32.mrb[0].mxu0
  %v255 = vadd.f32 %v72, %v254
  %v256 = vpop.f32.mrb[0].mxu0
  %257 = vmatprep.mubr.f32.mxu0 0.0
  %v258 = vand.u32 %v78, 4294901760
  %v259 = vsub.f32 %v78, %v258
  %v260 = vand.u32 %v259, 4294901760
  %v261 = vsub.f32 %v259, %v260
  %v262 = vand.u32 %v261, 4294901760
  %263 = vmatmul.mubr.f32.gmra.mrb[0].mxu0 %v262
  %v264 = vpop.f32.mrb[0].mxu0
  %v265 = vadd.f32 %v72, %v264
  %v266 = vpop.f32.mrb[0].mxu0
  %267 = vmatprep.mubr.f32.mxu0 0.0
  %v268 = vand.u32 %v81, 4294901760
  %v269 = vsub.f32 %v81, %v268
  %v270 = vand.u32 %v269, 4294901760
  %v271 = vsub.f32 %v269, %v270
  %v272 = vand.u32 %v271, 4294901760
  %273 = vmatmul.mubr.f32.gmra.mrb[0].mxu0 %v272
  %v274 = vpop.f32.mrb[0].mxu0
  %v275 = vadd.f32 %v72, %v274
  %v276 = vpop.f32.mrb[0].mxu0
  %277 = vmatprep.mubr.f32.mxu0 0.0
  %v278 = vand.u32 %v84, 4294901760
  %v279 = vsub.f32 %v84, %v278
  %v280 = vand.u32 %v279, 4294901760
  %v281 = vsub.f32 %v279, %v280
  %v282 = vand.u32 %v281, 4294901760
  %283 = vmatmul.mubr.f32.gmra.mrb[0].mxu0 %v282
  %v284 = vpop.f32.mrb[0].mxu0
  %v285 = vadd.f32 %v72, %v284
  %v286 = vpop.f32.mrb[0].mxu0
  %287 = vmatprep.mubr.f32.mxu0 0.0
  %v288 = vand.u32 %v87, 4294901760
  %v289 = vsub.f32 %v87, %v288
  %v290 = vand.u32 %v289, 4294901760
  %v291 = vsub.f32 %v289, %v290
  %v292 = vand.u32 %v291, 4294901760
  %293 = vmatmul.mubr.f32.gmra.mrb[0].mxu0 %v292
  %v294 = vpop.f32.mrb[0].mxu0
  %v295 = vadd.f32 %v72, %v294
  %v296 = vpop.f32.mrb[0].mxu0
  %297 = vmatprep.mubr.f32.mxu0 0.0
  %v298 = vand.u32 %v90, 4294901760
  %v299 = vsub.f32 %v90, %v298
  %v300 = vand.u32 %v299, 4294901760
  %v301 = vsub.f32 %v299, %v300
  %v302 = vand.u32 %v301, 4294901760
  %303 = vmatmul.mubr.f32.gmra.mrb[0].mxu0 %v302
  %v304 = vpop.f32.mrb[0].mxu0
  %v305 = vadd.f32 %v72, %v304
  %v306 = vpop.f32.mrb[0].mxu0
  %307 = vmatprep.mubr.f32.mxu0 0.0
  %v308 = vand.u32 %v93, 4294901760
  %v309 = vsub.f32 %v93, %v308
  %v310 = vand.u32 %v309, 4294901760
  %v311 = vsub.f32 %v309, %v310
  %v312 = vand.u32 %v311, 4294901760
  %313 = vmatmul.mubr.f32.gmra.mrb[0].mxu0 %v312
  %v314 = vpop.f32.mrb[0].mxu0
  %v315 = vadd.f32 %v72, %v314
  %v316 = vpop.f32.mrb[0].mxu0
  %317 = vmatprep.mubr.f32.mxu0 0.0
  %v318 = vand.u32 %v96, 4294901760
  %v319 = vsub.f32 %v96, %v318
  %v320 = vand.u32 %v319, 4294901760
  %v321 = vsub.f32 %v319, %v320
  %v322 = vand.u32 %v321, 4294901760
  %323 = vmatmul.mubr.f32.gmra.mrb[0].mxu0 %v322
  %v324 = vpop.f32.mrb[0].mxu0
  %v325 = vadd.f32 %v72, %v324
  %v326 = vpop.f32.mrb[0].mxu0
  %327 = vmatprep.mubr.f32.mxu0 0.0
  %v328 = vand.u32 %v99, 4294901760
  %v329 = vsub.f32 %v99, %v328
  %v330 = vand.u32 %v329, 4294901760
  %v331 = vsub.f32 %v329, %v330
  %v332 = vand.u32 %v331, 4294901760
  %333 = vmatmul.mubr.f32.gmra.mrb[0].mxu0 %v332
  %v334 = vpop.f32.mrb[0].mxu0
  %v335 = vadd.f32 %v72, %v334
  %v336 = vpop.f32.mrb[0].mxu0
  %337 = vmatprep.mubr.f32.mxu0 0.0
  %v338 = vand.u32 %v102, 4294901760
  %v339 = vsub.f32 %v102, %v338
  %v340 = vand.u32 %v339, 4294901760
  %v341 = vsub.f32 %v339, %v340
  %v342 = vand.u32 %v341, 4294901760
  %343 = vmatmul.mubr.f32.gmra.mrb[0].mxu0 %v342
  %v344 = vpop.f32.mrb[0].mxu0
  %v345 = vadd.f32 %v72, %v344
  %v346 = vpop.f32.mrb[0].mxu0
  %347 = vmatprep.mubr.f32.mxu0 0.0
  %v348 = vand.u32 %v105, 4294901760
  %v349 = vsub.f32 %v105, %v348
  %v350 = vand.u32 %v349, 4294901760
  %v351 = vsub.f32 %v349, %v350
  %v352 = vand.u32 %v351, 4294901760
  %353 = vmatmul.mubr.f32.gmra.mrb[0].mxu0 %v352
  %v354 = vpop.f32.mrb[0].mxu0
  %v355 = vadd.f32 %v72, %v354
  %v356 = vpop.f32.mrb[0].mxu0
  %357 = vmatprep.mubr.f32.mxu0 0.0
  %v358 = vand.u32 %v108, 4294901760
  %v359 = vsub.f32 %v108, %v358
  %v360 = vand.u32 %v359, 4294901760
  %v361 = vsub.f32 %v359, %v360
  %v362 = vand.u32 %v361, 4294901760
  %363 = vmatmul.mubr.f32.gmra.mrb[0].mxu0 %v362
  %v364 = vpop.f32.mrb[0].mxu0
  %v365 = vadd.f32 %v72, %v364
  %v366 = vpop.f32.mrb[0].mxu0
  %367 = vmatprep.mubr.f32.mxu0 0.0
  %v368 = vand.u32 %v111, 4294901760
  %v369 = vsub.f32 %v111, %v368
  %v370 = vand.u32 %v369, 4294901760
  %v371 = vsub.f32 %v369, %v370
  %v372 = vand.u32 %v371, 4294901760
  %373 = vmatmul.mubr.f32.gmra.mrb[0].mxu0 %v372
  %v374 = vpop.f32.mrb[0].mxu0
  %v375 = vadd.f32 %v72, %v374
  %v376 = vpop.f32.mrb[0].mxu0
  %377 = vmatprep.mubr.f32.mxu0 0.0
  %v378 = vand.u32 %v114, 4294901760
  %v379 = vsub.f32 %v114, %v378
  %v380 = vand.u32 %v379, 4294901760
  %v381 = vsub.f32 %v379, %v380
  %v382 = vand.u32 %v381, 4294901760
  %383 = vmatmul.mubr.f32.gmra.mrb[0].mxu0 %v382
  %v384 = vpop.f32.mrb[0].mxu0
  %v385 = vadd.f32 %v72, %v384
  %v386 = vpop.f32.mrb[0].mxu0
  %387 = vmatprep.mubr.f32.mxu0 0.0
  %v388 = vand.u32 %v117, 4294901760
  %v389 = vsub.f32 %v117, %v388
  %v390 = vand.u32 %v389, 4294901760
  %v391 = vsub.f32 %v389, %v390
  %v392 = vand.u32 %v391, 4294901760
  %393 = vmatmul.mubr.f32.gmra.mrb[0].mxu0 %v392
  %v394 = vpop.f32.mrb[0].mxu0
  %v395 = vadd.f32 %v72, %v394
  %v396 = vpop.f32.mrb[0].mxu0
  %397 = vmatprep.mubr.f32.mxu0 0.0
  %v398 = vand.u32 %v120, 4294901760
  %v399 = vsub.f32 %v120, %v398
  %v400 = vand.u32 %v399, 4294901760
  %v401 = vsub.f32 %v399, %v400
  %v402 = vand.u32 %v401, 4294901760
  %403 = vmatmul.mubr.f32.gmra.mrb[0].mxu0 %v402
  %v404 = vpop.f32.mrb[0].mxu0
  %v405 = vadd.f32 %v72, %v404
  %v406 = vpop.f32.mrb[0].mxu0
  %407 = vmatprep.mubr.f32.mxu0 0.0
  %v408 = vand.u32 %v123, 4294901760
  %v409 = vsub.f32 %v123, %v408
  %v410 = vand.u32 %v409, 4294901760
  %v411 = vsub.f32 %v409, %v410
  %v412 = vand.u32 %v411, 4294901760
  %413 = vmatmul.mubr.f32.gmra.mrb[0].mxu0 %v412
  %v414 = vpop.f32.mrb[0].mxu0
  %v415 = vadd.f32 %v72, %v414
  %v416 = vpop.f32.mrb[0].mxu0
  %417 = vmatprep.mubr.f32.mxu0 0.0
  %v418 = vand.u32 %v126, 4294901760
  %v419 = vsub.f32 %v126, %v418
  %v420 = vand.u32 %v419, 4294901760
  %v421 = vsub.f32 %v419, %v420
  %v422 = vand.u32 %v421, 4294901760
  %423 = vmatmul.mubr.f32.gmra.mrb[0].mxu0 %v422
  %v424 = vpop.f32.mrb[0].mxu0
  %v425 = vadd.f32 %v72, %v424
  %v426 = vpop.f32.mrb[0].mxu0
  %427 = vmatprep.mubr.f32.mxu0 0.0
  %v428 = vand.u32 %v129, 4294901760
  %v429 = vsub.f32 %v129, %v428
  %v430 = vand.u32 %v429, 4294901760
  %v431 = vsub.f32 %v429, %v430
  %v432 = vand.u32 %v431, 4294901760
  %433 = vmatmul.mubr.f32.gmra.mrb[0].mxu0 %v432
  %v434 = vpop.f32.mrb[0].mxu0
  %v435 = vadd.f32 %v72, %v434
  %v436 = vpop.f32.mrb[0].mxu0
  %437 = vmatprep.mubr.f32.mxu0 0.0
  %v438 = vand.u32 %v132, 4294901760
  %v439 = vsub.f32 %v132, %v438
  %v440 = vand.u32 %v439, 4294901760
  %v441 = vsub.f32 %v439, %v440
  %v442 = vand.u32 %v441, 4294901760
  %443 = vmatmul.mubr.f32.gmra.mrb[0].mxu0 %v442
  %v444 = vpop.f32.mrb[0].mxu0
  %v445 = vadd.f32 %v72, %v444
  %v446 = vpop.f32.mrb[0].mxu0
  %447 = vmatprep.mubr.f32.mxu0 0.0
  %v448 = vand.u32 %v135, 4294901760
  %v449 = vsub.f32 %v135, %v448
  %v450 = vand.u32 %v449, 4294901760
  %v451 = vsub.f32 %v449, %v450
  %v452 = vand.u32 %v451, 4294901760
  %453 = vmatmul.mubr.f32.gmra.mrb[0].mxu0 %v452
  %v454 = vpop.f32.mrb[0].mxu0
  %v455 = vadd.f32 %v72, %v454
  %v456 = vpop.f32.mrb[0].mxu0
  %457 = vmatprep.mubr.f32.mxu0 0.0
  %v458 = vand.u32 %v138, 4294901760
  %v459 = vsub.f32 %v138, %v458
  %v460 = vand.u32 %v459, 4294901760
  %v461 = vsub.f32 %v459, %v460
  %v462 = vand.u32 %v461, 4294901760
  %463 = vmatmul.mubr.f32.gmra.mrb[0].mxu0 %v462
  %v464 = vpop.f32.mrb[0].mxu0
  %v465 = vadd.f32 %v72, %v464
  %v466 = vpop.f32.mrb[0].mxu0
  %467 = vmatprep.mubr.f32.mxu0 0.0
  %v468 = vand.u32 %v141, 4294901760
  %v469 = vsub.f32 %v141, %v468
  %v470 = vand.u32 %v469, 4294901760
  %v471 = vsub.f32 %v469, %v470
  %v472 = vand.u32 %v471, 4294901760
  %473 = vmatmul.mubr.f32.gmra.mrb[0].mxu0 %v472
  %v474 = vpop.f32.mrb[0].mxu0
  %v475 = vadd.f32 %v72, %v474
  %v476 = vpop.f32.mrb[0].mxu0
  %477 = vmatprep.mubr.f32.mxu0 0.0
  %v478 = vand.u32 %v144, 4294901760
  %v479 = vsub.f32 %v144, %v478
  %v480 = vand.u32 %v479, 4294901760
  %v481 = vsub.f32 %v479, %v480
  %v482 = vand.u32 %v481, 4294901760
  %483 = vmatmul.mubr.f32.gmra.mrb[0].mxu0 %v482
  %v484 = vpop.f32.mrb[0].mxu0
  %v485 = vadd.f32 %v72, %v484
  %v486 = vpop.f32.mrb[0].mxu0
  %487 = vmatprep.mubr.f32.mxu0 0.0
  %v488 = vand.u32 %v147, 4294901760
  %v489 = vsub.f32 %v147, %v488
  %v490 = vand.u32 %v489, 4294901760
  %v491 = vsub.f32 %v489, %v490
  %v492 = vand.u32 %v491, 4294901760
  %493 = vmatmul.mubr.f32.gmra.mrb[0].mxu0 %v492
  %v494 = vpop.f32.mrb[0].mxu0
  %v495 = vadd.f32 %v72, %v494
  %v496 = vpop.f32.mrb[0].mxu0
  %497 = vmatprep.mubr.f32.mxu0 0.0
  %v498 = vand.u32 %v150, 4294901760
  %v499 = vsub.f32 %v150, %v498
  %v500 = vand.u32 %v499, 4294901760
  %v501 = vsub.f32 %v499, %v500
  %v502 = vand.u32 %v501, 4294901760
  %503 = vmatmul.mubr.f32.gmra.mrb[0].mxu0 %v502
  %v504 = vpop.f32.mrb[0].mxu0
  %v505 = vadd.f32 %v72, %v504
  %v506 = vpop.f32.mrb[0].mxu0
  %507 = vmatprep.mubr.f32.mxu0 0.0
  %v508 = vand.u32 %v153, 4294901760
  %v509 = vsub.f32 %v153, %v508
  %v510 = vand.u32 %v509, 4294901760
  %v511 = vsub.f32 %v509, %v510
  %v512 = vand.u32 %v511, 4294901760
  %513 = vmatmul.mubr.f32.gmra.mrb[0].mxu0 %v512
  %v514 = vpop.f32.mrb[0].mxu0
  %v515 = vadd.f32 %v72, %v514
  %v516 = vpop.f32.mrb[0].mxu0
  %517 = vmatprep.mubr.f32.mxu0 0.0
  %v518 = vand.u32 %v156, 4294901760
  %v519 = vsub.f32 %v156, %v518
  %v520 = vand.u32 %v519, 4294901760
  %v521 = vsub.f32 %v519, %v520
  %v522 = vand.u32 %v521, 4294901760
  %523 = vmatmul.mubr.f32.gmra.mrb[0].mxu0 %v522
  %v524 = vpop.f32.mrb[0].mxu0
  %v525 = vadd.f32 %v72, %v524
  %v526 = vpop.f32.mrb[0].mxu0
  %527 = vmatprep.mubr.f32.mxu0 0.0
  %v528 = vand.u32 %v159, 4294901760
  %v529 = vsub.f32 %v159, %v528
  %v530 = vand.u32 %v529, 4294901760
  %v531 = vsub.f32 %v529, %v530
  %v532 = vand.u32 %v531, 4294901760
  %533 = vmatmul.mubr.f32.gmra.mrb[0].mxu0 %v532
  %v534 = vpop.f32.mrb[0].mxu0
  %v535 = vadd.f32 %v72, %v534
  %v536 = vpop.f32.mrb[0].mxu0
  %537 = vmatprep.mubr.f32.mxu0 0.0
  %v538 = vand.u32 %v162, 4294901760
  %v539 = vsub.f32 %v162, %v538
  %v540 = vand.u32 %v539, 4294901760
  %v541 = vsub.f32 %v539, %v540
  %v542 = vand.u32 %v541, 4294901760
  %543 = vmatmul.mubr.f32.gmra.mrb[0].mxu0 %v542
  %v544 = vpop.f32.mrb[0].mxu0
  %v545 = vadd.f32 %v72, %v544
  %v546 = vpop.f32.mrb[0].mxu0
  %547 = vmatprep.mubr.f32.mxu0 0.0
  %v548 = vand.u32 %v165, 4294901760
  %v549 = vsub.f32 %v165, %v548
  %v550 = vand.u32 %v549, 4294901760
  %v551 = vsub.f32 %v549, %v550
  %v552 = vand.u32 %v551, 4294901760
  %553 = vmatmul.mubr.f32.gmra.mrb[0].mxu0 %v552
  %v554 = vpop.f32.mrb[0].mxu0
  %v555 = vadd.f32 %v72, %v554
  %v556 = vpop.f32.mrb[0].mxu0
  %557 = vmatprep.mubr.f32.mxu0 0.0
  %v558 = vand.u32 %v168, 4294901760
  %v559 = vsub.f32 %v168, %v558
  %v560 = vand.u32 %v559, 4294901760
  %v561 = vsub.f32 %v559, %v560
  %v562 = vand.u32 %v561, 4294901760
  %563 = vmatmul.mubr.f32.gmra.mrb[0].mxu0 %v562
  %v564 = vpop.f32.mrb[0].mxu0
  %v565 = vadd.f32 %v72, %v564
  %v566 = vpop.f32.mrb[0].mxu0
  %567 = vdwg.mxu0
  %568 = vmatprep.subr.mxu0 0.0
  %v569 = vand.u32 %v59, 4294901760
  %v570 = vsub.f32 %v59, %v569
  %v571 = vand.u32 %v570, 4294901760
  %v572 = vsub.f32 %v570, %v571
  %v573 = vand.u32 %v572, 4294901760
  %574 = vmatpush1.msra.mxu0 %v573
  %575 = vmatprep.subr.mxu0 0.0
  %v576 = vand.u32 %v60, 4294901760
  %v577 = vsub.f32 %v60, %v576
  %v578 = vand.u32 %v577, 4294901760
  %v579 = vsub.f32 %v577, %v578
  %v580 = vand.u32 %v579, 4294901760
  %581 = vmatpush1.msra.mxu0 %v580
  %582 = vmatprep.subr.mxu0 0.0
  %v583 = vand.u32 %v61, 4294901760
  %v584 = vsub.f32 %v61, %v583
  %v585 = vand.u32 %v584, 4294901760
  %v586 = vsub.f32 %v584, %v585
  %v587 = vand.u32 %v586, 4294901760
  %588 = vmatpush1.msra.mxu0 %v587
  %589 = vmatprep.subr.mxu0 0.0
  %v590 = vand.u32 %v62, 4294901760
  %v591 = vsub.f32 %v62, %v590
  %v592 = vand.u32 %v591, 4294901760
  %v593 = vsub.f32 %v591, %v592
  %v594 = vand.u32 %v593, 4294901760
  %595 = vmatpush1.msra.mxu0 %v594
  %596 = vmatprep.subr.mxu0 0.0
  %v597 = vand.u32 %v63, 4294901760
  %v598 = vsub.f32 %v63, %v597
  %v599 = vand.u32 %v598, 4294901760
  %v600 = vsub.f32 %v598, %v599
  %v601 = vand.u32 %v600, 4294901760
  %602 = vmatpush1.msra.mxu0 %v601
  %603 = vmatprep.subr.mxu0 0.0
  %v604 = vand.u32 %v64, 4294901760
  %v605 = vsub.f32 %v64, %v604
  %v606 = vand.u32 %v605, 4294901760
  %v607 = vsub.f32 %v605, %v606
  %v608 = vand.u32 %v607, 4294901760
  %609 = vmatpush1.msra.mxu0 %v608
  %610 = vmatprep.subr.mxu0 0.0
  %v611 = vand.u32 %v65, 4294901760
  %v612 = vsub.f32 %v65, %v611
  %v613 = vand.u32 %v612, 4294901760
  %v614 = vsub.f32 %v612, %v613
  %v615 = vand.u32 %v614, 4294901760
  %616 = vmatpush1.msra.mxu0 %v615
  %617 = vmatprep.subr.mxu0 0.0
  %v618 = vand.u32 %v66, 4294901760
  %v619 = vsub.f32 %v66, %v618
  %v620 = vand.u32 %v619, 4294901760
  %v621 = vsub.f32 %v619, %v620
  %v622 = vand.u32 %v621, 4294901760
  %623 = vmatpush1.msra.mxu0 %v622
  %624 = vmatprep.subr.mxu0 0.0
  %v625 = vand.u32 %v172, 4294901760
  %v626 = vsub.f32 %v172, %v625
  %v627 = vand.u32 %v626, 4294901760
  %v628 = vsub.f32 %v626, %v627
  %v629 = vand.u32 %v628, 4294901760
  %630 = vmatpush1.msra.mxu0 %v629
  %631 = vmatprep.subr.mxu0 0.0
  %632 = vmatpush1.msra.mxu0 0.0
  %633 = vmatprep.subr.mxu0 0.0
  %634 = vmatpush1.msra.mxu0 0.0
  %635 = vmatprep.subr.mxu0 0.0
  %636 = vmatpush1.msra.mxu0 0.0
  %637 = vmatprep.subr.mxu0 0.0
  %638 = vmatpush1.msra.mxu0 0.0
  %639 = vmatprep.subr.mxu0 0.0
  %640 = vmatpush1.msra.mxu0 0.0
  %641 = vmatprep.subr.mxu0 0.0
  %642 = vmatpush1.msra.mxu0 0.0
  %643 = vmatprep.subr.mxu0 0.0
  %644 = vmatpush1.msra.mxu0 0.0
  %645 = vmatprep.subr.mxu0 0.0
  %646 = vmatpush1.msra.mxu0 0.0
  %647 = vmatprep.subr.mxu0 0.0
  %648 = vmatpush1.msra.mxu0 0.0
  %649 = vmatprep.subr.mxu0 0.0
  %650 = vmatpush1.msra.mxu0 0.0
  %651 = vmatprep.subr.mxu0 0.0
  %652 = vmatpush1.msra.mxu0 0.0
  %653 = vmatprep.subr.mxu0 0.0
  %654 = vmatpush1.msra.mxu0 0.0
  %655 = vmatprep.subr.mxu0 0.0
  %656 = vmatpush1.msra.mxu0 0.0
  %657 = vmatprep.subr.mxu0 0.0
  %658 = vmatpush1.msra.mxu0 0.0
  %659 = vmatprep.subr.mxu0 0.0
  %660 = vmatpush1.msra.mxu0 0.0
  %661 = vmatprep.subr.mxu0 0.0
  %662 = vmatpush1.msra.mxu0 0.0
  %663 = vmatprep.subr.mxu0 0.0
  %664 = vmatpush1.msra.mxu0 0.0
  %665 = vmatprep.subr.mxu0 0.0
  %666 = vmatpush1.msra.mxu0 0.0
  %667 = vmatprep.subr.mxu0 0.0
  %668 = vmatpush1.msra.mxu0 0.0
  %669 = vmatprep.subr.mxu0 0.0
  %670 = vmatpush1.msra.mxu0 0.0
  %671 = vmatprep.subr.mxu0 0.0
  %672 = vmatpush1.msra.mxu0 0.0
  %673 = vmatprep.subr.mxu0 0.0
  %674 = vmatpush1.msra.mxu0 0.0
  %675 = vmatprep.subr.mxu0 0.0
  %676 = vmatpush1.msra.mxu0 0.0
  %677 = vmatprep.mubr.f32.mxu0 0.0
  %v678 = vand.u32 %v75, 4294901760
  %679 = vmatmul.mubr.f32.gmra.mrb[0].mxu0 %v678
  %v680 = vpop.f32.mrb[0].mxu0
  %v681 = vadd.f32 %v255, %v680
  %v682 = vpop.f32.mrb[0].mxu0
  %683 = vmatprep.mubr.f32.mxu0 0.0
  %v684 = vand.u32 %v78, 4294901760
  %685 = vmatmul.mubr.f32.gmra.mrb[0].mxu0 %v684
  %v686 = vpop.f32.mrb[0].mxu0
  %v687 = vadd.f32 %v265, %v686
  %v688 = vpop.f32.mrb[0].mxu0
  %689 = vmatprep.mubr.f32.mxu0 0.0
  %v690 = vand.u32 %v81, 4294901760
  %691 = vmatmul.mubr.f32.gmra.mrb[0].mxu0 %v690
  %v692 = vpop.f32.mrb[0].mxu0
  %v693 = vadd.f32 %v275, %v692
  %v694 = vpop.f32.mrb[0].mxu0
  %695 = vmatprep.mubr.f32.mxu0 0.0
  %v696 = vand.u32 %v84, 4294901760
  %697 = vmatmul.mubr.f32.gmra.mrb[0].mxu0 %v696
  %v698 = vpop.f32.mrb[0].mxu0
  %v699 = vadd.f32 %v285, %v698
  %v700 = vpop.f32.mrb[0].mxu0
  %701 = vmatprep.mubr.f32.mxu0 0.0
  %v702 = vand.u32 %v87, 4294901760
  %703 = vmatmul.mubr.f32.gmra.mrb[0].mxu0 %v702
  %v704 = vpop.f32.mrb[0].mxu0
  %v705 = vadd.f32 %v295, %v704
  %v706 = vpop.f32.mrb[0].mxu0
  %707 = vmatprep.mubr.f32.mxu0 0.0
  %v708 = vand.u32 %v90, 4294901760
  %709 = vmatmul.mubr.f32.gmra.mrb[0].mxu0 %v708
  %v710 = vpop.f32.mrb[0].mxu0
  %v711 = vadd.f32 %v305, %v710
  %v712 = vpop.f32.mrb[0].mxu0
  %713 = vmatprep.mubr.f32.mxu0 0.0
  %v714 = vand.u32 %v93, 4294901760
  %715 = vmatmul.mubr.f32.gmra.mrb[0].mxu0 %v714
  %v716 = vpop.f32.mrb[0].mxu0
  %v717 = vadd.f32 %v315, %v716
  %v718 = vpop.f32.mrb[0].mxu0
  %719 = vmatprep.mubr.f32.mxu0 0.0
  %v720 = vand.u32 %v96, 4294901760
  %721 = vmatmul.mubr.f32.gmra.mrb[0].mxu0 %v720
  %v722 = vpop.f32.mrb[0].mxu0
  %v723 = vadd.f32 %v325, %v722
  %v724 = vpop.f32.mrb[0].mxu0
  %725 = vmatprep.mubr.f32.mxu0 0.0
  %v726 = vand.u32 %v99, 4294901760
  %727 = vmatmul.mubr.f32.gmra.mrb[0].mxu0 %v726
  %v728 = vpop.f32.mrb[0].mxu0
  %v729 = vadd.f32 %v335, %v728
  %v730 = vpop.f32.mrb[0].mxu0
  %731 = vmatprep.mubr.f32.mxu0 0.0
  %v732 = vand.u32 %v102, 4294901760
  %733 = vmatmul.mubr.f32.gmra.mrb[0].mxu0 %v732
  %v734 = vpop.f32.mrb[0].mxu0
  %v735 = vadd.f32 %v345, %v734
  %v736 = vpop.f32.mrb[0].mxu0
  %737 = vmatprep.mubr.f32.mxu0 0.0
  %v738 = vand.u32 %v105, 4294901760
  %739 = vmatmul.mubr.f32.gmra.mrb[0].mxu0 %v738
  %v740 = vpop.f32.mrb[0].mxu0
  %v741 = vadd.f32 %v355, %v740
  %v742 = vpop.f32.mrb[0].mxu0
  %743 = vmatprep.mubr.f32.mxu0 0.0
  %v744 = vand.u32 %v108, 4294901760
  %745 = vmatmul.mubr.f32.gmra.mrb[0].mxu0 %v744
  %v746 = vpop.f32.mrb[0].mxu0
  %v747 = vadd.f32 %v365, %v746
  %v748 = vpop.f32.mrb[0].mxu0
  %749 = vmatprep.mubr.f32.mxu0 0.0
  %v750 = vand.u32 %v111, 4294901760
  %751 = vmatmul.mubr.f32.gmra.mrb[0].mxu0 %v750
  %v752 = vpop.f32.mrb[0].mxu0
  %v753 = vadd.f32 %v375, %v752
  %v754 = vpop.f32.mrb[0].mxu0
  %755 = vmatprep.mubr.f32.mxu0 0.0
  %v756 = vand.u32 %v114, 4294901760
  %757 = vmatmul.mubr.f32.gmra.mrb[0].mxu0 %v756
  %v758 = vpop.f32.mrb[0].mxu0
  %v759 = vadd.f32 %v385, %v758
  %v760 = vpop.f32.mrb[0].mxu0
  %761 = vmatprep.mubr.f32.mxu0 0.0
  %v762 = vand.u32 %v117, 4294901760
  %763 = vmatmul.mubr.f32.gmra.mrb[0].mxu0 %v762
  %v764 = vpop.f32.mrb[0].mxu0
  %v765 = vadd.f32 %v395, %v764
  %v766 = vpop.f32.mrb[0].mxu0
  %767 = vmatprep.mubr.f32.mxu0 0.0
  %v768 = vand.u32 %v120, 4294901760
  %769 = vmatmul.mubr.f32.gmra.mrb[0].mxu0 %v768
  %v770 = vpop.f32.mrb[0].mxu0
  %v771 = vadd.f32 %v405, %v770
  %v772 = vpop.f32.mrb[0].mxu0
  %773 = vmatprep.mubr.f32.mxu0 0.0
  %v774 = vand.u32 %v123, 4294901760
  %775 = vmatmul.mubr.f32.gmra.mrb[0].mxu0 %v774
  %v776 = vpop.f32.mrb[0].mxu0
  %v777 = vadd.f32 %v415, %v776
  %v778 = vpop.f32.mrb[0].mxu0
  %779 = vmatprep.mubr.f32.mxu0 0.0
  %v780 = vand.u32 %v126, 4294901760
  %781 = vmatmul.mubr.f32.gmra.mrb[0].mxu0 %v780
  %v782 = vpop.f32.mrb[0].mxu0
  %v783 = vadd.f32 %v425, %v782
  %v784 = vpop.f32.mrb[0].mxu0
  %785 = vmatprep.mubr.f32.mxu0 0.0
  %v786 = vand.u32 %v129, 4294901760
  %787 = vmatmul.mubr.f32.gmra.mrb[0].mxu0 %v786
  %v788 = vpop.f32.mrb[0].mxu0
  %v789 = vadd.f32 %v435, %v788
  %v790 = vpop.f32.mrb[0].mxu0
  %791 = vmatprep.mubr.f32.mxu0 0.0
  %v792 = vand.u32 %v132, 4294901760
  %793 = vmatmul.mubr.f32.gmra.mrb[0].mxu0 %v792
  %v794 = vpop.f32.mrb[0].mxu0
  %v795 = vadd.f32 %v445, %v794
  %v796 = vpop.f32.mrb[0].mxu0
  %797 = vmatprep.mubr.f32.mxu0 0.0
  %v798 = vand.u32 %v135, 4294901760
  %799 = vmatmul.mubr.f32.gmra.mrb[0].mxu0 %v798
  %v800 = vpop.f32.mrb[0].mxu0
  %v801 = vadd.f32 %v455, %v800
  %v802 = vpop.f32.mrb[0].mxu0
  %803 = vmatprep.mubr.f32.mxu0 0.0
  %v804 = vand.u32 %v138, 4294901760
  %805 = vmatmul.mubr.f32.gmra.mrb[0].mxu0 %v804
  %v806 = vpop.f32.mrb[0].mxu0
  %v807 = vadd.f32 %v465, %v806
  %v808 = vpop.f32.mrb[0].mxu0
  %809 = vmatprep.mubr.f32.mxu0 0.0
  %v810 = vand.u32 %v141, 4294901760
  %811 = vmatmul.mubr.f32.gmra.mrb[0].mxu0 %v810
  %v812 = vpop.f32.mrb[0].mxu0
  %v813 = vadd.f32 %v475, %v812
  %v814 = vpop.f32.mrb[0].mxu0
  %815 = vmatprep.mubr.f32.mxu0 0.0
  %v816 = vand.u32 %v144, 4294901760
  %817 = vmatmul.mubr.f32.gmra.mrb[0].mxu0 %v816
  %v818 = vpop.f32.mrb[0].mxu0
  %v819 = vadd.f32 %v485, %v818
  %v820 = vpop.f32.mrb[0].mxu0
  %821 = vmatprep.mubr.f32.mxu0 0.0
  %v822 = vand.u32 %v147, 4294901760
  %823 = vmatmul.mubr.f32.gmra.mrb[0].mxu0 %v822
  %v824 = vpop.f32.mrb[0].mxu0
  %v825 = vadd.f32 %v495, %v824
  %v826 = vpop.f32.mrb[0].mxu0
  %827 = vmatprep.mubr.f32.mxu0 0.0
  %v828 = vand.u32 %v150, 4294901760
  %829 = vmatmul.mubr.f32.gmra.mrb[0].mxu0 %v828
  %v830 = vpop.f32.mrb[0].mxu0
  %v831 = vadd.f32 %v505, %v830
  %v832 = vpop.f32.mrb[0].mxu0
  %833 = vmatprep.mubr.f32.mxu0 0.0
  %v834 = vand.u32 %v153, 4294901760
  %835 = vmatmul.mubr.f32.gmra.mrb[0].mxu0 %v834
  %v836 = vpop.f32.mrb[0].mxu0
  %v837 = vadd.f32 %v515, %v836
  %v838 = vpop.f32.mrb[0].mxu0
  %839 = vmatprep.mubr.f32.mxu0 0.0
  %v840 = vand.u32 %v156, 4294901760
  %841 = vmatmul.mubr.f32.gmra.mrb[0].mxu0 %v840
  %v842 = vpop.f32.mrb[0].mxu0
  %v843 = vadd.f32 %v525, %v842
  %v844 = vpop.f32.mrb[0].mxu0
  %845 = vmatprep.mubr.f32.mxu0 0.0
  %v846 = vand.u32 %v159, 4294901760
  %847 = vmatmul.mubr.f32.gmra.mrb[0].mxu0 %v846
  %v848 = vpop.f32.mrb[0].mxu0
  %v849 = vadd.f32 %v535, %v848
  %v850 = vpop.f32.mrb[0].mxu0
  %851 = vmatprep.mubr.f32.mxu0 0.0
  %v852 = vand.u32 %v162, 4294901760
  %853 = vmatmul.mubr.f32.gmra.mrb[0].mxu0 %v852
  %v854 = vpop.f32.mrb[0].mxu0
  %v855 = vadd.f32 %v545, %v854
  %v856 = vpop.f32.mrb[0].mxu0
  %857 = vmatprep.mubr.f32.mxu0 0.0
  %v858 = vand.u32 %v165, 4294901760
  %859 = vmatmul.mubr.f32.gmra.mrb[0].mxu0 %v858
  %v860 = vpop.f32.mrb[0].mxu0
  %v861 = vadd.f32 %v555, %v860
  %v862 = vpop.f32.mrb[0].mxu0
  %863 = vmatprep.mubr.f32.mxu0 0.0
  %v864 = vand.u32 %v168, 4294901760
  %865 = vmatmul.mubr.f32.gmra.mrb[0].mxu0 %v864
  %v866 = vpop.f32.mrb[0].mxu0
  %v867 = vadd.f32 %v565, %v866
  %v868 = vpop.f32.mrb[0].mxu0
  %869 = vdwg.mxu0
  %870 = vmatprep.subr.mxu0 0.0
  %v871 = vand.u32 %v59, 4294901760
  %v872 = vsub.f32 %v59, %v871
  %873 = vmatpush1.msra.mxu0 %v872
  %874 = vmatprep.subr.mxu0 0.0
  %v875 = vand.u32 %v60, 4294901760
  %v876 = vsub.f32 %v60, %v875
  %877 = vmatpush1.msra.mxu0 %v876
  %878 = vmatprep.subr.mxu0 0.0
  %v879 = vand.u32 %v61, 4294901760
  %v880 = vsub.f32 %v61, %v879
  %881 = vmatpush1.msra.mxu0 %v880
  %882 = vmatprep.subr.mxu0 0.0
  %v883 = vand.u32 %v62, 4294901760
  %v884 = vsub.f32 %v62, %v883
  %885 = vmatpush1.msra.mxu0 %v884
  %886 = vmatprep.subr.mxu0 0.0
  %v887 = vand.u32 %v63, 4294901760
  %v888 = vsub.f32 %v63, %v887
  %889 = vmatpush1.msra.mxu0 %v888
  %890 = vmatprep.subr.mxu0 0.0
  %v891 = vand.u32 %v64, 4294901760
  %v892 = vsub.f32 %v64, %v891
  %893 = vmatpush1.msra.mxu0 %v892
  %894 = vmatprep.subr.mxu0 0.0
  %v895 = vand.u32 %v65, 4294901760
  %v896 = vsub.f32 %v65, %v895
  %897 = vmatpush1.msra.mxu0 %v896
  %898 = vmatprep.subr.mxu0 0.0
  %v899 = vand.u32 %v66, 4294901760
  %v900 = vsub.f32 %v66, %v899
  %901 = vmatpush1.msra.mxu0 %v900
  %902 = vmatprep.subr.mxu0 0.0
  %v903 = vand.u32 %v172, 4294901760
  %v904 = vsub.f32 %v172, %v903
  %905 = vmatpush1.msra.mxu0 %v904
  %906 = vmatprep.subr.mxu0 0.0
  %907 = vmatpush1.msra.mxu0 0.0
  %908 = vmatprep.subr.mxu0 0.0
  %909 = vmatpush1.msra.mxu0 0.0
  %910 = vmatprep.subr.mxu0 0.0
  %911 = vmatpush1.msra.mxu0 0.0
  %912 = vmatprep.subr.mxu0 0.0
  %913 = vmatpush1.msra.mxu0 0.0
  %914 = vmatprep.subr.mxu0 0.0
  %915 = vmatpush1.msra.mxu0 0.0
  %916 = vmatprep.subr.mxu0 0.0
  %917 = vmatpush1.msra.mxu0 0.0
  %918 = vmatprep.subr.mxu0 0.0
  %919 = vmatpush1.msra.mxu0 0.0
  %920 = vmatprep.subr.mxu0 0.0
  %921 = vmatpush1.msra.mxu0 0.0
  %922 = vmatprep.subr.mxu0 0.0
  %923 = vmatpush1.msra.mxu0 0.0
  %924 = vmatprep.subr.mxu0 0.0
  %925 = vmatpush1.msra.mxu0 0.0
  %926 = vmatprep.subr.mxu0 0.0
  %927 = vmatpush1.msra.mxu0 0.0
  %928 = vmatprep.subr.mxu0 0.0
  %929 = vmatpush1.msra.mxu0 0.0
  %930 = vmatprep.subr.mxu0 0.0
  %931 = vmatpush1.msra.mxu0 0.0
  %932 = vmatprep.subr.mxu0 0.0
  %933 = vmatpush1.msra.mxu0 0.0
  %934 = vmatprep.subr.mxu0 0.0
  %935 = vmatpush1.msra.mxu0 0.0
  %936 = vmatprep.subr.mxu0 0.0
  %937 = vmatpush1.msra.mxu0 0.0
  %938 = vmatprep.subr.mxu0 0.0
  %939 = vmatpush1.msra.mxu0 0.0
  %940 = vmatprep.subr.mxu0 0.0
  %941 = vmatpush1.msra.mxu0 0.0
  %942 = vmatprep.subr.mxu0 0.0
  %943 = vmatpush1.msra.mxu0 0.0
  %944 = vmatprep.subr.mxu0 0.0
  %945 = vmatpush1.msra.mxu0 0.0
  %946 = vmatprep.subr.mxu0 0.0
  %947 = vmatpush1.msra.mxu0 0.0
  %948 = vmatprep.subr.mxu0 0.0
  %949 = vmatpush1.msra.mxu0 0.0
  %950 = vmatprep.subr.mxu0 0.0
  %951 = vmatpush1.msra.mxu0 0.0
  %952 = vmatprep.mubr.f32.mxu0 0.0
  %v953 = vand.u32 %v75, 4294901760
  %v954 = vsub.f32 %v75, %v953
  %955 = vmatmul.mubr.f32.gmra.mrb[0].mxu0 %v954
  %v956 = vpop.f32.mrb[0].mxu0
  %v957 = vadd.f32 %v681, %v956
  %v958 = vpop.f32.mrb[0].mxu0
  %959 = vmatprep.mubr.f32.mxu0 0.0
  %v960 = vand.u32 %v78, 4294901760
  %v961 = vsub.f32 %v78, %v960
  %962 = vmatmul.mubr.f32.gmra.mrb[0].mxu0 %v961
  %v963 = vpop.f32.mrb[0].mxu0
  %v964 = vadd.f32 %v687, %v963
  %v965 = vpop.f32.mrb[0].mxu0
  %966 = vmatprep.mubr.f32.mxu0 0.0
  %v967 = vand.u32 %v81, 4294901760
  %v968 = vsub.f32 %v81, %v967
  %969 = vmatmul.mubr.f32.gmra.mrb[0].mxu0 %v968
  %v970 = vpop.f32.mrb[0].mxu0
  %v971 = vadd.f32 %v693, %v970
  %v972 = vpop.f32.mrb[0].mxu0
  %973 = vmatprep.mubr.f32.mxu0 0.0
  %v974 = vand.u32 %v84, 4294901760
  %v975 = vsub.f32 %v84, %v974
  %976 = vmatmul.mubr.f32.gmra.mrb[0].mxu0 %v975
  %v977 = vpop.f32.mrb[0].mxu0
  %v978 = vadd.f32 %v699, %v977
  %v979 = vpop.f32.mrb[0].mxu0
  %980 = vmatprep.mubr.f32.mxu0 0.0
  %v981 = vand.u32 %v87, 4294901760
  %v982 = vsub.f32 %v87, %v981
  %983 = vmatmul.mubr.f32.gmra.mrb[0].mxu0 %v982
  %v984 = vpop.f32.mrb[0].mxu0
  %v985 = vadd.f32 %v705, %v984
  %v986 = vpop.f32.mrb[0].mxu0
  %987 = vmatprep.mubr.f32.mxu0 0.0
  %v988 = vand.u32 %v90, 4294901760
  %v989 = vsub.f32 %v90, %v988
  %990 = vmatmul.mubr.f32.gmra.mrb[0].mxu0 %v989
  %v991 = vpop.f32.mrb[0].mxu0
  %v992 = vadd.f32 %v711, %v991
  %v993 = vpop.f32.mrb[0].mxu0
  %994 = vmatprep.mubr.f32.mxu0 0.0
  %v995 = vand.u32 %v93, 4294901760
  %v996 = vsub.f32 %v93, %v995
  %997 = vmatmul.mubr.f32.gmra.mrb[0].mxu0 %v996
  %v998 = vpop.f32.mrb[0].mxu0
  %v999 = vadd.f32 %v717, %v998
  %v1000 = vpop.f32.mrb[0].mxu0
  %1001 = vmatprep.mubr.f32.mxu0 0.0
  %v1002 = vand.u32 %v96, 4294901760
  %v1003 = vsub.f32 %v96, %v1002
  %1004 = vmatmul.mubr.f32.gmra.mrb[0].mxu0 %v1003
  %v1005 = vpop.f32.mrb[0].mxu0
  %v1006 = vadd.f32 %v723, %v1005
  %v1007 = vpop.f32.mrb[0].mxu0
  %1008 = vmatprep.mubr.f32.mxu0 0.0
  %v1009 = vand.u32 %v99, 4294901760
  %v1010 = vsub.f32 %v99, %v1009
  %1011 = vmatmul.mubr.f32.gmra.mrb[0].mxu0 %v1010
  %v1012 = vpop.f32.mrb[0].mxu0
  %v1013 = vadd.f32 %v729, %v1012
  %v1014 = vpop.f32.mrb[0].mxu0
  %1015 = vmatprep.mubr.f32.mxu0 0.0
  %v1016 = vand.u32 %v102, 4294901760
  %v1017 = vsub.f32 %v102, %v1016
  %1018 = vmatmul.mubr.f32.gmra.mrb[0].mxu0 %v1017
  %v1019 = vpop.f32.mrb[0].mxu0
  %v1020 = vadd.f32 %v735, %v1019
  %v1021 = vpop.f32.mrb[0].mxu0
  %1022 = vmatprep.mubr.f32.mxu0 0.0
  %v1023 = vand.u32 %v105, 4294901760
  %v1024 = vsub.f32 %v105, %v1023
  %1025 = vmatmul.mubr.f32.gmra.mrb[0].mxu0 %v1024
  %v1026 = vpop.f32.mrb[0].mxu0
  %v1027 = vadd.f32 %v741, %v1026
  %v1028 = vpop.f32.mrb[0].mxu0
  %1029 = vmatprep.mubr.f32.mxu0 0.0
  %v1030 = vand.u32 %v108, 4294901760
  %v1031 = vsub.f32 %v108, %v1030
  %1032 = vmatmul.mubr.f32.gmra.mrb[0].mxu0 %v1031
  %v1033 = vpop.f32.mrb[0].mxu0
  %v1034 = vadd.f32 %v747, %v1033
  %v1035 = vpop.f32.mrb[0].mxu0
  %1036 = vmatprep.mubr.f32.mxu0 0.0
  %v1037 = vand.u32 %v111, 4294901760
  %v1038 = vsub.f32 %v111, %v1037
  %1039 = vmatmul.mubr.f32.gmra.mrb[0].mxu0 %v1038
  %v1040 = vpop.f32.mrb[0].mxu0
  %v1041 = vadd.f32 %v753, %v1040
  %v1042 = vpop.f32.mrb[0].mxu0
  %1043 = vmatprep.mubr.f32.mxu0 0.0
  %v1044 = vand.u32 %v114, 4294901760
  %v1045 = vsub.f32 %v114, %v1044
  %1046 = vmatmul.mubr.f32.gmra.mrb[0].mxu0 %v1045
  %v1047 = vpop.f32.mrb[0].mxu0
  %v1048 = vadd.f32 %v759, %v1047
  %v1049 = vpop.f32.mrb[0].mxu0
  %1050 = vmatprep.mubr.f32.mxu0 0.0
  %v1051 = vand.u32 %v117, 4294901760
  %v1052 = vsub.f32 %v117, %v1051
  %1053 = vmatmul.mubr.f32.gmra.mrb[0].mxu0 %v1052
  %v1054 = vpop.f32.mrb[0].mxu0
  %v1055 = vadd.f32 %v765, %v1054
  %v1056 = vpop.f32.mrb[0].mxu0
  %1057 = vmatprep.mubr.f32.mxu0 0.0
  %v1058 = vand.u32 %v120, 4294901760
  %v1059 = vsub.f32 %v120, %v1058
  %1060 = vmatmul.mubr.f32.gmra.mrb[0].mxu0 %v1059
  %v1061 = vpop.f32.mrb[0].mxu0
  %v1062 = vadd.f32 %v771, %v1061
  %v1063 = vpop.f32.mrb[0].mxu0
  %1064 = vmatprep.mubr.f32.mxu0 0.0
  %v1065 = vand.u32 %v123, 4294901760
  %v1066 = vsub.f32 %v123, %v1065
  %1067 = vmatmul.mubr.f32.gmra.mrb[0].mxu0 %v1066
  %v1068 = vpop.f32.mrb[0].mxu0
  %v1069 = vadd.f32 %v777, %v1068
  %v1070 = vpop.f32.mrb[0].mxu0
  %1071 = vmatprep.mubr.f32.mxu0 0.0
  %v1072 = vand.u32 %v126, 4294901760
  %v1073 = vsub.f32 %v126, %v1072
  %1074 = vmatmul.mubr.f32.gmra.mrb[0].mxu0 %v1073
  %v1075 = vpop.f32.mrb[0].mxu0
  %v1076 = vadd.f32 %v783, %v1075
  %v1077 = vpop.f32.mrb[0].mxu0
  %1078 = vmatprep.mubr.f32.mxu0 0.0
  %v1079 = vand.u32 %v129, 4294901760
  %v1080 = vsub.f32 %v129, %v1079
  %1081 = vmatmul.mubr.f32.gmra.mrb[0].mxu0 %v1080
  %v1082 = vpop.f32.mrb[0].mxu0
  %v1083 = vadd.f32 %v789, %v1082
  %v1084 = vpop.f32.mrb[0].mxu0
  %1085 = vmatprep.mubr.f32.mxu0 0.0
  %v1086 = vand.u32 %v132, 4294901760
  %v1087 = vsub.f32 %v132, %v1086
  %1088 = vmatmul.mubr.f32.gmra.mrb[0].mxu0 %v1087
  %v1089 = vpop.f32.mrb[0].mxu0
  %v1090 = vadd.f32 %v795, %v1089
  %v1091 = vpop.f32.mrb[0].mxu0
  %1092 = vmatprep.mubr.f32.mxu0 0.0
  %v1093 = vand.u32 %v135, 4294901760
  %v1094 = vsub.f32 %v135, %v1093
  %1095 = vmatmul.mubr.f32.gmra.mrb[0].mxu0 %v1094
  %v1096 = vpop.f32.mrb[0].mxu0
  %v1097 = vadd.f32 %v801, %v1096
  %v1098 = vpop.f32.mrb[0].mxu0
  %1099 = vmatprep.mubr.f32.mxu0 0.0
  %v1100 = vand.u32 %v138, 4294901760
  %v1101 = vsub.f32 %v138, %v1100
  %1102 = vmatmul.mubr.f32.gmra.mrb[0].mxu0 %v1101
  %v1103 = vpop.f32.mrb[0].mxu0
  %v1104 = vadd.f32 %v807, %v1103
  %v1105 = vpop.f32.mrb[0].mxu0
  %1106 = vmatprep.mubr.f32.mxu0 0.0
  %v1107 = vand.u32 %v141, 4294901760
  %v1108 = vsub.f32 %v141, %v1107
  %1109 = vmatmul.mubr.f32.gmra.mrb[0].mxu0 %v1108
  %v1110 = vpop.f32.mrb[0].mxu0
  %v1111 = vadd.f32 %v813, %v1110
  %v1112 = vpop.f32.mrb[0].mxu0
  %1113 = vmatprep.mubr.f32.mxu0 0.0
  %v1114 = vand.u32 %v144, 4294901760
  %v1115 = vsub.f32 %v144, %v1114
  %1116 = vmatmul.mubr.f32.gmra.mrb[0].mxu0 %v1115
  %v1117 = vpop.f32.mrb[0].mxu0
  %v1118 = vadd.f32 %v819, %v1117
  %v1119 = vpop.f32.mrb[0].mxu0
  %1120 = vmatprep.mubr.f32.mxu0 0.0
  %v1121 = vand.u32 %v147, 4294901760
  %v1122 = vsub.f32 %v147, %v1121
  %1123 = vmatmul.mubr.f32.gmra.mrb[0].mxu0 %v1122
  %v1124 = vpop.f32.mrb[0].mxu0
  %v1125 = vadd.f32 %v825, %v1124
  %v1126 = vpop.f32.mrb[0].mxu0
  %1127 = vmatprep.mubr.f32.mxu0 0.0
  %v1128 = vand.u32 %v150, 4294901760
  %v1129 = vsub.f32 %v150, %v1128
  %1130 = vmatmul.mubr.f32.gmra.mrb[0].mxu0 %v1129
  %v1131 = vpop.f32.mrb[0].mxu0
  %v1132 = vadd.f32 %v831, %v1131
  %v1133 = vpop.f32.mrb[0].mxu0
  %1134 = vmatprep.mubr.f32.mxu0 0.0
  %v1135 = vand.u32 %v153, 4294901760
  %v1136 = vsub.f32 %v153, %v1135
  %1137 = vmatmul.mubr.f32.gmra.mrb[0].mxu0 %v1136
  %v1138 = vpop.f32.mrb[0].mxu0
  %v1139 = vadd.f32 %v837, %v1138
  %v1140 = vpop.f32.mrb[0].mxu0
  %1141 = vmatprep.mubr.f32.mxu0 0.0
  %v1142 = vand.u32 %v156, 4294901760
  %v1143 = vsub.f32 %v156, %v1142
  %1144 = vmatmul.mubr.f32.gmra.mrb[0].mxu0 %v1143
  %v1145 = vpop.f32.mrb[0].mxu0
  %v1146 = vadd.f32 %v843, %v1145
  %v1147 = vpop.f32.mrb[0].mxu0
  %1148 = vmatprep.mubr.f32.mxu0 0.0
  %v1149 = vand.u32 %v159, 4294901760
  %v1150 = vsub.f32 %v159, %v1149
  %1151 = vmatmul.mubr.f32.gmra.mrb[0].mxu0 %v1150
  %v1152 = vpop.f32.mrb[0].mxu0
  %v1153 = vadd.f32 %v849, %v1152
  %v1154 = vpop.f32.mrb[0].mxu0
  %1155 = vmatprep.mubr.f32.mxu0 0.0
  %v1156 = vand.u32 %v162, 4294901760
  %v1157 = vsub.f32 %v162, %v1156
  %1158 = vmatmul.mubr.f32.gmra.mrb[0].mxu0 %v1157
  %v1159 = vpop.f32.mrb[0].mxu0
  %v1160 = vadd.f32 %v855, %v1159
  %v1161 = vpop.f32.mrb[0].mxu0
  %1162 = vmatprep.mubr.f32.mxu0 0.0
  %v1163 = vand.u32 %v165, 4294901760
  %v1164 = vsub.f32 %v165, %v1163
  %1165 = vmatmul.mubr.f32.gmra.mrb[0].mxu0 %v1164
  %v1166 = vpop.f32.mrb[0].mxu0
  %v1167 = vadd.f32 %v861, %v1166
  %v1168 = vpop.f32.mrb[0].mxu0
  %1169 = vmatprep.mubr.f32.mxu0 0.0
  %v1170 = vand.u32 %v168, 4294901760
  %v1171 = vsub.f32 %v168, %v1170
  %1172 = vmatmul.mubr.f32.gmra.mrb[0].mxu0 %v1171
  %v1173 = vpop.f32.mrb[0].mxu0
  %v1174 = vadd.f32 %v867, %v1173
  %v1175 = vpop.f32.mrb[0].mxu0
  %1176 = vdwg.mxu0
  %1177 = vmatprep.subr.mxu0 0.0
  %v1178 = vand.u32 %v59, 4294901760
  %1179 = vmatpush1.msra.mxu0 %v1178
  %1180 = vmatprep.subr.mxu0 0.0
  %v1181 = vand.u32 %v60, 4294901760
  %1182 = vmatpush1.msra.mxu0 %v1181
  %1183 = vmatprep.subr.mxu0 0.0
  %v1184 = vand.u32 %v61, 4294901760
  %1185 = vmatpush1.msra.mxu0 %v1184
  %1186 = vmatprep.subr.mxu0 0.0
  %v1187 = vand.u32 %v62, 4294901760
  %1188 = vmatpush1.msra.mxu0 %v1187
  %1189 = vmatprep.subr.mxu0 0.0
  %v1190 = vand.u32 %v63, 4294901760
  %1191 = vmatpush1.msra.mxu0 %v1190
  %1192 = vmatprep.subr.mxu0 0.0
  %v1193 = vand.u32 %v64, 4294901760
  %1194 = vmatpush1.msra.mxu0 %v1193
  %1195 = vmatprep.subr.mxu0 0.0
  %v1196 = vand.u32 %v65, 4294901760
  %1197 = vmatpush1.msra.mxu0 %v1196
  %1198 = vmatprep.subr.mxu0 0.0
  %v1199 = vand.u32 %v66, 4294901760
  %1200 = vmatpush1.msra.mxu0 %v1199
  %1201 = vmatprep.subr.mxu0 0.0
  %v1202 = vand.u32 %v172, 4294901760
  %1203 = vmatpush1.msra.mxu0 %v1202
  %1204 = vmatprep.subr.mxu0 0.0
  %1205 = vmatpush1.msra.mxu0 0.0
  %1206 = vmatprep.subr.mxu0 0.0
  %1207 = vmatpush1.msra.mxu0 0.0
  %1208 = vmatprep.subr.mxu0 0.0
  %1209 = vmatpush1.msra.mxu0 0.0
  %1210 = vmatprep.subr.mxu0 0.0
  %1211 = vmatpush1.msra.mxu0 0.0
  %1212 = vmatprep.subr.mxu0 0.0
  %1213 = vmatpush1.msra.mxu0 0.0
  %1214 = vmatprep.subr.mxu0 0.0
  %1215 = vmatpush1.msra.mxu0 0.0
  %1216 = vmatprep.subr.mxu0 0.0
  %1217 = vmatpush1.msra.mxu0 0.0
  %1218 = vmatprep.subr.mxu0 0.0
  %1219 = vmatpush1.msra.mxu0 0.0
  %1220 = vmatprep.subr.mxu0 0.0
  %1221 = vmatpush1.msra.mxu0 0.0
  %1222 = vmatprep.subr.mxu0 0.0
  %1223 = vmatpush1.msra.mxu0 0.0
  %1224 = vmatprep.subr.mxu0 0.0
  %1225 = vmatpush1.msra.mxu0 0.0
  %1226 = vmatprep.subr.mxu0 0.0
  %1227 = vmatpush1.msra.mxu0 0.0
  %1228 = vmatprep.subr.mxu0 0.0
  %1229 = vmatpush1.msra.mxu0 0.0
  %1230 = vmatprep.subr.mxu0 0.0
  %1231 = vmatpush1.msra.mxu0 0.0
  %1232 = vmatprep.subr.mxu0 0.0
  %1233 = vmatpush1.msra.mxu0 0.0
  %1234 = vmatprep.subr.mxu0 0.0
  %1235 = vmatpush1.msra.mxu0 0.0
  %1236 = vmatprep.subr.mxu0 0.0
  %1237 = vmatpush1.msra.mxu0 0.0
  %1238 = vmatprep.subr.mxu0 0.0
  %1239 = vmatpush1.msra.mxu0 0.0
  %1240 = vmatprep.subr.mxu0 0.0
  %1241 = vmatpush1.msra.mxu0 0.0
  %1242 = vmatprep.subr.mxu0 0.0
  %1243 = vmatpush1.msra.mxu0 0.0
  %1244 = vmatprep.subr.mxu0 0.0
  %1245 = vmatpush1.msra.mxu0 0.0
  %1246 = vmatprep.subr.mxu0 0.0
  %1247 = vmatpush1.msra.mxu0 0.0
  %1248 = vmatprep.subr.mxu0 0.0
  %1249 = vmatpush1.msra.mxu0 0.0
  %1250 = vmatprep.mubr.f32.mxu0 0.0
  %v1251 = vand.u32 %v75, 4294901760
  %v1252 = vsub.f32 %v75, %v1251
  %v1253 = vand.u32 %v1252, 4294901760
  %1254 = vmatmul.mubr.f32.gmra.mrb[0].mxu0 %v1253
  %v1255 = vpop.f32.mrb[0].mxu0
  %v1256 = vadd.f32 %v957, %v1255
  %v1257 = vpop.f32.mrb[0].mxu0
  %1258 = vmatprep.mubr.f32.mxu0 0.0
  %v1259 = vand.u32 %v78, 4294901760
  %v1260 = vsub.f32 %v78, %v1259
  %v1261 = vand.u32 %v1260, 4294901760
  %1262 = vmatmul.mubr.f32.gmra.mrb[0].mxu0 %v1261
  %v1263 = vpop.f32.mrb[0].mxu0
  %v1264 = vadd.f32 %v964, %v1263
  %v1265 = vpop.f32.mrb[0].mxu0
  %1266 = vmatprep.mubr.f32.mxu0 0.0
  %v1267 = vand.u32 %v81, 4294901760
  %v1268 = vsub.f32 %v81, %v1267
  %v1269 = vand.u32 %v1268, 4294901760
  %1270 = vmatmul.mubr.f32.gmra.mrb[0].mxu0 %v1269
  %v1271 = vpop.f32.mrb[0].mxu0
  %v1272 = vadd.f32 %v971, %v1271
  %v1273 = vpop.f32.mrb[0].mxu0
  %1274 = vmatprep.mubr.f32.mxu0 0.0
  %v1275 = vand.u32 %v84, 4294901760
  %v1276 = vsub.f32 %v84, %v1275
  %v1277 = vand.u32 %v1276, 4294901760
  %1278 = vmatmul.mubr.f32.gmra.mrb[0].mxu0 %v1277
  %v1279 = vpop.f32.mrb[0].mxu0
  %v1280 = vadd.f32 %v978, %v1279
  %v1281 = vpop.f32.mrb[0].mxu0
  %1282 = vmatprep.mubr.f32.mxu0 0.0
  %v1283 = vand.u32 %v87, 4294901760
  %v1284 = vsub.f32 %v87, %v1283
  %v1285 = vand.u32 %v1284, 4294901760
  %1286 = vmatmul.mubr.f32.gmra.mrb[0].mxu0 %v1285
  %v1287 = vpop.f32.mrb[0].mxu0
  %v1288 = vadd.f32 %v985, %v1287
  %v1289 = vpop.f32.mrb[0].mxu0
  %1290 = vmatprep.mubr.f32.mxu0 0.0
  %v1291 = vand.u32 %v90, 4294901760
  %v1292 = vsub.f32 %v90, %v1291
  %v1293 = vand.u32 %v1292, 4294901760
  %1294 = vmatmul.mubr.f32.gmra.mrb[0].mxu0 %v1293
  %v1295 = vpop.f32.mrb[0].mxu0
  %v1296 = vadd.f32 %v992, %v1295
  %v1297 = vpop.f32.mrb[0].mxu0
  %1298 = vmatprep.mubr.f32.mxu0 0.0
  %v1299 = vand.u32 %v93, 4294901760
  %v1300 = vsub.f32 %v93, %v1299
  %v1301 = vand.u32 %v1300, 4294901760
  %1302 = vmatmul.mubr.f32.gmra.mrb[0].mxu0 %v1301
  %v1303 = vpop.f32.mrb[0].mxu0
  %v1304 = vadd.f32 %v999, %v1303
  %v1305 = vpop.f32.mrb[0].mxu0
  %1306 = vmatprep.mubr.f32.mxu0 0.0
  %v1307 = vand.u32 %v96, 4294901760
  %v1308 = vsub.f32 %v96, %v1307
  %v1309 = vand.u32 %v1308, 4294901760
  %1310 = vmatmul.mubr.f32.gmra.mrb[0].mxu0 %v1309
  %v1311 = vpop.f32.mrb[0].mxu0
  %v1312 = vadd.f32 %v1006, %v1311
  %v1313 = vpop.f32.mrb[0].mxu0
  %1314 = vmatprep.mubr.f32.mxu0 0.0
  %v1315 = vand.u32 %v99, 4294901760
  %v1316 = vsub.f32 %v99, %v1315
  %v1317 = vand.u32 %v1316, 4294901760
  %1318 = vmatmul.mubr.f32.gmra.mrb[0].mxu0 %v1317
  %v1319 = vpop.f32.mrb[0].mxu0
  %v1320 = vadd.f32 %v1013, %v1319
  %v1321 = vpop.f32.mrb[0].mxu0
  %1322 = vmatprep.mubr.f32.mxu0 0.0
  %v1323 = vand.u32 %v102, 4294901760
  %v1324 = vsub.f32 %v102, %v1323
  %v1325 = vand.u32 %v1324, 4294901760
  %1326 = vmatmul.mubr.f32.gmra.mrb[0].mxu0 %v1325
  %v1327 = vpop.f32.mrb[0].mxu0
  %v1328 = vadd.f32 %v1020, %v1327
  %v1329 = vpop.f32.mrb[0].mxu0
  %1330 = vmatprep.mubr.f32.mxu0 0.0
  %v1331 = vand.u32 %v105, 4294901760
  %v1332 = vsub.f32 %v105, %v1331
  %v1333 = vand.u32 %v1332, 4294901760
  %1334 = vmatmul.mubr.f32.gmra.mrb[0].mxu0 %v1333
  %v1335 = vpop.f32.mrb[0].mxu0
  %v1336 = vadd.f32 %v1027, %v1335
  %v1337 = vpop.f32.mrb[0].mxu0
  %1338 = vmatprep.mubr.f32.mxu0 0.0
  %v1339 = vand.u32 %v108, 4294901760
  %v1340 = vsub.f32 %v108, %v1339
  %v1341 = vand.u32 %v1340, 4294901760
  %1342 = vmatmul.mubr.f32.gmra.mrb[0].mxu0 %v1341
  %v1343 = vpop.f32.mrb[0].mxu0
  %v1344 = vadd.f32 %v1034, %v1343
  %v1345 = vpop.f32.mrb[0].mxu0
  %1346 = vmatprep.mubr.f32.mxu0 0.0
  %v1347 = vand.u32 %v111, 4294901760
  %v1348 = vsub.f32 %v111, %v1347
  %v1349 = vand.u32 %v1348, 4294901760
  %1350 = vmatmul.mubr.f32.gmra.mrb[0].mxu0 %v1349
  %v1351 = vpop.f32.mrb[0].mxu0
  %v1352 = vadd.f32 %v1041, %v1351
  %v1353 = vpop.f32.mrb[0].mxu0
  %1354 = vmatprep.mubr.f32.mxu0 0.0
  %v1355 = vand.u32 %v114, 4294901760
  %v1356 = vsub.f32 %v114, %v1355
  %v1357 = vand.u32 %v1356, 4294901760
  %1358 = vmatmul.mubr.f32.gmra.mrb[0].mxu0 %v1357
  %v1359 = vpop.f32.mrb[0].mxu0
  %v1360 = vadd.f32 %v1048, %v1359
  %v1361 = vpop.f32.mrb[0].mxu0
  %1362 = vmatprep.mubr.f32.mxu0 0.0
  %v1363 = vand.u32 %v117, 4294901760
  %v1364 = vsub.f32 %v117, %v1363
  %v1365 = vand.u32 %v1364, 4294901760
  %1366 = vmatmul.mubr.f32.gmra.mrb[0].mxu0 %v1365
  %v1367 = vpop.f32.mrb[0].mxu0
  %v1368 = vadd.f32 %v1055, %v1367
  %v1369 = vpop.f32.mrb[0].mxu0
  %1370 = vmatprep.mubr.f32.mxu0 0.0
  %v1371 = vand.u32 %v120, 4294901760
  %v1372 = vsub.f32 %v120, %v1371
  %v1373 = vand.u32 %v1372, 4294901760
  %1374 = vmatmul.mubr.f32.gmra.mrb[0].mxu0 %v1373
  %v1375 = vpop.f32.mrb[0].mxu0
  %v1376 = vadd.f32 %v1062, %v1375
  %v1377 = vpop.f32.mrb[0].mxu0
  %1378 = vmatprep.mubr.f32.mxu0 0.0
  %v1379 = vand.u32 %v123, 4294901760
  %v1380 = vsub.f32 %v123, %v1379
  %v1381 = vand.u32 %v1380, 4294901760
  %1382 = vmatmul.mubr.f32.gmra.mrb[0].mxu0 %v1381
  %v1383 = vpop.f32.mrb[0].mxu0
  %v1384 = vadd.f32 %v1069, %v1383
  %v1385 = vpop.f32.mrb[0].mxu0
  %1386 = vmatprep.mubr.f32.mxu0 0.0
  %v1387 = vand.u32 %v126, 4294901760
  %v1388 = vsub.f32 %v126, %v1387
  %v1389 = vand.u32 %v1388, 4294901760
  %1390 = vmatmul.mubr.f32.gmra.mrb[0].mxu0 %v1389
  %v1391 = vpop.f32.mrb[0].mxu0
  %v1392 = vadd.f32 %v1076, %v1391
  %v1393 = vpop.f32.mrb[0].mxu0
  %1394 = vmatprep.mubr.f32.mxu0 0.0
  %v1395 = vand.u32 %v129, 4294901760
  %v1396 = vsub.f32 %v129, %v1395
  %v1397 = vand.u32 %v1396, 4294901760
  %1398 = vmatmul.mubr.f32.gmra.mrb[0].mxu0 %v1397
  %v1399 = vpop.f32.mrb[0].mxu0
  %v1400 = vadd.f32 %v1083, %v1399
  %v1401 = vpop.f32.mrb[0].mxu0
  %1402 = vmatprep.mubr.f32.mxu0 0.0
  %v1403 = vand.u32 %v132, 4294901760
  %v1404 = vsub.f32 %v132, %v1403
  %v1405 = vand.u32 %v1404, 4294901760
  %1406 = vmatmul.mubr.f32.gmra.mrb[0].mxu0 %v1405
  %v1407 = vpop.f32.mrb[0].mxu0
  %v1408 = vadd.f32 %v1090, %v1407
  %v1409 = vpop.f32.mrb[0].mxu0
  %1410 = vmatprep.mubr.f32.mxu0 0.0
  %v1411 = vand.u32 %v135, 4294901760
  %v1412 = vsub.f32 %v135, %v1411
  %v1413 = vand.u32 %v1412, 4294901760
  %1414 = vmatmul.mubr.f32.gmra.mrb[0].mxu0 %v1413
  %v1415 = vpop.f32.mrb[0].mxu0
  %v1416 = vadd.f32 %v1097, %v1415
  %v1417 = vpop.f32.mrb[0].mxu0
  %1418 = vmatprep.mubr.f32.mxu0 0.0
  %v1419 = vand.u32 %v138, 4294901760
  %v1420 = vsub.f32 %v138, %v1419
  %v1421 = vand.u32 %v1420, 4294901760
  %1422 = vmatmul.mubr.f32.gmra.mrb[0].mxu0 %v1421
  %v1423 = vpop.f32.mrb[0].mxu0
  %v1424 = vadd.f32 %v1104, %v1423
  %v1425 = vpop.f32.mrb[0].mxu0
  %1426 = vmatprep.mubr.f32.mxu0 0.0
  %v1427 = vand.u32 %v141, 4294901760
  %v1428 = vsub.f32 %v141, %v1427
  %v1429 = vand.u32 %v1428, 4294901760
  %1430 = vmatmul.mubr.f32.gmra.mrb[0].mxu0 %v1429
  %v1431 = vpop.f32.mrb[0].mxu0
  %v1432 = vadd.f32 %v1111, %v1431
  %v1433 = vpop.f32.mrb[0].mxu0
  %1434 = vmatprep.mubr.f32.mxu0 0.0
  %v1435 = vand.u32 %v144, 4294901760
  %v1436 = vsub.f32 %v144, %v1435
  %v1437 = vand.u32 %v1436, 4294901760
  %1438 = vmatmul.mubr.f32.gmra.mrb[0].mxu0 %v1437
  %v1439 = vpop.f32.mrb[0].mxu0
  %v1440 = vadd.f32 %v1118, %v1439
  %v1441 = vpop.f32.mrb[0].mxu0
  %1442 = vmatprep.mubr.f32.mxu0 0.0
  %v1443 = vand.u32 %v147, 4294901760
  %v1444 = vsub.f32 %v147, %v1443
  %v1445 = vand.u32 %v1444, 4294901760
  %1446 = vmatmul.mubr.f32.gmra.mrb[0].mxu0 %v1445
  %v1447 = vpop.f32.mrb[0].mxu0
  %v1448 = vadd.f32 %v1125, %v1447
  %v1449 = vpop.f32.mrb[0].mxu0
  %1450 = vmatprep.mubr.f32.mxu0 0.0
  %v1451 = vand.u32 %v150, 4294901760
  %v1452 = vsub.f32 %v150, %v1451
  %v1453 = vand.u32 %v1452, 4294901760
  %1454 = vmatmul.mubr.f32.gmra.mrb[0].mxu0 %v1453
  %v1455 = vpop.f32.mrb[0].mxu0
  %v1456 = vadd.f32 %v1132, %v1455
  %v1457 = vpop.f32.mrb[0].mxu0
  %1458 = vmatprep.mubr.f32.mxu0 0.0
  %v1459 = vand.u32 %v153, 4294901760
  %v1460 = vsub.f32 %v153, %v1459
  %v1461 = vand.u32 %v1460, 4294901760
  %1462 = vmatmul.mubr.f32.gmra.mrb[0].mxu0 %v1461
  %v1463 = vpop.f32.mrb[0].mxu0
  %v1464 = vadd.f32 %v1139, %v1463
  %v1465 = vpop.f32.mrb[0].mxu0
  %1466 = vmatprep.mubr.f32.mxu0 0.0
  %v1467 = vand.u32 %v156, 4294901760
  %v1468 = vsub.f32 %v156, %v1467
  %v1469 = vand.u32 %v1468, 4294901760
  %1470 = vmatmul.mubr.f32.gmra.mrb[0].mxu0 %v1469
  %v1471 = vpop.f32.mrb[0].mxu0
  %v1472 = vadd.f32 %v1146, %v1471
  %v1473 = vpop.f32.mrb[0].mxu0
  %1474 = vmatprep.mubr.f32.mxu0 0.0
  %v1475 = vand.u32 %v159, 4294901760
  %v1476 = vsub.f32 %v159, %v1475
  %v1477 = vand.u32 %v1476, 4294901760
  %1478 = vmatmul.mubr.f32.gmra.mrb[0].mxu0 %v1477
  %v1479 = vpop.f32.mrb[0].mxu0
  %v1480 = vadd.f32 %v1153, %v1479
  %v1481 = vpop.f32.mrb[0].mxu0
  %1482 = vmatprep.mubr.f32.mxu0 0.0
  %v1483 = vand.u32 %v162, 4294901760
  %v1484 = vsub.f32 %v162, %v1483
  %v1485 = vand.u32 %v1484, 4294901760
  %1486 = vmatmul.mubr.f32.gmra.mrb[0].mxu0 %v1485
  %v1487 = vpop.f32.mrb[0].mxu0
  %v1488 = vadd.f32 %v1160, %v1487
  %v1489 = vpop.f32.mrb[0].mxu0
  %1490 = vmatprep.mubr.f32.mxu0 0.0
  %v1491 = vand.u32 %v165, 4294901760
  %v1492 = vsub.f32 %v165, %v1491
  %v1493 = vand.u32 %v1492, 4294901760
  %1494 = vmatmul.mubr.f32.gmra.mrb[0].mxu0 %v1493
  %v1495 = vpop.f32.mrb[0].mxu0
  %v1496 = vadd.f32 %v1167, %v1495
  %v1497 = vpop.f32.mrb[0].mxu0
  %1498 = vmatprep.mubr.f32.mxu0 0.0
  %v1499 = vand.u32 %v168, 4294901760
  %v1500 = vsub.f32 %v168, %v1499
  %v1501 = vand.u32 %v1500, 4294901760
  %1502 = vmatmul.mubr.f32.gmra.mrb[0].mxu0 %v1501
  %v1503 = vpop.f32.mrb[0].mxu0
  %v1504 = vadd.f32 %v1174, %v1503
  %v1505 = vpop.f32.mrb[0].mxu0
  %1506 = vdwg.mxu0
  %1507 = vmatprep.subr.mxu0 0.0
  %v1508 = vand.u32 %v59, 4294901760
  %v1509 = vsub.f32 %v59, %v1508
  %v1510 = vand.u32 %v1509, 4294901760
  %1511 = vmatpush1.msra.mxu0 %v1510
  %1512 = vmatprep.subr.mxu0 0.0
  %v1513 = vand.u32 %v60, 4294901760
  %v1514 = vsub.f32 %v60, %v1513
  %v1515 = vand.u32 %v1514, 4294901760
  %1516 = vmatpush1.msra.mxu0 %v1515
  %1517 = vmatprep.subr.mxu0 0.0
  %v1518 = vand.u32 %v61, 4294901760
  %v1519 = vsub.f32 %v61, %v1518
  %v1520 = vand.u32 %v1519, 4294901760
  %1521 = vmatpush1.msra.mxu0 %v1520
  %1522 = vmatprep.subr.mxu0 0.0
  %v1523 = vand.u32 %v62, 4294901760
  %v1524 = vsub.f32 %v62, %v1523
  %v1525 = vand.u32 %v1524, 4294901760
  %1526 = vmatpush1.msra.mxu0 %v1525
  %1527 = vmatprep.subr.mxu0 0.0
  %v1528 = vand.u32 %v63, 4294901760
  %v1529 = vsub.f32 %v63, %v1528
  %v1530 = vand.u32 %v1529, 4294901760
  %1531 = vmatpush1.msra.mxu0 %v1530
  %1532 = vmatprep.subr.mxu0 0.0
  %v1533 = vand.u32 %v64, 4294901760
  %v1534 = vsub.f32 %v64, %v1533
  %v1535 = vand.u32 %v1534, 4294901760
  %1536 = vmatpush1.msra.mxu0 %v1535
  %1537 = vmatprep.subr.mxu0 0.0
  %v1538 = vand.u32 %v65, 4294901760
  %v1539 = vsub.f32 %v65, %v1538
  %v1540 = vand.u32 %v1539, 4294901760
  %1541 = vmatpush1.msra.mxu0 %v1540
  %1542 = vmatprep.subr.mxu0 0.0
  %v1543 = vand.u32 %v66, 4294901760
  %v1544 = vsub.f32 %v66, %v1543
  %v1545 = vand.u32 %v1544, 4294901760
  %1546 = vmatpush1.msra.mxu0 %v1545
  %1547 = vmatprep.subr.mxu0 0.0
  %v1548 = vand.u32 %v172, 4294901760
  %v1549 = vsub.f32 %v172, %v1548
  %v1550 = vand.u32 %v1549, 4294901760
  %1551 = vmatpush1.msra.mxu0 %v1550
  %1552 = vmatprep.subr.mxu0 0.0
  %1553 = vmatpush1.msra.mxu0 0.0
  %1554 = vmatprep.subr.mxu0 0.0
  %1555 = vmatpush1.msra.mxu0 0.0
  %1556 = vmatprep.subr.mxu0 0.0
  %1557 = vmatpush1.msra.mxu0 0.0
  %1558 = vmatprep.subr.mxu0 0.0
  %1559 = vmatpush1.msra.mxu0 0.0
  %1560 = vmatprep.subr.mxu0 0.0
  %1561 = vmatpush1.msra.mxu0 0.0
  %1562 = vmatprep.subr.mxu0 0.0
  %1563 = vmatpush1.msra.mxu0 0.0
  %1564 = vmatprep.subr.mxu0 0.0
  %1565 = vmatpush1.msra.mxu0 0.0
  %1566 = vmatprep.subr.mxu0 0.0
  %1567 = vmatpush1.msra.mxu0 0.0
  %1568 = vmatprep.subr.mxu0 0.0
  %1569 = vmatpush1.msra.mxu0 0.0
  %1570 = vmatprep.subr.mxu0 0.0
  %1571 = vmatpush1.msra.mxu0 0.0
  %1572 = vmatprep.subr.mxu0 0.0
  %1573 = vmatpush1.msra.mxu0 0.0
  %1574 = vmatprep.subr.mxu0 0.0
  %1575 = vmatpush1.msra.mxu0 0.0
  %1576 = vmatprep.subr.mxu0 0.0
  %1577 = vmatpush1.msra.mxu0 0.0
  %1578 = vmatprep.subr.mxu0 0.0
  %1579 = vmatpush1.msra.mxu0 0.0
  %1580 = vmatprep.subr.mxu0 0.0
  %1581 = vmatpush1.msra.mxu0 0.0
  %1582 = vmatprep.subr.mxu0 0.0
  %1583 = vmatpush1.msra.mxu0 0.0
  %1584 = vmatprep.subr.mxu0 0.0
  %1585 = vmatpush1.msra.mxu0 0.0
  %1586 = vmatprep.subr.mxu0 0.0
  %1587 = vmatpush1.msra.mxu0 0.0
  %1588 = vmatprep.subr.mxu0 0.0
  %1589 = vmatpush1.msra.mxu0 0.0
  %1590 = vmatprep.subr.mxu0 0.0
  %1591 = vmatpush1.msra.mxu0 0.0
  %1592 = vmatprep.subr.mxu0 0.0
  %1593 = vmatpush1.msra.mxu0 0.0
  %1594 = vmatprep.subr.mxu0 0.0
  %1595 = vmatpush1.msra.mxu0 0.0
  %1596 = vmatprep.subr.mxu0 0.0
  %1597 = vmatpush1.msra.mxu0 0.0
  %1598 = vmatprep.mubr.f32.mxu0 0.0
  %v1599 = vand.u32 %v75, 4294901760
  %1600 = vmatmul.mubr.f32.gmra.mrb[0].mxu0 %v1599
  %v1601 = vpop.f32.mrb[0].mxu0
  %v1602 = vadd.f32 %v1256, %v1601
  %v1603 = vpop.f32.mrb[0].mxu0
  %1604 = vmatprep.mubr.f32.mxu0 0.0
  %v1605 = vand.u32 %v78, 4294901760
  %1606 = vmatmul.mubr.f32.gmra.mrb[0].mxu0 %v1605
  %v1607 = vpop.f32.mrb[0].mxu0
  %v1608 = vadd.f32 %v1264, %v1607
  %v1609 = vpop.f32.mrb[0].mxu0
  %1610 = vmatprep.mubr.f32.mxu0 0.0
  %v1611 = vand.u32 %v81, 4294901760
  %1612 = vmatmul.mubr.f32.gmra.mrb[0].mxu0 %v1611
  %v1613 = vpop.f32.mrb[0].mxu0
  %v1614 = vadd.f32 %v1272, %v1613
  %v1615 = vpop.f32.mrb[0].mxu0
  %1616 = vmatprep.mubr.f32.mxu0 0.0
  %v1617 = vand.u32 %v84, 4294901760
  %1618 = vmatmul.mubr.f32.gmra.mrb[0].mxu0 %v1617
  %v1619 = vpop.f32.mrb[0].mxu0
  %v1620 = vadd.f32 %v1280, %v1619
  %v1621 = vpop.f32.mrb[0].mxu0
  %1622 = vmatprep.mubr.f32.mxu0 0.0
  %v1623 = vand.u32 %v87, 4294901760
  %1624 = vmatmul.mubr.f32.gmra.mrb[0].mxu0 %v1623
  %v1625 = vpop.f32.mrb[0].mxu0
  %v1626 = vadd.f32 %v1288, %v1625
  %v1627 = vpop.f32.mrb[0].mxu0
  %1628 = vmatprep.mubr.f32.mxu0 0.0
  %v1629 = vand.u32 %v90, 4294901760
  %1630 = vmatmul.mubr.f32.gmra.mrb[0].mxu0 %v1629
  %v1631 = vpop.f32.mrb[0].mxu0
  %v1632 = vadd.f32 %v1296, %v1631
  %v1633 = vpop.f32.mrb[0].mxu0
  %1634 = vmatprep.mubr.f32.mxu0 0.0
  %v1635 = vand.u32 %v93, 4294901760
  %1636 = vmatmul.mubr.f32.gmra.mrb[0].mxu0 %v1635
  %v1637 = vpop.f32.mrb[0].mxu0
  %v1638 = vadd.f32 %v1304, %v1637
  %v1639 = vpop.f32.mrb[0].mxu0
  %1640 = vmatprep.mubr.f32.mxu0 0.0
  %v1641 = vand.u32 %v96, 4294901760
  %1642 = vmatmul.mubr.f32.gmra.mrb[0].mxu0 %v1641
  %v1643 = vpop.f32.mrb[0].mxu0
  %v1644 = vadd.f32 %v1312, %v1643
  %v1645 = vpop.f32.mrb[0].mxu0
  %1646 = vmatprep.mubr.f32.mxu0 0.0
  %v1647 = vand.u32 %v99, 4294901760
  %1648 = vmatmul.mubr.f32.gmra.mrb[0].mxu0 %v1647
  %v1649 = vpop.f32.mrb[0].mxu0
  %v1650 = vadd.f32 %v1320, %v1649
  %v1651 = vpop.f32.mrb[0].mxu0
  %1652 = vmatprep.mubr.f32.mxu0 0.0
  %v1653 = vand.u32 %v102, 4294901760
  %1654 = vmatmul.mubr.f32.gmra.mrb[0].mxu0 %v1653
  %v1655 = vpop.f32.mrb[0].mxu0
  %v1656 = vadd.f32 %v1328, %v1655
  %v1657 = vpop.f32.mrb[0].mxu0
  %1658 = vmatprep.mubr.f32.mxu0 0.0
  %v1659 = vand.u32 %v105, 4294901760
  %1660 = vmatmul.mubr.f32.gmra.mrb[0].mxu0 %v1659
  %v1661 = vpop.f32.mrb[0].mxu0
  %v1662 = vadd.f32 %v1336, %v1661
  %v1663 = vpop.f32.mrb[0].mxu0
  %1664 = vmatprep.mubr.f32.mxu0 0.0
  %v1665 = vand.u32 %v108, 4294901760
  %1666 = vmatmul.mubr.f32.gmra.mrb[0].mxu0 %v1665
  %v1667 = vpop.f32.mrb[0].mxu0
  %v1668 = vadd.f32 %v1344, %v1667
  %v1669 = vpop.f32.mrb[0].mxu0
  %1670 = vmatprep.mubr.f32.mxu0 0.0
  %v1671 = vand.u32 %v111, 4294901760
  %1672 = vmatmul.mubr.f32.gmra.mrb[0].mxu0 %v1671
  %v1673 = vpop.f32.mrb[0].mxu0
  %v1674 = vadd.f32 %v1352, %v1673
  %v1675 = vpop.f32.mrb[0].mxu0
  %1676 = vmatprep.mubr.f32.mxu0 0.0
  %v1677 = vand.u32 %v114, 4294901760
  %1678 = vmatmul.mubr.f32.gmra.mrb[0].mxu0 %v1677
  %v1679 = vpop.f32.mrb[0].mxu0
  %v1680 = vadd.f32 %v1360, %v1679
  %v1681 = vpop.f32.mrb[0].mxu0
  %1682 = vmatprep.mubr.f32.mxu0 0.0
  %v1683 = vand.u32 %v117, 4294901760
  %1684 = vmatmul.mubr.f32.gmra.mrb[0].mxu0 %v1683
  %v1685 = vpop.f32.mrb[0].mxu0
  %v1686 = vadd.f32 %v1368, %v1685
  %v1687 = vpop.f32.mrb[0].mxu0
  %1688 = vmatprep.mubr.f32.mxu0 0.0
  %v1689 = vand.u32 %v120, 4294901760
  %1690 = vmatmul.mubr.f32.gmra.mrb[0].mxu0 %v1689
  %v1691 = vpop.f32.mrb[0].mxu0
  %v1692 = vadd.f32 %v1376, %v1691
  %v1693 = vpop.f32.mrb[0].mxu0
  %1694 = vmatprep.mubr.f32.mxu0 0.0
  %v1695 = vand.u32 %v123, 4294901760
  %1696 = vmatmul.mubr.f32.gmra.mrb[0].mxu0 %v1695
  %v1697 = vpop.f32.mrb[0].mxu0
  %v1698 = vadd.f32 %v1384, %v1697
  %v1699 = vpop.f32.mrb[0].mxu0
  %1700 = vmatprep.mubr.f32.mxu0 0.0
  %v1701 = vand.u32 %v126, 4294901760
  %1702 = vmatmul.mubr.f32.gmra.mrb[0].mxu0 %v1701
  %v1703 = vpop.f32.mrb[0].mxu0
  %v1704 = vadd.f32 %v1392, %v1703
  %v1705 = vpop.f32.mrb[0].mxu0
  %1706 = vmatprep.mubr.f32.mxu0 0.0
  %v1707 = vand.u32 %v129, 4294901760
  %1708 = vmatmul.mubr.f32.gmra.mrb[0].mxu0 %v1707
  %v1709 = vpop.f32.mrb[0].mxu0
  %v1710 = vadd.f32 %v1400, %v1709
  %v1711 = vpop.f32.mrb[0].mxu0
  %1712 = vmatprep.mubr.f32.mxu0 0.0
  %v1713 = vand.u32 %v132, 4294901760
  %1714 = vmatmul.mubr.f32.gmra.mrb[0].mxu0 %v1713
  %v1715 = vpop.f32.mrb[0].mxu0
  %v1716 = vadd.f32 %v1408, %v1715
  %v1717 = vpop.f32.mrb[0].mxu0
  %1718 = vmatprep.mubr.f32.mxu0 0.0
  %v1719 = vand.u32 %v135, 4294901760
  %1720 = vmatmul.mubr.f32.gmra.mrb[0].mxu0 %v1719
  %v1721 = vpop.f32.mrb[0].mxu0
  %v1722 = vadd.f32 %v1416, %v1721
  %v1723 = vpop.f32.mrb[0].mxu0
  %1724 = vmatprep.mubr.f32.mxu0 0.0
  %v1725 = vand.u32 %v138, 4294901760
  %1726 = vmatmul.mubr.f32.gmra.mrb[0].mxu0 %v1725
  %v1727 = vpop.f32.mrb[0].mxu0
  %v1728 = vadd.f32 %v1424, %v1727
  %v1729 = vpop.f32.mrb[0].mxu0
  %1730 = vmatprep.mubr.f32.mxu0 0.0
  %v1731 = vand.u32 %v141, 4294901760
  %1732 = vmatmul.mubr.f32.gmra.mrb[0].mxu0 %v1731
  %v1733 = vpop.f32.mrb[0].mxu0
  %v1734 = vadd.f32 %v1432, %v1733
  %v1735 = vpop.f32.mrb[0].mxu0
  %1736 = vmatprep.mubr.f32.mxu0 0.0
  %v1737 = vand.u32 %v144, 4294901760
  %1738 = vmatmul.mubr.f32.gmra.mrb[0].mxu0 %v1737
  %v1739 = vpop.f32.mrb[0].mxu0
  %v1740 = vadd.f32 %v1440, %v1739
  %v1741 = vpop.f32.mrb[0].mxu0
  %1742 = vmatprep.mubr.f32.mxu0 0.0
  %v1743 = vand.u32 %v147, 4294901760
  %1744 = vmatmul.mubr.f32.gmra.mrb[0].mxu0 %v1743
  %v1745 = vpop.f32.mrb[0].mxu0
  %v1746 = vadd.f32 %v1448, %v1745
  %v1747 = vpop.f32.mrb[0].mxu0
  %1748 = vmatprep.mubr.f32.mxu0 0.0
  %v1749 = vand.u32 %v150, 4294901760
  %1750 = vmatmul.mubr.f32.gmra.mrb[0].mxu0 %v1749
  %v1751 = vpop.f32.mrb[0].mxu0
  %v1752 = vadd.f32 %v1456, %v1751
  %v1753 = vpop.f32.mrb[0].mxu0
  %1754 = vmatprep.mubr.f32.mxu0 0.0
  %v1755 = vand.u32 %v153, 4294901760
  %1756 = vmatmul.mubr.f32.gmra.mrb[0].mxu0 %v1755
  %v1757 = vpop.f32.mrb[0].mxu0
  %v1758 = vadd.f32 %v1464, %v1757
  %v1759 = vpop.f32.mrb[0].mxu0
  %1760 = vmatprep.mubr.f32.mxu0 0.0
  %v1761 = vand.u32 %v156, 4294901760
  %1762 = vmatmul.mubr.f32.gmra.mrb[0].mxu0 %v1761
  %v1763 = vpop.f32.mrb[0].mxu0
  %v1764 = vadd.f32 %v1472, %v1763
  %v1765 = vpop.f32.mrb[0].mxu0
  %1766 = vmatprep.mubr.f32.mxu0 0.0
  %v1767 = vand.u32 %v159, 4294901760
  %1768 = vmatmul.mubr.f32.gmra.mrb[0].mxu0 %v1767
  %v1769 = vpop.f32.mrb[0].mxu0
  %v1770 = vadd.f32 %v1480, %v1769
  %v1771 = vpop.f32.mrb[0].mxu0
  %1772 = vmatprep.mubr.f32.mxu0 0.0
  %v1773 = vand.u32 %v162, 4294901760
  %1774 = vmatmul.mubr.f32.gmra.mrb[0].mxu0 %v1773
  %v1775 = vpop.f32.mrb[0].mxu0
  %v1776 = vadd.f32 %v1488, %v1775
  %v1777 = vpop.f32.mrb[0].mxu0
  %1778 = vmatprep.mubr.f32.mxu0 0.0
  %v1779 = vand.u32 %v165, 4294901760
  %1780 = vmatmul.mubr.f32.gmra.mrb[0].mxu0 %v1779
  %v1781 = vpop.f32.mrb[0].mxu0
  %v1782 = vadd.f32 %v1496, %v1781
  %v1783 = vpop.f32.mrb[0].mxu0
  %1784 = vmatprep.mubr.f32.mxu0 0.0
  %v1785 = vand.u32 %v168, 4294901760
  %1786 = vmatmul.mubr.f32.gmra.mrb[0].mxu0 %v1785
  %v1787 = vpop.f32.mrb[0].mxu0
  %v1788 = vadd.f32 %v1504, %v1787
  %v1789 = vpop.f32.mrb[0].mxu0
  %1790 = vdwg.mxu0
  %1791 = vmatprep.subr.mxu0 0.0
  %v1792 = vand.u32 %v59, 4294901760
  %1793 = vmatpush1.msra.mxu0 %v1792
  %1794 = vmatprep.subr.mxu0 0.0
  %v1795 = vand.u32 %v60, 4294901760
  %1796 = vmatpush1.msra.mxu0 %v1795
  %1797 = vmatprep.subr.mxu0 0.0
  %v1798 = vand.u32 %v61, 4294901760
  %1799 = vmatpush1.msra.mxu0 %v1798
  %1800 = vmatprep.subr.mxu0 0.0
  %v1801 = vand.u32 %v62, 4294901760
  %1802 = vmatpush1.msra.mxu0 %v1801
  %1803 = vmatprep.subr.mxu0 0.0
  %v1804 = vand.u32 %v63, 4294901760
  %1805 = vmatpush1.msra.mxu0 %v1804
  %1806 = vmatprep.subr.mxu0 0.0
  %v1807 = vand.u32 %v64, 4294901760
  %1808 = vmatpush1.msra.mxu0 %v1807
  %1809 = vmatprep.subr.mxu0 0.0
  %v1810 = vand.u32 %v65, 4294901760
  %1811 = vmatpush1.msra.mxu0 %v1810
  %1812 = vmatprep.subr.mxu0 0.0
  %v1813 = vand.u32 %v66, 4294901760
  %1814 = vmatpush1.msra.mxu0 %v1813
  %1815 = vmatprep.subr.mxu0 0.0
  %v1816 = vand.u32 %v172, 4294901760
  %1817 = vmatpush1.msra.mxu0 %v1816
  %1818 = vmatprep.subr.mxu0 0.0
  %1819 = vmatpush1.msra.mxu0 0.0
  %1820 = vmatprep.subr.mxu0 0.0
  %1821 = vmatpush1.msra.mxu0 0.0
  %1822 = vmatprep.subr.mxu0 0.0
  %1823 = vmatpush1.msra.mxu0 0.0
  %1824 = vmatprep.subr.mxu0 0.0
  %1825 = vmatpush1.msra.mxu0 0.0
  %1826 = vmatprep.subr.mxu0 0.0
  %1827 = vmatpush1.msra.mxu0 0.0
  %1828 = vmatprep.subr.mxu0 0.0
  %1829 = vmatpush1.msra.mxu0 0.0
  %1830 = vmatprep.subr.mxu0 0.0
  %1831 = vmatpush1.msra.mxu0 0.0
  %1832 = vmatprep.subr.mxu0 0.0
  %1833 = vmatpush1.msra.mxu0 0.0
  %1834 = vmatprep.subr.mxu0 0.0
  %1835 = vmatpush1.msra.mxu0 0.0
  %1836 = vmatprep.subr.mxu0 0.0
  %1837 = vmatpush1.msra.mxu0 0.0
  %1838 = vmatprep.subr.mxu0 0.0
  %1839 = vmatpush1.msra.mxu0 0.0
  %1840 = vmatprep.subr.mxu0 0.0
  %1841 = vmatpush1.msra.mxu0 0.0
  %1842 = vmatprep.subr.mxu0 0.0
  %1843 = vmatpush1.msra.mxu0 0.0
  %1844 = vmatprep.subr.mxu0 0.0
  %1845 = vmatpush1.msra.mxu0 0.0
  %1846 = vmatprep.subr.mxu0 0.0
  %1847 = vmatpush1.msra.mxu0 0.0
  %1848 = vmatprep.subr.mxu0 0.0
  %1849 = vmatpush1.msra.mxu0 0.0
  %1850 = vmatprep.subr.mxu0 0.0
  %1851 = vmatpush1.msra.mxu0 0.0
  %1852 = vmatprep.subr.mxu0 0.0
  %1853 = vmatpush1.msra.mxu0 0.0
  %1854 = vmatprep.subr.mxu0 0.0
  %1855 = vmatpush1.msra.mxu0 0.0
  %1856 = vmatprep.subr.mxu0 0.0
  %1857 = vmatpush1.msra.mxu0 0.0
  %1858 = vmatprep.subr.mxu0 0.0
  %1859 = vmatpush1.msra.mxu0 0.0
  %1860 = vmatprep.subr.mxu0 0.0
  %1861 = vmatpush1.msra.mxu0 0.0
  %1862 = vmatprep.subr.mxu0 0.0
  %1863 = vmatpush1.msra.mxu0 0.0
  %1864 = vmatprep.mubr.f32.mxu0 0.0
  %v1865 = vand.u32 %v75, 4294901760
  %1866 = vmatmul.mubr.f32.gmra.mrb[0].mxu0 %v1865
  %v1867 = vpop.f32.mrb[0].mxu0
  %v1868 = vadd.f32 %v1602, %v1867
  %v1869 = vpop.f32.mrb[0].mxu0
  %1870 = vmatprep.mubr.f32.mxu0 0.0
  %v1871 = vand.u32 %v78, 4294901760
  %1872 = vmatmul.mubr.f32.gmra.mrb[0].mxu0 %v1871
  %v1873 = vpop.f32.mrb[0].mxu0
  %v1874 = vadd.f32 %v1608, %v1873
  %v1875 = vpop.f32.mrb[0].mxu0
  %1876 = vmatprep.mubr.f32.mxu0 0.0
  %v1877 = vand.u32 %v81, 4294901760
  %1878 = vmatmul.mubr.f32.gmra.mrb[0].mxu0 %v1877
  %v1879 = vpop.f32.mrb[0].mxu0
  %v1880 = vadd.f32 %v1614, %v1879
  %v1881 = vpop.f32.mrb[0].mxu0
  %1882 = vmatprep.mubr.f32.mxu0 0.0
  %v1883 = vand.u32 %v84, 4294901760
  %1884 = vmatmul.mubr.f32.gmra.mrb[0].mxu0 %v1883
  %v1885 = vpop.f32.mrb[0].mxu0
  %v1886 = vadd.f32 %v1620, %v1885
  %v1887 = vpop.f32.mrb[0].mxu0
  %1888 = vmatprep.mubr.f32.mxu0 0.0
  %v1889 = vand.u32 %v87, 4294901760
  %1890 = vmatmul.mubr.f32.gmra.mrb[0].mxu0 %v1889
  %v1891 = vpop.f32.mrb[0].mxu0
  %v1892 = vadd.f32 %v1626, %v1891
  %v1893 = vpop.f32.mrb[0].mxu0
  %1894 = vmatprep.mubr.f32.mxu0 0.0
  %v1895 = vand.u32 %v90, 4294901760
  %1896 = vmatmul.mubr.f32.gmra.mrb[0].mxu0 %v1895
  %v1897 = vpop.f32.mrb[0].mxu0
  %v1898 = vadd.f32 %v1632, %v1897
  %v1899 = vpop.f32.mrb[0].mxu0
  %1900 = vmatprep.mubr.f32.mxu0 0.0
  %v1901 = vand.u32 %v93, 4294901760
  %1902 = vmatmul.mubr.f32.gmra.mrb[0].mxu0 %v1901
  %v1903 = vpop.f32.mrb[0].mxu0
  %v1904 = vadd.f32 %v1638, %v1903
  %v1905 = vpop.f32.mrb[0].mxu0
  %1906 = vmatprep.mubr.f32.mxu0 0.0
  %v1907 = vand.u32 %v96, 4294901760
  %1908 = vmatmul.mubr.f32.gmra.mrb[0].mxu0 %v1907
  %v1909 = vpop.f32.mrb[0].mxu0
  %v1910 = vadd.f32 %v1644, %v1909
  %v1911 = vpop.f32.mrb[0].mxu0
  %1912 = vmatprep.mubr.f32.mxu0 0.0
  %v1913 = vand.u32 %v99, 4294901760
  %1914 = vmatmul.mubr.f32.gmra.mrb[0].mxu0 %v1913
  %v1915 = vpop.f32.mrb[0].mxu0
  %v1916 = vadd.f32 %v1650, %v1915
  %v1917 = vpop.f32.mrb[0].mxu0
  %1918 = vmatprep.mubr.f32.mxu0 0.0
  %v1919 = vand.u32 %v102, 4294901760
  %1920 = vmatmul.mubr.f32.gmra.mrb[0].mxu0 %v1919
  %v1921 = vpop.f32.mrb[0].mxu0
  %v1922 = vadd.f32 %v1656, %v1921
  %v1923 = vpop.f32.mrb[0].mxu0
  %1924 = vmatprep.mubr.f32.mxu0 0.0
  %v1925 = vand.u32 %v105, 4294901760
  %1926 = vmatmul.mubr.f32.gmra.mrb[0].mxu0 %v1925
  %v1927 = vpop.f32.mrb[0].mxu0
  %v1928 = vadd.f32 %v1662, %v1927
  %v1929 = vpop.f32.mrb[0].mxu0
  %1930 = vmatprep.mubr.f32.mxu0 0.0
  %v1931 = vand.u32 %v108, 4294901760
  %1932 = vmatmul.mubr.f32.gmra.mrb[0].mxu0 %v1931
  %v1933 = vpop.f32.mrb[0].mxu0
  %v1934 = vadd.f32 %v1668, %v1933
  %v1935 = vpop.f32.mrb[0].mxu0
  %1936 = vmatprep.mubr.f32.mxu0 0.0
  %v1937 = vand.u32 %v111, 4294901760
  %1938 = vmatmul.mubr.f32.gmra.mrb[0].mxu0 %v1937
  %v1939 = vpop.f32.mrb[0].mxu0
  %v1940 = vadd.f32 %v1674, %v1939
  %v1941 = vpop.f32.mrb[0].mxu0
  %1942 = vmatprep.mubr.f32.mxu0 0.0
  %v1943 = vand.u32 %v114, 4294901760
  %1944 = vmatmul.mubr.f32.gmra.mrb[0].mxu0 %v1943
  %v1945 = vpop.f32.mrb[0].mxu0
  %v1946 = vadd.f32 %v1680, %v1945
  %v1947 = vpop.f32.mrb[0].mxu0
  %1948 = vmatprep.mubr.f32.mxu0 0.0
  %v1949 = vand.u32 %v117, 4294901760
  %1950 = vmatmul.mubr.f32.gmra.mrb[0].mxu0 %v1949
  %v1951 = vpop.f32.mrb[0].mxu0
  %v1952 = vadd.f32 %v1686, %v1951
  %v1953 = vpop.f32.mrb[0].mxu0
  %1954 = vmatprep.mubr.f32.mxu0 0.0
  %v1955 = vand.u32 %v120, 4294901760
  %1956 = vmatmul.mubr.f32.gmra.mrb[0].mxu0 %v1955
  %v1957 = vpop.f32.mrb[0].mxu0
  %v1958 = vadd.f32 %v1692, %v1957
  %v1959 = vpop.f32.mrb[0].mxu0
  %1960 = vmatprep.mubr.f32.mxu0 0.0
  %v1961 = vand.u32 %v123, 4294901760
  %1962 = vmatmul.mubr.f32.gmra.mrb[0].mxu0 %v1961
  %v1963 = vpop.f32.mrb[0].mxu0
  %v1964 = vadd.f32 %v1698, %v1963
  %v1965 = vpop.f32.mrb[0].mxu0
  %1966 = vmatprep.mubr.f32.mxu0 0.0
  %v1967 = vand.u32 %v126, 4294901760
  %1968 = vmatmul.mubr.f32.gmra.mrb[0].mxu0 %v1967
  %v1969 = vpop.f32.mrb[0].mxu0
  %v1970 = vadd.f32 %v1704, %v1969
  %v1971 = vpop.f32.mrb[0].mxu0
  %1972 = vmatprep.mubr.f32.mxu0 0.0
  %v1973 = vand.u32 %v129, 4294901760
  %1974 = vmatmul.mubr.f32.gmra.mrb[0].mxu0 %v1973
  %v1975 = vpop.f32.mrb[0].mxu0
  %v1976 = vadd.f32 %v1710, %v1975
  %v1977 = vpop.f32.mrb[0].mxu0
  %1978 = vmatprep.mubr.f32.mxu0 0.0
  %v1979 = vand.u32 %v132, 4294901760
  %1980 = vmatmul.mubr.f32.gmra.mrb[0].mxu0 %v1979
  %v1981 = vpop.f32.mrb[0].mxu0
  %v1982 = vadd.f32 %v1716, %v1981
  %v1983 = vpop.f32.mrb[0].mxu0
  %1984 = vmatprep.mubr.f32.mxu0 0.0
  %v1985 = vand.u32 %v135, 4294901760
  %1986 = vmatmul.mubr.f32.gmra.mrb[0].mxu0 %v1985
  %v1987 = vpop.f32.mrb[0].mxu0
  %v1988 = vadd.f32 %v1722, %v1987
  %v1989 = vpop.f32.mrb[0].mxu0
  %1990 = vmatprep.mubr.f32.mxu0 0.0
  %v1991 = vand.u32 %v138, 4294901760
  %1992 = vmatmul.mubr.f32.gmra.mrb[0].mxu0 %v1991
  %v1993 = vpop.f32.mrb[0].mxu0
  %v1994 = vadd.f32 %v1728, %v1993
  %v1995 = vpop.f32.mrb[0].mxu0
  %1996 = vmatprep.mubr.f32.mxu0 0.0
  %v1997 = vand.u32 %v141, 4294901760
  %1998 = vmatmul.mubr.f32.gmra.mrb[0].mxu0 %v1997
  %v1999 = vpop.f32.mrb[0].mxu0
  %v2000 = vadd.f32 %v1734, %v1999
  %v2001 = vpop.f32.mrb[0].mxu0
  %2002 = vmatprep.mubr.f32.mxu0 0.0
  %v2003 = vand.u32 %v144, 4294901760
  %2004 = vmatmul.mubr.f32.gmra.mrb[0].mxu0 %v2003
  %v2005 = vpop.f32.mrb[0].mxu0
  %v2006 = vadd.f32 %v1740, %v2005
  %v2007 = vpop.f32.mrb[0].mxu0
  %2008 = vmatprep.mubr.f32.mxu0 0.0
  %v2009 = vand.u32 %v147, 4294901760
  %2010 = vmatmul.mubr.f32.gmra.mrb[0].mxu0 %v2009
  %v2011 = vpop.f32.mrb[0].mxu0
  %v2012 = vadd.f32 %v1746, %v2011
  %v2013 = vpop.f32.mrb[0].mxu0
  %2014 = vmatprep.mubr.f32.mxu0 0.0
  %v2015 = vand.u32 %v150, 4294901760
  %2016 = vmatmul.mubr.f32.gmra.mrb[0].mxu0 %v2015
  %v2017 = vpop.f32.mrb[0].mxu0
  %v2018 = vadd.f32 %v1752, %v2017
  %v2019 = vpop.f32.mrb[0].mxu0
  %2020 = vmatprep.mubr.f32.mxu0 0.0
  %v2021 = vand.u32 %v153, 4294901760
  %2022 = vmatmul.mubr.f32.gmra.mrb[0].mxu0 %v2021
  %v2023 = vpop.f32.mrb[0].mxu0
  %v2024 = vadd.f32 %v1758, %v2023
  %v2025 = vpop.f32.mrb[0].mxu0
  %2026 = vmatprep.mubr.f32.mxu0 0.0
  %v2027 = vand.u32 %v156, 4294901760
  %2028 = vmatmul.mubr.f32.gmra.mrb[0].mxu0 %v2027
  %v2029 = vpop.f32.mrb[0].mxu0
  %v2030 = vadd.f32 %v1764, %v2029
  %v2031 = vpop.f32.mrb[0].mxu0
  %2032 = vmatprep.mubr.f32.mxu0 0.0
  %v2033 = vand.u32 %v159, 4294901760
  %2034 = vmatmul.mubr.f32.gmra.mrb[0].mxu0 %v2033
  %v2035 = vpop.f32.mrb[0].mxu0
  %v2036 = vadd.f32 %v1770, %v2035
  %v2037 = vpop.f32.mrb[0].mxu0
  %2038 = vmatprep.mubr.f32.mxu0 0.0
  %v2039 = vand.u32 %v162, 4294901760
  %2040 = vmatmul.mubr.f32.gmra.mrb[0].mxu0 %v2039
  %v2041 = vpop.f32.mrb[0].mxu0
  %v2042 = vadd.f32 %v1776, %v2041
  %v2043 = vpop.f32.mrb[0].mxu0
  %2044 = vmatprep.mubr.f32.mxu0 0.0
  %v2045 = vand.u32 %v165, 4294901760
  %2046 = vmatmul.mubr.f32.gmra.mrb[0].mxu0 %v2045
  %v2047 = vpop.f32.mrb[0].mxu0
  %v2048 = vadd.f32 %v1782, %v2047
  %v2049 = vpop.f32.mrb[0].mxu0
  %2050 = vmatprep.mubr.f32.mxu0 0.0
  %v2051 = vand.u32 %v168, 4294901760
  %2052 = vmatmul.mubr.f32.gmra.mrb[0].mxu0 %v2051
  %v2053 = vpop.f32.mrb[0].mxu0
  %v2054 = vadd.f32 %v1788, %v2053
  %v2055 = vpop.f32.mrb[0].mxu0
  %2056 = vdwg.mxu0
  %vm2057 = vcmp.gt.f32.partialorder %v1868, 0.0
  %vm2058 = vcmp.gt.f32.partialorder %v1874, 0.0
  %vm2059 = vcmp.gt.f32.partialorder %v1880, 0.0
  %vm2060 = vcmp.gt.f32.partialorder %v1886, 0.0
  %vm2061 = vcmp.gt.f32.partialorder %v1892, 0.0
  %vm2062 = vcmp.gt.f32.partialorder %v1898, 0.0
  %vm2063 = vcmp.gt.f32.partialorder %v1904, 0.0
  %vm2064 = vcmp.gt.f32.partialorder %v1910, 0.0
  %vm2065 = vcmp.gt.f32.partialorder %v1916, 0.0
  %vm2066 = vcmp.gt.f32.partialorder %v1922, 0.0
  %vm2067 = vcmp.gt.f32.partialorder %v1928, 0.0
  %vm2068 = vcmp.gt.f32.partialorder %v1934, 0.0
  %vm2069 = vcmp.gt.f32.partialorder %v1940, 0.0
  %vm2070 = vcmp.gt.f32.partialorder %v1946, 0.0
  %vm2071 = vcmp.gt.f32.partialorder %v1952, 0.0
  %vm2072 = vcmp.gt.f32.partialorder %v1958, 0.0
  %vm2073 = vcmp.gt.f32.partialorder %v1964, 0.0
  %vm2074 = vcmp.gt.f32.partialorder %v1970, 0.0
  %vm2075 = vcmp.gt.f32.partialorder %v1976, 0.0
  %vm2076 = vcmp.gt.f32.partialorder %v1982, 0.0
  %vm2077 = vcmp.gt.f32.partialorder %v1988, 0.0
  %vm2078 = vcmp.gt.f32.partialorder %v1994, 0.0
  %vm2079 = vcmp.gt.f32.partialorder %v2000, 0.0
  %vm2080 = vcmp.gt.f32.partialorder %v2006, 0.0
  %vm2081 = vcmp.gt.f32.partialorder %v2012, 0.0
  %vm2082 = vcmp.gt.f32.partialorder %v2018, 0.0
  %vm2083 = vcmp.gt.f32.partialorder %v2024, 0.0
  %vm2084 = vcmp.gt.f32.partialorder %v2030, 0.0
  %vm2085 = vcmp.gt.f32.partialorder %v2036, 0.0
  %vm2086 = vcmp.gt.f32.partialorder %v2042, 0.0
  %vm2087 = vcmp.gt.f32.partialorder %v2048, 0.0
  %vm2088 = vcmp.gt.f32.partialorder %v2054, 0.0
  %v2089 = vmul.f32 %v1868, 1.442695
  %v2090 = vpow.pop %v2089
  %v2091 = vmul.f32 %v1874, 1.442695
  %v2092 = vpow.pop %v2091
  %v2093 = vmul.f32 %v1880, 1.442695
  %v2094 = vpow.pop %v2093
  %v2095 = vmul.f32 %v1886, 1.442695
  %v2096 = vpow.pop %v2095
  %v2097 = vmul.f32 %v1892, 1.442695
  %v2098 = vpow.pop %v2097
  %v2099 = vmul.f32 %v1898, 1.442695
  %v2100 = vpow.pop %v2099
  %v2101 = vmul.f32 %v1904, 1.442695
  %v2102 = vpow.pop %v2101
  %v2103 = vmul.f32 %v1910, 1.442695
  %v2104 = vpow.pop %v2103
  %v2105 = vmul.f32 %v1916, 1.442695
  %v2106 = vpow.pop %v2105
  %v2107 = vmul.f32 %v1922, 1.442695
  %v2108 = vpow.pop %v2107
  %v2109 = vmul.f32 %v1928, 1.442695
  %v2110 = vpow.pop %v2109
  %v2111 = vmul.f32 %v1934, 1.442695
  %v2112 = vpow.pop %v2111
  %v2113 = vmul.f32 %v1940, 1.442695
  %v2114 = vpow.pop %v2113
  %v2115 = vmul.f32 %v1946, 1.442695
  %v2116 = vpow.pop %v2115
  %v2117 = vmul.f32 %v1952, 1.442695
  %v2118 = vpow.pop %v2117
  %v2119 = vmul.f32 %v1958, 1.442695
  %v2120 = vpow.pop %v2119
  %v2121 = vmul.f32 %v1964, 1.442695
  %v2122 = vpow.pop %v2121
  %v2123 = vmul.f32 %v1970, 1.442695
  %v2124 = vpow.pop %v2123
  %v2125 = vmul.f32 %v1976, 1.442695
  %v2126 = vpow.pop %v2125
  %v2127 = vmul.f32 %v1982, 1.442695
  %v2128 = vpow.pop %v2127
  %v2129 = vmul.f32 %v1988, 1.442695
  %v2130 = vpow.pop %v2129
  %v2131 = vmul.f32 %v1994, 1.442695
  %v2132 = vpow.pop %v2131
  %v2133 = vmul.f32 %v2000, 1.442695
  %v2134 = vpow.pop %v2133
  %v2135 = vmul.f32 %v2006, 1.442695
  %v2136 = vpow.pop %v2135
  %v2137 = vmul.f32 %v2012, 1.442695
  %v2138 = vpow.pop %v2137
  %v2139 = vmul.f32 %v2018, 1.442695
  %v2140 = vpow.pop %v2139
  %v2141 = vmul.f32 %v2024, 1.442695
  %v2142 = vpow.pop %v2141
  %v2143 = vmul.f32 %v2030, 1.442695
  %v2144 = vpow.pop %v2143
  %v2145 = vmul.f32 %v2036, 1.442695
  %v2146 = vpow.pop %v2145
  %v2147 = vmul.f32 %v2042, 1.442695
  %v2148 = vpow.pop %v2147
  %v2149 = vmul.f32 %v2048, 1.442695
  %v2150 = vpow.pop %v2149
  %v2151 = vmul.f32 %v2054, 1.442695
  %v2152 = vpow.pop %v2151
  %v2153 = vsub.f32 %v2090, 1.0
  %v2154 = vsub.f32 %v2092, 1.0
  %v2155 = vsub.f32 %v2094, 1.0
  %v2156 = vsub.f32 %v2096, 1.0
  %v2157 = vsub.f32 %v2098, 1.0
  %v2158 = vsub.f32 %v2100, 1.0
  %v2159 = vsub.f32 %v2102, 1.0
  %v2160 = vsub.f32 %v2104, 1.0
  %v2161 = vsub.f32 %v2106, 1.0
  %v2162 = vsub.f32 %v2108, 1.0
  %v2163 = vsub.f32 %v2110, 1.0
  %v2164 = vsub.f32 %v2112, 1.0
  %v2165 = vsub.f32 %v2114, 1.0
  %v2166 = vsub.f32 %v2116, 1.0
  %v2167 = vsub.f32 %v2118, 1.0
  %v2168 = vsub.f32 %v2120, 1.0
  %v2169 = vsub.f32 %v2122, 1.0
  %v2170 = vsub.f32 %v2124, 1.0
  %v2171 = vsub.f32 %v2126, 1.0
  %v2172 = vsub.f32 %v2128, 1.0
  %v2173 = vsub.f32 %v2130, 1.0
  %v2174 = vsub.f32 %v2132, 1.0
  %v2175 = vsub.f32 %v2134, 1.0
  %v2176 = vsub.f32 %v2136, 1.0
  %v2177 = vsub.f32 %v2138, 1.0
  %v2178 = vsub.f32 %v2140, 1.0
  %v2179 = vsub.f32 %v2142, 1.0
  %v2180 = vsub.f32 %v2144, 1.0
  %v2181 = vsub.f32 %v2146, 1.0
  %v2182 = vsub.f32 %v2148, 1.0
  %v2183 = vsub.f32 %v2150, 1.0
  %v2184 = vsub.f32 %v2152, 1.0
  %v2185 = vsel %vm2057, %v1868, %v2153
  %v2186 = vsel %vm2058, %v1874, %v2154
  %v2187 = vsel %vm2059, %v1880, %v2155
  %v2188 = vsel %vm2060, %v1886, %v2156
  %v2189 = vsel %vm2061, %v1892, %v2157
  %v2190 = vsel %vm2062, %v1898, %v2158
  %v2191 = vsel %vm2063, %v1904, %v2159
  %v2192 = vsel %vm2064, %v1910, %v2160
  %v2193 = vsel %vm2065, %v1916, %v2161
  %v2194 = vsel %vm2066, %v1922, %v2162
  %v2195 = vsel %vm2067, %v1928, %v2163
  %v2196 = vsel %vm2068, %v1934, %v2164
  %v2197 = vsel %vm2069, %v1940, %v2165
  %v2198 = vsel %vm2070, %v1946, %v2166
  %v2199 = vsel %vm2071, %v1952, %v2167
  %v2200 = vsel %vm2072, %v1958, %v2168
  %v2201 = vsel %vm2073, %v1964, %v2169
  %v2202 = vsel %vm2074, %v1970, %v2170
  %v2203 = vsel %vm2075, %v1976, %v2171
  %v2204 = vsel %vm2076, %v1982, %v2172
  %v2205 = vsel %vm2077, %v1988, %v2173
  %v2206 = vsel %vm2078, %v1994, %v2174
  %v2207 = vsel %vm2079, %v2000, %v2175
  %v2208 = vsel %vm2080, %v2006, %v2176
  %v2209 = vsel %vm2081, %v2012, %v2177
  %v2210 = vsel %vm2082, %v2018, %v2178
  %v2211 = vsel %vm2083, %v2024, %v2179
  %v2212 = vsel %vm2084, %v2030, %v2180
  %v2213 = vsel %vm2085, %v2036, %v2181
  %v2214 = vsel %vm2086, %v2042, %v2182
  %v2215 = vsel %vm2087, %v2048, %v2183
  %v2216 = vsel %vm2088, %v2054, %v2184
  %vm2217 = vcmask 523264
  %2218 = vst.msk [vmem:[%s6] sm:$0xff] %vm2217, %v2185
  %2219 = vst.msk [vmem:[%s6 + $0x8] sm:$0xff] %vm2217, %v2186
  %2220 = vst.msk [vmem:[%s6 + $0x10] sm:$0xff] %vm2217, %v2187
  %2221 = vst.msk [vmem:[%s6 + $0x18] sm:$0xff] %vm2217, %v2188
  %2222 = vst.msk [vmem:[%s6 + $0x20] sm:$0xff] %vm2217, %v2189
  %2223 = vst.msk [vmem:[%s6 + $0x28] sm:$0xff] %vm2217, %v2190
  %2224 = vst.msk [vmem:[%s6 + $0x30] sm:$0xff] %vm2217, %v2191
  %2225 = vst.msk [vmem:[%s6 + $0x38] sm:$0xff] %vm2217, %v2192
  %2226 = vst.msk [vmem:[%s6 + $0x40] sm:$0xff] %vm2217, %v2193
  %2227 = vst.msk [vmem:[%s6 + $0x48] sm:$0xff] %vm2217, %v2194
  %2228 = vst.msk [vmem:[%s6 + $0x50] sm:$0xff] %vm2217, %v2195
  %2229 = vst.msk [vmem:[%s6 + $0x58] sm:$0xff] %vm2217, %v2196
  %2230 = vst.msk [vmem:[%s6 + $0x60] sm:$0xff] %vm2217, %v2197
  %2231 = vst.msk [vmem:[%s6 + $0x68] sm:$0xff] %vm2217, %v2198
  %2232 = vst.msk [vmem:[%s6 + $0x70] sm:$0xff] %vm2217, %v2199
  %2233 = vst.msk [vmem:[%s6 + $0x78] sm:$0xff] %vm2217, %v2200
  %2234 = vst.msk [vmem:[%s6 + $0x80] sm:$0xff] %vm2217, %v2201
  %2235 = vst.msk [vmem:[%s6 + $0x88] sm:$0xff] %vm2217, %v2202
  %2236 = vst.msk [vmem:[%s6 + $0x90] sm:$0xff] %vm2217, %v2203
  %2237 = vst.msk [vmem:[%s6 + $0x98] sm:$0xff] %vm2217, %v2204
  %2238 = vst.msk [vmem:[%s6 + $0xa0] sm:$0xff] %vm2217, %v2205
  %2239 = vst.msk [vmem:[%s6 + $0xa8] sm:$0xff] %vm2217, %v2206
  %2240 = vst.msk [vmem:[%s6 + $0xb0] sm:$0xff] %vm2217, %v2207
  %2241 = vst.msk [vmem:[%s6 + $0xb8] sm:$0xff] %vm2217, %v2208
  %2242 = vst.msk [vmem:[%s6 + $0xc0] sm:$0xff] %vm2217, %v2209
  %2243 = vst.msk [vmem:[%s6 + $0xc8] sm:$0xff] %vm2217, %v2210
  %2244 = vst.msk [vmem:[%s6 + $0xd0] sm:$0xff] %vm2217, %v2211
  %2245 = vst.msk [vmem:[%s6 + $0xd8] sm:$0xff] %vm2217, %v2212
  %2246 = vst.msk [vmem:[%s6 + $0xe0] sm:$0xff] %vm2217, %v2213
  %2247 = vst.msk [vmem:[%s6 + $0xe8] sm:$0xff] %vm2217, %v2214
  %2248 = vst.msk [vmem:[%s6 + $0xf0] sm:$0xff] %vm2217, %v2215
  %2249 = vst.msk [vmem:[%s6 + $0xf8] sm:$0xff] %vm2217, %v2216
  %v2250 = vld [vmem:[%s2] sm:$0xff]
  %v2251 = vld [vmem:[%s2 + $0x8] sm:$0xff]
  %v2252 = vld [vmem:[%s2 + $0x10] sm:$0xff]
  %v2253 = vld [vmem:[%s2 + $0x18] sm:$0xff]
  %v2254 = vld [vmem:[%s2 + $0x20] sm:$0xff]
  %v2255 = vld [vmem:[%s2 + $0x28] sm:$0xff]
  %v2256 = vld [vmem:[%s2 + $0x30] sm:$0xff]
  %v2257 = vld [vmem:[%s2 + $0x38] sm:$0xff]
  %v2258 = vld [vmem:[%s5 + $0x1] sm:$0x1]
  %v2259 = vlaneseq
  %v2260 = vshrl.u32 %v2259, 7
  %v2261 = vsub.s32 0, %v2260
  %v2262 = vrot.slane %v2258, %v2261
  %v2264 = vsel %vm2217, %v2185, 0
  %v2267 = vsel %vm2217, %v2186, 0
  %v2270 = vsel %vm2217, %v2187, 0
  %v2273 = vsel %vm2217, %v2188, 0
  %v2276 = vsel %vm2217, %v2189, 0
  %v2279 = vsel %vm2217, %v2190, 0
  %v2282 = vsel %vm2217, %v2191, 0
  %v2285 = vsel %vm2217, %v2192, 0
  %v2288 = vsel %vm2217, %v2193, 0
  %v2291 = vsel %vm2217, %v2194, 0
  %v2294 = vsel %vm2217, %v2195, 0
  %v2297 = vsel %vm2217, %v2196, 0
  %v2300 = vsel %vm2217, %v2197, 0
  %v2303 = vsel %vm2217, %v2198, 0
  %v2306 = vsel %vm2217, %v2199, 0
  %v2309 = vsel %vm2217, %v2200, 0
  %v2312 = vsel %vm2217, %v2201, 0
  %v2315 = vsel %vm2217, %v2202, 0
  %v2318 = vsel %vm2217, %v2203, 0
  %v2321 = vsel %vm2217, %v2204, 0
  %v2324 = vsel %vm2217, %v2205, 0
  %v2327 = vsel %vm2217, %v2206, 0
  %v2330 = vsel %vm2217, %v2207, 0
  %v2333 = vsel %vm2217, %v2208, 0
  %v2336 = vsel %vm2217, %v2209, 0
  %v2339 = vsel %vm2217, %v2210, 0
  %v2342 = vsel %vm2217, %v2211, 0
  %v2345 = vsel %vm2217, %v2212, 0
  %v2348 = vsel %vm2217, %v2213, 0
  %v2351 = vsel %vm2217, %v2214, 0
  %v2354 = vsel %vm2217, %v2215, 0
  %v2357 = vsel %vm2217, %v2216, 0
  %2359 = vmatprep.subr.mxu0 0.0
  %v2360 = vand.u32 %v2250, 4294901760
  %2361 = vmatpush1.msra.mxu0 %v2360
  %2362 = vmatprep.subr.mxu0 0.0
  %v2363 = vand.u32 %v2251, 4294901760
  %2364 = vmatpush1.msra.mxu0 %v2363
  %2365 = vmatprep.subr.mxu0 0.0
  %v2366 = vand.u32 %v2252, 4294901760
  %2367 = vmatpush1.msra.mxu0 %v2366
  %2368 = vmatprep.subr.mxu0 0.0
  %v2369 = vand.u32 %v2253, 4294901760
  %2370 = vmatpush1.msra.mxu0 %v2369
  %2371 = vmatprep.subr.mxu0 0.0
  %v2372 = vand.u32 %v2254, 4294901760
  %2373 = vmatpush1.msra.mxu0 %v2372
  %2374 = vmatprep.subr.mxu0 0.0
  %v2375 = vand.u32 %v2255, 4294901760
  %2376 = vmatpush1.msra.mxu0 %v2375
  %2377 = vmatprep.subr.mxu0 0.0
  %v2378 = vand.u32 %v2256, 4294901760
  %2379 = vmatpush1.msra.mxu0 %v2378
  %2380 = vmatprep.subr.mxu0 0.0
  %v2381 = vand.u32 %v2257, 4294901760
  %2382 = vmatpush1.msra.mxu0 %v2381
  %2383 = vmatprep.subr.mxu0 0.0
  %2384 = vmatpush1.msra.mxu0 0.0
  %2385 = vmatprep.subr.mxu0 0.0
  %2386 = vmatpush1.msra.mxu0 0.0
  %2387 = vmatprep.subr.mxu0 0.0
  %2388 = vmatpush1.msra.mxu0 0.0
  %2389 = vmatprep.subr.mxu0 0.0
  %2390 = vmatpush1.msra.mxu0 0.0
  %2391 = vmatprep.subr.mxu0 0.0
  %2392 = vmatpush1.msra.mxu0 0.0
  %2393 = vmatprep.subr.mxu0 0.0
  %2394 = vmatpush1.msra.mxu0 0.0
  %2395 = vmatprep.subr.mxu0 0.0
  %2396 = vmatpush1.msra.mxu0 0.0
  %2397 = vmatprep.subr.mxu0 0.0
  %2398 = vmatpush1.msra.mxu0 0.0
  %2399 = vmatprep.subr.mxu0 0.0
  %2400 = vmatpush1.msra.mxu0 0.0
  %2401 = vmatprep.subr.mxu0 0.0
  %2402 = vmatpush1.msra.mxu0 0.0
  %2403 = vmatprep.subr.mxu0 0.0
  %2404 = vmatpush1.msra.mxu0 0.0
  %2405 = vmatprep.subr.mxu0 0.0
  %2406 = vmatpush1.msra.mxu0 0.0
  %2407 = vmatprep.subr.mxu0 0.0
  %2408 = vmatpush1.msra.mxu0 0.0
  %2409 = vmatprep.subr.mxu0 0.0
  %2410 = vmatpush1.msra.mxu0 0.0
  %2411 = vmatprep.subr.mxu0 0.0
  %2412 = vmatpush1.msra.mxu0 0.0
  %2413 = vmatprep.subr.mxu0 0.0
  %2414 = vmatpush1.msra.mxu0 0.0
  %2415 = vmatprep.subr.mxu0 0.0
  %2416 = vmatpush1.msra.mxu0 0.0
  %2417 = vmatprep.subr.mxu0 0.0
  %2418 = vmatpush1.msra.mxu0 0.0
  %2419 = vmatprep.subr.mxu0 0.0
  %2420 = vmatpush1.msra.mxu0 0.0
  %2421 = vmatprep.subr.mxu0 0.0
  %2422 = vmatpush1.msra.mxu0 0.0
  %2423 = vmatprep.subr.mxu0 0.0
  %2424 = vmatpush1.msra.mxu0 0.0
  %2425 = vmatprep.subr.mxu0 0.0
  %2426 = vmatpush1.msra.mxu0 0.0
  %2427 = vmatprep.subr.mxu0 0.0
  %2428 = vmatpush1.msra.mxu0 0.0
  %2429 = vmatprep.subr.mxu0 0.0
  %2430 = vmatpush1.msra.mxu0 0.0
  %2431 = vmatprep.mubr.f32.mxu0 0.0
  %v2432 = vand.u32 %v2264, 4294901760
  %v2433 = vsub.f32 %v2264, %v2432
  %v2434 = vand.u32 %v2433, 4294901760
  %v2435 = vsub.f32 %v2433, %v2434
  %v2436 = vand.u32 %v2435, 4294901760
  %2437 = vmatmul.mubr.f32.gmra.mrb[0].mxu0 %v2436
  %v2438 = vpop.f32.mrb[0].mxu0
  %v2439 = vadd.f32 %v2262, %v2438
  %v2440 = vpop.f32.mrb[0].mxu0
  %2441 = vmatprep.mubr.f32.mxu0 0.0
  %v2442 = vand.u32 %v2267, 4294901760
  %v2443 = vsub.f32 %v2267, %v2442
  %v2444 = vand.u32 %v2443, 4294901760
  %v2445 = vsub.f32 %v2443, %v2444
  %v2446 = vand.u32 %v2445, 4294901760
  %2447 = vmatmul.mubr.f32.gmra.mrb[0].mxu0 %v2446
  %v2448 = vpop.f32.mrb[0].mxu0
  %v2449 = vadd.f32 %v2262, %v2448
  %v2450 = vpop.f32.mrb[0].mxu0
  %2451 = vmatprep.mubr.f32.mxu0 0.0
  %v2452 = vand.u32 %v2270, 4294901760
  %v2453 = vsub.f32 %v2270, %v2452
  %v2454 = vand.u32 %v2453, 4294901760
  %v2455 = vsub.f32 %v2453, %v2454
  %v2456 = vand.u32 %v2455, 4294901760
  %2457 = vmatmul.mubr.f32.gmra.mrb[0].mxu0 %v2456
  %v2458 = vpop.f32.mrb[0].mxu0
  %v2459 = vadd.f32 %v2262, %v2458
  %v2460 = vpop.f32.mrb[0].mxu0
  %2461 = vmatprep.mubr.f32.mxu0 0.0
  %v2462 = vand.u32 %v2273, 4294901760
  %v2463 = vsub.f32 %v2273, %v2462
  %v2464 = vand.u32 %v2463, 4294901760
  %v2465 = vsub.f32 %v2463, %v2464
  %v2466 = vand.u32 %v2465, 4294901760
  %2467 = vmatmul.mubr.f32.gmra.mrb[0].mxu0 %v2466
  %v2468 = vpop.f32.mrb[0].mxu0
  %v2469 = vadd.f32 %v2262, %v2468
  %v2470 = vpop.f32.mrb[0].mxu0
  %2471 = vmatprep.mubr.f32.mxu0 0.0
  %v2472 = vand.u32 %v2276, 4294901760
  %v2473 = vsub.f32 %v2276, %v2472
  %v2474 = vand.u32 %v2473, 4294901760
  %v2475 = vsub.f32 %v2473, %v2474
  %v2476 = vand.u32 %v2475, 4294901760
  %2477 = vmatmul.mubr.f32.gmra.mrb[0].mxu0 %v2476
  %v2478 = vpop.f32.mrb[0].mxu0
  %v2479 = vadd.f32 %v2262, %v2478
  %v2480 = vpop.f32.mrb[0].mxu0
  %2481 = vmatprep.mubr.f32.mxu0 0.0
  %v2482 = vand.u32 %v2279, 4294901760
  %v2483 = vsub.f32 %v2279, %v2482
  %v2484 = vand.u32 %v2483, 4294901760
  %v2485 = vsub.f32 %v2483, %v2484
  %v2486 = vand.u32 %v2485, 4294901760
  %2487 = vmatmul.mubr.f32.gmra.mrb[0].mxu0 %v2486
  %v2488 = vpop.f32.mrb[0].mxu0
  %v2489 = vadd.f32 %v2262, %v2488
  %v2490 = vpop.f32.mrb[0].mxu0
  %2491 = vmatprep.mubr.f32.mxu0 0.0
  %v2492 = vand.u32 %v2282, 4294901760
  %v2493 = vsub.f32 %v2282, %v2492
  %v2494 = vand.u32 %v2493, 4294901760
  %v2495 = vsub.f32 %v2493, %v2494
  %v2496 = vand.u32 %v2495, 4294901760
  %2497 = vmatmul.mubr.f32.gmra.mrb[0].mxu0 %v2496
  %v2498 = vpop.f32.mrb[0].mxu0
  %v2499 = vadd.f32 %v2262, %v2498
  %v2500 = vpop.f32.mrb[0].mxu0
  %2501 = vmatprep.mubr.f32.mxu0 0.0
  %v2502 = vand.u32 %v2285, 4294901760
  %v2503 = vsub.f32 %v2285, %v2502
  %v2504 = vand.u32 %v2503, 4294901760
  %v2505 = vsub.f32 %v2503, %v2504
  %v2506 = vand.u32 %v2505, 4294901760
  %2507 = vmatmul.mubr.f32.gmra.mrb[0].mxu0 %v2506
  %v2508 = vpop.f32.mrb[0].mxu0
  %v2509 = vadd.f32 %v2262, %v2508
  %v2510 = vpop.f32.mrb[0].mxu0
  %2511 = vmatprep.mubr.f32.mxu0 0.0
  %v2512 = vand.u32 %v2288, 4294901760
  %v2513 = vsub.f32 %v2288, %v2512
  %v2514 = vand.u32 %v2513, 4294901760
  %v2515 = vsub.f32 %v2513, %v2514
  %v2516 = vand.u32 %v2515, 4294901760
  %2517 = vmatmul.mubr.f32.gmra.mrb[0].mxu0 %v2516
  %v2518 = vpop.f32.mrb[0].mxu0
  %v2519 = vadd.f32 %v2262, %v2518
  %v2520 = vpop.f32.mrb[0].mxu0
  %2521 = vmatprep.mubr.f32.mxu0 0.0
  %v2522 = vand.u32 %v2291, 4294901760
  %v2523 = vsub.f32 %v2291, %v2522
  %v2524 = vand.u32 %v2523, 4294901760
  %v2525 = vsub.f32 %v2523, %v2524
  %v2526 = vand.u32 %v2525, 4294901760
  %2527 = vmatmul.mubr.f32.gmra.mrb[0].mxu0 %v2526
  %v2528 = vpop.f32.mrb[0].mxu0
  %v2529 = vadd.f32 %v2262, %v2528
  %v2530 = vpop.f32.mrb[0].mxu0
  %2531 = vmatprep.mubr.f32.mxu0 0.0
  %v2532 = vand.u32 %v2294, 4294901760
  %v2533 = vsub.f32 %v2294, %v2532
  %v2534 = vand.u32 %v2533, 4294901760
  %v2535 = vsub.f32 %v2533, %v2534
  %v2536 = vand.u32 %v2535, 4294901760
  %2537 = vmatmul.mubr.f32.gmra.mrb[0].mxu0 %v2536
  %v2538 = vpop.f32.mrb[0].mxu0
  %v2539 = vadd.f32 %v2262, %v2538
  %v2540 = vpop.f32.mrb[0].mxu0
  %2541 = vmatprep.mubr.f32.mxu0 0.0
  %v2542 = vand.u32 %v2297, 4294901760
  %v2543 = vsub.f32 %v2297, %v2542
  %v2544 = vand.u32 %v2543, 4294901760
  %v2545 = vsub.f32 %v2543, %v2544
  %v2546 = vand.u32 %v2545, 4294901760
  %2547 = vmatmul.mubr.f32.gmra.mrb[0].mxu0 %v2546
  %v2548 = vpop.f32.mrb[0].mxu0
  %v2549 = vadd.f32 %v2262, %v2548
  %v2550 = vpop.f32.mrb[0].mxu0
  %2551 = vmatprep.mubr.f32.mxu0 0.0
  %v2552 = vand.u32 %v2300, 4294901760
  %v2553 = vsub.f32 %v2300, %v2552
  %v2554 = vand.u32 %v2553, 4294901760
  %v2555 = vsub.f32 %v2553, %v2554
  %v2556 = vand.u32 %v2555, 4294901760
  %2557 = vmatmul.mubr.f32.gmra.mrb[0].mxu0 %v2556
  %v2558 = vpop.f32.mrb[0].mxu0
  %v2559 = vadd.f32 %v2262, %v2558
  %v2560 = vpop.f32.mrb[0].mxu0
  %2561 = vmatprep.mubr.f32.mxu0 0.0
  %v2562 = vand.u32 %v2303, 4294901760
  %v2563 = vsub.f32 %v2303, %v2562
  %v2564 = vand.u32 %v2563, 4294901760
  %v2565 = vsub.f32 %v2563, %v2564
  %v2566 = vand.u32 %v2565, 4294901760
  %2567 = vmatmul.mubr.f32.gmra.mrb[0].mxu0 %v2566
  %v2568 = vpop.f32.mrb[0].mxu0
  %v2569 = vadd.f32 %v2262, %v2568
  %v2570 = vpop.f32.mrb[0].mxu0
  %2571 = vmatprep.mubr.f32.mxu0 0.0
  %v2572 = vand.u32 %v2306, 4294901760
  %v2573 = vsub.f32 %v2306, %v2572
  %v2574 = vand.u32 %v2573, 4294901760
  %v2575 = vsub.f32 %v2573, %v2574
  %v2576 = vand.u32 %v2575, 4294901760
  %2577 = vmatmul.mubr.f32.gmra.mrb[0].mxu0 %v2576
  %v2578 = vpop.f32.mrb[0].mxu0
  %v2579 = vadd.f32 %v2262, %v2578
  %v2580 = vpop.f32.mrb[0].mxu0
  %2581 = vmatprep.mubr.f32.mxu0 0.0
  %v2582 = vand.u32 %v2309, 4294901760
  %v2583 = vsub.f32 %v2309, %v2582
  %v2584 = vand.u32 %v2583, 4294901760
  %v2585 = vsub.f32 %v2583, %v2584
  %v2586 = vand.u32 %v2585, 4294901760
  %2587 = vmatmul.mubr.f32.gmra.mrb[0].mxu0 %v2586
  %v2588 = vpop.f32.mrb[0].mxu0
  %v2589 = vadd.f32 %v2262, %v2588
  %v2590 = vpop.f32.mrb[0].mxu0
  %2591 = vmatprep.mubr.f32.mxu0 0.0
  %v2592 = vand.u32 %v2312, 4294901760
  %v2593 = vsub.f32 %v2312, %v2592
  %v2594 = vand.u32 %v2593, 4294901760
  %v2595 = vsub.f32 %v2593, %v2594
  %v2596 = vand.u32 %v2595, 4294901760
  %2597 = vmatmul.mubr.f32.gmra.mrb[0].mxu0 %v2596
  %v2598 = vpop.f32.mrb[0].mxu0
  %v2599 = vadd.f32 %v2262, %v2598
  %v2600 = vpop.f32.mrb[0].mxu0
  %2601 = vmatprep.mubr.f32.mxu0 0.0
  %v2602 = vand.u32 %v2315, 4294901760
  %v2603 = vsub.f32 %v2315, %v2602
  %v2604 = vand.u32 %v2603, 4294901760
  %v2605 = vsub.f32 %v2603, %v2604
  %v2606 = vand.u32 %v2605, 4294901760
  %2607 = vmatmul.mubr.f32.gmra.mrb[0].mxu0 %v2606
  %v2608 = vpop.f32.mrb[0].mxu0
  %v2609 = vadd.f32 %v2262, %v2608
  %v2610 = vpop.f32.mrb[0].mxu0
  %2611 = vmatprep.mubr.f32.mxu0 0.0
  %v2612 = vand.u32 %v2318, 4294901760
  %v2613 = vsub.f32 %v2318, %v2612
  %v2614 = vand.u32 %v2613, 4294901760
  %v2615 = vsub.f32 %v2613, %v2614
  %v2616 = vand.u32 %v2615, 4294901760
  %2617 = vmatmul.mubr.f32.gmra.mrb[0].mxu0 %v2616
  %v2618 = vpop.f32.mrb[0].mxu0
  %v2619 = vadd.f32 %v2262, %v2618
  %v2620 = vpop.f32.mrb[0].mxu0
  %2621 = vmatprep.mubr.f32.mxu0 0.0
  %v2622 = vand.u32 %v2321, 4294901760
  %v2623 = vsub.f32 %v2321, %v2622
  %v2624 = vand.u32 %v2623, 4294901760
  %v2625 = vsub.f32 %v2623, %v2624
  %v2626 = vand.u32 %v2625, 4294901760
  %2627 = vmatmul.mubr.f32.gmra.mrb[0].mxu0 %v2626
  %v2628 = vpop.f32.mrb[0].mxu0
  %v2629 = vadd.f32 %v2262, %v2628
  %v2630 = vpop.f32.mrb[0].mxu0
  %2631 = vmatprep.mubr.f32.mxu0 0.0
  %v2632 = vand.u32 %v2324, 4294901760
  %v2633 = vsub.f32 %v2324, %v2632
  %v2634 = vand.u32 %v2633, 4294901760
  %v2635 = vsub.f32 %v2633, %v2634
  %v2636 = vand.u32 %v2635, 4294901760
  %2637 = vmatmul.mubr.f32.gmra.mrb[0].mxu0 %v2636
  %v2638 = vpop.f32.mrb[0].mxu0
  %v2639 = vadd.f32 %v2262, %v2638
  %v2640 = vpop.f32.mrb[0].mxu0
  %2641 = vmatprep.mubr.f32.mxu0 0.0
  %v2642 = vand.u32 %v2327, 4294901760
  %v2643 = vsub.f32 %v2327, %v2642
  %v2644 = vand.u32 %v2643, 4294901760
  %v2645 = vsub.f32 %v2643, %v2644
  %v2646 = vand.u32 %v2645, 4294901760
  %2647 = vmatmul.mubr.f32.gmra.mrb[0].mxu0 %v2646
  %v2648 = vpop.f32.mrb[0].mxu0
  %v2649 = vadd.f32 %v2262, %v2648
  %v2650 = vpop.f32.mrb[0].mxu0
  %2651 = vmatprep.mubr.f32.mxu0 0.0
  %v2652 = vand.u32 %v2330, 4294901760
  %v2653 = vsub.f32 %v2330, %v2652
  %v2654 = vand.u32 %v2653, 4294901760
  %v2655 = vsub.f32 %v2653, %v2654
  %v2656 = vand.u32 %v2655, 4294901760
  %2657 = vmatmul.mubr.f32.gmra.mrb[0].mxu0 %v2656
  %v2658 = vpop.f32.mrb[0].mxu0
  %v2659 = vadd.f32 %v2262, %v2658
  %v2660 = vpop.f32.mrb[0].mxu0
  %2661 = vmatprep.mubr.f32.mxu0 0.0
  %v2662 = vand.u32 %v2333, 4294901760
  %v2663 = vsub.f32 %v2333, %v2662
  %v2664 = vand.u32 %v2663, 4294901760
  %v2665 = vsub.f32 %v2663, %v2664
  %v2666 = vand.u32 %v2665, 4294901760
  %2667 = vmatmul.mubr.f32.gmra.mrb[0].mxu0 %v2666
  %v2668 = vpop.f32.mrb[0].mxu0
  %v2669 = vadd.f32 %v2262, %v2668
  %v2670 = vpop.f32.mrb[0].mxu0
  %2671 = vmatprep.mubr.f32.mxu0 0.0
  %v2672 = vand.u32 %v2336, 4294901760
  %v2673 = vsub.f32 %v2336, %v2672
  %v2674 = vand.u32 %v2673, 4294901760
  %v2675 = vsub.f32 %v2673, %v2674
  %v2676 = vand.u32 %v2675, 4294901760
  %2677 = vmatmul.mubr.f32.gmra.mrb[0].mxu0 %v2676
  %v2678 = vpop.f32.mrb[0].mxu0
  %v2679 = vadd.f32 %v2262, %v2678
  %v2680 = vpop.f32.mrb[0].mxu0
  %2681 = vmatprep.mubr.f32.mxu0 0.0
  %v2682 = vand.u32 %v2339, 4294901760
  %v2683 = vsub.f32 %v2339, %v2682
  %v2684 = vand.u32 %v2683, 4294901760
  %v2685 = vsub.f32 %v2683, %v2684
  %v2686 = vand.u32 %v2685, 4294901760
  %2687 = vmatmul.mubr.f32.gmra.mrb[0].mxu0 %v2686
  %v2688 = vpop.f32.mrb[0].mxu0
  %v2689 = vadd.f32 %v2262, %v2688
  %v2690 = vpop.f32.mrb[0].mxu0
  %2691 = vmatprep.mubr.f32.mxu0 0.0
  %v2692 = vand.u32 %v2342, 4294901760
  %v2693 = vsub.f32 %v2342, %v2692
  %v2694 = vand.u32 %v2693, 4294901760
  %v2695 = vsub.f32 %v2693, %v2694
  %v2696 = vand.u32 %v2695, 4294901760
  %2697 = vmatmul.mubr.f32.gmra.mrb[0].mxu0 %v2696
  %v2698 = vpop.f32.mrb[0].mxu0
  %v2699 = vadd.f32 %v2262, %v2698
  %v2700 = vpop.f32.mrb[0].mxu0
  %2701 = vmatprep.mubr.f32.mxu0 0.0
  %v2702 = vand.u32 %v2345, 4294901760
  %v2703 = vsub.f32 %v2345, %v2702
  %v2704 = vand.u32 %v2703, 4294901760
  %v2705 = vsub.f32 %v2703, %v2704
  %v2706 = vand.u32 %v2705, 4294901760
  %2707 = vmatmul.mubr.f32.gmra.mrb[0].mxu0 %v2706
  %v2708 = vpop.f32.mrb[0].mxu0
  %v2709 = vadd.f32 %v2262, %v2708
  %v2710 = vpop.f32.mrb[0].mxu0
  %2711 = vmatprep.mubr.f32.mxu0 0.0
  %v2712 = vand.u32 %v2348, 4294901760
  %v2713 = vsub.f32 %v2348, %v2712
  %v2714 = vand.u32 %v2713, 4294901760
  %v2715 = vsub.f32 %v2713, %v2714
  %v2716 = vand.u32 %v2715, 4294901760
  %2717 = vmatmul.mubr.f32.gmra.mrb[0].mxu0 %v2716
  %v2718 = vpop.f32.mrb[0].mxu0
  %v2719 = vadd.f32 %v2262, %v2718
  %v2720 = vpop.f32.mrb[0].mxu0
  %2721 = vmatprep.mubr.f32.mxu0 0.0
  %v2722 = vand.u32 %v2351, 4294901760
  %v2723 = vsub.f32 %v2351, %v2722
  %v2724 = vand.u32 %v2723, 4294901760
  %v2725 = vsub.f32 %v2723, %v2724
  %v2726 = vand.u32 %v2725, 4294901760
  %2727 = vmatmul.mubr.f32.gmra.mrb[0].mxu0 %v2726
  %v2728 = vpop.f32.mrb[0].mxu0
  %v2729 = vadd.f32 %v2262, %v2728
  %v2730 = vpop.f32.mrb[0].mxu0
  %2731 = vmatprep.mubr.f32.mxu0 0.0
  %v2732 = vand.u32 %v2354, 4294901760
  %v2733 = vsub.f32 %v2354, %v2732
  %v2734 = vand.u32 %v2733, 4294901760
  %v2735 = vsub.f32 %v2733, %v2734
  %v2736 = vand.u32 %v2735, 4294901760
  %2737 = vmatmul.mubr.f32.gmra.mrb[0].mxu0 %v2736
  %v2738 = vpop.f32.mrb[0].mxu0
  %v2739 = vadd.f32 %v2262, %v2738
  %v2740 = vpop.f32.mrb[0].mxu0
  %2741 = vmatprep.mubr.f32.mxu0 0.0
  %v2742 = vand.u32 %v2357, 4294901760
  %v2743 = vsub.f32 %v2357, %v2742
  %v2744 = vand.u32 %v2743, 4294901760
  %v2745 = vsub.f32 %v2743, %v2744
  %v2746 = vand.u32 %v2745, 4294901760
  %2747 = vmatmul.mubr.f32.gmra.mrb[0].mxu0 %v2746
  %v2748 = vpop.f32.mrb[0].mxu0
  %v2749 = vadd.f32 %v2262, %v2748
  %v2750 = vpop.f32.mrb[0].mxu0
  %2751 = vdwg.mxu0
  %2752 = vmatprep.subr.mxu0 0.0
  %v2753 = vand.u32 %v2250, 4294901760
  %v2754 = vsub.f32 %v2250, %v2753
  %v2755 = vand.u32 %v2754, 4294901760
  %v2756 = vsub.f32 %v2754, %v2755
  %v2757 = vand.u32 %v2756, 4294901760
  %2758 = vmatpush1.msra.mxu0 %v2757
  %2759 = vmatprep.subr.mxu0 0.0
  %v2760 = vand.u32 %v2251, 4294901760
  %v2761 = vsub.f32 %v2251, %v2760
  %v2762 = vand.u32 %v2761, 4294901760
  %v2763 = vsub.f32 %v2761, %v2762
  %v2764 = vand.u32 %v2763, 4294901760
  %2765 = vmatpush1.msra.mxu0 %v2764
  %2766 = vmatprep.subr.mxu0 0.0
  %v2767 = vand.u32 %v2252, 4294901760
  %v2768 = vsub.f32 %v2252, %v2767
  %v2769 = vand.u32 %v2768, 4294901760
  %v2770 = vsub.f32 %v2768, %v2769
  %v2771 = vand.u32 %v2770, 4294901760
  %2772 = vmatpush1.msra.mxu0 %v2771
  %2773 = vmatprep.subr.mxu0 0.0
  %v2774 = vand.u32 %v2253, 4294901760
  %v2775 = vsub.f32 %v2253, %v2774
  %v2776 = vand.u32 %v2775, 4294901760
  %v2777 = vsub.f32 %v2775, %v2776
  %v2778 = vand.u32 %v2777, 4294901760
  %2779 = vmatpush1.msra.mxu0 %v2778
  %2780 = vmatprep.subr.mxu0 0.0
  %v2781 = vand.u32 %v2254, 4294901760
  %v2782 = vsub.f32 %v2254, %v2781
  %v2783 = vand.u32 %v2782, 4294901760
  %v2784 = vsub.f32 %v2782, %v2783
  %v2785 = vand.u32 %v2784, 4294901760
  %2786 = vmatpush1.msra.mxu0 %v2785
  %2787 = vmatprep.subr.mxu0 0.0
  %v2788 = vand.u32 %v2255, 4294901760
  %v2789 = vsub.f32 %v2255, %v2788
  %v2790 = vand.u32 %v2789, 4294901760
  %v2791 = vsub.f32 %v2789, %v2790
  %v2792 = vand.u32 %v2791, 4294901760
  %2793 = vmatpush1.msra.mxu0 %v2792
  %2794 = vmatprep.subr.mxu0 0.0
  %v2795 = vand.u32 %v2256, 4294901760
  %v2796 = vsub.f32 %v2256, %v2795
  %v2797 = vand.u32 %v2796, 4294901760
  %v2798 = vsub.f32 %v2796, %v2797
  %v2799 = vand.u32 %v2798, 4294901760
  %2800 = vmatpush1.msra.mxu0 %v2799
  %2801 = vmatprep.subr.mxu0 0.0
  %v2802 = vand.u32 %v2257, 4294901760
  %v2803 = vsub.f32 %v2257, %v2802
  %v2804 = vand.u32 %v2803, 4294901760
  %v2805 = vsub.f32 %v2803, %v2804
  %v2806 = vand.u32 %v2805, 4294901760
  %2807 = vmatpush1.msra.mxu0 %v2806
  %2808 = vmatprep.subr.mxu0 0.0
  %2809 = vmatpush1.msra.mxu0 0.0
  %2810 = vmatprep.subr.mxu0 0.0
  %2811 = vmatpush1.msra.mxu0 0.0
  %2812 = vmatprep.subr.mxu0 0.0
  %2813 = vmatpush1.msra.mxu0 0.0
  %2814 = vmatprep.subr.mxu0 0.0
  %2815 = vmatpush1.msra.mxu0 0.0
  %2816 = vmatprep.subr.mxu0 0.0
  %2817 = vmatpush1.msra.mxu0 0.0
  %2818 = vmatprep.subr.mxu0 0.0
  %2819 = vmatpush1.msra.mxu0 0.0
  %2820 = vmatprep.subr.mxu0 0.0
  %2821 = vmatpush1.msra.mxu0 0.0
  %2822 = vmatprep.subr.mxu0 0.0
  %2823 = vmatpush1.msra.mxu0 0.0
  %2824 = vmatprep.subr.mxu0 0.0
  %2825 = vmatpush1.msra.mxu0 0.0
  %2826 = vmatprep.subr.mxu0 0.0
  %2827 = vmatpush1.msra.mxu0 0.0
  %2828 = vmatprep.subr.mxu0 0.0
  %2829 = vmatpush1.msra.mxu0 0.0
  %2830 = vmatprep.subr.mxu0 0.0
  %2831 = vmatpush1.msra.mxu0 0.0
  %2832 = vmatprep.subr.mxu0 0.0
  %2833 = vmatpush1.msra.mxu0 0.0
  %2834 = vmatprep.subr.mxu0 0.0
  %2835 = vmatpush1.msra.mxu0 0.0
  %2836 = vmatprep.subr.mxu0 0.0
  %2837 = vmatpush1.msra.mxu0 0.0
  %2838 = vmatprep.subr.mxu0 0.0
  %2839 = vmatpush1.msra.mxu0 0.0
  %2840 = vmatprep.subr.mxu0 0.0
  %2841 = vmatpush1.msra.mxu0 0.0
  %2842 = vmatprep.subr.mxu0 0.0
  %2843 = vmatpush1.msra.mxu0 0.0
  %2844 = vmatprep.subr.mxu0 0.0
  %2845 = vmatpush1.msra.mxu0 0.0
  %2846 = vmatprep.subr.mxu0 0.0
  %2847 = vmatpush1.msra.mxu0 0.0
  %2848 = vmatprep.subr.mxu0 0.0
  %2849 = vmatpush1.msra.mxu0 0.0
  %2850 = vmatprep.subr.mxu0 0.0
  %2851 = vmatpush1.msra.mxu0 0.0
  %2852 = vmatprep.subr.mxu0 0.0
  %2853 = vmatpush1.msra.mxu0 0.0
  %2854 = vmatprep.subr.mxu0 0.0
  %2855 = vmatpush1.msra.mxu0 0.0
  %2856 = vmatprep.mubr.f32.mxu0 0.0
  %v2857 = vand.u32 %v2264, 4294901760
  %2858 = vmatmul.mubr.f32.gmra.mrb[0].mxu0 %v2857
  %v2859 = vpop.f32.mrb[0].mxu0
  %v2860 = vadd.f32 %v2439, %v2859
  %v2861 = vpop.f32.mrb[0].mxu0
  %2862 = vmatprep.mubr.f32.mxu0 0.0
  %v2863 = vand.u32 %v2267, 4294901760
  %2864 = vmatmul.mubr.f32.gmra.mrb[0].mxu0 %v2863
  %v2865 = vpop.f32.mrb[0].mxu0
  %v2866 = vadd.f32 %v2449, %v2865
  %v2867 = vpop.f32.mrb[0].mxu0
  %2868 = vmatprep.mubr.f32.mxu0 0.0
  %v2869 = vand.u32 %v2270, 4294901760
  %2870 = vmatmul.mubr.f32.gmra.mrb[0].mxu0 %v2869
  %v2871 = vpop.f32.mrb[0].mxu0
  %v2872 = vadd.f32 %v2459, %v2871
  %v2873 = vpop.f32.mrb[0].mxu0
  %2874 = vmatprep.mubr.f32.mxu0 0.0
  %v2875 = vand.u32 %v2273, 4294901760
  %2876 = vmatmul.mubr.f32.gmra.mrb[0].mxu0 %v2875
  %v2877 = vpop.f32.mrb[0].mxu0
  %v2878 = vadd.f32 %v2469, %v2877
  %v2879 = vpop.f32.mrb[0].mxu0
  %2880 = vmatprep.mubr.f32.mxu0 0.0
  %v2881 = vand.u32 %v2276, 4294901760
  %2882 = vmatmul.mubr.f32.gmra.mrb[0].mxu0 %v2881
  %v2883 = vpop.f32.mrb[0].mxu0
  %v2884 = vadd.f32 %v2479, %v2883
  %v2885 = vpop.f32.mrb[0].mxu0
  %2886 = vmatprep.mubr.f32.mxu0 0.0
  %v2887 = vand.u32 %v2279, 4294901760
  %2888 = vmatmul.mubr.f32.gmra.mrb[0].mxu0 %v2887
  %v2889 = vpop.f32.mrb[0].mxu0
  %v2890 = vadd.f32 %v2489, %v2889
  %v2891 = vpop.f32.mrb[0].mxu0
  %2892 = vmatprep.mubr.f32.mxu0 0.0
  %v2893 = vand.u32 %v2282, 4294901760
  %2894 = vmatmul.mubr.f32.gmra.mrb[0].mxu0 %v2893
  %v2895 = vpop.f32.mrb[0].mxu0
  %v2896 = vadd.f32 %v2499, %v2895
  %v2897 = vpop.f32.mrb[0].mxu0
  %2898 = vmatprep.mubr.f32.mxu0 0.0
  %v2899 = vand.u32 %v2285, 4294901760
  %2900 = vmatmul.mubr.f32.gmra.mrb[0].mxu0 %v2899
  %v2901 = vpop.f32.mrb[0].mxu0
  %v2902 = vadd.f32 %v2509, %v2901
  %v2903 = vpop.f32.mrb[0].mxu0
  %2904 = vmatprep.mubr.f32.mxu0 0.0
  %v2905 = vand.u32 %v2288, 4294901760
  %2906 = vmatmul.mubr.f32.gmra.mrb[0].mxu0 %v2905
  %v2907 = vpop.f32.mrb[0].mxu0
  %v2908 = vadd.f32 %v2519, %v2907
  %v2909 = vpop.f32.mrb[0].mxu0
  %2910 = vmatprep.mubr.f32.mxu0 0.0
  %v2911 = vand.u32 %v2291, 4294901760
  %2912 = vmatmul.mubr.f32.gmra.mrb[0].mxu0 %v2911
  %v2913 = vpop.f32.mrb[0].mxu0
  %v2914 = vadd.f32 %v2529, %v2913
  %v2915 = vpop.f32.mrb[0].mxu0
  %2916 = vmatprep.mubr.f32.mxu0 0.0
  %v2917 = vand.u32 %v2294, 4294901760
  %2918 = vmatmul.mubr.f32.gmra.mrb[0].mxu0 %v2917
  %v2919 = vpop.f32.mrb[0].mxu0
  %v2920 = vadd.f32 %v2539, %v2919
  %v2921 = vpop.f32.mrb[0].mxu0
  %2922 = vmatprep.mubr.f32.mxu0 0.0
  %v2923 = vand.u32 %v2297, 4294901760
  %2924 = vmatmul.mubr.f32.gmra.mrb[0].mxu0 %v2923
  %v2925 = vpop.f32.mrb[0].mxu0
  %v2926 = vadd.f32 %v2549, %v2925
  %v2927 = vpop.f32.mrb[0].mxu0
  %2928 = vmatprep.mubr.f32.mxu0 0.0
  %v2929 = vand.u32 %v2300, 4294901760
  %2930 = vmatmul.mubr.f32.gmra.mrb[0].mxu0 %v2929
  %v2931 = vpop.f32.mrb[0].mxu0
  %v2932 = vadd.f32 %v2559, %v2931
  %v2933 = vpop.f32.mrb[0].mxu0
  %2934 = vmatprep.mubr.f32.mxu0 0.0
  %v2935 = vand.u32 %v2303, 4294901760
  %2936 = vmatmul.mubr.f32.gmra.mrb[0].mxu0 %v2935
  %v2937 = vpop.f32.mrb[0].mxu0
  %v2938 = vadd.f32 %v2569, %v2937
  %v2939 = vpop.f32.mrb[0].mxu0
  %2940 = vmatprep.mubr.f32.mxu0 0.0
  %v2941 = vand.u32 %v2306, 4294901760
  %2942 = vmatmul.mubr.f32.gmra.mrb[0].mxu0 %v2941
  %v2943 = vpop.f32.mrb[0].mxu0
  %v2944 = vadd.f32 %v2579, %v2943
  %v2945 = vpop.f32.mrb[0].mxu0
  %2946 = vmatprep.mubr.f32.mxu0 0.0
  %v2947 = vand.u32 %v2309, 4294901760
  %2948 = vmatmul.mubr.f32.gmra.mrb[0].mxu0 %v2947
  %v2949 = vpop.f32.mrb[0].mxu0
  %v2950 = vadd.f32 %v2589, %v2949
  %v2951 = vpop.f32.mrb[0].mxu0
  %2952 = vmatprep.mubr.f32.mxu0 0.0
  %v2953 = vand.u32 %v2312, 4294901760
  %2954 = vmatmul.mubr.f32.gmra.mrb[0].mxu0 %v2953
  %v2955 = vpop.f32.mrb[0].mxu0
  %v2956 = vadd.f32 %v2599, %v2955
  %v2957 = vpop.f32.mrb[0].mxu0
  %2958 = vmatprep.mubr.f32.mxu0 0.0
  %v2959 = vand.u32 %v2315, 4294901760
  %2960 = vmatmul.mubr.f32.gmra.mrb[0].mxu0 %v2959
  %v2961 = vpop.f32.mrb[0].mxu0
  %v2962 = vadd.f32 %v2609, %v2961
  %v2963 = vpop.f32.mrb[0].mxu0
  %2964 = vmatprep.mubr.f32.mxu0 0.0
  %v2965 = vand.u32 %v2318, 4294901760
  %2966 = vmatmul.mubr.f32.gmra.mrb[0].mxu0 %v2965
  %v2967 = vpop.f32.mrb[0].mxu0
  %v2968 = vadd.f32 %v2619, %v2967
  %v2969 = vpop.f32.mrb[0].mxu0
  %2970 = vmatprep.mubr.f32.mxu0 0.0
  %v2971 = vand.u32 %v2321, 4294901760
  %2972 = vmatmul.mubr.f32.gmra.mrb[0].mxu0 %v2971
  %v2973 = vpop.f32.mrb[0].mxu0
  %v2974 = vadd.f32 %v2629, %v2973
  %v2975 = vpop.f32.mrb[0].mxu0
  %2976 = vmatprep.mubr.f32.mxu0 0.0
  %v2977 = vand.u32 %v2324, 4294901760
  %2978 = vmatmul.mubr.f32.gmra.mrb[0].mxu0 %v2977
  %v2979 = vpop.f32.mrb[0].mxu0
  %v2980 = vadd.f32 %v2639, %v2979
  %v2981 = vpop.f32.mrb[0].mxu0
  %2982 = vmatprep.mubr.f32.mxu0 0.0
  %v2983 = vand.u32 %v2327, 4294901760
  %2984 = vmatmul.mubr.f32.gmra.mrb[0].mxu0 %v2983
  %v2985 = vpop.f32.mrb[0].mxu0
  %v2986 = vadd.f32 %v2649, %v2985
  %v2987 = vpop.f32.mrb[0].mxu0
  %2988 = vmatprep.mubr.f32.mxu0 0.0
  %v2989 = vand.u32 %v2330, 4294901760
  %2990 = vmatmul.mubr.f32.gmra.mrb[0].mxu0 %v2989
  %v2991 = vpop.f32.mrb[0].mxu0
  %v2992 = vadd.f32 %v2659, %v2991
  %v2993 = vpop.f32.mrb[0].mxu0
  %2994 = vmatprep.mubr.f32.mxu0 0.0
  %v2995 = vand.u32 %v2333, 4294901760
  %2996 = vmatmul.mubr.f32.gmra.mrb[0].mxu0 %v2995
  %v2997 = vpop.f32.mrb[0].mxu0
  %v2998 = vadd.f32 %v2669, %v2997
  %v2999 = vpop.f32.mrb[0].mxu0
  %3000 = vmatprep.mubr.f32.mxu0 0.0
  %v3001 = vand.u32 %v2336, 4294901760
  %3002 = vmatmul.mubr.f32.gmra.mrb[0].mxu0 %v3001
  %v3003 = vpop.f32.mrb[0].mxu0
  %v3004 = vadd.f32 %v2679, %v3003
  %v3005 = vpop.f32.mrb[0].mxu0
  %3006 = vmatprep.mubr.f32.mxu0 0.0
  %v3007 = vand.u32 %v2339, 4294901760
  %3008 = vmatmul.mubr.f32.gmra.mrb[0].mxu0 %v3007
  %v3009 = vpop.f32.mrb[0].mxu0
  %v3010 = vadd.f32 %v2689, %v3009
  %v3011 = vpop.f32.mrb[0].mxu0
  %3012 = vmatprep.mubr.f32.mxu0 0.0
  %v3013 = vand.u32 %v2342, 4294901760
  %3014 = vmatmul.mubr.f32.gmra.mrb[0].mxu0 %v3013
  %v3015 = vpop.f32.mrb[0].mxu0
  %v3016 = vadd.f32 %v2699, %v3015
  %v3017 = vpop.f32.mrb[0].mxu0
  %3018 = vmatprep.mubr.f32.mxu0 0.0
  %v3019 = vand.u32 %v2345, 4294901760
  %3020 = vmatmul.mubr.f32.gmra.mrb[0].mxu0 %v3019
  %v3021 = vpop.f32.mrb[0].mxu0
  %v3022 = vadd.f32 %v2709, %v3021
  %v3023 = vpop.f32.mrb[0].mxu0
  %3024 = vmatprep.mubr.f32.mxu0 0.0
  %v3025 = vand.u32 %v2348, 4294901760
  %3026 = vmatmul.mubr.f32.gmra.mrb[0].mxu0 %v3025
  %v3027 = vpop.f32.mrb[0].mxu0
  %v3028 = vadd.f32 %v2719, %v3027
  %v3029 = vpop.f32.mrb[0].mxu0
  %3030 = vmatprep.mubr.f32.mxu0 0.0
  %v3031 = vand.u32 %v2351, 4294901760
  %3032 = vmatmul.mubr.f32.gmra.mrb[0].mxu0 %v3031
  %v3033 = vpop.f32.mrb[0].mxu0
  %v3034 = vadd.f32 %v2729, %v3033
  %v3035 = vpop.f32.mrb[0].mxu0
  %3036 = vmatprep.mubr.f32.mxu0 0.0
  %v3037 = vand.u32 %v2354, 4294901760
  %3038 = vmatmul.mubr.f32.gmra.mrb[0].mxu0 %v3037
  %v3039 = vpop.f32.mrb[0].mxu0
  %v3040 = vadd.f32 %v2739, %v3039
  %v3041 = vpop.f32.mrb[0].mxu0
  %3042 = vmatprep.mubr.f32.mxu0 0.0
  %v3043 = vand.u32 %v2357, 4294901760
  %3044 = vmatmul.mubr.f32.gmra.mrb[0].mxu0 %v3043
  %v3045 = vpop.f32.mrb[0].mxu0
  %v3046 = vadd.f32 %v2749, %v3045
  %v3047 = vpop.f32.mrb[0].mxu0
  %3048 = vdwg.mxu0
  %3049 = vmatprep.subr.mxu0 0.0
  %v3050 = vand.u32 %v2250, 4294901760
  %v3051 = vsub.f32 %v2250, %v3050
  %3052 = vmatpush1.msra.mxu0 %v3051
  %3053 = vmatprep.subr.mxu0 0.0
  %v3054 = vand.u32 %v2251, 4294901760
  %v3055 = vsub.f32 %v2251, %v3054
  %3056 = vmatpush1.msra.mxu0 %v3055
  %3057 = vmatprep.subr.mxu0 0.0
  %v3058 = vand.u32 %v2252, 4294901760
  %v3059 = vsub.f32 %v2252, %v3058
  %3060 = vmatpush1.msra.mxu0 %v3059
  %3061 = vmatprep.subr.mxu0 0.0
  %v3062 = vand.u32 %v2253, 4294901760
  %v3063 = vsub.f32 %v2253, %v3062
  %3064 = vmatpush1.msra.mxu0 %v3063
  %3065 = vmatprep.subr.mxu0 0.0
  %v3066 = vand.u32 %v2254, 4294901760
  %v3067 = vsub.f32 %v2254, %v3066
  %3068 = vmatpush1.msra.mxu0 %v3067
  %3069 = vmatprep.subr.mxu0 0.0
  %v3070 = vand.u32 %v2255, 4294901760
  %v3071 = vsub.f32 %v2255, %v3070
  %3072 = vmatpush1.msra.mxu0 %v3071
  %3073 = vmatprep.subr.mxu0 0.0
  %v3074 = vand.u32 %v2256, 4294901760
  %v3075 = vsub.f32 %v2256, %v3074
  %3076 = vmatpush1.msra.mxu0 %v3075
  %3077 = vmatprep.subr.mxu0 0.0
  %v3078 = vand.u32 %v2257, 4294901760
  %v3079 = vsub.f32 %v2257, %v3078
  %3080 = vmatpush1.msra.mxu0 %v3079
  %3081 = vmatprep.subr.mxu0 0.0
  %3082 = vmatpush1.msra.mxu0 0.0
  %3083 = vmatprep.subr.mxu0 0.0
  %3084 = vmatpush1.msra.mxu0 0.0
  %3085 = vmatprep.subr.mxu0 0.0
  %3086 = vmatpush1.msra.mxu0 0.0
  %3087 = vmatprep.subr.mxu0 0.0
  %3088 = vmatpush1.msra.mxu0 0.0
  %3089 = vmatprep.subr.mxu0 0.0
  %3090 = vmatpush1.msra.mxu0 0.0
  %3091 = vmatprep.subr.mxu0 0.0
  %3092 = vmatpush1.msra.mxu0 0.0
  %3093 = vmatprep.subr.mxu0 0.0
  %3094 = vmatpush1.msra.mxu0 0.0
  %3095 = vmatprep.subr.mxu0 0.0
  %3096 = vmatpush1.msra.mxu0 0.0
  %3097 = vmatprep.subr.mxu0 0.0
  %3098 = vmatpush1.msra.mxu0 0.0
  %3099 = vmatprep.subr.mxu0 0.0
  %3100 = vmatpush1.msra.mxu0 0.0
  %3101 = vmatprep.subr.mxu0 0.0
  %3102 = vmatpush1.msra.mxu0 0.0
  %3103 = vmatprep.subr.mxu0 0.0
  %3104 = vmatpush1.msra.mxu0 0.0
  %3105 = vmatprep.subr.mxu0 0.0
  %3106 = vmatpush1.msra.mxu0 0.0
  %3107 = vmatprep.subr.mxu0 0.0
  %3108 = vmatpush1.msra.mxu0 0.0
  %3109 = vmatprep.subr.mxu0 0.0
  %3110 = vmatpush1.msra.mxu0 0.0
  %3111 = vmatprep.subr.mxu0 0.0
  %3112 = vmatpush1.msra.mxu0 0.0
  %3113 = vmatprep.subr.mxu0 0.0
  %3114 = vmatpush1.msra.mxu0 0.0
  %3115 = vmatprep.subr.mxu0 0.0
  %3116 = vmatpush1.msra.mxu0 0.0
  %3117 = vmatprep.subr.mxu0 0.0
  %3118 = vmatpush1.msra.mxu0 0.0
  %3119 = vmatprep.subr.mxu0 0.0
  %3120 = vmatpush1.msra.mxu0 0.0
  %3121 = vmatprep.subr.mxu0 0.0
  %3122 = vmatpush1.msra.mxu0 0.0
  %3123 = vmatprep.subr.mxu0 0.0
  %3124 = vmatpush1.msra.mxu0 0.0
  %3125 = vmatprep.subr.mxu0 0.0
  %3126 = vmatpush1.msra.mxu0 0.0
  %3127 = vmatprep.subr.mxu0 0.0
  %3128 = vmatpush1.msra.mxu0 0.0
  %3129 = vmatprep.mubr.f32.mxu0 0.0
  %v3130 = vand.u32 %v2264, 4294901760
  %v3131 = vsub.f32 %v2264, %v3130
  %3132 = vmatmul.mubr.f32.gmra.mrb[0].mxu0 %v3131
  %v3133 = vpop.f32.mrb[0].mxu0
  %v3134 = vadd.f32 %v2860, %v3133
  %v3135 = vpop.f32.mrb[0].mxu0
  %3136 = vmatprep.mubr.f32.mxu0 0.0
  %v3137 = vand.u32 %v2267, 4294901760
  %v3138 = vsub.f32 %v2267, %v3137
  %3139 = vmatmul.mubr.f32.gmra.mrb[0].mxu0 %v3138
  %v3140 = vpop.f32.mrb[0].mxu0
  %v3141 = vadd.f32 %v2866, %v3140
  %v3142 = vpop.f32.mrb[0].mxu0
  %3143 = vmatprep.mubr.f32.mxu0 0.0
  %v3144 = vand.u32 %v2270, 4294901760
  %v3145 = vsub.f32 %v2270, %v3144
  %3146 = vmatmul.mubr.f32.gmra.mrb[0].mxu0 %v3145
  %v3147 = vpop.f32.mrb[0].mxu0
  %v3148 = vadd.f32 %v2872, %v3147
  %v3149 = vpop.f32.mrb[0].mxu0
  %3150 = vmatprep.mubr.f32.mxu0 0.0
  %v3151 = vand.u32 %v2273, 4294901760
  %v3152 = vsub.f32 %v2273, %v3151
  %3153 = vmatmul.mubr.f32.gmra.mrb[0].mxu0 %v3152
  %v3154 = vpop.f32.mrb[0].mxu0
  %v3155 = vadd.f32 %v2878, %v3154
  %v3156 = vpop.f32.mrb[0].mxu0
  %3157 = vmatprep.mubr.f32.mxu0 0.0
  %v3158 = vand.u32 %v2276, 4294901760
  %v3159 = vsub.f32 %v2276, %v3158
  %3160 = vmatmul.mubr.f32.gmra.mrb[0].mxu0 %v3159
  %v3161 = vpop.f32.mrb[0].mxu0
  %v3162 = vadd.f32 %v2884, %v3161
  %v3163 = vpop.f32.mrb[0].mxu0
  %3164 = vmatprep.mubr.f32.mxu0 0.0
  %v3165 = vand.u32 %v2279, 4294901760
  %v3166 = vsub.f32 %v2279, %v3165
  %3167 = vmatmul.mubr.f32.gmra.mrb[0].mxu0 %v3166
  %v3168 = vpop.f32.mrb[0].mxu0
  %v3169 = vadd.f32 %v2890, %v3168
  %v3170 = vpop.f32.mrb[0].mxu0
  %3171 = vmatprep.mubr.f32.mxu0 0.0
  %v3172 = vand.u32 %v2282, 4294901760
  %v3173 = vsub.f32 %v2282, %v3172
  %3174 = vmatmul.mubr.f32.gmra.mrb[0].mxu0 %v3173
  %v3175 = vpop.f32.mrb[0].mxu0
  %v3176 = vadd.f32 %v2896, %v3175
  %v3177 = vpop.f32.mrb[0].mxu0
  %3178 = vmatprep.mubr.f32.mxu0 0.0
  %v3179 = vand.u32 %v2285, 4294901760
  %v3180 = vsub.f32 %v2285, %v3179
  %3181 = vmatmul.mubr.f32.gmra.mrb[0].mxu0 %v3180
  %v3182 = vpop.f32.mrb[0].mxu0
  %v3183 = vadd.f32 %v2902, %v3182
  %v3184 = vpop.f32.mrb[0].mxu0
  %3185 = vmatprep.mubr.f32.mxu0 0.0
  %v3186 = vand.u32 %v2288, 4294901760
  %v3187 = vsub.f32 %v2288, %v3186
  %3188 = vmatmul.mubr.f32.gmra.mrb[0].mxu0 %v3187
  %v3189 = vpop.f32.mrb[0].mxu0
  %v3190 = vadd.f32 %v2908, %v3189
  %v3191 = vpop.f32.mrb[0].mxu0
  %3192 = vmatprep.mubr.f32.mxu0 0.0
  %v3193 = vand.u32 %v2291, 4294901760
  %v3194 = vsub.f32 %v2291, %v3193
  %3195 = vmatmul.mubr.f32.gmra.mrb[0].mxu0 %v3194
  %v3196 = vpop.f32.mrb[0].mxu0
  %v3197 = vadd.f32 %v2914, %v3196
  %v3198 = vpop.f32.mrb[0].mxu0
  %3199 = vmatprep.mubr.f32.mxu0 0.0
  %v3200 = vand.u32 %v2294, 4294901760
  %v3201 = vsub.f32 %v2294, %v3200
  %3202 = vmatmul.mubr.f32.gmra.mrb[0].mxu0 %v3201
  %v3203 = vpop.f32.mrb[0].mxu0
  %v3204 = vadd.f32 %v2920, %v3203
  %v3205 = vpop.f32.mrb[0].mxu0
  %3206 = vmatprep.mubr.f32.mxu0 0.0
  %v3207 = vand.u32 %v2297, 4294901760
  %v3208 = vsub.f32 %v2297, %v3207
  %3209 = vmatmul.mubr.f32.gmra.mrb[0].mxu0 %v3208
  %v3210 = vpop.f32.mrb[0].mxu0
  %v3211 = vadd.f32 %v2926, %v3210
  %v3212 = vpop.f32.mrb[0].mxu0
  %3213 = vmatprep.mubr.f32.mxu0 0.0
  %v3214 = vand.u32 %v2300, 4294901760
  %v3215 = vsub.f32 %v2300, %v3214
  %3216 = vmatmul.mubr.f32.gmra.mrb[0].mxu0 %v3215
  %v3217 = vpop.f32.mrb[0].mxu0
  %v3218 = vadd.f32 %v2932, %v3217
  %v3219 = vpop.f32.mrb[0].mxu0
  %3220 = vmatprep.mubr.f32.mxu0 0.0
  %v3221 = vand.u32 %v2303, 4294901760
  %v3222 = vsub.f32 %v2303, %v3221
  %3223 = vmatmul.mubr.f32.gmra.mrb[0].mxu0 %v3222
  %v3224 = vpop.f32.mrb[0].mxu0
  %v3225 = vadd.f32 %v2938, %v3224
  %v3226 = vpop.f32.mrb[0].mxu0
  %3227 = vmatprep.mubr.f32.mxu0 0.0
  %v3228 = vand.u32 %v2306, 4294901760
  %v3229 = vsub.f32 %v2306, %v3228
  %3230 = vmatmul.mubr.f32.gmra.mrb[0].mxu0 %v3229
  %v3231 = vpop.f32.mrb[0].mxu0
  %v3232 = vadd.f32 %v2944, %v3231
  %v3233 = vpop.f32.mrb[0].mxu0
  %3234 = vmatprep.mubr.f32.mxu0 0.0
  %v3235 = vand.u32 %v2309, 4294901760
  %v3236 = vsub.f32 %v2309, %v3235
  %3237 = vmatmul.mubr.f32.gmra.mrb[0].mxu0 %v3236
  %v3238 = vpop.f32.mrb[0].mxu0
  %v3239 = vadd.f32 %v2950, %v3238
  %v3240 = vpop.f32.mrb[0].mxu0
  %3241 = vmatprep.mubr.f32.mxu0 0.0
  %v3242 = vand.u32 %v2312, 4294901760
  %v3243 = vsub.f32 %v2312, %v3242
  %3244 = vmatmul.mubr.f32.gmra.mrb[0].mxu0 %v3243
  %v3245 = vpop.f32.mrb[0].mxu0
  %v3246 = vadd.f32 %v2956, %v3245
  %v3247 = vpop.f32.mrb[0].mxu0
  %3248 = vmatprep.mubr.f32.mxu0 0.0
  %v3249 = vand.u32 %v2315, 4294901760
  %v3250 = vsub.f32 %v2315, %v3249
  %3251 = vmatmul.mubr.f32.gmra.mrb[0].mxu0 %v3250
  %v3252 = vpop.f32.mrb[0].mxu0
  %v3253 = vadd.f32 %v2962, %v3252
  %v3254 = vpop.f32.mrb[0].mxu0
  %3255 = vmatprep.mubr.f32.mxu0 0.0
  %v3256 = vand.u32 %v2318, 4294901760
  %v3257 = vsub.f32 %v2318, %v3256
  %3258 = vmatmul.mubr.f32.gmra.mrb[0].mxu0 %v3257
  %v3259 = vpop.f32.mrb[0].mxu0
  %v3260 = vadd.f32 %v2968, %v3259
  %v3261 = vpop.f32.mrb[0].mxu0
  %3262 = vmatprep.mubr.f32.mxu0 0.0
  %v3263 = vand.u32 %v2321, 4294901760
  %v3264 = vsub.f32 %v2321, %v3263
  %3265 = vmatmul.mubr.f32.gmra.mrb[0].mxu0 %v3264
  %v3266 = vpop.f32.mrb[0].mxu0
  %v3267 = vadd.f32 %v2974, %v3266
  %v3268 = vpop.f32.mrb[0].mxu0
  %3269 = vmatprep.mubr.f32.mxu0 0.0
  %v3270 = vand.u32 %v2324, 4294901760
  %v3271 = vsub.f32 %v2324, %v3270
  %3272 = vmatmul.mubr.f32.gmra.mrb[0].mxu0 %v3271
  %v3273 = vpop.f32.mrb[0].mxu0
  %v3274 = vadd.f32 %v2980, %v3273
  %v3275 = vpop.f32.mrb[0].mxu0
  %3276 = vmatprep.mubr.f32.mxu0 0.0
  %v3277 = vand.u32 %v2327, 4294901760
  %v3278 = vsub.f32 %v2327, %v3277
  %3279 = vmatmul.mubr.f32.gmra.mrb[0].mxu0 %v3278
  %v3280 = vpop.f32.mrb[0].mxu0
  %v3281 = vadd.f32 %v2986, %v3280
  %v3282 = vpop.f32.mrb[0].mxu0
  %3283 = vmatprep.mubr.f32.mxu0 0.0
  %v3284 = vand.u32 %v2330, 4294901760
  %v3285 = vsub.f32 %v2330, %v3284
  %3286 = vmatmul.mubr.f32.gmra.mrb[0].mxu0 %v3285
  %v3287 = vpop.f32.mrb[0].mxu0
  %v3288 = vadd.f32 %v2992, %v3287
  %v3289 = vpop.f32.mrb[0].mxu0
  %3290 = vmatprep.mubr.f32.mxu0 0.0
  %v3291 = vand.u32 %v2333, 4294901760
  %v3292 = vsub.f32 %v2333, %v3291
  %3293 = vmatmul.mubr.f32.gmra.mrb[0].mxu0 %v3292
  %v3294 = vpop.f32.mrb[0].mxu0
  %v3295 = vadd.f32 %v2998, %v3294
  %v3296 = vpop.f32.mrb[0].mxu0
  %3297 = vmatprep.mubr.f32.mxu0 0.0
  %v3298 = vand.u32 %v2336, 4294901760
  %v3299 = vsub.f32 %v2336, %v3298
  %3300 = vmatmul.mubr.f32.gmra.mrb[0].mxu0 %v3299
  %v3301 = vpop.f32.mrb[0].mxu0
  %v3302 = vadd.f32 %v3004, %v3301
  %v3303 = vpop.f32.mrb[0].mxu0
  %3304 = vmatprep.mubr.f32.mxu0 0.0
  %v3305 = vand.u32 %v2339, 4294901760
  %v3306 = vsub.f32 %v2339, %v3305
  %3307 = vmatmul.mubr.f32.gmra.mrb[0].mxu0 %v3306
  %v3308 = vpop.f32.mrb[0].mxu0
  %v3309 = vadd.f32 %v3010, %v3308
  %v3310 = vpop.f32.mrb[0].mxu0
  %3311 = vmatprep.mubr.f32.mxu0 0.0
  %v3312 = vand.u32 %v2342, 4294901760
  %v3313 = vsub.f32 %v2342, %v3312
  %3314 = vmatmul.mubr.f32.gmra.mrb[0].mxu0 %v3313
  %v3315 = vpop.f32.mrb[0].mxu0
  %v3316 = vadd.f32 %v3016, %v3315
  %v3317 = vpop.f32.mrb[0].mxu0
  %3318 = vmatprep.mubr.f32.mxu0 0.0
  %v3319 = vand.u32 %v2345, 4294901760
  %v3320 = vsub.f32 %v2345, %v3319
  %3321 = vmatmul.mubr.f32.gmra.mrb[0].mxu0 %v3320
  %v3322 = vpop.f32.mrb[0].mxu0
  %v3323 = vadd.f32 %v3022, %v3322
  %v3324 = vpop.f32.mrb[0].mxu0
  %3325 = vmatprep.mubr.f32.mxu0 0.0
  %v3326 = vand.u32 %v2348, 4294901760
  %v3327 = vsub.f32 %v2348, %v3326
  %3328 = vmatmul.mubr.f32.gmra.mrb[0].mxu0 %v3327
  %v3329 = vpop.f32.mrb[0].mxu0
  %v3330 = vadd.f32 %v3028, %v3329
  %v3331 = vpop.f32.mrb[0].mxu0
  %3332 = vmatprep.mubr.f32.mxu0 0.0
  %v3333 = vand.u32 %v2351, 4294901760
  %v3334 = vsub.f32 %v2351, %v3333
  %3335 = vmatmul.mubr.f32.gmra.mrb[0].mxu0 %v3334
  %v3336 = vpop.f32.mrb[0].mxu0
  %v3337 = vadd.f32 %v3034, %v3336
  %v3338 = vpop.f32.mrb[0].mxu0
  %3339 = vmatprep.mubr.f32.mxu0 0.0
  %v3340 = vand.u32 %v2354, 4294901760
  %v3341 = vsub.f32 %v2354, %v3340
  %3342 = vmatmul.mubr.f32.gmra.mrb[0].mxu0 %v3341
  %v3343 = vpop.f32.mrb[0].mxu0
  %v3344 = vadd.f32 %v3040, %v3343
  %v3345 = vpop.f32.mrb[0].mxu0
  %3346 = vmatprep.mubr.f32.mxu0 0.0
  %v3347 = vand.u32 %v2357, 4294901760
  %v3348 = vsub.f32 %v2357, %v3347
  %3349 = vmatmul.mubr.f32.gmra.mrb[0].mxu0 %v3348
  %v3350 = vpop.f32.mrb[0].mxu0
  %v3351 = vadd.f32 %v3046, %v3350
  %v3352 = vpop.f32.mrb[0].mxu0
  %3353 = vdwg.mxu0
  %3354 = vmatprep.subr.mxu0 0.0
  %v3355 = vand.u32 %v2250, 4294901760
  %3356 = vmatpush1.msra.mxu0 %v3355
  %3357 = vmatprep.subr.mxu0 0.0
  %v3358 = vand.u32 %v2251, 4294901760
  %3359 = vmatpush1.msra.mxu0 %v3358
  %3360 = vmatprep.subr.mxu0 0.0
  %v3361 = vand.u32 %v2252, 4294901760
  %3362 = vmatpush1.msra.mxu0 %v3361
  %3363 = vmatprep.subr.mxu0 0.0
  %v3364 = vand.u32 %v2253, 4294901760
  %3365 = vmatpush1.msra.mxu0 %v3364
  %3366 = vmatprep.subr.mxu0 0.0
  %v3367 = vand.u32 %v2254, 4294901760
  %3368 = vmatpush1.msra.mxu0 %v3367
  %3369 = vmatprep.subr.mxu0 0.0
  %v3370 = vand.u32 %v2255, 4294901760
  %3371 = vmatpush1.msra.mxu0 %v3370
  %3372 = vmatprep.subr.mxu0 0.0
  %v3373 = vand.u32 %v2256, 4294901760
  %3374 = vmatpush1.msra.mxu0 %v3373
  %3375 = vmatprep.subr.mxu0 0.0
  %v3376 = vand.u32 %v2257, 4294901760
  %3377 = vmatpush1.msra.mxu0 %v3376
  %3378 = vmatprep.subr.mxu0 0.0
  %3379 = vmatpush1.msra.mxu0 0.0
  %3380 = vmatprep.subr.mxu0 0.0
  %3381 = vmatpush1.msra.mxu0 0.0
  %3382 = vmatprep.subr.mxu0 0.0
  %3383 = vmatpush1.msra.mxu0 0.0
  %3384 = vmatprep.subr.mxu0 0.0
  %3385 = vmatpush1.msra.mxu0 0.0
  %3386 = vmatprep.subr.mxu0 0.0
  %3387 = vmatpush1.msra.mxu0 0.0
  %3388 = vmatprep.subr.mxu0 0.0
  %3389 = vmatpush1.msra.mxu0 0.0
  %3390 = vmatprep.subr.mxu0 0.0
  %3391 = vmatpush1.msra.mxu0 0.0
  %3392 = vmatprep.subr.mxu0 0.0
  %3393 = vmatpush1.msra.mxu0 0.0
  %3394 = vmatprep.subr.mxu0 0.0
  %3395 = vmatpush1.msra.mxu0 0.0
  %3396 = vmatprep.subr.mxu0 0.0
  %3397 = vmatpush1.msra.mxu0 0.0
  %3398 = vmatprep.subr.mxu0 0.0
  %3399 = vmatpush1.msra.mxu0 0.0
  %3400 = vmatprep.subr.mxu0 0.0
  %3401 = vmatpush1.msra.mxu0 0.0
  %3402 = vmatprep.subr.mxu0 0.0
  %3403 = vmatpush1.msra.mxu0 0.0
  %3404 = vmatprep.subr.mxu0 0.0
  %3405 = vmatpush1.msra.mxu0 0.0
  %3406 = vmatprep.subr.mxu0 0.0
  %3407 = vmatpush1.msra.mxu0 0.0
  %3408 = vmatprep.subr.mxu0 0.0
  %3409 = vmatpush1.msra.mxu0 0.0
  %3410 = vmatprep.subr.mxu0 0.0
  %3411 = vmatpush1.msra.mxu0 0.0
  %3412 = vmatprep.subr.mxu0 0.0
  %3413 = vmatpush1.msra.mxu0 0.0
  %3414 = vmatprep.subr.mxu0 0.0
  %3415 = vmatpush1.msra.mxu0 0.0
  %3416 = vmatprep.subr.mxu0 0.0
  %3417 = vmatpush1.msra.mxu0 0.0
  %3418 = vmatprep.subr.mxu0 0.0
  %3419 = vmatpush1.msra.mxu0 0.0
  %3420 = vmatprep.subr.mxu0 0.0
  %3421 = vmatpush1.msra.mxu0 0.0
  %3422 = vmatprep.subr.mxu0 0.0
  %3423 = vmatpush1.msra.mxu0 0.0
  %3424 = vmatprep.subr.mxu0 0.0
  %3425 = vmatpush1.msra.mxu0 0.0
  %3426 = vmatprep.mubr.f32.mxu0 0.0
  %v3427 = vand.u32 %v2264, 4294901760
  %v3428 = vsub.f32 %v2264, %v3427
  %v3429 = vand.u32 %v3428, 4294901760
  %3430 = vmatmul.mubr.f32.gmra.mrb[0].mxu0 %v3429
  %v3431 = vpop.f32.mrb[0].mxu0
  %v3432 = vadd.f32 %v3134, %v3431
  %v3433 = vpop.f32.mrb[0].mxu0
  %3434 = vmatprep.mubr.f32.mxu0 0.0
  %v3435 = vand.u32 %v2267, 4294901760
  %v3436 = vsub.f32 %v2267, %v3435
  %v3437 = vand.u32 %v3436, 4294901760
  %3438 = vmatmul.mubr.f32.gmra.mrb[0].mxu0 %v3437
  %v3439 = vpop.f32.mrb[0].mxu0
  %v3440 = vadd.f32 %v3141, %v3439
  %v3441 = vpop.f32.mrb[0].mxu0
  %3442 = vmatprep.mubr.f32.mxu0 0.0
  %v3443 = vand.u32 %v2270, 4294901760
  %v3444 = vsub.f32 %v2270, %v3443
  %v3445 = vand.u32 %v3444, 4294901760
  %3446 = vmatmul.mubr.f32.gmra.mrb[0].mxu0 %v3445
  %v3447 = vpop.f32.mrb[0].mxu0
  %v3448 = vadd.f32 %v3148, %v3447
  %v3449 = vpop.f32.mrb[0].mxu0
  %3450 = vmatprep.mubr.f32.mxu0 0.0
  %v3451 = vand.u32 %v2273, 4294901760
  %v3452 = vsub.f32 %v2273, %v3451
  %v3453 = vand.u32 %v3452, 4294901760
  %3454 = vmatmul.mubr.f32.gmra.mrb[0].mxu0 %v3453
  %v3455 = vpop.f32.mrb[0].mxu0
  %v3456 = vadd.f32 %v3155, %v3455
  %v3457 = vpop.f32.mrb[0].mxu0
  %3458 = vmatprep.mubr.f32.mxu0 0.0
  %v3459 = vand.u32 %v2276, 4294901760
  %v3460 = vsub.f32 %v2276, %v3459
  %v3461 = vand.u32 %v3460, 4294901760
  %3462 = vmatmul.mubr.f32.gmra.mrb[0].mxu0 %v3461
  %v3463 = vpop.f32.mrb[0].mxu0
  %v3464 = vadd.f32 %v3162, %v3463
  %v3465 = vpop.f32.mrb[0].mxu0
  %3466 = vmatprep.mubr.f32.mxu0 0.0
  %v3467 = vand.u32 %v2279, 4294901760
  %v3468 = vsub.f32 %v2279, %v3467
  %v3469 = vand.u32 %v3468, 4294901760
  %3470 = vmatmul.mubr.f32.gmra.mrb[0].mxu0 %v3469
  %v3471 = vpop.f32.mrb[0].mxu0
  %v3472 = vadd.f32 %v3169, %v3471
  %v3473 = vpop.f32.mrb[0].mxu0
  %3474 = vmatprep.mubr.f32.mxu0 0.0
  %v3475 = vand.u32 %v2282, 4294901760
  %v3476 = vsub.f32 %v2282, %v3475
  %v3477 = vand.u32 %v3476, 4294901760
  %3478 = vmatmul.mubr.f32.gmra.mrb[0].mxu0 %v3477
  %v3479 = vpop.f32.mrb[0].mxu0
  %v3480 = vadd.f32 %v3176, %v3479
  %v3481 = vpop.f32.mrb[0].mxu0
  %3482 = vmatprep.mubr.f32.mxu0 0.0
  %v3483 = vand.u32 %v2285, 4294901760
  %v3484 = vsub.f32 %v2285, %v3483
  %v3485 = vand.u32 %v3484, 4294901760
  %3486 = vmatmul.mubr.f32.gmra.mrb[0].mxu0 %v3485
  %v3487 = vpop.f32.mrb[0].mxu0
  %v3488 = vadd.f32 %v3183, %v3487
  %v3489 = vpop.f32.mrb[0].mxu0
  %3490 = vmatprep.mubr.f32.mxu0 0.0
  %v3491 = vand.u32 %v2288, 4294901760
  %v3492 = vsub.f32 %v2288, %v3491
  %v3493 = vand.u32 %v3492, 4294901760
  %3494 = vmatmul.mubr.f32.gmra.mrb[0].mxu0 %v3493
  %v3495 = vpop.f32.mrb[0].mxu0
  %v3496 = vadd.f32 %v3190, %v3495
  %v3497 = vpop.f32.mrb[0].mxu0
  %3498 = vmatprep.mubr.f32.mxu0 0.0
  %v3499 = vand.u32 %v2291, 4294901760
  %v3500 = vsub.f32 %v2291, %v3499
  %v3501 = vand.u32 %v3500, 4294901760
  %3502 = vmatmul.mubr.f32.gmra.mrb[0].mxu0 %v3501
  %v3503 = vpop.f32.mrb[0].mxu0
  %v3504 = vadd.f32 %v3197, %v3503
  %v3505 = vpop.f32.mrb[0].mxu0
  %3506 = vmatprep.mubr.f32.mxu0 0.0
  %v3507 = vand.u32 %v2294, 4294901760
  %v3508 = vsub.f32 %v2294, %v3507
  %v3509 = vand.u32 %v3508, 4294901760
  %3510 = vmatmul.mubr.f32.gmra.mrb[0].mxu0 %v3509
  %v3511 = vpop.f32.mrb[0].mxu0
  %v3512 = vadd.f32 %v3204, %v3511
  %v3513 = vpop.f32.mrb[0].mxu0
  %3514 = vmatprep.mubr.f32.mxu0 0.0
  %v3515 = vand.u32 %v2297, 4294901760
  %v3516 = vsub.f32 %v2297, %v3515
  %v3517 = vand.u32 %v3516, 4294901760
  %3518 = vmatmul.mubr.f32.gmra.mrb[0].mxu0 %v3517
  %v3519 = vpop.f32.mrb[0].mxu0
  %v3520 = vadd.f32 %v3211, %v3519
  %v3521 = vpop.f32.mrb[0].mxu0
  %3522 = vmatprep.mubr.f32.mxu0 0.0
  %v3523 = vand.u32 %v2300, 4294901760
  %v3524 = vsub.f32 %v2300, %v3523
  %v3525 = vand.u32 %v3524, 4294901760
  %3526 = vmatmul.mubr.f32.gmra.mrb[0].mxu0 %v3525
  %v3527 = vpop.f32.mrb[0].mxu0
  %v3528 = vadd.f32 %v3218, %v3527
  %v3529 = vpop.f32.mrb[0].mxu0
  %3530 = vmatprep.mubr.f32.mxu0 0.0
  %v3531 = vand.u32 %v2303, 4294901760
  %v3532 = vsub.f32 %v2303, %v3531
  %v3533 = vand.u32 %v3532, 4294901760
  %3534 = vmatmul.mubr.f32.gmra.mrb[0].mxu0 %v3533
  %v3535 = vpop.f32.mrb[0].mxu0
  %v3536 = vadd.f32 %v3225, %v3535
  %v3537 = vpop.f32.mrb[0].mxu0
  %3538 = vmatprep.mubr.f32.mxu0 0.0
  %v3539 = vand.u32 %v2306, 4294901760
  %v3540 = vsub.f32 %v2306, %v3539
  %v3541 = vand.u32 %v3540, 4294901760
  %3542 = vmatmul.mubr.f32.gmra.mrb[0].mxu0 %v3541
  %v3543 = vpop.f32.mrb[0].mxu0
  %v3544 = vadd.f32 %v3232, %v3543
  %v3545 = vpop.f32.mrb[0].mxu0
  %3546 = vmatprep.mubr.f32.mxu0 0.0
  %v3547 = vand.u32 %v2309, 4294901760
  %v3548 = vsub.f32 %v2309, %v3547
  %v3549 = vand.u32 %v3548, 4294901760
  %3550 = vmatmul.mubr.f32.gmra.mrb[0].mxu0 %v3549
  %v3551 = vpop.f32.mrb[0].mxu0
  %v3552 = vadd.f32 %v3239, %v3551
  %v3553 = vpop.f32.mrb[0].mxu0
  %3554 = vmatprep.mubr.f32.mxu0 0.0
  %v3555 = vand.u32 %v2312, 4294901760
  %v3556 = vsub.f32 %v2312, %v3555
  %v3557 = vand.u32 %v3556, 4294901760
  %3558 = vmatmul.mubr.f32.gmra.mrb[0].mxu0 %v3557
  %v3559 = vpop.f32.mrb[0].mxu0
  %v3560 = vadd.f32 %v3246, %v3559
  %v3561 = vpop.f32.mrb[0].mxu0
  %3562 = vmatprep.mubr.f32.mxu0 0.0
  %v3563 = vand.u32 %v2315, 4294901760
  %v3564 = vsub.f32 %v2315, %v3563
  %v3565 = vand.u32 %v3564, 4294901760
  %3566 = vmatmul.mubr.f32.gmra.mrb[0].mxu0 %v3565
  %v3567 = vpop.f32.mrb[0].mxu0
  %v3568 = vadd.f32 %v3253, %v3567
  %v3569 = vpop.f32.mrb[0].mxu0
  %3570 = vmatprep.mubr.f32.mxu0 0.0
  %v3571 = vand.u32 %v2318, 4294901760
  %v3572 = vsub.f32 %v2318, %v3571
  %v3573 = vand.u32 %v3572, 4294901760
  %3574 = vmatmul.mubr.f32.gmra.mrb[0].mxu0 %v3573
  %v3575 = vpop.f32.mrb[0].mxu0
  %v3576 = vadd.f32 %v3260, %v3575
  %v3577 = vpop.f32.mrb[0].mxu0
  %3578 = vmatprep.mubr.f32.mxu0 0.0
  %v3579 = vand.u32 %v2321, 4294901760
  %v3580 = vsub.f32 %v2321, %v3579
  %v3581 = vand.u32 %v3580, 4294901760
  %3582 = vmatmul.mubr.f32.gmra.mrb[0].mxu0 %v3581
  %v3583 = vpop.f32.mrb[0].mxu0
  %v3584 = vadd.f32 %v3267, %v3583
  %v3585 = vpop.f32.mrb[0].mxu0
  %3586 = vmatprep.mubr.f32.mxu0 0.0
  %v3587 = vand.u32 %v2324, 4294901760
  %v3588 = vsub.f32 %v2324, %v3587
  %v3589 = vand.u32 %v3588, 4294901760
  %3590 = vmatmul.mubr.f32.gmra.mrb[0].mxu0 %v3589
  %v3591 = vpop.f32.mrb[0].mxu0
  %v3592 = vadd.f32 %v3274, %v3591
  %v3593 = vpop.f32.mrb[0].mxu0
  %3594 = vmatprep.mubr.f32.mxu0 0.0
  %v3595 = vand.u32 %v2327, 4294901760
  %v3596 = vsub.f32 %v2327, %v3595
  %v3597 = vand.u32 %v3596, 4294901760
  %3598 = vmatmul.mubr.f32.gmra.mrb[0].mxu0 %v3597
  %v3599 = vpop.f32.mrb[0].mxu0
  %v3600 = vadd.f32 %v3281, %v3599
  %v3601 = vpop.f32.mrb[0].mxu0
  %3602 = vmatprep.mubr.f32.mxu0 0.0
  %v3603 = vand.u32 %v2330, 4294901760
  %v3604 = vsub.f32 %v2330, %v3603
  %v3605 = vand.u32 %v3604, 4294901760
  %3606 = vmatmul.mubr.f32.gmra.mrb[0].mxu0 %v3605
  %v3607 = vpop.f32.mrb[0].mxu0
  %v3608 = vadd.f32 %v3288, %v3607
  %v3609 = vpop.f32.mrb[0].mxu0
  %3610 = vmatprep.mubr.f32.mxu0 0.0
  %v3611 = vand.u32 %v2333, 4294901760
  %v3612 = vsub.f32 %v2333, %v3611
  %v3613 = vand.u32 %v3612, 4294901760
  %3614 = vmatmul.mubr.f32.gmra.mrb[0].mxu0 %v3613
  %v3615 = vpop.f32.mrb[0].mxu0
  %v3616 = vadd.f32 %v3295, %v3615
  %v3617 = vpop.f32.mrb[0].mxu0
  %3618 = vmatprep.mubr.f32.mxu0 0.0
  %v3619 = vand.u32 %v2336, 4294901760
  %v3620 = vsub.f32 %v2336, %v3619
  %v3621 = vand.u32 %v3620, 4294901760
  %3622 = vmatmul.mubr.f32.gmra.mrb[0].mxu0 %v3621
  %v3623 = vpop.f32.mrb[0].mxu0
  %v3624 = vadd.f32 %v3302, %v3623
  %v3625 = vpop.f32.mrb[0].mxu0
  %3626 = vmatprep.mubr.f32.mxu0 0.0
  %v3627 = vand.u32 %v2339, 4294901760
  %v3628 = vsub.f32 %v2339, %v3627
  %v3629 = vand.u32 %v3628, 4294901760
  %3630 = vmatmul.mubr.f32.gmra.mrb[0].mxu0 %v3629
  %v3631 = vpop.f32.mrb[0].mxu0
  %v3632 = vadd.f32 %v3309, %v3631
  %v3633 = vpop.f32.mrb[0].mxu0
  %3634 = vmatprep.mubr.f32.mxu0 0.0
  %v3635 = vand.u32 %v2342, 4294901760
  %v3636 = vsub.f32 %v2342, %v3635
  %v3637 = vand.u32 %v3636, 4294901760
  %3638 = vmatmul.mubr.f32.gmra.mrb[0].mxu0 %v3637
  %v3639 = vpop.f32.mrb[0].mxu0
  %v3640 = vadd.f32 %v3316, %v3639
  %v3641 = vpop.f32.mrb[0].mxu0
  %3642 = vmatprep.mubr.f32.mxu0 0.0
  %v3643 = vand.u32 %v2345, 4294901760
  %v3644 = vsub.f32 %v2345, %v3643
  %v3645 = vand.u32 %v3644, 4294901760
  %3646 = vmatmul.mubr.f32.gmra.mrb[0].mxu0 %v3645
  %v3647 = vpop.f32.mrb[0].mxu0
  %v3648 = vadd.f32 %v3323, %v3647
  %v3649 = vpop.f32.mrb[0].mxu0
  %3650 = vmatprep.mubr.f32.mxu0 0.0
  %v3651 = vand.u32 %v2348, 4294901760
  %v3652 = vsub.f32 %v2348, %v3651
  %v3653 = vand.u32 %v3652, 4294901760
  %3654 = vmatmul.mubr.f32.gmra.mrb[0].mxu0 %v3653
  %v3655 = vpop.f32.mrb[0].mxu0
  %v3656 = vadd.f32 %v3330, %v3655
  %v3657 = vpop.f32.mrb[0].mxu0
  %3658 = vmatprep.mubr.f32.mxu0 0.0
  %v3659 = vand.u32 %v2351, 4294901760
  %v3660 = vsub.f32 %v2351, %v3659
  %v3661 = vand.u32 %v3660, 4294901760
  %3662 = vmatmul.mubr.f32.gmra.mrb[0].mxu0 %v3661
  %v3663 = vpop.f32.mrb[0].mxu0
  %v3664 = vadd.f32 %v3337, %v3663
  %v3665 = vpop.f32.mrb[0].mxu0
  %3666 = vmatprep.mubr.f32.mxu0 0.0
  %v3667 = vand.u32 %v2354, 4294901760
  %v3668 = vsub.f32 %v2354, %v3667
  %v3669 = vand.u32 %v3668, 4294901760
  %3670 = vmatmul.mubr.f32.gmra.mrb[0].mxu0 %v3669
  %v3671 = vpop.f32.mrb[0].mxu0
  %v3672 = vadd.f32 %v3344, %v3671
  %v3673 = vpop.f32.mrb[0].mxu0
  %3674 = vmatprep.mubr.f32.mxu0 0.0
  %v3675 = vand.u32 %v2357, 4294901760
  %v3676 = vsub.f32 %v2357, %v3675
  %v3677 = vand.u32 %v3676, 4294901760
  %3678 = vmatmul.mubr.f32.gmra.mrb[0].mxu0 %v3677
  %v3679 = vpop.f32.mrb[0].mxu0
  %v3680 = vadd.f32 %v3351, %v3679
  %v3681 = vpop.f32.mrb[0].mxu0
  %3682 = vdwg.mxu0
  %3683 = vmatprep.subr.mxu0 0.0
  %v3684 = vand.u32 %v2250, 4294901760
  %v3685 = vsub.f32 %v2250, %v3684
  %v3686 = vand.u32 %v3685, 4294901760
  %3687 = vmatpush1.msra.mxu0 %v3686
  %3688 = vmatprep.subr.mxu0 0.0
  %v3689 = vand.u32 %v2251, 4294901760
  %v3690 = vsub.f32 %v2251, %v3689
  %v3691 = vand.u32 %v3690, 4294901760
  %3692 = vmatpush1.msra.mxu0 %v3691
  %3693 = vmatprep.subr.mxu0 0.0
  %v3694 = vand.u32 %v2252, 4294901760
  %v3695 = vsub.f32 %v2252, %v3694
  %v3696 = vand.u32 %v3695, 4294901760
  %3697 = vmatpush1.msra.mxu0 %v3696
  %3698 = vmatprep.subr.mxu0 0.0
  %v3699 = vand.u32 %v2253, 4294901760
  %v3700 = vsub.f32 %v2253, %v3699
  %v3701 = vand.u32 %v3700, 4294901760
  %3702 = vmatpush1.msra.mxu0 %v3701
  %3703 = vmatprep.subr.mxu0 0.0
  %v3704 = vand.u32 %v2254, 4294901760
  %v3705 = vsub.f32 %v2254, %v3704
  %v3706 = vand.u32 %v3705, 4294901760
  %3707 = vmatpush1.msra.mxu0 %v3706
  %3708 = vmatprep.subr.mxu0 0.0
  %v3709 = vand.u32 %v2255, 4294901760
  %v3710 = vsub.f32 %v2255, %v3709
  %v3711 = vand.u32 %v3710, 4294901760
  %3712 = vmatpush1.msra.mxu0 %v3711
  %3713 = vmatprep.subr.mxu0 0.0
  %v3714 = vand.u32 %v2256, 4294901760
  %v3715 = vsub.f32 %v2256, %v3714
  %v3716 = vand.u32 %v3715, 4294901760
  %3717 = vmatpush1.msra.mxu0 %v3716
  %3718 = vmatprep.subr.mxu0 0.0
  %v3719 = vand.u32 %v2257, 4294901760
  %v3720 = vsub.f32 %v2257, %v3719
  %v3721 = vand.u32 %v3720, 4294901760
  %3722 = vmatpush1.msra.mxu0 %v3721
  %3723 = vmatprep.subr.mxu0 0.0
  %3724 = vmatpush1.msra.mxu0 0.0
  %3725 = vmatprep.subr.mxu0 0.0
  %3726 = vmatpush1.msra.mxu0 0.0
  %3727 = vmatprep.subr.mxu0 0.0
  %3728 = vmatpush1.msra.mxu0 0.0
  %3729 = vmatprep.subr.mxu0 0.0
  %3730 = vmatpush1.msra.mxu0 0.0
  %3731 = vmatprep.subr.mxu0 0.0
  %3732 = vmatpush1.msra.mxu0 0.0
  %3733 = vmatprep.subr.mxu0 0.0
  %3734 = vmatpush1.msra.mxu0 0.0
  %3735 = vmatprep.subr.mxu0 0.0
  %3736 = vmatpush1.msra.mxu0 0.0
  %3737 = vmatprep.subr.mxu0 0.0
  %3738 = vmatpush1.msra.mxu0 0.0
  %3739 = vmatprep.subr.mxu0 0.0
  %3740 = vmatpush1.msra.mxu0 0.0
  %3741 = vmatprep.subr.mxu0 0.0
  %3742 = vmatpush1.msra.mxu0 0.0
  %3743 = vmatprep.subr.mxu0 0.0
  %3744 = vmatpush1.msra.mxu0 0.0
  %3745 = vmatprep.subr.mxu0 0.0
  %3746 = vmatpush1.msra.mxu0 0.0
  %3747 = vmatprep.subr.mxu0 0.0
  %3748 = vmatpush1.msra.mxu0 0.0
  %3749 = vmatprep.subr.mxu0 0.0
  %3750 = vmatpush1.msra.mxu0 0.0
  %3751 = vmatprep.subr.mxu0 0.0
  %3752 = vmatpush1.msra.mxu0 0.0
  %3753 = vmatprep.subr.mxu0 0.0
  %3754 = vmatpush1.msra.mxu0 0.0
  %3755 = vmatprep.subr.mxu0 0.0
  %3756 = vmatpush1.msra.mxu0 0.0
  %3757 = vmatprep.subr.mxu0 0.0
  %3758 = vmatpush1.msra.mxu0 0.0
  %3759 = vmatprep.subr.mxu0 0.0
  %3760 = vmatpush1.msra.mxu0 0.0
  %3761 = vmatprep.subr.mxu0 0.0
  %3762 = vmatpush1.msra.mxu0 0.0
  %3763 = vmatprep.subr.mxu0 0.0
  %3764 = vmatpush1.msra.mxu0 0.0
  %3765 = vmatprep.subr.mxu0 0.0
  %3766 = vmatpush1.msra.mxu0 0.0
  %3767 = vmatprep.subr.mxu0 0.0
  %3768 = vmatpush1.msra.mxu0 0.0
  %3769 = vmatprep.subr.mxu0 0.0
  %3770 = vmatpush1.msra.mxu0 0.0
  %3771 = vmatprep.mubr.f32.mxu0 0.0
  %v3772 = vand.u32 %v2264, 4294901760
  %3773 = vmatmul.mubr.f32.gmra.mrb[0].mxu0 %v3772
  %v3774 = vpop.f32.mrb[0].mxu0
  %v3775 = vadd.f32 %v3432, %v3774
  %v3776 = vpop.f32.mrb[0].mxu0
  %3777 = vmatprep.mubr.f32.mxu0 0.0
  %v3778 = vand.u32 %v2267, 4294901760
  %3779 = vmatmul.mubr.f32.gmra.mrb[0].mxu0 %v3778
  %v3780 = vpop.f32.mrb[0].mxu0
  %v3781 = vadd.f32 %v3440, %v3780
  %v3782 = vpop.f32.mrb[0].mxu0
  %3783 = vmatprep.mubr.f32.mxu0 0.0
  %v3784 = vand.u32 %v2270, 4294901760
  %3785 = vmatmul.mubr.f32.gmra.mrb[0].mxu0 %v3784
  %v3786 = vpop.f32.mrb[0].mxu0
  %v3787 = vadd.f32 %v3448, %v3786
  %v3788 = vpop.f32.mrb[0].mxu0
  %3789 = vmatprep.mubr.f32.mxu0 0.0
  %v3790 = vand.u32 %v2273, 4294901760
  %3791 = vmatmul.mubr.f32.gmra.mrb[0].mxu0 %v3790
  %v3792 = vpop.f32.mrb[0].mxu0
  %v3793 = vadd.f32 %v3456, %v3792
  %v3794 = vpop.f32.mrb[0].mxu0
  %3795 = vmatprep.mubr.f32.mxu0 0.0
  %v3796 = vand.u32 %v2276, 4294901760
  %3797 = vmatmul.mubr.f32.gmra.mrb[0].mxu0 %v3796
  %v3798 = vpop.f32.mrb[0].mxu0
  %v3799 = vadd.f32 %v3464, %v3798
  %v3800 = vpop.f32.mrb[0].mxu0
  %3801 = vmatprep.mubr.f32.mxu0 0.0
  %v3802 = vand.u32 %v2279, 4294901760
  %3803 = vmatmul.mubr.f32.gmra.mrb[0].mxu0 %v3802
  %v3804 = vpop.f32.mrb[0].mxu0
  %v3805 = vadd.f32 %v3472, %v3804
  %v3806 = vpop.f32.mrb[0].mxu0
  %3807 = vmatprep.mubr.f32.mxu0 0.0
  %v3808 = vand.u32 %v2282, 4294901760
  %3809 = vmatmul.mubr.f32.gmra.mrb[0].mxu0 %v3808
  %v3810 = vpop.f32.mrb[0].mxu0
  %v3811 = vadd.f32 %v3480, %v3810
  %v3812 = vpop.f32.mrb[0].mxu0
  %3813 = vmatprep.mubr.f32.mxu0 0.0
  %v3814 = vand.u32 %v2285, 4294901760
  %3815 = vmatmul.mubr.f32.gmra.mrb[0].mxu0 %v3814
  %v3816 = vpop.f32.mrb[0].mxu0
  %v3817 = vadd.f32 %v3488, %v3816
  %v3818 = vpop.f32.mrb[0].mxu0
  %3819 = vmatprep.mubr.f32.mxu0 0.0
  %v3820 = vand.u32 %v2288, 4294901760
  %3821 = vmatmul.mubr.f32.gmra.mrb[0].mxu0 %v3820
  %v3822 = vpop.f32.mrb[0].mxu0
  %v3823 = vadd.f32 %v3496, %v3822
  %v3824 = vpop.f32.mrb[0].mxu0
  %3825 = vmatprep.mubr.f32.mxu0 0.0
  %v3826 = vand.u32 %v2291, 4294901760
  %3827 = vmatmul.mubr.f32.gmra.mrb[0].mxu0 %v3826
  %v3828 = vpop.f32.mrb[0].mxu0
  %v3829 = vadd.f32 %v3504, %v3828
  %v3830 = vpop.f32.mrb[0].mxu0
  %3831 = vmatprep.mubr.f32.mxu0 0.0
  %v3832 = vand.u32 %v2294, 4294901760
  %3833 = vmatmul.mubr.f32.gmra.mrb[0].mxu0 %v3832
  %v3834 = vpop.f32.mrb[0].mxu0
  %v3835 = vadd.f32 %v3512, %v3834
  %v3836 = vpop.f32.mrb[0].mxu0
  %3837 = vmatprep.mubr.f32.mxu0 0.0
  %v3838 = vand.u32 %v2297, 4294901760
  %3839 = vmatmul.mubr.f32.gmra.mrb[0].mxu0 %v3838
  %v3840 = vpop.f32.mrb[0].mxu0
  %v3841 = vadd.f32 %v3520, %v3840
  %v3842 = vpop.f32.mrb[0].mxu0
  %3843 = vmatprep.mubr.f32.mxu0 0.0
  %v3844 = vand.u32 %v2300, 4294901760
  %3845 = vmatmul.mubr.f32.gmra.mrb[0].mxu0 %v3844
  %v3846 = vpop.f32.mrb[0].mxu0
  %v3847 = vadd.f32 %v3528, %v3846
  %v3848 = vpop.f32.mrb[0].mxu0
  %3849 = vmatprep.mubr.f32.mxu0 0.0
  %v3850 = vand.u32 %v2303, 4294901760
  %3851 = vmatmul.mubr.f32.gmra.mrb[0].mxu0 %v3850
  %v3852 = vpop.f32.mrb[0].mxu0
  %v3853 = vadd.f32 %v3536, %v3852
  %v3854 = vpop.f32.mrb[0].mxu0
  %3855 = vmatprep.mubr.f32.mxu0 0.0
  %v3856 = vand.u32 %v2306, 4294901760
  %3857 = vmatmul.mubr.f32.gmra.mrb[0].mxu0 %v3856
  %v3858 = vpop.f32.mrb[0].mxu0
  %v3859 = vadd.f32 %v3544, %v3858
  %v3860 = vpop.f32.mrb[0].mxu0
  %3861 = vmatprep.mubr.f32.mxu0 0.0
  %v3862 = vand.u32 %v2309, 4294901760
  %3863 = vmatmul.mubr.f32.gmra.mrb[0].mxu0 %v3862
  %v3864 = vpop.f32.mrb[0].mxu0
  %v3865 = vadd.f32 %v3552, %v3864
  %v3866 = vpop.f32.mrb[0].mxu0
  %3867 = vmatprep.mubr.f32.mxu0 0.0
  %v3868 = vand.u32 %v2312, 4294901760
  %3869 = vmatmul.mubr.f32.gmra.mrb[0].mxu0 %v3868
  %v3870 = vpop.f32.mrb[0].mxu0
  %v3871 = vadd.f32 %v3560, %v3870
  %v3872 = vpop.f32.mrb[0].mxu0
  %3873 = vmatprep.mubr.f32.mxu0 0.0
  %v3874 = vand.u32 %v2315, 4294901760
  %3875 = vmatmul.mubr.f32.gmra.mrb[0].mxu0 %v3874
  %v3876 = vpop.f32.mrb[0].mxu0
  %v3877 = vadd.f32 %v3568, %v3876
  %v3878 = vpop.f32.mrb[0].mxu0
  %3879 = vmatprep.mubr.f32.mxu0 0.0
  %v3880 = vand.u32 %v2318, 4294901760
  %3881 = vmatmul.mubr.f32.gmra.mrb[0].mxu0 %v3880
  %v3882 = vpop.f32.mrb[0].mxu0
  %v3883 = vadd.f32 %v3576, %v3882
  %v3884 = vpop.f32.mrb[0].mxu0
  %3885 = vmatprep.mubr.f32.mxu0 0.0
  %v3886 = vand.u32 %v2321, 4294901760
  %3887 = vmatmul.mubr.f32.gmra.mrb[0].mxu0 %v3886
  %v3888 = vpop.f32.mrb[0].mxu0
  %v3889 = vadd.f32 %v3584, %v3888
  %v3890 = vpop.f32.mrb[0].mxu0
  %3891 = vmatprep.mubr.f32.mxu0 0.0
  %v3892 = vand.u32 %v2324, 4294901760
  %3893 = vmatmul.mubr.f32.gmra.mrb[0].mxu0 %v3892
  %v3894 = vpop.f32.mrb[0].mxu0
  %v3895 = vadd.f32 %v3592, %v3894
  %v3896 = vpop.f32.mrb[0].mxu0
  %3897 = vmatprep.mubr.f32.mxu0 0.0
  %v3898 = vand.u32 %v2327, 4294901760
  %3899 = vmatmul.mubr.f32.gmra.mrb[0].mxu0 %v3898
  %v3900 = vpop.f32.mrb[0].mxu0
  %v3901 = vadd.f32 %v3600, %v3900
  %v3902 = vpop.f32.mrb[0].mxu0
  %3903 = vmatprep.mubr.f32.mxu0 0.0
  %v3904 = vand.u32 %v2330, 4294901760
  %3905 = vmatmul.mubr.f32.gmra.mrb[0].mxu0 %v3904
  %v3906 = vpop.f32.mrb[0].mxu0
  %v3907 = vadd.f32 %v3608, %v3906
  %v3908 = vpop.f32.mrb[0].mxu0
  %3909 = vmatprep.mubr.f32.mxu0 0.0
  %v3910 = vand.u32 %v2333, 4294901760
  %3911 = vmatmul.mubr.f32.gmra.mrb[0].mxu0 %v3910
  %v3912 = vpop.f32.mrb[0].mxu0
  %v3913 = vadd.f32 %v3616, %v3912
  %v3914 = vpop.f32.mrb[0].mxu0
  %3915 = vmatprep.mubr.f32.mxu0 0.0
  %v3916 = vand.u32 %v2336, 4294901760
  %3917 = vmatmul.mubr.f32.gmra.mrb[0].mxu0 %v3916
  %v3918 = vpop.f32.mrb[0].mxu0
  %v3919 = vadd.f32 %v3624, %v3918
  %v3920 = vpop.f32.mrb[0].mxu0
  %3921 = vmatprep.mubr.f32.mxu0 0.0
  %v3922 = vand.u32 %v2339, 4294901760
  %3923 = vmatmul.mubr.f32.gmra.mrb[0].mxu0 %v3922
  %v3924 = vpop.f32.mrb[0].mxu0
  %v3925 = vadd.f32 %v3632, %v3924
  %v3926 = vpop.f32.mrb[0].mxu0
  %3927 = vmatprep.mubr.f32.mxu0 0.0
  %v3928 = vand.u32 %v2342, 4294901760
  %3929 = vmatmul.mubr.f32.gmra.mrb[0].mxu0 %v3928
  %v3930 = vpop.f32.mrb[0].mxu0
  %v3931 = vadd.f32 %v3640, %v3930
  %v3932 = vpop.f32.mrb[0].mxu0
  %3933 = vmatprep.mubr.f32.mxu0 0.0
  %v3934 = vand.u32 %v2345, 4294901760
  %3935 = vmatmul.mubr.f32.gmra.mrb[0].mxu0 %v3934
  %v3936 = vpop.f32.mrb[0].mxu0
  %v3937 = vadd.f32 %v3648, %v3936
  %v3938 = vpop.f32.mrb[0].mxu0
  %3939 = vmatprep.mubr.f32.mxu0 0.0
  %v3940 = vand.u32 %v2348, 4294901760
  %3941 = vmatmul.mubr.f32.gmra.mrb[0].mxu0 %v3940
  %v3942 = vpop.f32.mrb[0].mxu0
  %v3943 = vadd.f32 %v3656, %v3942
  %v3944 = vpop.f32.mrb[0].mxu0
  %3945 = vmatprep.mubr.f32.mxu0 0.0
  %v3946 = vand.u32 %v2351, 4294901760
  %3947 = vmatmul.mubr.f32.gmra.mrb[0].mxu0 %v3946
  %v3948 = vpop.f32.mrb[0].mxu0
  %v3949 = vadd.f32 %v3664, %v3948
  %v3950 = vpop.f32.mrb[0].mxu0
  %3951 = vmatprep.mubr.f32.mxu0 0.0
  %v3952 = vand.u32 %v2354, 4294901760
  %3953 = vmatmul.mubr.f32.gmra.mrb[0].mxu0 %v3952
  %v3954 = vpop.f32.mrb[0].mxu0
  %v3955 = vadd.f32 %v3672, %v3954
  %v3956 = vpop.f32.mrb[0].mxu0
  %3957 = vmatprep.mubr.f32.mxu0 0.0
  %v3958 = vand.u32 %v2357, 4294901760
  %3959 = vmatmul.mubr.f32.gmra.mrb[0].mxu0 %v3958
  %v3960 = vpop.f32.mrb[0].mxu0
  %v3961 = vadd.f32 %v3680, %v3960
  %v3962 = vpop.f32.mrb[0].mxu0
  %3963 = vdwg.mxu0
  %3964 = vmatprep.subr.mxu0 0.0
  %v3965 = vand.u32 %v2250, 4294901760
  %3966 = vmatpush1.msra.mxu0 %v3965
  %3967 = vmatprep.subr.mxu0 0.0
  %v3968 = vand.u32 %v2251, 4294901760
  %3969 = vmatpush1.msra.mxu0 %v3968
  %3970 = vmatprep.subr.mxu0 0.0
  %v3971 = vand.u32 %v2252, 4294901760
  %3972 = vmatpush1.msra.mxu0 %v3971
  %3973 = vmatprep.subr.mxu0 0.0
  %v3974 = vand.u32 %v2253, 4294901760
  %3975 = vmatpush1.msra.mxu0 %v3974
  %3976 = vmatprep.subr.mxu0 0.0
  %v3977 = vand.u32 %v2254, 4294901760
  %3978 = vmatpush1.msra.mxu0 %v3977
  %3979 = vmatprep.subr.mxu0 0.0
  %v3980 = vand.u32 %v2255, 4294901760
  %3981 = vmatpush1.msra.mxu0 %v3980
  %3982 = vmatprep.subr.mxu0 0.0
  %v3983 = vand.u32 %v2256, 4294901760
  %3984 = vmatpush1.msra.mxu0 %v3983
  %3985 = vmatprep.subr.mxu0 0.0
  %v3986 = vand.u32 %v2257, 4294901760
  %3987 = vmatpush1.msra.mxu0 %v3986
  %3988 = vmatprep.subr.mxu0 0.0
  %3989 = vmatpush1.msra.mxu0 0.0
  %3990 = vmatprep.subr.mxu0 0.0
  %3991 = vmatpush1.msra.mxu0 0.0
  %3992 = vmatprep.subr.mxu0 0.0
  %3993 = vmatpush1.msra.mxu0 0.0
  %3994 = vmatprep.subr.mxu0 0.0
  %3995 = vmatpush1.msra.mxu0 0.0
  %3996 = vmatprep.subr.mxu0 0.0
  %3997 = vmatpush1.msra.mxu0 0.0
  %3998 = vmatprep.subr.mxu0 0.0
  %3999 = vmatpush1.msra.mxu0 0.0
  %4000 = vmatprep.subr.mxu0 0.0
  %4001 = vmatpush1.msra.mxu0 0.0
  %4002 = vmatprep.subr.mxu0 0.0
  %4003 = vmatpush1.msra.mxu0 0.0
  %4004 = vmatprep.subr.mxu0 0.0
  %4005 = vmatpush1.msra.mxu0 0.0
  %4006 = vmatprep.subr.mxu0 0.0
  %4007 = vmatpush1.msra.mxu0 0.0
  %4008 = vmatprep.subr.mxu0 0.0
  %4009 = vmatpush1.msra.mxu0 0.0
  %4010 = vmatprep.subr.mxu0 0.0
  %4011 = vmatpush1.msra.mxu0 0.0
  %4012 = vmatprep.subr.mxu0 0.0
  %4013 = vmatpush1.msra.mxu0 0.0
  %4014 = vmatprep.subr.mxu0 0.0
  %4015 = vmatpush1.msra.mxu0 0.0
  %4016 = vmatprep.subr.mxu0 0.0
  %4017 = vmatpush1.msra.mxu0 0.0
  %4018 = vmatprep.subr.mxu0 0.0
  %4019 = vmatpush1.msra.mxu0 0.0
  %4020 = vmatprep.subr.mxu0 0.0
  %4021 = vmatpush1.msra.mxu0 0.0
  %4022 = vmatprep.subr.mxu0 0.0
  %4023 = vmatpush1.msra.mxu0 0.0
  %4024 = vmatprep.subr.mxu0 0.0
  %4025 = vmatpush1.msra.mxu0 0.0
  %4026 = vmatprep.subr.mxu0 0.0
  %4027 = vmatpush1.msra.mxu0 0.0
  %4028 = vmatprep.subr.mxu0 0.0
  %4029 = vmatpush1.msra.mxu0 0.0
  %4030 = vmatprep.subr.mxu0 0.0
  %4031 = vmatpush1.msra.mxu0 0.0
  %4032 = vmatprep.subr.mxu0 0.0
  %4033 = vmatpush1.msra.mxu0 0.0
  %4034 = vmatprep.subr.mxu0 0.0
  %4035 = vmatpush1.msra.mxu0 0.0
  %4036 = vmatprep.mubr.f32.mxu0 0.0
  %v4037 = vand.u32 %v2264, 4294901760
  %4038 = vmatmul.mubr.f32.gmra.mrb[0].mxu0 %v4037
  %v4039 = vpop.f32.mrb[0].mxu0
  %v4040 = vadd.f32 %v3775, %v4039
  %v4041 = vpop.f32.mrb[0].mxu0
  %4042 = vmatprep.mubr.f32.mxu0 0.0
  %v4043 = vand.u32 %v2267, 4294901760
  %4044 = vmatmul.mubr.f32.gmra.mrb[0].mxu0 %v4043
  %v4045 = vpop.f32.mrb[0].mxu0
  %v4046 = vadd.f32 %v3781, %v4045
  %v4047 = vpop.f32.mrb[0].mxu0
  %4048 = vmatprep.mubr.f32.mxu0 0.0
  %v4049 = vand.u32 %v2270, 4294901760
  %4050 = vmatmul.mubr.f32.gmra.mrb[0].mxu0 %v4049
  %v4051 = vpop.f32.mrb[0].mxu0
  %v4052 = vadd.f32 %v3787, %v4051
  %v4053 = vpop.f32.mrb[0].mxu0
  %4054 = vmatprep.mubr.f32.mxu0 0.0
  %v4055 = vand.u32 %v2273, 4294901760
  %4056 = vmatmul.mubr.f32.gmra.mrb[0].mxu0 %v4055
  %v4057 = vpop.f32.mrb[0].mxu0
  %v4058 = vadd.f32 %v3793, %v4057
  %v4059 = vpop.f32.mrb[0].mxu0
  %4060 = vmatprep.mubr.f32.mxu0 0.0
  %v4061 = vand.u32 %v2276, 4294901760
  %4062 = vmatmul.mubr.f32.gmra.mrb[0].mxu0 %v4061
  %v4063 = vpop.f32.mrb[0].mxu0
  %v4064 = vadd.f32 %v3799, %v4063
  %v4065 = vpop.f32.mrb[0].mxu0
  %4066 = vmatprep.mubr.f32.mxu0 0.0
  %v4067 = vand.u32 %v2279, 4294901760
  %4068 = vmatmul.mubr.f32.gmra.mrb[0].mxu0 %v4067
  %v4069 = vpop.f32.mrb[0].mxu0
  %v4070 = vadd.f32 %v3805, %v4069
  %v4071 = vpop.f32.mrb[0].mxu0
  %4072 = vmatprep.mubr.f32.mxu0 0.0
  %v4073 = vand.u32 %v2282, 4294901760
  %4074 = vmatmul.mubr.f32.gmra.mrb[0].mxu0 %v4073
  %v4075 = vpop.f32.mrb[0].mxu0
  %v4076 = vadd.f32 %v3811, %v4075
  %v4077 = vpop.f32.mrb[0].mxu0
  %4078 = vmatprep.mubr.f32.mxu0 0.0
  %v4079 = vand.u32 %v2285, 4294901760
  %4080 = vmatmul.mubr.f32.gmra.mrb[0].mxu0 %v4079
  %v4081 = vpop.f32.mrb[0].mxu0
  %v4082 = vadd.f32 %v3817, %v4081
  %v4083 = vpop.f32.mrb[0].mxu0
  %4084 = vmatprep.mubr.f32.mxu0 0.0
  %v4085 = vand.u32 %v2288, 4294901760
  %4086 = vmatmul.mubr.f32.gmra.mrb[0].mxu0 %v4085
  %v4087 = vpop.f32.mrb[0].mxu0
  %v4088 = vadd.f32 %v3823, %v4087
  %v4089 = vpop.f32.mrb[0].mxu0
  %4090 = vmatprep.mubr.f32.mxu0 0.0
  %v4091 = vand.u32 %v2291, 4294901760
  %4092 = vmatmul.mubr.f32.gmra.mrb[0].mxu0 %v4091
  %v4093 = vpop.f32.mrb[0].mxu0
  %v4094 = vadd.f32 %v3829, %v4093
  %v4095 = vpop.f32.mrb[0].mxu0
  %4096 = vmatprep.mubr.f32.mxu0 0.0
  %v4097 = vand.u32 %v2294, 4294901760
  %4098 = vmatmul.mubr.f32.gmra.mrb[0].mxu0 %v4097
  %v4099 = vpop.f32.mrb[0].mxu0
  %v4100 = vadd.f32 %v3835, %v4099
  %v4101 = vpop.f32.mrb[0].mxu0
  %4102 = vmatprep.mubr.f32.mxu0 0.0
  %v4103 = vand.u32 %v2297, 4294901760
  %4104 = vmatmul.mubr.f32.gmra.mrb[0].mxu0 %v4103
  %v4105 = vpop.f32.mrb[0].mxu0
  %v4106 = vadd.f32 %v3841, %v4105
  %v4107 = vpop.f32.mrb[0].mxu0
  %4108 = vmatprep.mubr.f32.mxu0 0.0
  %v4109 = vand.u32 %v2300, 4294901760
  %4110 = vmatmul.mubr.f32.gmra.mrb[0].mxu0 %v4109
  %v4111 = vpop.f32.mrb[0].mxu0
  %v4112 = vadd.f32 %v3847, %v4111
  %v4113 = vpop.f32.mrb[0].mxu0
  %4114 = vmatprep.mubr.f32.mxu0 0.0
  %v4115 = vand.u32 %v2303, 4294901760
  %4116 = vmatmul.mubr.f32.gmra.mrb[0].mxu0 %v4115
  %v4117 = vpop.f32.mrb[0].mxu0
  %v4118 = vadd.f32 %v3853, %v4117
  %v4119 = vpop.f32.mrb[0].mxu0
  %4120 = vmatprep.mubr.f32.mxu0 0.0
  %v4121 = vand.u32 %v2306, 4294901760
  %4122 = vmatmul.mubr.f32.gmra.mrb[0].mxu0 %v4121
  %v4123 = vpop.f32.mrb[0].mxu0
  %v4124 = vadd.f32 %v3859, %v4123
  %v4125 = vpop.f32.mrb[0].mxu0
  %4126 = vmatprep.mubr.f32.mxu0 0.0
  %v4127 = vand.u32 %v2309, 4294901760
  %4128 = vmatmul.mubr.f32.gmra.mrb[0].mxu0 %v4127
  %v4129 = vpop.f32.mrb[0].mxu0
  %v4130 = vadd.f32 %v3865, %v4129
  %v4131 = vpop.f32.mrb[0].mxu0
  %4132 = vmatprep.mubr.f32.mxu0 0.0
  %v4133 = vand.u32 %v2312, 4294901760
  %4134 = vmatmul.mubr.f32.gmra.mrb[0].mxu0 %v4133
  %v4135 = vpop.f32.mrb[0].mxu0
  %v4136 = vadd.f32 %v3871, %v4135
  %v4137 = vpop.f32.mrb[0].mxu0
  %4138 = vmatprep.mubr.f32.mxu0 0.0
  %v4139 = vand.u32 %v2315, 4294901760
  %4140 = vmatmul.mubr.f32.gmra.mrb[0].mxu0 %v4139
  %v4141 = vpop.f32.mrb[0].mxu0
  %v4142 = vadd.f32 %v3877, %v4141
  %v4143 = vpop.f32.mrb[0].mxu0
  %4144 = vmatprep.mubr.f32.mxu0 0.0
  %v4145 = vand.u32 %v2318, 4294901760
  %4146 = vmatmul.mubr.f32.gmra.mrb[0].mxu0 %v4145
  %v4147 = vpop.f32.mrb[0].mxu0
  %v4148 = vadd.f32 %v3883, %v4147
  %v4149 = vpop.f32.mrb[0].mxu0
  %4150 = vmatprep.mubr.f32.mxu0 0.0
  %v4151 = vand.u32 %v2321, 4294901760
  %4152 = vmatmul.mubr.f32.gmra.mrb[0].mxu0 %v4151
  %v4153 = vpop.f32.mrb[0].mxu0
  %v4154 = vadd.f32 %v3889, %v4153
  %v4155 = vpop.f32.mrb[0].mxu0
  %4156 = vmatprep.mubr.f32.mxu0 0.0
  %v4157 = vand.u32 %v2324, 4294901760
  %4158 = vmatmul.mubr.f32.gmra.mrb[0].mxu0 %v4157
  %v4159 = vpop.f32.mrb[0].mxu0
  %v4160 = vadd.f32 %v3895, %v4159
  %v4161 = vpop.f32.mrb[0].mxu0
  %4162 = vmatprep.mubr.f32.mxu0 0.0
  %v4163 = vand.u32 %v2327, 4294901760
  %4164 = vmatmul.mubr.f32.gmra.mrb[0].mxu0 %v4163
  %v4165 = vpop.f32.mrb[0].mxu0
  %v4166 = vadd.f32 %v3901, %v4165
  %v4167 = vpop.f32.mrb[0].mxu0
  %4168 = vmatprep.mubr.f32.mxu0 0.0
  %v4169 = vand.u32 %v2330, 4294901760
  %4170 = vmatmul.mubr.f32.gmra.mrb[0].mxu0 %v4169
  %v4171 = vpop.f32.mrb[0].mxu0
  %v4172 = vadd.f32 %v3907, %v4171
  %v4173 = vpop.f32.mrb[0].mxu0
  %4174 = vmatprep.mubr.f32.mxu0 0.0
  %v4175 = vand.u32 %v2333, 4294901760
  %4176 = vmatmul.mubr.f32.gmra.mrb[0].mxu0 %v4175
  %v4177 = vpop.f32.mrb[0].mxu0
  %v4178 = vadd.f32 %v3913, %v4177
  %v4179 = vpop.f32.mrb[0].mxu0
  %4180 = vmatprep.mubr.f32.mxu0 0.0
  %v4181 = vand.u32 %v2336, 4294901760
  %4182 = vmatmul.mubr.f32.gmra.mrb[0].mxu0 %v4181
  %v4183 = vpop.f32.mrb[0].mxu0
  %v4184 = vadd.f32 %v3919, %v4183
  %v4185 = vpop.f32.mrb[0].mxu0
  %4186 = vmatprep.mubr.f32.mxu0 0.0
  %v4187 = vand.u32 %v2339, 4294901760
  %4188 = vmatmul.mubr.f32.gmra.mrb[0].mxu0 %v4187
  %v4189 = vpop.f32.mrb[0].mxu0
  %v4190 = vadd.f32 %v3925, %v4189
  %v4191 = vpop.f32.mrb[0].mxu0
  %4192 = vmatprep.mubr.f32.mxu0 0.0
  %v4193 = vand.u32 %v2342, 4294901760
  %4194 = vmatmul.mubr.f32.gmra.mrb[0].mxu0 %v4193
  %v4195 = vpop.f32.mrb[0].mxu0
  %v4196 = vadd.f32 %v3931, %v4195
  %v4197 = vpop.f32.mrb[0].mxu0
  %4198 = vmatprep.mubr.f32.mxu0 0.0
  %v4199 = vand.u32 %v2345, 4294901760
  %4200 = vmatmul.mubr.f32.gmra.mrb[0].mxu0 %v4199
  %v4201 = vpop.f32.mrb[0].mxu0
  %v4202 = vadd.f32 %v3937, %v4201
  %v4203 = vpop.f32.mrb[0].mxu0
  %4204 = vmatprep.mubr.f32.mxu0 0.0
  %v4205 = vand.u32 %v2348, 4294901760
  %4206 = vmatmul.mubr.f32.gmra.mrb[0].mxu0 %v4205
  %v4207 = vpop.f32.mrb[0].mxu0
  %v4208 = vadd.f32 %v3943, %v4207
  %v4209 = vpop.f32.mrb[0].mxu0
  %4210 = vmatprep.mubr.f32.mxu0 0.0
  %v4211 = vand.u32 %v2351, 4294901760
  %4212 = vmatmul.mubr.f32.gmra.mrb[0].mxu0 %v4211
  %v4213 = vpop.f32.mrb[0].mxu0
  %v4214 = vadd.f32 %v3949, %v4213
  %v4215 = vpop.f32.mrb[0].mxu0
  %4216 = vmatprep.mubr.f32.mxu0 0.0
  %v4217 = vand.u32 %v2354, 4294901760
  %4218 = vmatmul.mubr.f32.gmra.mrb[0].mxu0 %v4217
  %v4219 = vpop.f32.mrb[0].mxu0
  %v4220 = vadd.f32 %v3955, %v4219
  %v4221 = vpop.f32.mrb[0].mxu0
  %4222 = vmatprep.mubr.f32.mxu0 0.0
  %v4223 = vand.u32 %v2357, 4294901760
  %4224 = vmatmul.mubr.f32.gmra.mrb[0].mxu0 %v4223
  %v4225 = vpop.f32.mrb[0].mxu0
  %v4226 = vadd.f32 %v3961, %v4225
  %v4227 = vpop.f32.mrb[0].mxu0
  %4228 = vdwg.mxu0
  %vm4229 = vcmp.gt.f32.partialorder %v4040, 0.0
  %vm4230 = vcmp.gt.f32.partialorder %v4046, 0.0
  %vm4231 = vcmp.gt.f32.partialorder %v4052, 0.0
  %vm4232 = vcmp.gt.f32.partialorder %v4058, 0.0
  %vm4233 = vcmp.gt.f32.partialorder %v4064, 0.0
  %vm4234 = vcmp.gt.f32.partialorder %v4070, 0.0
  %vm4235 = vcmp.gt.f32.partialorder %v4076, 0.0
  %vm4236 = vcmp.gt.f32.partialorder %v4082, 0.0
  %vm4237 = vcmp.gt.f32.partialorder %v4088, 0.0
  %vm4238 = vcmp.gt.f32.partialorder %v4094, 0.0
  %vm4239 = vcmp.gt.f32.partialorder %v4100, 0.0
  %vm4240 = vcmp.gt.f32.partialorder %v4106, 0.0
  %vm4241 = vcmp.gt.f32.partialorder %v4112, 0.0
  %vm4242 = vcmp.gt.f32.partialorder %v4118, 0.0
  %vm4243 = vcmp.gt.f32.partialorder %v4124, 0.0
  %vm4244 = vcmp.gt.f32.partialorder %v4130, 0.0
  %vm4245 = vcmp.gt.f32.partialorder %v4136, 0.0
  %vm4246 = vcmp.gt.f32.partialorder %v4142, 0.0
  %vm4247 = vcmp.gt.f32.partialorder %v4148, 0.0
  %vm4248 = vcmp.gt.f32.partialorder %v4154, 0.0
  %vm4249 = vcmp.gt.f32.partialorder %v4160, 0.0
  %vm4250 = vcmp.gt.f32.partialorder %v4166, 0.0
  %vm4251 = vcmp.gt.f32.partialorder %v4172, 0.0
  %vm4252 = vcmp.gt.f32.partialorder %v4178, 0.0
  %vm4253 = vcmp.gt.f32.partialorder %v4184, 0.0
  %vm4254 = vcmp.gt.f32.partialorder %v4190, 0.0
  %vm4255 = vcmp.gt.f32.partialorder %v4196, 0.0
  %vm4256 = vcmp.gt.f32.partialorder %v4202, 0.0
  %vm4257 = vcmp.gt.f32.partialorder %v4208, 0.0
  %vm4258 = vcmp.gt.f32.partialorder %v4214, 0.0
  %vm4259 = vcmp.gt.f32.partialorder %v4220, 0.0
  %vm4260 = vcmp.gt.f32.partialorder %v4226, 0.0
  %v4261 = vmul.f32 %v4040, 1.442695
  %v4262 = vpow.pop %v4261
  %v4263 = vmul.f32 %v4046, 1.442695
  %v4264 = vpow.pop %v4263
  %v4265 = vmul.f32 %v4052, 1.442695
  %v4266 = vpow.pop %v4265
  %v4267 = vmul.f32 %v4058, 1.442695
  %v4268 = vpow.pop %v4267
  %v4269 = vmul.f32 %v4064, 1.442695
  %v4270 = vpow.pop %v4269
  %v4271 = vmul.f32 %v4070, 1.442695
  %v4272 = vpow.pop %v4271
  %v4273 = vmul.f32 %v4076, 1.442695
  %v4274 = vpow.pop %v4273
  %v4275 = vmul.f32 %v4082, 1.442695
  %v4276 = vpow.pop %v4275
  %v4277 = vmul.f32 %v4088, 1.442695
  %v4278 = vpow.pop %v4277
  %v4279 = vmul.f32 %v4094, 1.442695
  %v4280 = vpow.pop %v4279
  %v4281 = vmul.f32 %v4100, 1.442695
  %v4282 = vpow.pop %v4281
  %v4283 = vmul.f32 %v4106, 1.442695
  %v4284 = vpow.pop %v4283
  %v4285 = vmul.f32 %v4112, 1.442695
  %v4286 = vpow.pop %v4285
  %v4287 = vmul.f32 %v4118, 1.442695
  %v4288 = vpow.pop %v4287
  %v4289 = vmul.f32 %v4124, 1.442695
  %v4290 = vpow.pop %v4289
  %v4291 = vmul.f32 %v4130, 1.442695
  %v4292 = vpow.pop %v4291
  %v4293 = vmul.f32 %v4136, 1.442695
  %v4294 = vpow.pop %v4293
  %v4295 = vmul.f32 %v4142, 1.442695
  %v4296 = vpow.pop %v4295
  %v4297 = vmul.f32 %v4148, 1.442695
  %v4298 = vpow.pop %v4297
  %v4299 = vmul.f32 %v4154, 1.442695
  %v4300 = vpow.pop %v4299
  %v4301 = vmul.f32 %v4160, 1.442695
  %v4302 = vpow.pop %v4301
  %v4303 = vmul.f32 %v4166, 1.442695
  %v4304 = vpow.pop %v4303
  %v4305 = vmul.f32 %v4172, 1.442695
  %v4306 = vpow.pop %v4305
  %v4307 = vmul.f32 %v4178, 1.442695
  %v4308 = vpow.pop %v4307
  %v4309 = vmul.f32 %v4184, 1.442695
  %v4310 = vpow.pop %v4309
  %v4311 = vmul.f32 %v4190, 1.442695
  %v4312 = vpow.pop %v4311
  %v4313 = vmul.f32 %v4196, 1.442695
  %v4314 = vpow.pop %v4313
  %v4315 = vmul.f32 %v4202, 1.442695
  %v4316 = vpow.pop %v4315
  %v4317 = vmul.f32 %v4208, 1.442695
  %v4318 = vpow.pop %v4317
  %v4319 = vmul.f32 %v4214, 1.442695
  %v4320 = vpow.pop %v4319
  %v4321 = vmul.f32 %v4220, 1.442695
  %v4322 = vpow.pop %v4321
  %v4323 = vmul.f32 %v4226, 1.442695
  %v4324 = vpow.pop %v4323
  %v4325 = vsub.f32 %v4262, 1.0
  %v4326 = vsub.f32 %v4264, 1.0
  %v4327 = vsub.f32 %v4266, 1.0
  %v4328 = vsub.f32 %v4268, 1.0
  %v4329 = vsub.f32 %v4270, 1.0
  %v4330 = vsub.f32 %v4272, 1.0
  %v4331 = vsub.f32 %v4274, 1.0
  %v4332 = vsub.f32 %v4276, 1.0
  %v4333 = vsub.f32 %v4278, 1.0
  %v4334 = vsub.f32 %v4280, 1.0
  %v4335 = vsub.f32 %v4282, 1.0
  %v4336 = vsub.f32 %v4284, 1.0
  %v4337 = vsub.f32 %v4286, 1.0
  %v4338 = vsub.f32 %v4288, 1.0
  %v4339 = vsub.f32 %v4290, 1.0
  %v4340 = vsub.f32 %v4292, 1.0
  %v4341 = vsub.f32 %v4294, 1.0
  %v4342 = vsub.f32 %v4296, 1.0
  %v4343 = vsub.f32 %v4298, 1.0
  %v4344 = vsub.f32 %v4300, 1.0
  %v4345 = vsub.f32 %v4302, 1.0
  %v4346 = vsub.f32 %v4304, 1.0
  %v4347 = vsub.f32 %v4306, 1.0
  %v4348 = vsub.f32 %v4308, 1.0
  %v4349 = vsub.f32 %v4310, 1.0
  %v4350 = vsub.f32 %v4312, 1.0
  %v4351 = vsub.f32 %v4314, 1.0
  %v4352 = vsub.f32 %v4316, 1.0
  %v4353 = vsub.f32 %v4318, 1.0
  %v4354 = vsub.f32 %v4320, 1.0
  %v4355 = vsub.f32 %v4322, 1.0
  %v4356 = vsub.f32 %v4324, 1.0
  %v4357 = vsel %vm4229, %v4040, %v4325
  %v4358 = vsel %vm4230, %v4046, %v4326
  %v4359 = vsel %vm4231, %v4052, %v4327
  %v4360 = vsel %vm4232, %v4058, %v4328
  %v4361 = vsel %vm4233, %v4064, %v4329
  %v4362 = vsel %vm4234, %v4070, %v4330
  %v4363 = vsel %vm4235, %v4076, %v4331
  %v4364 = vsel %vm4236, %v4082, %v4332
  %v4365 = vsel %vm4237, %v4088, %v4333
  %v4366 = vsel %vm4238, %v4094, %v4334
  %v4367 = vsel %vm4239, %v4100, %v4335
  %v4368 = vsel %vm4240, %v4106, %v4336
  %v4369 = vsel %vm4241, %v4112, %v4337
  %v4370 = vsel %vm4242, %v4118, %v4338
  %v4371 = vsel %vm4243, %v4124, %v4339
  %v4372 = vsel %vm4244, %v4130, %v4340
  %v4373 = vsel %vm4245, %v4136, %v4341
  %v4374 = vsel %vm4246, %v4142, %v4342
  %v4375 = vsel %vm4247, %v4148, %v4343
  %v4376 = vsel %vm4248, %v4154, %v4344
  %v4377 = vsel %vm4249, %v4160, %v4345
  %v4378 = vsel %vm4250, %v4166, %v4346
  %v4379 = vsel %vm4251, %v4172, %v4347
  %v4380 = vsel %vm4252, %v4178, %v4348
  %v4381 = vsel %vm4253, %v4184, %v4349
  %v4382 = vsel %vm4254, %v4190, %v4350
  %v4383 = vsel %vm4255, %v4196, %v4351
  %v4384 = vsel %vm4256, %v4202, %v4352
  %v4385 = vsel %vm4257, %v4208, %v4353
  %v4386 = vsel %vm4258, %v4214, %v4354
  %v4387 = vsel %vm4259, %v4220, %v4355
  %v4388 = vsel %vm4260, %v4226, %v4356
  %4389 = vst.msk [vmem:[%s7] sm:$0xff] %vm2217, %v4357
  %4390 = vst.msk [vmem:[%s7 + $0x8] sm:$0xff] %vm2217, %v4358
  %4391 = vst.msk [vmem:[%s7 + $0x10] sm:$0xff] %vm2217, %v4359
  %4392 = vst.msk [vmem:[%s7 + $0x18] sm:$0xff] %vm2217, %v4360
  %4393 = vst.msk [vmem:[%s7 + $0x20] sm:$0xff] %vm2217, %v4361
  %4394 = vst.msk [vmem:[%s7 + $0x28] sm:$0xff] %vm2217, %v4362
  %4395 = vst.msk [vmem:[%s7 + $0x30] sm:$0xff] %vm2217, %v4363
  %4396 = vst.msk [vmem:[%s7 + $0x38] sm:$0xff] %vm2217, %v4364
  %4397 = vst.msk [vmem:[%s7 + $0x40] sm:$0xff] %vm2217, %v4365
  %4398 = vst.msk [vmem:[%s7 + $0x48] sm:$0xff] %vm2217, %v4366
  %4399 = vst.msk [vmem:[%s7 + $0x50] sm:$0xff] %vm2217, %v4367
  %4400 = vst.msk [vmem:[%s7 + $0x58] sm:$0xff] %vm2217, %v4368
  %4401 = vst.msk [vmem:[%s7 + $0x60] sm:$0xff] %vm2217, %v4369
  %4402 = vst.msk [vmem:[%s7 + $0x68] sm:$0xff] %vm2217, %v4370
  %4403 = vst.msk [vmem:[%s7 + $0x70] sm:$0xff] %vm2217, %v4371
  %4404 = vst.msk [vmem:[%s7 + $0x78] sm:$0xff] %vm2217, %v4372
  %4405 = vst.msk [vmem:[%s7 + $0x80] sm:$0xff] %vm2217, %v4373
  %4406 = vst.msk [vmem:[%s7 + $0x88] sm:$0xff] %vm2217, %v4374
  %4407 = vst.msk [vmem:[%s7 + $0x90] sm:$0xff] %vm2217, %v4375
  %4408 = vst.msk [vmem:[%s7 + $0x98] sm:$0xff] %vm2217, %v4376
  %4409 = vst.msk [vmem:[%s7 + $0xa0] sm:$0xff] %vm2217, %v4377
  %4410 = vst.msk [vmem:[%s7 + $0xa8] sm:$0xff] %vm2217, %v4378
  %4411 = vst.msk [vmem:[%s7 + $0xb0] sm:$0xff] %vm2217, %v4379
  %4412 = vst.msk [vmem:[%s7 + $0xb8] sm:$0xff] %vm2217, %v4380
  %4413 = vst.msk [vmem:[%s7 + $0xc0] sm:$0xff] %vm2217, %v4381
  %4414 = vst.msk [vmem:[%s7 + $0xc8] sm:$0xff] %vm2217, %v4382
  %4415 = vst.msk [vmem:[%s7 + $0xd0] sm:$0xff] %vm2217, %v4383
  %4416 = vst.msk [vmem:[%s7 + $0xd8] sm:$0xff] %vm2217, %v4384
  %4417 = vst.msk [vmem:[%s7 + $0xe0] sm:$0xff] %vm2217, %v4385
  %4418 = vst.msk [vmem:[%s7 + $0xe8] sm:$0xff] %vm2217, %v4386
  %4419 = vst.msk [vmem:[%s7 + $0xf0] sm:$0xff] %vm2217, %v4387
  %4420 = vst.msk [vmem:[%s7 + $0xf8] sm:$0xff] %vm2217, %v4388
  %v4421 = vld [vmem:[%s3] sm:$0xff]
  %v4422 = vld [vmem:[%s3 + $0x8] sm:$0xff]
  %v4423 = vld [vmem:[%s3 + $0x10] sm:$0xff]
  %v4424 = vld [vmem:[%s3 + $0x18] sm:$0xff]
  %v4425 = vld [vmem:[%s3 + $0x20] sm:$0xff]
  %v4426 = vld [vmem:[%s3 + $0x28] sm:$0xff]
  %v4427 = vld [vmem:[%s3 + $0x30] sm:$0xff]
  %v4428 = vld [vmem:[%s3 + $0x38] sm:$0xff]
  %v4429 = vld [vmem:[%s5 + $0x2] sm:$0x1]
  %v4430 = vlaneseq
  %v4431 = vshrl.u32 %v4430, 7
  %v4432 = vsub.s32 0, %v4431
  %v4433 = vrot.slane %v4429, %v4432
  %v4435 = vsel %vm2217, %v4357, 0
  %v4438 = vsel %vm2217, %v4358, 0
  %v4441 = vsel %vm2217, %v4359, 0
  %v4444 = vsel %vm2217, %v4360, 0
  %v4447 = vsel %vm2217, %v4361, 0
  %v4450 = vsel %vm2217, %v4362, 0
  %v4453 = vsel %vm2217, %v4363, 0
  %v4456 = vsel %vm2217, %v4364, 0
  %v4459 = vsel %vm2217, %v4365, 0
  %v4462 = vsel %vm2217, %v4366, 0
  %v4465 = vsel %vm2217, %v4367, 0
  %v4468 = vsel %vm2217, %v4368, 0
  %v4471 = vsel %vm2217, %v4369, 0
  %v4474 = vsel %vm2217, %v4370, 0
  %v4477 = vsel %vm2217, %v4371, 0
  %v4480 = vsel %vm2217, %v4372, 0
  %v4483 = vsel %vm2217, %v4373, 0
  %v4486 = vsel %vm2217, %v4374, 0
  %v4489 = vsel %vm2217, %v4375, 0
  %v4492 = vsel %vm2217, %v4376, 0
  %v4495 = vsel %vm2217, %v4377, 0
  %v4498 = vsel %vm2217, %v4378, 0
  %v4501 = vsel %vm2217, %v4379, 0
  %v4504 = vsel %vm2217, %v4380, 0
  %v4507 = vsel %vm2217, %v4381, 0
  %v4510 = vsel %vm2217, %v4382, 0
  %v4513 = vsel %vm2217, %v4383, 0
  %v4516 = vsel %vm2217, %v4384, 0
  %v4519 = vsel %vm2217, %v4385, 0
  %v4522 = vsel %vm2217, %v4386, 0
  %v4525 = vsel %vm2217, %v4387, 0
  %v4528 = vsel %vm2217, %v4388, 0
  %4530 = vmatprep.subr.mxu0 0.0
  %v4531 = vand.u32 %v4421, 4294901760
  %4532 = vmatpush1.msra.mxu0 %v4531
  %4533 = vmatprep.subr.mxu0 0.0
  %v4534 = vand.u32 %v4422, 4294901760
  %4535 = vmatpush1.msra.mxu0 %v4534
  %4536 = vmatprep.subr.mxu0 0.0
  %v4537 = vand.u32 %v4423, 4294901760
  %4538 = vmatpush1.msra.mxu0 %v4537
  %4539 = vmatprep.subr.mxu0 0.0
  %v4540 = vand.u32 %v4424, 4294901760
  %4541 = vmatpush1.msra.mxu0 %v4540
  %4542 = vmatprep.subr.mxu0 0.0
  %v4543 = vand.u32 %v4425, 4294901760
  %4544 = vmatpush1.msra.mxu0 %v4543
  %4545 = vmatprep.subr.mxu0 0.0
  %v4546 = vand.u32 %v4426, 4294901760
  %4547 = vmatpush1.msra.mxu0 %v4546
  %4548 = vmatprep.subr.mxu0 0.0
  %v4549 = vand.u32 %v4427, 4294901760
  %4550 = vmatpush1.msra.mxu0 %v4549
  %4551 = vmatprep.subr.mxu0 0.0
  %v4552 = vand.u32 %v4428, 4294901760
  %4553 = vmatpush1.msra.mxu0 %v4552
  %4554 = vmatprep.subr.mxu0 0.0
  %4555 = vmatpush1.msra.mxu0 0.0
  %4556 = vmatprep.subr.mxu0 0.0
  %4557 = vmatpush1.msra.mxu0 0.0
  %4558 = vmatprep.subr.mxu0 0.0
  %4559 = vmatpush1.msra.mxu0 0.0
  %4560 = vmatprep.subr.mxu0 0.0
  %4561 = vmatpush1.msra.mxu0 0.0
  %4562 = vmatprep.subr.mxu0 0.0
  %4563 = vmatpush1.msra.mxu0 0.0
  %4564 = vmatprep.subr.mxu0 0.0
  %4565 = vmatpush1.msra.mxu0 0.0
  %4566 = vmatprep.subr.mxu0 0.0
  %4567 = vmatpush1.msra.mxu0 0.0
  %4568 = vmatprep.subr.mxu0 0.0
  %4569 = vmatpush1.msra.mxu0 0.0
  %4570 = vmatprep.subr.mxu0 0.0
  %4571 = vmatpush1.msra.mxu0 0.0
  %4572 = vmatprep.subr.mxu0 0.0
  %4573 = vmatpush1.msra.mxu0 0.0
  %4574 = vmatprep.subr.mxu0 0.0
  %4575 = vmatpush1.msra.mxu0 0.0
  %4576 = vmatprep.subr.mxu0 0.0
  %4577 = vmatpush1.msra.mxu0 0.0
  %4578 = vmatprep.subr.mxu0 0.0
  %4579 = vmatpush1.msra.mxu0 0.0
  %4580 = vmatprep.subr.mxu0 0.0
  %4581 = vmatpush1.msra.mxu0 0.0
  %4582 = vmatprep.subr.mxu0 0.0
  %4583 = vmatpush1.msra.mxu0 0.0
  %4584 = vmatprep.subr.mxu0 0.0
  %4585 = vmatpush1.msra.mxu0 0.0
  %4586 = vmatprep.subr.mxu0 0.0
  %4587 = vmatpush1.msra.mxu0 0.0
  %4588 = vmatprep.subr.mxu0 0.0
  %4589 = vmatpush1.msra.mxu0 0.0
  %4590 = vmatprep.subr.mxu0 0.0
  %4591 = vmatpush1.msra.mxu0 0.0
  %4592 = vmatprep.subr.mxu0 0.0
  %4593 = vmatpush1.msra.mxu0 0.0
  %4594 = vmatprep.subr.mxu0 0.0
  %4595 = vmatpush1.msra.mxu0 0.0
  %4596 = vmatprep.subr.mxu0 0.0
  %4597 = vmatpush1.msra.mxu0 0.0
  %4598 = vmatprep.subr.mxu0 0.0
  %4599 = vmatpush1.msra.mxu0 0.0
  %4600 = vmatprep.subr.mxu0 0.0
  %4601 = vmatpush1.msra.mxu0 0.0
  %4602 = vmatprep.mubr.f32.mxu0 0.0
  %v4603 = vand.u32 %v4435, 4294901760
  %v4604 = vsub.f32 %v4435, %v4603
  %v4605 = vand.u32 %v4604, 4294901760
  %v4606 = vsub.f32 %v4604, %v4605
  %v4607 = vand.u32 %v4606, 4294901760
  %4608 = vmatmul.mubr.f32.gmra.mrb[0].mxu0 %v4607
  %v4609 = vpop.f32.mrb[0].mxu0
  %v4610 = vadd.f32 %v4433, %v4609
  %v4611 = vpop.f32.mrb[0].mxu0
  %4612 = vmatprep.mubr.f32.mxu0 0.0
  %v4613 = vand.u32 %v4438, 4294901760
  %v4614 = vsub.f32 %v4438, %v4613
  %v4615 = vand.u32 %v4614, 4294901760
  %v4616 = vsub.f32 %v4614, %v4615
  %v4617 = vand.u32 %v4616, 4294901760
  %4618 = vmatmul.mubr.f32.gmra.mrb[0].mxu0 %v4617
  %v4619 = vpop.f32.mrb[0].mxu0
  %v4620 = vadd.f32 %v4433, %v4619
  %v4621 = vpop.f32.mrb[0].mxu0
  %4622 = vmatprep.mubr.f32.mxu0 0.0
  %v4623 = vand.u32 %v4441, 4294901760
  %v4624 = vsub.f32 %v4441, %v4623
  %v4625 = vand.u32 %v4624, 4294901760
  %v4626 = vsub.f32 %v4624, %v4625
  %v4627 = vand.u32 %v4626, 4294901760
  %4628 = vmatmul.mubr.f32.gmra.mrb[0].mxu0 %v4627
  %v4629 = vpop.f32.mrb[0].mxu0
  %v4630 = vadd.f32 %v4433, %v4629
  %v4631 = vpop.f32.mrb[0].mxu0
  %4632 = vmatprep.mubr.f32.mxu0 0.0
  %v4633 = vand.u32 %v4444, 4294901760
  %v4634 = vsub.f32 %v4444, %v4633
  %v4635 = vand.u32 %v4634, 4294901760
  %v4636 = vsub.f32 %v4634, %v4635
  %v4637 = vand.u32 %v4636, 4294901760
  %4638 = vmatmul.mubr.f32.gmra.mrb[0].mxu0 %v4637
  %v4639 = vpop.f32.mrb[0].mxu0
  %v4640 = vadd.f32 %v4433, %v4639
  %v4641 = vpop.f32.mrb[0].mxu0
  %4642 = vmatprep.mubr.f32.mxu0 0.0
  %v4643 = vand.u32 %v4447, 4294901760
  %v4644 = vsub.f32 %v4447, %v4643
  %v4645 = vand.u32 %v4644, 4294901760
  %v4646 = vsub.f32 %v4644, %v4645
  %v4647 = vand.u32 %v4646, 4294901760
  %4648 = vmatmul.mubr.f32.gmra.mrb[0].mxu0 %v4647
  %v4649 = vpop.f32.mrb[0].mxu0
  %v4650 = vadd.f32 %v4433, %v4649
  %v4651 = vpop.f32.mrb[0].mxu0
  %4652 = vmatprep.mubr.f32.mxu0 0.0
  %v4653 = vand.u32 %v4450, 4294901760
  %v4654 = vsub.f32 %v4450, %v4653
  %v4655 = vand.u32 %v4654, 4294901760
  %v4656 = vsub.f32 %v4654, %v4655
  %v4657 = vand.u32 %v4656, 4294901760
  %4658 = vmatmul.mubr.f32.gmra.mrb[0].mxu0 %v4657
  %v4659 = vpop.f32.mrb[0].mxu0
  %v4660 = vadd.f32 %v4433, %v4659
  %v4661 = vpop.f32.mrb[0].mxu0
  %4662 = vmatprep.mubr.f32.mxu0 0.0
  %v4663 = vand.u32 %v4453, 4294901760
  %v4664 = vsub.f32 %v4453, %v4663
  %v4665 = vand.u32 %v4664, 4294901760
  %v4666 = vsub.f32 %v4664, %v4665
  %v4667 = vand.u32 %v4666, 4294901760
  %4668 = vmatmul.mubr.f32.gmra.mrb[0].mxu0 %v4667
  %v4669 = vpop.f32.mrb[0].mxu0
  %v4670 = vadd.f32 %v4433, %v4669
  %v4671 = vpop.f32.mrb[0].mxu0
  %4672 = vmatprep.mubr.f32.mxu0 0.0
  %v4673 = vand.u32 %v4456, 4294901760
  %v4674 = vsub.f32 %v4456, %v4673
  %v4675 = vand.u32 %v4674, 4294901760
  %v4676 = vsub.f32 %v4674, %v4675
  %v4677 = vand.u32 %v4676, 4294901760
  %4678 = vmatmul.mubr.f32.gmra.mrb[0].mxu0 %v4677
  %v4679 = vpop.f32.mrb[0].mxu0
  %v4680 = vadd.f32 %v4433, %v4679
  %v4681 = vpop.f32.mrb[0].mxu0
  %4682 = vmatprep.mubr.f32.mxu0 0.0
  %v4683 = vand.u32 %v4459, 4294901760
  %v4684 = vsub.f32 %v4459, %v4683
  %v4685 = vand.u32 %v4684, 4294901760
  %v4686 = vsub.f32 %v4684, %v4685
  %v4687 = vand.u32 %v4686, 4294901760
  %4688 = vmatmul.mubr.f32.gmra.mrb[0].mxu0 %v4687
  %v4689 = vpop.f32.mrb[0].mxu0
  %v4690 = vadd.f32 %v4433, %v4689
  %v4691 = vpop.f32.mrb[0].mxu0
  %4692 = vmatprep.mubr.f32.mxu0 0.0
  %v4693 = vand.u32 %v4462, 4294901760
  %v4694 = vsub.f32 %v4462, %v4693
  %v4695 = vand.u32 %v4694, 4294901760
  %v4696 = vsub.f32 %v4694, %v4695
  %v4697 = vand.u32 %v4696, 4294901760
  %4698 = vmatmul.mubr.f32.gmra.mrb[0].mxu0 %v4697
  %v4699 = vpop.f32.mrb[0].mxu0
  %v4700 = vadd.f32 %v4433, %v4699
  %v4701 = vpop.f32.mrb[0].mxu0
  %4702 = vmatprep.mubr.f32.mxu0 0.0
  %v4703 = vand.u32 %v4465, 4294901760
  %v4704 = vsub.f32 %v4465, %v4703
  %v4705 = vand.u32 %v4704, 4294901760
  %v4706 = vsub.f32 %v4704, %v4705
  %v4707 = vand.u32 %v4706, 4294901760
  %4708 = vmatmul.mubr.f32.gmra.mrb[0].mxu0 %v4707
  %v4709 = vpop.f32.mrb[0].mxu0
  %v4710 = vadd.f32 %v4433, %v4709
  %v4711 = vpop.f32.mrb[0].mxu0
  %4712 = vmatprep.mubr.f32.mxu0 0.0
  %v4713 = vand.u32 %v4468, 4294901760
  %v4714 = vsub.f32 %v4468, %v4713
  %v4715 = vand.u32 %v4714, 4294901760
  %v4716 = vsub.f32 %v4714, %v4715
  %v4717 = vand.u32 %v4716, 4294901760
  %4718 = vmatmul.mubr.f32.gmra.mrb[0].mxu0 %v4717
  %v4719 = vpop.f32.mrb[0].mxu0
  %v4720 = vadd.f32 %v4433, %v4719
  %v4721 = vpop.f32.mrb[0].mxu0
  %4722 = vmatprep.mubr.f32.mxu0 0.0
  %v4723 = vand.u32 %v4471, 4294901760
  %v4724 = vsub.f32 %v4471, %v4723
  %v4725 = vand.u32 %v4724, 4294901760
  %v4726 = vsub.f32 %v4724, %v4725
  %v4727 = vand.u32 %v4726, 4294901760
  %4728 = vmatmul.mubr.f32.gmra.mrb[0].mxu0 %v4727
  %v4729 = vpop.f32.mrb[0].mxu0
  %v4730 = vadd.f32 %v4433, %v4729
  %v4731 = vpop.f32.mrb[0].mxu0
  %4732 = vmatprep.mubr.f32.mxu0 0.0
  %v4733 = vand.u32 %v4474, 4294901760
  %v4734 = vsub.f32 %v4474, %v4733
  %v4735 = vand.u32 %v4734, 4294901760
  %v4736 = vsub.f32 %v4734, %v4735
  %v4737 = vand.u32 %v4736, 4294901760
  %4738 = vmatmul.mubr.f32.gmra.mrb[0].mxu0 %v4737
  %v4739 = vpop.f32.mrb[0].mxu0
  %v4740 = vadd.f32 %v4433, %v4739
  %v4741 = vpop.f32.mrb[0].mxu0
  %4742 = vmatprep.mubr.f32.mxu0 0.0
  %v4743 = vand.u32 %v4477, 4294901760
  %v4744 = vsub.f32 %v4477, %v4743
  %v4745 = vand.u32 %v4744, 4294901760
  %v4746 = vsub.f32 %v4744, %v4745
  %v4747 = vand.u32 %v4746, 4294901760
  %4748 = vmatmul.mubr.f32.gmra.mrb[0].mxu0 %v4747
  %v4749 = vpop.f32.mrb[0].mxu0
  %v4750 = vadd.f32 %v4433, %v4749
  %v4751 = vpop.f32.mrb[0].mxu0
  %4752 = vmatprep.mubr.f32.mxu0 0.0
  %v4753 = vand.u32 %v4480, 4294901760
  %v4754 = vsub.f32 %v4480, %v4753
  %v4755 = vand.u32 %v4754, 4294901760
  %v4756 = vsub.f32 %v4754, %v4755
  %v4757 = vand.u32 %v4756, 4294901760
  %4758 = vmatmul.mubr.f32.gmra.mrb[0].mxu0 %v4757
  %v4759 = vpop.f32.mrb[0].mxu0
  %v4760 = vadd.f32 %v4433, %v4759
  %v4761 = vpop.f32.mrb[0].mxu0
  %4762 = vmatprep.mubr.f32.mxu0 0.0
  %v4763 = vand.u32 %v4483, 4294901760
  %v4764 = vsub.f32 %v4483, %v4763
  %v4765 = vand.u32 %v4764, 4294901760
  %v4766 = vsub.f32 %v4764, %v4765
  %v4767 = vand.u32 %v4766, 4294901760
  %4768 = vmatmul.mubr.f32.gmra.mrb[0].mxu0 %v4767
  %v4769 = vpop.f32.mrb[0].mxu0
  %v4770 = vadd.f32 %v4433, %v4769
  %v4771 = vpop.f32.mrb[0].mxu0
  %4772 = vmatprep.mubr.f32.mxu0 0.0
  %v4773 = vand.u32 %v4486, 4294901760
  %v4774 = vsub.f32 %v4486, %v4773
  %v4775 = vand.u32 %v4774, 4294901760
  %v4776 = vsub.f32 %v4774, %v4775
  %v4777 = vand.u32 %v4776, 4294901760
  %4778 = vmatmul.mubr.f32.gmra.mrb[0].mxu0 %v4777
  %v4779 = vpop.f32.mrb[0].mxu0
  %v4780 = vadd.f32 %v4433, %v4779
  %v4781 = vpop.f32.mrb[0].mxu0
  %4782 = vmatprep.mubr.f32.mxu0 0.0
  %v4783 = vand.u32 %v4489, 4294901760
  %v4784 = vsub.f32 %v4489, %v4783
  %v4785 = vand.u32 %v4784, 4294901760
  %v4786 = vsub.f32 %v4784, %v4785
  %v4787 = vand.u32 %v4786, 4294901760
  %4788 = vmatmul.mubr.f32.gmra.mrb[0].mxu0 %v4787
  %v4789 = vpop.f32.mrb[0].mxu0
  %v4790 = vadd.f32 %v4433, %v4789
  %v4791 = vpop.f32.mrb[0].mxu0
  %4792 = vmatprep.mubr.f32.mxu0 0.0
  %v4793 = vand.u32 %v4492, 4294901760
  %v4794 = vsub.f32 %v4492, %v4793
  %v4795 = vand.u32 %v4794, 4294901760
  %v4796 = vsub.f32 %v4794, %v4795
  %v4797 = vand.u32 %v4796, 4294901760
  %4798 = vmatmul.mubr.f32.gmra.mrb[0].mxu0 %v4797
  %v4799 = vpop.f32.mrb[0].mxu0
  %v4800 = vadd.f32 %v4433, %v4799
  %v4801 = vpop.f32.mrb[0].mxu0
  %4802 = vmatprep.mubr.f32.mxu0 0.0
  %v4803 = vand.u32 %v4495, 4294901760
  %v4804 = vsub.f32 %v4495, %v4803
  %v4805 = vand.u32 %v4804, 4294901760
  %v4806 = vsub.f32 %v4804, %v4805
  %v4807 = vand.u32 %v4806, 4294901760
  %4808 = vmatmul.mubr.f32.gmra.mrb[0].mxu0 %v4807
  %v4809 = vpop.f32.mrb[0].mxu0
  %v4810 = vadd.f32 %v4433, %v4809
  %v4811 = vpop.f32.mrb[0].mxu0
  %4812 = vmatprep.mubr.f32.mxu0 0.0
  %v4813 = vand.u32 %v4498, 4294901760
  %v4814 = vsub.f32 %v4498, %v4813
  %v4815 = vand.u32 %v4814, 4294901760
  %v4816 = vsub.f32 %v4814, %v4815
  %v4817 = vand.u32 %v4816, 4294901760
  %4818 = vmatmul.mubr.f32.gmra.mrb[0].mxu0 %v4817
  %v4819 = vpop.f32.mrb[0].mxu0
  %v4820 = vadd.f32 %v4433, %v4819
  %v4821 = vpop.f32.mrb[0].mxu0
  %4822 = vmatprep.mubr.f32.mxu0 0.0
  %v4823 = vand.u32 %v4501, 4294901760
  %v4824 = vsub.f32 %v4501, %v4823
  %v4825 = vand.u32 %v4824, 4294901760
  %v4826 = vsub.f32 %v4824, %v4825
  %v4827 = vand.u32 %v4826, 4294901760
  %4828 = vmatmul.mubr.f32.gmra.mrb[0].mxu0 %v4827
  %v4829 = vpop.f32.mrb[0].mxu0
  %v4830 = vadd.f32 %v4433, %v4829
  %v4831 = vpop.f32.mrb[0].mxu0
  %4832 = vmatprep.mubr.f32.mxu0 0.0
  %v4833 = vand.u32 %v4504, 4294901760
  %v4834 = vsub.f32 %v4504, %v4833
  %v4835 = vand.u32 %v4834, 4294901760
  %v4836 = vsub.f32 %v4834, %v4835
  %v4837 = vand.u32 %v4836, 4294901760
  %4838 = vmatmul.mubr.f32.gmra.mrb[0].mxu0 %v4837
  %v4839 = vpop.f32.mrb[0].mxu0
  %v4840 = vadd.f32 %v4433, %v4839
  %v4841 = vpop.f32.mrb[0].mxu0
  %4842 = vmatprep.mubr.f32.mxu0 0.0
  %v4843 = vand.u32 %v4507, 4294901760
  %v4844 = vsub.f32 %v4507, %v4843
  %v4845 = vand.u32 %v4844, 4294901760
  %v4846 = vsub.f32 %v4844, %v4845
  %v4847 = vand.u32 %v4846, 4294901760
  %4848 = vmatmul.mubr.f32.gmra.mrb[0].mxu0 %v4847
  %v4849 = vpop.f32.mrb[0].mxu0
  %v4850 = vadd.f32 %v4433, %v4849
  %v4851 = vpop.f32.mrb[0].mxu0
  %4852 = vmatprep.mubr.f32.mxu0 0.0
  %v4853 = vand.u32 %v4510, 4294901760
  %v4854 = vsub.f32 %v4510, %v4853
  %v4855 = vand.u32 %v4854, 4294901760
  %v4856 = vsub.f32 %v4854, %v4855
  %v4857 = vand.u32 %v4856, 4294901760
  %4858 = vmatmul.mubr.f32.gmra.mrb[0].mxu0 %v4857
  %v4859 = vpop.f32.mrb[0].mxu0
  %v4860 = vadd.f32 %v4433, %v4859
  %v4861 = vpop.f32.mrb[0].mxu0
  %4862 = vmatprep.mubr.f32.mxu0 0.0
  %v4863 = vand.u32 %v4513, 4294901760
  %v4864 = vsub.f32 %v4513, %v4863
  %v4865 = vand.u32 %v4864, 4294901760
  %v4866 = vsub.f32 %v4864, %v4865
  %v4867 = vand.u32 %v4866, 4294901760
  %4868 = vmatmul.mubr.f32.gmra.mrb[0].mxu0 %v4867
  %v4869 = vpop.f32.mrb[0].mxu0
  %v4870 = vadd.f32 %v4433, %v4869
  %v4871 = vpop.f32.mrb[0].mxu0
  %4872 = vmatprep.mubr.f32.mxu0 0.0
  %v4873 = vand.u32 %v4516, 4294901760
  %v4874 = vsub.f32 %v4516, %v4873
  %v4875 = vand.u32 %v4874, 4294901760
  %v4876 = vsub.f32 %v4874, %v4875
  %v4877 = vand.u32 %v4876, 4294901760
  %4878 = vmatmul.mubr.f32.gmra.mrb[0].mxu0 %v4877
  %v4879 = vpop.f32.mrb[0].mxu0
  %v4880 = vadd.f32 %v4433, %v4879
  %v4881 = vpop.f32.mrb[0].mxu0
  %4882 = vmatprep.mubr.f32.mxu0 0.0
  %v4883 = vand.u32 %v4519, 4294901760
  %v4884 = vsub.f32 %v4519, %v4883
  %v4885 = vand.u32 %v4884, 4294901760
  %v4886 = vsub.f32 %v4884, %v4885
  %v4887 = vand.u32 %v4886, 4294901760
  %4888 = vmatmul.mubr.f32.gmra.mrb[0].mxu0 %v4887
  %v4889 = vpop.f32.mrb[0].mxu0
  %v4890 = vadd.f32 %v4433, %v4889
  %v4891 = vpop.f32.mrb[0].mxu0
  %4892 = vmatprep.mubr.f32.mxu0 0.0
  %v4893 = vand.u32 %v4522, 4294901760
  %v4894 = vsub.f32 %v4522, %v4893
  %v4895 = vand.u32 %v4894, 4294901760
  %v4896 = vsub.f32 %v4894, %v4895
  %v4897 = vand.u32 %v4896, 4294901760
  %4898 = vmatmul.mubr.f32.gmra.mrb[0].mxu0 %v4897
  %v4899 = vpop.f32.mrb[0].mxu0
  %v4900 = vadd.f32 %v4433, %v4899
  %v4901 = vpop.f32.mrb[0].mxu0
  %4902 = vmatprep.mubr.f32.mxu0 0.0
  %v4903 = vand.u32 %v4525, 4294901760
  %v4904 = vsub.f32 %v4525, %v4903
  %v4905 = vand.u32 %v4904, 4294901760
  %v4906 = vsub.f32 %v4904, %v4905
  %v4907 = vand.u32 %v4906, 4294901760
  %4908 = vmatmul.mubr.f32.gmra.mrb[0].mxu0 %v4907
  %v4909 = vpop.f32.mrb[0].mxu0
  %v4910 = vadd.f32 %v4433, %v4909
  %v4911 = vpop.f32.mrb[0].mxu0
  %4912 = vmatprep.mubr.f32.mxu0 0.0
  %v4913 = vand.u32 %v4528, 4294901760
  %v4914 = vsub.f32 %v4528, %v4913
  %v4915 = vand.u32 %v4914, 4294901760
  %v4916 = vsub.f32 %v4914, %v4915
  %v4917 = vand.u32 %v4916, 4294901760
  %4918 = vmatmul.mubr.f32.gmra.mrb[0].mxu0 %v4917
  %v4919 = vpop.f32.mrb[0].mxu0
  %v4920 = vadd.f32 %v4433, %v4919
  %v4921 = vpop.f32.mrb[0].mxu0
  %4922 = vdwg.mxu0
  %4923 = vmatprep.subr.mxu0 0.0
  %v4924 = vand.u32 %v4421, 4294901760
  %v4925 = vsub.f32 %v4421, %v4924
  %v4926 = vand.u32 %v4925, 4294901760
  %v4927 = vsub.f32 %v4925, %v4926
  %v4928 = vand.u32 %v4927, 4294901760
  %4929 = vmatpush1.msra.mxu0 %v4928
  %4930 = vmatprep.subr.mxu0 0.0
  %v4931 = vand.u32 %v4422, 4294901760
  %v4932 = vsub.f32 %v4422, %v4931
  %v4933 = vand.u32 %v4932, 4294901760
  %v4934 = vsub.f32 %v4932, %v4933
  %v4935 = vand.u32 %v4934, 4294901760
  %4936 = vmatpush1.msra.mxu0 %v4935
  %4937 = vmatprep.subr.mxu0 0.0
  %v4938 = vand.u32 %v4423, 4294901760
  %v4939 = vsub.f32 %v4423, %v4938
  %v4940 = vand.u32 %v4939, 4294901760
  %v4941 = vsub.f32 %v4939, %v4940
  %v4942 = vand.u32 %v4941, 4294901760
  %4943 = vmatpush1.msra.mxu0 %v4942
  %4944 = vmatprep.subr.mxu0 0.0
  %v4945 = vand.u32 %v4424, 4294901760
  %v4946 = vsub.f32 %v4424, %v4945
  %v4947 = vand.u32 %v4946, 4294901760
  %v4948 = vsub.f32 %v4946, %v4947
  %v4949 = vand.u32 %v4948, 4294901760
  %4950 = vmatpush1.msra.mxu0 %v4949
  %4951 = vmatprep.subr.mxu0 0.0
  %v4952 = vand.u32 %v4425, 4294901760
  %v4953 = vsub.f32 %v4425, %v4952
  %v4954 = vand.u32 %v4953, 4294901760
  %v4955 = vsub.f32 %v4953, %v4954
  %v4956 = vand.u32 %v4955, 4294901760
  %4957 = vmatpush1.msra.mxu0 %v4956
  %4958 = vmatprep.subr.mxu0 0.0
  %v4959 = vand.u32 %v4426, 4294901760
  %v4960 = vsub.f32 %v4426, %v4959
  %v4961 = vand.u32 %v4960, 4294901760
  %v4962 = vsub.f32 %v4960, %v4961
  %v4963 = vand.u32 %v4962, 4294901760
  %4964 = vmatpush1.msra.mxu0 %v4963
  %4965 = vmatprep.subr.mxu0 0.0
  %v4966 = vand.u32 %v4427, 4294901760
  %v4967 = vsub.f32 %v4427, %v4966
  %v4968 = vand.u32 %v4967, 4294901760
  %v4969 = vsub.f32 %v4967, %v4968
  %v4970 = vand.u32 %v4969, 4294901760
  %4971 = vmatpush1.msra.mxu0 %v4970
  %4972 = vmatprep.subr.mxu0 0.0
  %v4973 = vand.u32 %v4428, 4294901760
  %v4974 = vsub.f32 %v4428, %v4973
  %v4975 = vand.u32 %v4974, 4294901760
  %v4976 = vsub.f32 %v4974, %v4975
  %v4977 = vand.u32 %v4976, 4294901760
  %4978 = vmatpush1.msra.mxu0 %v4977
  %4979 = vmatprep.subr.mxu0 0.0
  %4980 = vmatpush1.msra.mxu0 0.0
  %4981 = vmatprep.subr.mxu0 0.0
  %4982 = vmatpush1.msra.mxu0 0.0
  %4983 = vmatprep.subr.mxu0 0.0
  %4984 = vmatpush1.msra.mxu0 0.0
  %4985 = vmatprep.subr.mxu0 0.0
  %4986 = vmatpush1.msra.mxu0 0.0
  %4987 = vmatprep.subr.mxu0 0.0
  %4988 = vmatpush1.msra.mxu0 0.0
  %4989 = vmatprep.subr.mxu0 0.0
  %4990 = vmatpush1.msra.mxu0 0.0
  %4991 = vmatprep.subr.mxu0 0.0
  %4992 = vmatpush1.msra.mxu0 0.0
  %4993 = vmatprep.subr.mxu0 0.0
  %4994 = vmatpush1.msra.mxu0 0.0
  %4995 = vmatprep.subr.mxu0 0.0
  %4996 = vmatpush1.msra.mxu0 0.0
  %4997 = vmatprep.subr.mxu0 0.0
  %4998 = vmatpush1.msra.mxu0 0.0
  %4999 = vmatprep.subr.mxu0 0.0
  %5000 = vmatpush1.msra.mxu0 0.0
  %5001 = vmatprep.subr.mxu0 0.0
  %5002 = vmatpush1.msra.mxu0 0.0
  %5003 = vmatprep.subr.mxu0 0.0
  %5004 = vmatpush1.msra.mxu0 0.0
  %5005 = vmatprep.subr.mxu0 0.0
  %5006 = vmatpush1.msra.mxu0 0.0
  %5007 = vmatprep.subr.mxu0 0.0
  %5008 = vmatpush1.msra.mxu0 0.0
  %5009 = vmatprep.subr.mxu0 0.0
  %5010 = vmatpush1.msra.mxu0 0.0
  %5011 = vmatprep.subr.mxu0 0.0
  %5012 = vmatpush1.msra.mxu0 0.0
  %5013 = vmatprep.subr.mxu0 0.0
  %5014 = vmatpush1.msra.mxu0 0.0
  %5015 = vmatprep.subr.mxu0 0.0
  %5016 = vmatpush1.msra.mxu0 0.0
  %5017 = vmatprep.subr.mxu0 0.0
  %5018 = vmatpush1.msra.mxu0 0.0
  %5019 = vmatprep.subr.mxu0 0.0
  %5020 = vmatpush1.msra.mxu0 0.0
  %5021 = vmatprep.subr.mxu0 0.0
  %5022 = vmatpush1.msra.mxu0 0.0
  %5023 = vmatprep.subr.mxu0 0.0
  %5024 = vmatpush1.msra.mxu0 0.0
  %5025 = vmatprep.subr.mxu0 0.0
  %5026 = vmatpush1.msra.mxu0 0.0
  %5027 = vmatprep.mubr.f32.mxu0 0.0
  %v5028 = vand.u32 %v4435, 4294901760
  %5029 = vmatmul.mubr.f32.gmra.mrb[0].mxu0 %v5028
  %v5030 = vpop.f32.mrb[0].mxu0
  %v5031 = vadd.f32 %v4610, %v5030
  %v5032 = vpop.f32.mrb[0].mxu0
  %5033 = vmatprep.mubr.f32.mxu0 0.0
  %v5034 = vand.u32 %v4438, 4294901760
  %5035 = vmatmul.mubr.f32.gmra.mrb[0].mxu0 %v5034
  %v5036 = vpop.f32.mrb[0].mxu0
  %v5037 = vadd.f32 %v4620, %v5036
  %v5038 = vpop.f32.mrb[0].mxu0
  %5039 = vmatprep.mubr.f32.mxu0 0.0
  %v5040 = vand.u32 %v4441, 4294901760
  %5041 = vmatmul.mubr.f32.gmra.mrb[0].mxu0 %v5040
  %v5042 = vpop.f32.mrb[0].mxu0
  %v5043 = vadd.f32 %v4630, %v5042
  %v5044 = vpop.f32.mrb[0].mxu0
  %5045 = vmatprep.mubr.f32.mxu0 0.0
  %v5046 = vand.u32 %v4444, 4294901760
  %5047 = vmatmul.mubr.f32.gmra.mrb[0].mxu0 %v5046
  %v5048 = vpop.f32.mrb[0].mxu0
  %v5049 = vadd.f32 %v4640, %v5048
  %v5050 = vpop.f32.mrb[0].mxu0
  %5051 = vmatprep.mubr.f32.mxu0 0.0
  %v5052 = vand.u32 %v4447, 4294901760
  %5053 = vmatmul.mubr.f32.gmra.mrb[0].mxu0 %v5052
  %v5054 = vpop.f32.mrb[0].mxu0
  %v5055 = vadd.f32 %v4650, %v5054
  %v5056 = vpop.f32.mrb[0].mxu0
  %5057 = vmatprep.mubr.f32.mxu0 0.0
  %v5058 = vand.u32 %v4450, 4294901760
  %5059 = vmatmul.mubr.f32.gmra.mrb[0].mxu0 %v5058
  %v5060 = vpop.f32.mrb[0].mxu0
  %v5061 = vadd.f32 %v4660, %v5060
  %v5062 = vpop.f32.mrb[0].mxu0
  %5063 = vmatprep.mubr.f32.mxu0 0.0
  %v5064 = vand.u32 %v4453, 4294901760
  %5065 = vmatmul.mubr.f32.gmra.mrb[0].mxu0 %v5064
  %v5066 = vpop.f32.mrb[0].mxu0
  %v5067 = vadd.f32 %v4670, %v5066
  %v5068 = vpop.f32.mrb[0].mxu0
  %5069 = vmatprep.mubr.f32.mxu0 0.0
  %v5070 = vand.u32 %v4456, 4294901760
  %5071 = vmatmul.mubr.f32.gmra.mrb[0].mxu0 %v5070
  %v5072 = vpop.f32.mrb[0].mxu0
  %v5073 = vadd.f32 %v4680, %v5072
  %v5074 = vpop.f32.mrb[0].mxu0
  %5075 = vmatprep.mubr.f32.mxu0 0.0
  %v5076 = vand.u32 %v4459, 4294901760
  %5077 = vmatmul.mubr.f32.gmra.mrb[0].mxu0 %v5076
  %v5078 = vpop.f32.mrb[0].mxu0
  %v5079 = vadd.f32 %v4690, %v5078
  %v5080 = vpop.f32.mrb[0].mxu0
  %5081 = vmatprep.mubr.f32.mxu0 0.0
  %v5082 = vand.u32 %v4462, 4294901760
  %5083 = vmatmul.mubr.f32.gmra.mrb[0].mxu0 %v5082
  %v5084 = vpop.f32.mrb[0].mxu0
  %v5085 = vadd.f32 %v4700, %v5084
  %v5086 = vpop.f32.mrb[0].mxu0
  %5087 = vmatprep.mubr.f32.mxu0 0.0
  %v5088 = vand.u32 %v4465, 4294901760
  %5089 = vmatmul.mubr.f32.gmra.mrb[0].mxu0 %v5088
  %v5090 = vpop.f32.mrb[0].mxu0
  %v5091 = vadd.f32 %v4710, %v5090
  %v5092 = vpop.f32.mrb[0].mxu0
  %5093 = vmatprep.mubr.f32.mxu0 0.0
  %v5094 = vand.u32 %v4468, 4294901760
  %5095 = vmatmul.mubr.f32.gmra.mrb[0].mxu0 %v5094
  %v5096 = vpop.f32.mrb[0].mxu0
  %v5097 = vadd.f32 %v4720, %v5096
  %v5098 = vpop.f32.mrb[0].mxu0
  %5099 = vmatprep.mubr.f32.mxu0 0.0
  %v5100 = vand.u32 %v4471, 4294901760
  %5101 = vmatmul.mubr.f32.gmra.mrb[0].mxu0 %v5100
  %v5102 = vpop.f32.mrb[0].mxu0
  %v5103 = vadd.f32 %v4730, %v5102
  %v5104 = vpop.f32.mrb[0].mxu0
  %5105 = vmatprep.mubr.f32.mxu0 0.0
  %v5106 = vand.u32 %v4474, 4294901760
  %5107 = vmatmul.mubr.f32.gmra.mrb[0].mxu0 %v5106
  %v5108 = vpop.f32.mrb[0].mxu0
  %v5109 = vadd.f32 %v4740, %v5108
  %v5110 = vpop.f32.mrb[0].mxu0
  %5111 = vmatprep.mubr.f32.mxu0 0.0
  %v5112 = vand.u32 %v4477, 4294901760
  %5113 = vmatmul.mubr.f32.gmra.mrb[0].mxu0 %v5112
  %v5114 = vpop.f32.mrb[0].mxu0
  %v5115 = vadd.f32 %v4750, %v5114
  %v5116 = vpop.f32.mrb[0].mxu0
  %5117 = vmatprep.mubr.f32.mxu0 0.0
  %v5118 = vand.u32 %v4480, 4294901760
  %5119 = vmatmul.mubr.f32.gmra.mrb[0].mxu0 %v5118
  %v5120 = vpop.f32.mrb[0].mxu0
  %v5121 = vadd.f32 %v4760, %v5120
  %v5122 = vpop.f32.mrb[0].mxu0
  %5123 = vmatprep.mubr.f32.mxu0 0.0
  %v5124 = vand.u32 %v4483, 4294901760
  %5125 = vmatmul.mubr.f32.gmra.mrb[0].mxu0 %v5124
  %v5126 = vpop.f32.mrb[0].mxu0
  %v5127 = vadd.f32 %v4770, %v5126
  %v5128 = vpop.f32.mrb[0].mxu0
  %5129 = vmatprep.mubr.f32.mxu0 0.0
  %v5130 = vand.u32 %v4486, 4294901760
  %5131 = vmatmul.mubr.f32.gmra.mrb[0].mxu0 %v5130
  %v5132 = vpop.f32.mrb[0].mxu0
  %v5133 = vadd.f32 %v4780, %v5132
  %v5134 = vpop.f32.mrb[0].mxu0
  %5135 = vmatprep.mubr.f32.mxu0 0.0
  %v5136 = vand.u32 %v4489, 4294901760
  %5137 = vmatmul.mubr.f32.gmra.mrb[0].mxu0 %v5136
  %v5138 = vpop.f32.mrb[0].mxu0
  %v5139 = vadd.f32 %v4790, %v5138
  %v5140 = vpop.f32.mrb[0].mxu0
  %5141 = vmatprep.mubr.f32.mxu0 0.0
  %v5142 = vand.u32 %v4492, 4294901760
  %5143 = vmatmul.mubr.f32.gmra.mrb[0].mxu0 %v5142
  %v5144 = vpop.f32.mrb[0].mxu0
  %v5145 = vadd.f32 %v4800, %v5144
  %v5146 = vpop.f32.mrb[0].mxu0
  %5147 = vmatprep.mubr.f32.mxu0 0.0
  %v5148 = vand.u32 %v4495, 4294901760
  %5149 = vmatmul.mubr.f32.gmra.mrb[0].mxu0 %v5148
  %v5150 = vpop.f32.mrb[0].mxu0
  %v5151 = vadd.f32 %v4810, %v5150
  %v5152 = vpop.f32.mrb[0].mxu0
  %5153 = vmatprep.mubr.f32.mxu0 0.0
  %v5154 = vand.u32 %v4498, 4294901760
  %5155 = vmatmul.mubr.f32.gmra.mrb[0].mxu0 %v5154
  %v5156 = vpop.f32.mrb[0].mxu0
  %v5157 = vadd.f32 %v4820, %v5156
  %v5158 = vpop.f32.mrb[0].mxu0
  %5159 = vmatprep.mubr.f32.mxu0 0.0
  %v5160 = vand.u32 %v4501, 4294901760
  %5161 = vmatmul.mubr.f32.gmra.mrb[0].mxu0 %v5160
  %v5162 = vpop.f32.mrb[0].mxu0
  %v5163 = vadd.f32 %v4830, %v5162
  %v5164 = vpop.f32.mrb[0].mxu0
  %5165 = vmatprep.mubr.f32.mxu0 0.0
  %v5166 = vand.u32 %v4504, 4294901760
  %5167 = vmatmul.mubr.f32.gmra.mrb[0].mxu0 %v5166
  %v5168 = vpop.f32.mrb[0].mxu0
  %v5169 = vadd.f32 %v4840, %v5168
  %v5170 = vpop.f32.mrb[0].mxu0
  %5171 = vmatprep.mubr.f32.mxu0 0.0
  %v5172 = vand.u32 %v4507, 4294901760
  %5173 = vmatmul.mubr.f32.gmra.mrb[0].mxu0 %v5172
  %v5174 = vpop.f32.mrb[0].mxu0
  %v5175 = vadd.f32 %v4850, %v5174
  %v5176 = vpop.f32.mrb[0].mxu0
  %5177 = vmatprep.mubr.f32.mxu0 0.0
  %v5178 = vand.u32 %v4510, 4294901760
  %5179 = vmatmul.mubr.f32.gmra.mrb[0].mxu0 %v5178
  %v5180 = vpop.f32.mrb[0].mxu0
  %v5181 = vadd.f32 %v4860, %v5180
  %v5182 = vpop.f32.mrb[0].mxu0
  %5183 = vmatprep.mubr.f32.mxu0 0.0
  %v5184 = vand.u32 %v4513, 4294901760
  %5185 = vmatmul.mubr.f32.gmra.mrb[0].mxu0 %v5184
  %v5186 = vpop.f32.mrb[0].mxu0
  %v5187 = vadd.f32 %v4870, %v5186
  %v5188 = vpop.f32.mrb[0].mxu0
  %5189 = vmatprep.mubr.f32.mxu0 0.0
  %v5190 = vand.u32 %v4516, 4294901760
  %5191 = vmatmul.mubr.f32.gmra.mrb[0].mxu0 %v5190
  %v5192 = vpop.f32.mrb[0].mxu0
  %v5193 = vadd.f32 %v4880, %v5192
  %v5194 = vpop.f32.mrb[0].mxu0
  %5195 = vmatprep.mubr.f32.mxu0 0.0
  %v5196 = vand.u32 %v4519, 4294901760
  %5197 = vmatmul.mubr.f32.gmra.mrb[0].mxu0 %v5196
  %v5198 = vpop.f32.mrb[0].mxu0
  %v5199 = vadd.f32 %v4890, %v5198
  %v5200 = vpop.f32.mrb[0].mxu0
  %5201 = vmatprep.mubr.f32.mxu0 0.0
  %v5202 = vand.u32 %v4522, 4294901760
  %5203 = vmatmul.mubr.f32.gmra.mrb[0].mxu0 %v5202
  %v5204 = vpop.f32.mrb[0].mxu0
  %v5205 = vadd.f32 %v4900, %v5204
  %v5206 = vpop.f32.mrb[0].mxu0
  %5207 = vmatprep.mubr.f32.mxu0 0.0
  %v5208 = vand.u32 %v4525, 4294901760
  %5209 = vmatmul.mubr.f32.gmra.mrb[0].mxu0 %v5208
  %v5210 = vpop.f32.mrb[0].mxu0
  %v5211 = vadd.f32 %v4910, %v5210
  %v5212 = vpop.f32.mrb[0].mxu0
  %5213 = vmatprep.mubr.f32.mxu0 0.0
  %v5214 = vand.u32 %v4528, 4294901760
  %5215 = vmatmul.mubr.f32.gmra.mrb[0].mxu0 %v5214
  %v5216 = vpop.f32.mrb[0].mxu0
  %v5217 = vadd.f32 %v4920, %v5216
  %v5218 = vpop.f32.mrb[0].mxu0
  %5219 = vdwg.mxu0
  %5220 = vmatprep.subr.mxu0 0.0
  %v5221 = vand.u32 %v4421, 4294901760
  %v5222 = vsub.f32 %v4421, %v5221
  %5223 = vmatpush1.msra.mxu0 %v5222
  %5224 = vmatprep.subr.mxu0 0.0
  %v5225 = vand.u32 %v4422, 4294901760
  %v5226 = vsub.f32 %v4422, %v5225
  %5227 = vmatpush1.msra.mxu0 %v5226
  %5228 = vmatprep.subr.mxu0 0.0
  %v5229 = vand.u32 %v4423, 4294901760
  %v5230 = vsub.f32 %v4423, %v5229
  %5231 = vmatpush1.msra.mxu0 %v5230
  %5232 = vmatprep.subr.mxu0 0.0
  %v5233 = vand.u32 %v4424, 4294901760
  %v5234 = vsub.f32 %v4424, %v5233
  %5235 = vmatpush1.msra.mxu0 %v5234
  %5236 = vmatprep.subr.mxu0 0.0
  %v5237 = vand.u32 %v4425, 4294901760
  %v5238 = vsub.f32 %v4425, %v5237
  %5239 = vmatpush1.msra.mxu0 %v5238
  %5240 = vmatprep.subr.mxu0 0.0
  %v5241 = vand.u32 %v4426, 4294901760
  %v5242 = vsub.f32 %v4426, %v5241
  %5243 = vmatpush1.msra.mxu0 %v5242
  %5244 = vmatprep.subr.mxu0 0.0
  %v5245 = vand.u32 %v4427, 4294901760
  %v5246 = vsub.f32 %v4427, %v5245
  %5247 = vmatpush1.msra.mxu0 %v5246
  %5248 = vmatprep.subr.mxu0 0.0
  %v5249 = vand.u32 %v4428, 4294901760
  %v5250 = vsub.f32 %v4428, %v5249
  %5251 = vmatpush1.msra.mxu0 %v5250
  %5252 = vmatprep.subr.mxu0 0.0
  %5253 = vmatpush1.msra.mxu0 0.0
  %5254 = vmatprep.subr.mxu0 0.0
  %5255 = vmatpush1.msra.mxu0 0.0
  %5256 = vmatprep.subr.mxu0 0.0
  %5257 = vmatpush1.msra.mxu0 0.0
  %5258 = vmatprep.subr.mxu0 0.0
  %5259 = vmatpush1.msra.mxu0 0.0
  %5260 = vmatprep.subr.mxu0 0.0
  %5261 = vmatpush1.msra.mxu0 0.0
  %5262 = vmatprep.subr.mxu0 0.0
  %5263 = vmatpush1.msra.mxu0 0.0
  %5264 = vmatprep.subr.mxu0 0.0
  %5265 = vmatpush1.msra.mxu0 0.0
  %5266 = vmatprep.subr.mxu0 0.0
  %5267 = vmatpush1.msra.mxu0 0.0
  %5268 = vmatprep.subr.mxu0 0.0
  %5269 = vmatpush1.msra.mxu0 0.0
  %5270 = vmatprep.subr.mxu0 0.0
  %5271 = vmatpush1.msra.mxu0 0.0
  %5272 = vmatprep.subr.mxu0 0.0
  %5273 = vmatpush1.msra.mxu0 0.0
  %5274 = vmatprep.subr.mxu0 0.0
  %5275 = vmatpush1.msra.mxu0 0.0
  %5276 = vmatprep.subr.mxu0 0.0
  %5277 = vmatpush1.msra.mxu0 0.0
  %5278 = vmatprep.subr.mxu0 0.0
  %5279 = vmatpush1.msra.mxu0 0.0
  %5280 = vmatprep.subr.mxu0 0.0
  %5281 = vmatpush1.msra.mxu0 0.0
  %5282 = vmatprep.subr.mxu0 0.0
  %5283 = vmatpush1.msra.mxu0 0.0
  %5284 = vmatprep.subr.mxu0 0.0
  %5285 = vmatpush1.msra.mxu0 0.0
  %5286 = vmatprep.subr.mxu0 0.0
  %5287 = vmatpush1.msra.mxu0 0.0
  %5288 = vmatprep.subr.mxu0 0.0
  %5289 = vmatpush1.msra.mxu0 0.0
  %5290 = vmatprep.subr.mxu0 0.0
  %5291 = vmatpush1.msra.mxu0 0.0
  %5292 = vmatprep.subr.mxu0 0.0
  %5293 = vmatpush1.msra.mxu0 0.0
  %5294 = vmatprep.subr.mxu0 0.0
  %5295 = vmatpush1.msra.mxu0 0.0
  %5296 = vmatprep.subr.mxu0 0.0
  %5297 = vmatpush1.msra.mxu0 0.0
  %5298 = vmatprep.subr.mxu0 0.0
  %5299 = vmatpush1.msra.mxu0 0.0
  %5300 = vmatprep.mubr.f32.mxu0 0.0
  %v5301 = vand.u32 %v4435, 4294901760
  %v5302 = vsub.f32 %v4435, %v5301
  %5303 = vmatmul.mubr.f32.gmra.mrb[0].mxu0 %v5302
  %v5304 = vpop.f32.mrb[0].mxu0
  %v5305 = vadd.f32 %v5031, %v5304
  %v5306 = vpop.f32.mrb[0].mxu0
  %5307 = vmatprep.mubr.f32.mxu0 0.0
  %v5308 = vand.u32 %v4438, 4294901760
  %v5309 = vsub.f32 %v4438, %v5308
  %5310 = vmatmul.mubr.f32.gmra.mrb[0].mxu0 %v5309
  %v5311 = vpop.f32.mrb[0].mxu0
  %v5312 = vadd.f32 %v5037, %v5311
  %v5313 = vpop.f32.mrb[0].mxu0
  %5314 = vmatprep.mubr.f32.mxu0 0.0
  %v5315 = vand.u32 %v4441, 4294901760
  %v5316 = vsub.f32 %v4441, %v5315
  %5317 = vmatmul.mubr.f32.gmra.mrb[0].mxu0 %v5316
  %v5318 = vpop.f32.mrb[0].mxu0
  %v5319 = vadd.f32 %v5043, %v5318
  %v5320 = vpop.f32.mrb[0].mxu0
  %5321 = vmatprep.mubr.f32.mxu0 0.0
  %v5322 = vand.u32 %v4444, 4294901760
  %v5323 = vsub.f32 %v4444, %v5322
  %5324 = vmatmul.mubr.f32.gmra.mrb[0].mxu0 %v5323
  %v5325 = vpop.f32.mrb[0].mxu0
  %v5326 = vadd.f32 %v5049, %v5325
  %v5327 = vpop.f32.mrb[0].mxu0
  %5328 = vmatprep.mubr.f32.mxu0 0.0
  %v5329 = vand.u32 %v4447, 4294901760
  %v5330 = vsub.f32 %v4447, %v5329
  %5331 = vmatmul.mubr.f32.gmra.mrb[0].mxu0 %v5330
  %v5332 = vpop.f32.mrb[0].mxu0
  %v5333 = vadd.f32 %v5055, %v5332
  %v5334 = vpop.f32.mrb[0].mxu0
  %5335 = vmatprep.mubr.f32.mxu0 0.0
  %v5336 = vand.u32 %v4450, 4294901760
  %v5337 = vsub.f32 %v4450, %v5336
  %5338 = vmatmul.mubr.f32.gmra.mrb[0].mxu0 %v5337
  %v5339 = vpop.f32.mrb[0].mxu0
  %v5340 = vadd.f32 %v5061, %v5339
  %v5341 = vpop.f32.mrb[0].mxu0
  %5342 = vmatprep.mubr.f32.mxu0 0.0
  %v5343 = vand.u32 %v4453, 4294901760
  %v5344 = vsub.f32 %v4453, %v5343
  %5345 = vmatmul.mubr.f32.gmra.mrb[0].mxu0 %v5344
  %v5346 = vpop.f32.mrb[0].mxu0
  %v5347 = vadd.f32 %v5067, %v5346
  %v5348 = vpop.f32.mrb[0].mxu0
  %5349 = vmatprep.mubr.f32.mxu0 0.0
  %v5350 = vand.u32 %v4456, 4294901760
  %v5351 = vsub.f32 %v4456, %v5350
  %5352 = vmatmul.mubr.f32.gmra.mrb[0].mxu0 %v5351
  %v5353 = vpop.f32.mrb[0].mxu0
  %v5354 = vadd.f32 %v5073, %v5353
  %v5355 = vpop.f32.mrb[0].mxu0
  %5356 = vmatprep.mubr.f32.mxu0 0.0
  %v5357 = vand.u32 %v4459, 4294901760
  %v5358 = vsub.f32 %v4459, %v5357
  %5359 = vmatmul.mubr.f32.gmra.mrb[0].mxu0 %v5358
  %v5360 = vpop.f32.mrb[0].mxu0
  %v5361 = vadd.f32 %v5079, %v5360
  %v5362 = vpop.f32.mrb[0].mxu0
  %5363 = vmatprep.mubr.f32.mxu0 0.0
  %v5364 = vand.u32 %v4462, 4294901760
  %v5365 = vsub.f32 %v4462, %v5364
  %5366 = vmatmul.mubr.f32.gmra.mrb[0].mxu0 %v5365
  %v5367 = vpop.f32.mrb[0].mxu0
  %v5368 = vadd.f32 %v5085, %v5367
  %v5369 = vpop.f32.mrb[0].mxu0
  %5370 = vmatprep.mubr.f32.mxu0 0.0
  %v5371 = vand.u32 %v4465, 4294901760
  %v5372 = vsub.f32 %v4465, %v5371
  %5373 = vmatmul.mubr.f32.gmra.mrb[0].mxu0 %v5372
  %v5374 = vpop.f32.mrb[0].mxu0
  %v5375 = vadd.f32 %v5091, %v5374
  %v5376 = vpop.f32.mrb[0].mxu0
  %5377 = vmatprep.mubr.f32.mxu0 0.0
  %v5378 = vand.u32 %v4468, 4294901760
  %v5379 = vsub.f32 %v4468, %v5378
  %5380 = vmatmul.mubr.f32.gmra.mrb[0].mxu0 %v5379
  %v5381 = vpop.f32.mrb[0].mxu0
  %v5382 = vadd.f32 %v5097, %v5381
  %v5383 = vpop.f32.mrb[0].mxu0
  %5384 = vmatprep.mubr.f32.mxu0 0.0
  %v5385 = vand.u32 %v4471, 4294901760
  %v5386 = vsub.f32 %v4471, %v5385
  %5387 = vmatmul.mubr.f32.gmra.mrb[0].mxu0 %v5386
  %v5388 = vpop.f32.mrb[0].mxu0
  %v5389 = vadd.f32 %v5103, %v5388
  %v5390 = vpop.f32.mrb[0].mxu0
  %5391 = vmatprep.mubr.f32.mxu0 0.0
  %v5392 = vand.u32 %v4474, 4294901760
  %v5393 = vsub.f32 %v4474, %v5392
  %5394 = vmatmul.mubr.f32.gmra.mrb[0].mxu0 %v5393
  %v5395 = vpop.f32.mrb[0].mxu0
  %v5396 = vadd.f32 %v5109, %v5395
  %v5397 = vpop.f32.mrb[0].mxu0
  %5398 = vmatprep.mubr.f32.mxu0 0.0
  %v5399 = vand.u32 %v4477, 4294901760
  %v5400 = vsub.f32 %v4477, %v5399
  %5401 = vmatmul.mubr.f32.gmra.mrb[0].mxu0 %v5400
  %v5402 = vpop.f32.mrb[0].mxu0
  %v5403 = vadd.f32 %v5115, %v5402
  %v5404 = vpop.f32.mrb[0].mxu0
  %5405 = vmatprep.mubr.f32.mxu0 0.0
  %v5406 = vand.u32 %v4480, 4294901760
  %v5407 = vsub.f32 %v4480, %v5406
  %5408 = vmatmul.mubr.f32.gmra.mrb[0].mxu0 %v5407
  %v5409 = vpop.f32.mrb[0].mxu0
  %v5410 = vadd.f32 %v5121, %v5409
  %v5411 = vpop.f32.mrb[0].mxu0
  %5412 = vmatprep.mubr.f32.mxu0 0.0
  %v5413 = vand.u32 %v4483, 4294901760
  %v5414 = vsub.f32 %v4483, %v5413
  %5415 = vmatmul.mubr.f32.gmra.mrb[0].mxu0 %v5414
  %v5416 = vpop.f32.mrb[0].mxu0
  %v5417 = vadd.f32 %v5127, %v5416
  %v5418 = vpop.f32.mrb[0].mxu0
  %5419 = vmatprep.mubr.f32.mxu0 0.0
  %v5420 = vand.u32 %v4486, 4294901760
  %v5421 = vsub.f32 %v4486, %v5420
  %5422 = vmatmul.mubr.f32.gmra.mrb[0].mxu0 %v5421
  %v5423 = vpop.f32.mrb[0].mxu0
  %v5424 = vadd.f32 %v5133, %v5423
  %v5425 = vpop.f32.mrb[0].mxu0
  %5426 = vmatprep.mubr.f32.mxu0 0.0
  %v5427 = vand.u32 %v4489, 4294901760
  %v5428 = vsub.f32 %v4489, %v5427
  %5429 = vmatmul.mubr.f32.gmra.mrb[0].mxu0 %v5428
  %v5430 = vpop.f32.mrb[0].mxu0
  %v5431 = vadd.f32 %v5139, %v5430
  %v5432 = vpop.f32.mrb[0].mxu0
  %5433 = vmatprep.mubr.f32.mxu0 0.0
  %v5434 = vand.u32 %v4492, 4294901760
  %v5435 = vsub.f32 %v4492, %v5434
  %5436 = vmatmul.mubr.f32.gmra.mrb[0].mxu0 %v5435
  %v5437 = vpop.f32.mrb[0].mxu0
  %v5438 = vadd.f32 %v5145, %v5437
  %v5439 = vpop.f32.mrb[0].mxu0
  %5440 = vmatprep.mubr.f32.mxu0 0.0
  %v5441 = vand.u32 %v4495, 4294901760
  %v5442 = vsub.f32 %v4495, %v5441
  %5443 = vmatmul.mubr.f32.gmra.mrb[0].mxu0 %v5442
  %v5444 = vpop.f32.mrb[0].mxu0
  %v5445 = vadd.f32 %v5151, %v5444
  %v5446 = vpop.f32.mrb[0].mxu0
  %5447 = vmatprep.mubr.f32.mxu0 0.0
  %v5448 = vand.u32 %v4498, 4294901760
  %v5449 = vsub.f32 %v4498, %v5448
  %5450 = vmatmul.mubr.f32.gmra.mrb[0].mxu0 %v5449
  %v5451 = vpop.f32.mrb[0].mxu0
  %v5452 = vadd.f32 %v5157, %v5451
  %v5453 = vpop.f32.mrb[0].mxu0
  %5454 = vmatprep.mubr.f32.mxu0 0.0
  %v5455 = vand.u32 %v4501, 4294901760
  %v5456 = vsub.f32 %v4501, %v5455
  %5457 = vmatmul.mubr.f32.gmra.mrb[0].mxu0 %v5456
  %v5458 = vpop.f32.mrb[0].mxu0
  %v5459 = vadd.f32 %v5163, %v5458
  %v5460 = vpop.f32.mrb[0].mxu0
  %5461 = vmatprep.mubr.f32.mxu0 0.0
  %v5462 = vand.u32 %v4504, 4294901760
  %v5463 = vsub.f32 %v4504, %v5462
  %5464 = vmatmul.mubr.f32.gmra.mrb[0].mxu0 %v5463
  %v5465 = vpop.f32.mrb[0].mxu0
  %v5466 = vadd.f32 %v5169, %v5465
  %v5467 = vpop.f32.mrb[0].mxu0
  %5468 = vmatprep.mubr.f32.mxu0 0.0
  %v5469 = vand.u32 %v4507, 4294901760
  %v5470 = vsub.f32 %v4507, %v5469
  %5471 = vmatmul.mubr.f32.gmra.mrb[0].mxu0 %v5470
  %v5472 = vpop.f32.mrb[0].mxu0
  %v5473 = vadd.f32 %v5175, %v5472
  %v5474 = vpop.f32.mrb[0].mxu0
  %5475 = vmatprep.mubr.f32.mxu0 0.0
  %v5476 = vand.u32 %v4510, 4294901760
  %v5477 = vsub.f32 %v4510, %v5476
  %5478 = vmatmul.mubr.f32.gmra.mrb[0].mxu0 %v5477
  %v5479 = vpop.f32.mrb[0].mxu0
  %v5480 = vadd.f32 %v5181, %v5479
  %v5481 = vpop.f32.mrb[0].mxu0
  %5482 = vmatprep.mubr.f32.mxu0 0.0
  %v5483 = vand.u32 %v4513, 4294901760
  %v5484 = vsub.f32 %v4513, %v5483
  %5485 = vmatmul.mubr.f32.gmra.mrb[0].mxu0 %v5484
  %v5486 = vpop.f32.mrb[0].mxu0
  %v5487 = vadd.f32 %v5187, %v5486
  %v5488 = vpop.f32.mrb[0].mxu0
  %5489 = vmatprep.mubr.f32.mxu0 0.0
  %v5490 = vand.u32 %v4516, 4294901760
  %v5491 = vsub.f32 %v4516, %v5490
  %5492 = vmatmul.mubr.f32.gmra.mrb[0].mxu0 %v5491
  %v5493 = vpop.f32.mrb[0].mxu0
  %v5494 = vadd.f32 %v5193, %v5493
  %v5495 = vpop.f32.mrb[0].mxu0
  %5496 = vmatprep.mubr.f32.mxu0 0.0
  %v5497 = vand.u32 %v4519, 4294901760
  %v5498 = vsub.f32 %v4519, %v5497
  %5499 = vmatmul.mubr.f32.gmra.mrb[0].mxu0 %v5498
  %v5500 = vpop.f32.mrb[0].mxu0
  %v5501 = vadd.f32 %v5199, %v5500
  %v5502 = vpop.f32.mrb[0].mxu0
  %5503 = vmatprep.mubr.f32.mxu0 0.0
  %v5504 = vand.u32 %v4522, 4294901760
  %v5505 = vsub.f32 %v4522, %v5504
  %5506 = vmatmul.mubr.f32.gmra.mrb[0].mxu0 %v5505
  %v5507 = vpop.f32.mrb[0].mxu0
  %v5508 = vadd.f32 %v5205, %v5507
  %v5509 = vpop.f32.mrb[0].mxu0
  %5510 = vmatprep.mubr.f32.mxu0 0.0
  %v5511 = vand.u32 %v4525, 4294901760
  %v5512 = vsub.f32 %v4525, %v5511
  %5513 = vmatmul.mubr.f32.gmra.mrb[0].mxu0 %v5512
  %v5514 = vpop.f32.mrb[0].mxu0
  %v5515 = vadd.f32 %v5211, %v5514
  %v5516 = vpop.f32.mrb[0].mxu0
  %5517 = vmatprep.mubr.f32.mxu0 0.0
  %v5518 = vand.u32 %v4528, 4294901760
  %v5519 = vsub.f32 %v4528, %v5518
  %5520 = vmatmul.mubr.f32.gmra.mrb[0].mxu0 %v5519
  %v5521 = vpop.f32.mrb[0].mxu0
  %v5522 = vadd.f32 %v5217, %v5521
  %v5523 = vpop.f32.mrb[0].mxu0
  %5524 = vdwg.mxu0
  %5525 = vmatprep.subr.mxu0 0.0
  %v5526 = vand.u32 %v4421, 4294901760
  %5527 = vmatpush1.msra.mxu0 %v5526
  %5528 = vmatprep.subr.mxu0 0.0
  %v5529 = vand.u32 %v4422, 4294901760
  %5530 = vmatpush1.msra.mxu0 %v5529
  %5531 = vmatprep.subr.mxu0 0.0
  %v5532 = vand.u32 %v4423, 4294901760
  %5533 = vmatpush1.msra.mxu0 %v5532
  %5534 = vmatprep.subr.mxu0 0.0
  %v5535 = vand.u32 %v4424, 4294901760
  %5536 = vmatpush1.msra.mxu0 %v5535
  %5537 = vmatprep.subr.mxu0 0.0
  %v5538 = vand.u32 %v4425, 4294901760
  %5539 = vmatpush1.msra.mxu0 %v5538
  %5540 = vmatprep.subr.mxu0 0.0
  %v5541 = vand.u32 %v4426, 4294901760
  %5542 = vmatpush1.msra.mxu0 %v5541
  %5543 = vmatprep.subr.mxu0 0.0
  %v5544 = vand.u32 %v4427, 4294901760
  %5545 = vmatpush1.msra.mxu0 %v5544
  %5546 = vmatprep.subr.mxu0 0.0
  %v5547 = vand.u32 %v4428, 4294901760
  %5548 = vmatpush1.msra.mxu0 %v5547
  %5549 = vmatprep.subr.mxu0 0.0
  %5550 = vmatpush1.msra.mxu0 0.0
  %5551 = vmatprep.subr.mxu0 0.0
  %5552 = vmatpush1.msra.mxu0 0.0
  %5553 = vmatprep.subr.mxu0 0.0
  %5554 = vmatpush1.msra.mxu0 0.0
  %5555 = vmatprep.subr.mxu0 0.0
  %5556 = vmatpush1.msra.mxu0 0.0
  %5557 = vmatprep.subr.mxu0 0.0
  %5558 = vmatpush1.msra.mxu0 0.0
  %5559 = vmatprep.subr.mxu0 0.0
  %5560 = vmatpush1.msra.mxu0 0.0
  %5561 = vmatprep.subr.mxu0 0.0
  %5562 = vmatpush1.msra.mxu0 0.0
  %5563 = vmatprep.subr.mxu0 0.0
  %5564 = vmatpush1.msra.mxu0 0.0
  %5565 = vmatprep.subr.mxu0 0.0
  %5566 = vmatpush1.msra.mxu0 0.0
  %5567 = vmatprep.subr.mxu0 0.0
  %5568 = vmatpush1.msra.mxu0 0.0
  %5569 = vmatprep.subr.mxu0 0.0
  %5570 = vmatpush1.msra.mxu0 0.0
  %5571 = vmatprep.subr.mxu0 0.0
  %5572 = vmatpush1.msra.mxu0 0.0
  %5573 = vmatprep.subr.mxu0 0.0
  %5574 = vmatpush1.msra.mxu0 0.0
  %5575 = vmatprep.subr.mxu0 0.0
  %5576 = vmatpush1.msra.mxu0 0.0
  %5577 = vmatprep.subr.mxu0 0.0
  %5578 = vmatpush1.msra.mxu0 0.0
  %5579 = vmatprep.subr.mxu0 0.0
  %5580 = vmatpush1.msra.mxu0 0.0
  %5581 = vmatprep.subr.mxu0 0.0
  %5582 = vmatpush1.msra.mxu0 0.0
  %5583 = vmatprep.subr.mxu0 0.0
  %5584 = vmatpush1.msra.mxu0 0.0
  %5585 = vmatprep.subr.mxu0 0.0
  %5586 = vmatpush1.msra.mxu0 0.0
  %5587 = vmatprep.subr.mxu0 0.0
  %5588 = vmatpush1.msra.mxu0 0.0
  %5589 = vmatprep.subr.mxu0 0.0
  %5590 = vmatpush1.msra.mxu0 0.0
  %5591 = vmatprep.subr.mxu0 0.0
  %5592 = vmatpush1.msra.mxu0 0.0
  %5593 = vmatprep.subr.mxu0 0.0
  %5594 = vmatpush1.msra.mxu0 0.0
  %5595 = vmatprep.subr.mxu0 0.0
  %5596 = vmatpush1.msra.mxu0 0.0
  %5597 = vmatprep.mubr.f32.mxu0 0.0
  %v5598 = vand.u32 %v4435, 4294901760
  %v5599 = vsub.f32 %v4435, %v5598
  %v5600 = vand.u32 %v5599, 4294901760
  %5601 = vmatmul.mubr.f32.gmra.mrb[0].mxu0 %v5600
  %v5602 = vpop.f32.mrb[0].mxu0
  %v5603 = vadd.f32 %v5305, %v5602
  %v5604 = vpop.f32.mrb[0].mxu0
  %5605 = vmatprep.mubr.f32.mxu0 0.0
  %v5606 = vand.u32 %v4438, 4294901760
  %v5607 = vsub.f32 %v4438, %v5606
  %v5608 = vand.u32 %v5607, 4294901760
  %5609 = vmatmul.mubr.f32.gmra.mrb[0].mxu0 %v5608
  %v5610 = vpop.f32.mrb[0].mxu0
  %v5611 = vadd.f32 %v5312, %v5610
  %v5612 = vpop.f32.mrb[0].mxu0
  %5613 = vmatprep.mubr.f32.mxu0 0.0
  %v5614 = vand.u32 %v4441, 4294901760
  %v5615 = vsub.f32 %v4441, %v5614
  %v5616 = vand.u32 %v5615, 4294901760
  %5617 = vmatmul.mubr.f32.gmra.mrb[0].mxu0 %v5616
  %v5618 = vpop.f32.mrb[0].mxu0
  %v5619 = vadd.f32 %v5319, %v5618
  %v5620 = vpop.f32.mrb[0].mxu0
  %5621 = vmatprep.mubr.f32.mxu0 0.0
  %v5622 = vand.u32 %v4444, 4294901760
  %v5623 = vsub.f32 %v4444, %v5622
  %v5624 = vand.u32 %v5623, 4294901760
  %5625 = vmatmul.mubr.f32.gmra.mrb[0].mxu0 %v5624
  %v5626 = vpop.f32.mrb[0].mxu0
  %v5627 = vadd.f32 %v5326, %v5626
  %v5628 = vpop.f32.mrb[0].mxu0
  %5629 = vmatprep.mubr.f32.mxu0 0.0
  %v5630 = vand.u32 %v4447, 4294901760
  %v5631 = vsub.f32 %v4447, %v5630
  %v5632 = vand.u32 %v5631, 4294901760
  %5633 = vmatmul.mubr.f32.gmra.mrb[0].mxu0 %v5632
  %v5634 = vpop.f32.mrb[0].mxu0
  %v5635 = vadd.f32 %v5333, %v5634
  %v5636 = vpop.f32.mrb[0].mxu0
  %5637 = vmatprep.mubr.f32.mxu0 0.0
  %v5638 = vand.u32 %v4450, 4294901760
  %v5639 = vsub.f32 %v4450, %v5638
  %v5640 = vand.u32 %v5639, 4294901760
  %5641 = vmatmul.mubr.f32.gmra.mrb[0].mxu0 %v5640
  %v5642 = vpop.f32.mrb[0].mxu0
  %v5643 = vadd.f32 %v5340, %v5642
  %v5644 = vpop.f32.mrb[0].mxu0
  %5645 = vmatprep.mubr.f32.mxu0 0.0
  %v5646 = vand.u32 %v4453, 4294901760
  %v5647 = vsub.f32 %v4453, %v5646
  %v5648 = vand.u32 %v5647, 4294901760
  %5649 = vmatmul.mubr.f32.gmra.mrb[0].mxu0 %v5648
  %v5650 = vpop.f32.mrb[0].mxu0
  %v5651 = vadd.f32 %v5347, %v5650
  %v5652 = vpop.f32.mrb[0].mxu0
  %5653 = vmatprep.mubr.f32.mxu0 0.0
  %v5654 = vand.u32 %v4456, 4294901760
  %v5655 = vsub.f32 %v4456, %v5654
  %v5656 = vand.u32 %v5655, 4294901760
  %5657 = vmatmul.mubr.f32.gmra.mrb[0].mxu0 %v5656
  %v5658 = vpop.f32.mrb[0].mxu0
  %v5659 = vadd.f32 %v5354, %v5658
  %v5660 = vpop.f32.mrb[0].mxu0
  %5661 = vmatprep.mubr.f32.mxu0 0.0
  %v5662 = vand.u32 %v4459, 4294901760
  %v5663 = vsub.f32 %v4459, %v5662
  %v5664 = vand.u32 %v5663, 4294901760
  %5665 = vmatmul.mubr.f32.gmra.mrb[0].mxu0 %v5664
  %v5666 = vpop.f32.mrb[0].mxu0
  %v5667 = vadd.f32 %v5361, %v5666
  %v5668 = vpop.f32.mrb[0].mxu0
  %5669 = vmatprep.mubr.f32.mxu0 0.0
  %v5670 = vand.u32 %v4462, 4294901760
  %v5671 = vsub.f32 %v4462, %v5670
  %v5672 = vand.u32 %v5671, 4294901760
  %5673 = vmatmul.mubr.f32.gmra.mrb[0].mxu0 %v5672
  %v5674 = vpop.f32.mrb[0].mxu0
  %v5675 = vadd.f32 %v5368, %v5674
  %v5676 = vpop.f32.mrb[0].mxu0
  %5677 = vmatprep.mubr.f32.mxu0 0.0
  %v5678 = vand.u32 %v4465, 4294901760
  %v5679 = vsub.f32 %v4465, %v5678
  %v5680 = vand.u32 %v5679, 4294901760
  %5681 = vmatmul.mubr.f32.gmra.mrb[0].mxu0 %v5680
  %v5682 = vpop.f32.mrb[0].mxu0
  %v5683 = vadd.f32 %v5375, %v5682
  %v5684 = vpop.f32.mrb[0].mxu0
  %5685 = vmatprep.mubr.f32.mxu0 0.0
  %v5686 = vand.u32 %v4468, 4294901760
  %v5687 = vsub.f32 %v4468, %v5686
  %v5688 = vand.u32 %v5687, 4294901760
  %5689 = vmatmul.mubr.f32.gmra.mrb[0].mxu0 %v5688
  %v5690 = vpop.f32.mrb[0].mxu0
  %v5691 = vadd.f32 %v5382, %v5690
  %v5692 = vpop.f32.mrb[0].mxu0
  %5693 = vmatprep.mubr.f32.mxu0 0.0
  %v5694 = vand.u32 %v4471, 4294901760
  %v5695 = vsub.f32 %v4471, %v5694
  %v5696 = vand.u32 %v5695, 4294901760
  %5697 = vmatmul.mubr.f32.gmra.mrb[0].mxu0 %v5696
  %v5698 = vpop.f32.mrb[0].mxu0
  %v5699 = vadd.f32 %v5389, %v5698
  %v5700 = vpop.f32.mrb[0].mxu0
  %5701 = vmatprep.mubr.f32.mxu0 0.0
  %v5702 = vand.u32 %v4474, 4294901760
  %v5703 = vsub.f32 %v4474, %v5702
  %v5704 = vand.u32 %v5703, 4294901760
  %5705 = vmatmul.mubr.f32.gmra.mrb[0].mxu0 %v5704
  %v5706 = vpop.f32.mrb[0].mxu0
  %v5707 = vadd.f32 %v5396, %v5706
  %v5708 = vpop.f32.mrb[0].mxu0
  %5709 = vmatprep.mubr.f32.mxu0 0.0
  %v5710 = vand.u32 %v4477, 4294901760
  %v5711 = vsub.f32 %v4477, %v5710
  %v5712 = vand.u32 %v5711, 4294901760
  %5713 = vmatmul.mubr.f32.gmra.mrb[0].mxu0 %v5712
  %v5714 = vpop.f32.mrb[0].mxu0
  %v5715 = vadd.f32 %v5403, %v5714
  %v5716 = vpop.f32.mrb[0].mxu0
  %5717 = vmatprep.mubr.f32.mxu0 0.0
  %v5718 = vand.u32 %v4480, 4294901760
  %v5719 = vsub.f32 %v4480, %v5718
  %v5720 = vand.u32 %v5719, 4294901760
  %5721 = vmatmul.mubr.f32.gmra.mrb[0].mxu0 %v5720
  %v5722 = vpop.f32.mrb[0].mxu0
  %v5723 = vadd.f32 %v5410, %v5722
  %v5724 = vpop.f32.mrb[0].mxu0
  %5725 = vmatprep.mubr.f32.mxu0 0.0
  %v5726 = vand.u32 %v4483, 4294901760
  %v5727 = vsub.f32 %v4483, %v5726
  %v5728 = vand.u32 %v5727, 4294901760
  %5729 = vmatmul.mubr.f32.gmra.mrb[0].mxu0 %v5728
  %v5730 = vpop.f32.mrb[0].mxu0
  %v5731 = vadd.f32 %v5417, %v5730
  %v5732 = vpop.f32.mrb[0].mxu0
  %5733 = vmatprep.mubr.f32.mxu0 0.0
  %v5734 = vand.u32 %v4486, 4294901760
  %v5735 = vsub.f32 %v4486, %v5734
  %v5736 = vand.u32 %v5735, 4294901760
  %5737 = vmatmul.mubr.f32.gmra.mrb[0].mxu0 %v5736
  %v5738 = vpop.f32.mrb[0].mxu0
  %v5739 = vadd.f32 %v5424, %v5738
  %v5740 = vpop.f32.mrb[0].mxu0
  %5741 = vmatprep.mubr.f32.mxu0 0.0
  %v5742 = vand.u32 %v4489, 4294901760
  %v5743 = vsub.f32 %v4489, %v5742
  %v5744 = vand.u32 %v5743, 4294901760
  %5745 = vmatmul.mubr.f32.gmra.mrb[0].mxu0 %v5744
  %v5746 = vpop.f32.mrb[0].mxu0
  %v5747 = vadd.f32 %v5431, %v5746
  %v5748 = vpop.f32.mrb[0].mxu0
  %5749 = vmatprep.mubr.f32.mxu0 0.0
  %v5750 = vand.u32 %v4492, 4294901760
  %v5751 = vsub.f32 %v4492, %v5750
  %v5752 = vand.u32 %v5751, 4294901760
  %5753 = vmatmul.mubr.f32.gmra.mrb[0].mxu0 %v5752
  %v5754 = vpop.f32.mrb[0].mxu0
  %v5755 = vadd.f32 %v5438, %v5754
  %v5756 = vpop.f32.mrb[0].mxu0
  %5757 = vmatprep.mubr.f32.mxu0 0.0
  %v5758 = vand.u32 %v4495, 4294901760
  %v5759 = vsub.f32 %v4495, %v5758
  %v5760 = vand.u32 %v5759, 4294901760
  %5761 = vmatmul.mubr.f32.gmra.mrb[0].mxu0 %v5760
  %v5762 = vpop.f32.mrb[0].mxu0
  %v5763 = vadd.f32 %v5445, %v5762
  %v5764 = vpop.f32.mrb[0].mxu0
  %5765 = vmatprep.mubr.f32.mxu0 0.0
  %v5766 = vand.u32 %v4498, 4294901760
  %v5767 = vsub.f32 %v4498, %v5766
  %v5768 = vand.u32 %v5767, 4294901760
  %5769 = vmatmul.mubr.f32.gmra.mrb[0].mxu0 %v5768
  %v5770 = vpop.f32.mrb[0].mxu0
  %v5771 = vadd.f32 %v5452, %v5770
  %v5772 = vpop.f32.mrb[0].mxu0
  %5773 = vmatprep.mubr.f32.mxu0 0.0
  %v5774 = vand.u32 %v4501, 4294901760
  %v5775 = vsub.f32 %v4501, %v5774
  %v5776 = vand.u32 %v5775, 4294901760
  %5777 = vmatmul.mubr.f32.gmra.mrb[0].mxu0 %v5776
  %v5778 = vpop.f32.mrb[0].mxu0
  %v5779 = vadd.f32 %v5459, %v5778
  %v5780 = vpop.f32.mrb[0].mxu0
  %5781 = vmatprep.mubr.f32.mxu0 0.0
  %v5782 = vand.u32 %v4504, 4294901760
  %v5783 = vsub.f32 %v4504, %v5782
  %v5784 = vand.u32 %v5783, 4294901760
  %5785 = vmatmul.mubr.f32.gmra.mrb[0].mxu0 %v5784
  %v5786 = vpop.f32.mrb[0].mxu0
  %v5787 = vadd.f32 %v5466, %v5786
  %v5788 = vpop.f32.mrb[0].mxu0
  %5789 = vmatprep.mubr.f32.mxu0 0.0
  %v5790 = vand.u32 %v4507, 4294901760
  %v5791 = vsub.f32 %v4507, %v5790
  %v5792 = vand.u32 %v5791, 4294901760
  %5793 = vmatmul.mubr.f32.gmra.mrb[0].mxu0 %v5792
  %v5794 = vpop.f32.mrb[0].mxu0
  %v5795 = vadd.f32 %v5473, %v5794
  %v5796 = vpop.f32.mrb[0].mxu0
  %5797 = vmatprep.mubr.f32.mxu0 0.0
  %v5798 = vand.u32 %v4510, 4294901760
  %v5799 = vsub.f32 %v4510, %v5798
  %v5800 = vand.u32 %v5799, 4294901760
  %5801 = vmatmul.mubr.f32.gmra.mrb[0].mxu0 %v5800
  %v5802 = vpop.f32.mrb[0].mxu0
  %v5803 = vadd.f32 %v5480, %v5802
  %v5804 = vpop.f32.mrb[0].mxu0
  %5805 = vmatprep.mubr.f32.mxu0 0.0
  %v5806 = vand.u32 %v4513, 4294901760
  %v5807 = vsub.f32 %v4513, %v5806
  %v5808 = vand.u32 %v5807, 4294901760
  %5809 = vmatmul.mubr.f32.gmra.mrb[0].mxu0 %v5808
  %v5810 = vpop.f32.mrb[0].mxu0
  %v5811 = vadd.f32 %v5487, %v5810
  %v5812 = vpop.f32.mrb[0].mxu0
  %5813 = vmatprep.mubr.f32.mxu0 0.0
  %v5814 = vand.u32 %v4516, 4294901760
  %v5815 = vsub.f32 %v4516, %v5814
  %v5816 = vand.u32 %v5815, 4294901760
  %5817 = vmatmul.mubr.f32.gmra.mrb[0].mxu0 %v5816
  %v5818 = vpop.f32.mrb[0].mxu0
  %v5819 = vadd.f32 %v5494, %v5818
  %v5820 = vpop.f32.mrb[0].mxu0
  %5821 = vmatprep.mubr.f32.mxu0 0.0
  %v5822 = vand.u32 %v4519, 4294901760
  %v5823 = vsub.f32 %v4519, %v5822
  %v5824 = vand.u32 %v5823, 4294901760
  %5825 = vmatmul.mubr.f32.gmra.mrb[0].mxu0 %v5824
  %v5826 = vpop.f32.mrb[0].mxu0
  %v5827 = vadd.f32 %v5501, %v5826
  %v5828 = vpop.f32.mrb[0].mxu0
  %5829 = vmatprep.mubr.f32.mxu0 0.0
  %v5830 = vand.u32 %v4522, 4294901760
  %v5831 = vsub.f32 %v4522, %v5830
  %v5832 = vand.u32 %v5831, 4294901760
  %5833 = vmatmul.mubr.f32.gmra.mrb[0].mxu0 %v5832
  %v5834 = vpop.f32.mrb[0].mxu0
  %v5835 = vadd.f32 %v5508, %v5834
  %v5836 = vpop.f32.mrb[0].mxu0
  %5837 = vmatprep.mubr.f32.mxu0 0.0
  %v5838 = vand.u32 %v4525, 4294901760
  %v5839 = vsub.f32 %v4525, %v5838
  %v5840 = vand.u32 %v5839, 4294901760
  %5841 = vmatmul.mubr.f32.gmra.mrb[0].mxu0 %v5840
  %v5842 = vpop.f32.mrb[0].mxu0
  %v5843 = vadd.f32 %v5515, %v5842
  %v5844 = vpop.f32.mrb[0].mxu0
  %5845 = vmatprep.mubr.f32.mxu0 0.0
  %v5846 = vand.u32 %v4528, 4294901760
  %v5847 = vsub.f32 %v4528, %v5846
  %v5848 = vand.u32 %v5847, 4294901760
  %5849 = vmatmul.mubr.f32.gmra.mrb[0].mxu0 %v5848
  %v5850 = vpop.f32.mrb[0].mxu0
  %v5851 = vadd.f32 %v5522, %v5850
  %v5852 = vpop.f32.mrb[0].mxu0
  %5853 = vdwg.mxu0
  %5854 = vmatprep.subr.mxu0 0.0
  %v5855 = vand.u32 %v4421, 4294901760
  %v5856 = vsub.f32 %v4421, %v5855
  %v5857 = vand.u32 %v5856, 4294901760
  %5858 = vmatpush1.msra.mxu0 %v5857
  %5859 = vmatprep.subr.mxu0 0.0
  %v5860 = vand.u32 %v4422, 4294901760
  %v5861 = vsub.f32 %v4422, %v5860
  %v5862 = vand.u32 %v5861, 4294901760
  %5863 = vmatpush1.msra.mxu0 %v5862
  %5864 = vmatprep.subr.mxu0 0.0
  %v5865 = vand.u32 %v4423, 4294901760
  %v5866 = vsub.f32 %v4423, %v5865
  %v5867 = vand.u32 %v5866, 4294901760
  %5868 = vmatpush1.msra.mxu0 %v5867
  %5869 = vmatprep.subr.mxu0 0.0
  %v5870 = vand.u32 %v4424, 4294901760
  %v5871 = vsub.f32 %v4424, %v5870
  %v5872 = vand.u32 %v5871, 4294901760
  %5873 = vmatpush1.msra.mxu0 %v5872
  %5874 = vmatprep.subr.mxu0 0.0
  %v5875 = vand.u32 %v4425, 4294901760
  %v5876 = vsub.f32 %v4425, %v5875
  %v5877 = vand.u32 %v5876, 4294901760
  %5878 = vmatpush1.msra.mxu0 %v5877
  %5879 = vmatprep.subr.mxu0 0.0
  %v5880 = vand.u32 %v4426, 4294901760
  %v5881 = vsub.f32 %v4426, %v5880
  %v5882 = vand.u32 %v5881, 4294901760
  %5883 = vmatpush1.msra.mxu0 %v5882
  %5884 = vmatprep.subr.mxu0 0.0
  %v5885 = vand.u32 %v4427, 4294901760
  %v5886 = vsub.f32 %v4427, %v5885
  %v5887 = vand.u32 %v5886, 4294901760
  %5888 = vmatpush1.msra.mxu0 %v5887
  %5889 = vmatprep.subr.mxu0 0.0
  %v5890 = vand.u32 %v4428, 4294901760
  %v5891 = vsub.f32 %v4428, %v5890
  %v5892 = vand.u32 %v5891, 4294901760
  %5893 = vmatpush1.msra.mxu0 %v5892
  %5894 = vmatprep.subr.mxu0 0.0
  %5895 = vmatpush1.msra.mxu0 0.0
  %5896 = vmatprep.subr.mxu0 0.0
  %5897 = vmatpush1.msra.mxu0 0.0
  %5898 = vmatprep.subr.mxu0 0.0
  %5899 = vmatpush1.msra.mxu0 0.0
  %5900 = vmatprep.subr.mxu0 0.0
  %5901 = vmatpush1.msra.mxu0 0.0
  %5902 = vmatprep.subr.mxu0 0.0
  %5903 = vmatpush1.msra.mxu0 0.0
  %5904 = vmatprep.subr.mxu0 0.0
  %5905 = vmatpush1.msra.mxu0 0.0
  %5906 = vmatprep.subr.mxu0 0.0
  %5907 = vmatpush1.msra.mxu0 0.0
  %5908 = vmatprep.subr.mxu0 0.0
  %5909 = vmatpush1.msra.mxu0 0.0
  %5910 = vmatprep.subr.mxu0 0.0
  %5911 = vmatpush1.msra.mxu0 0.0
  %5912 = vmatprep.subr.mxu0 0.0
  %5913 = vmatpush1.msra.mxu0 0.0
  %5914 = vmatprep.subr.mxu0 0.0
  %5915 = vmatpush1.msra.mxu0 0.0
  %5916 = vmatprep.subr.mxu0 0.0
  %5917 = vmatpush1.msra.mxu0 0.0
  %5918 = vmatprep.subr.mxu0 0.0
  %5919 = vmatpush1.msra.mxu0 0.0
  %5920 = vmatprep.subr.mxu0 0.0
  %5921 = vmatpush1.msra.mxu0 0.0
  %5922 = vmatprep.subr.mxu0 0.0
  %5923 = vmatpush1.msra.mxu0 0.0
  %5924 = vmatprep.subr.mxu0 0.0
  %5925 = vmatpush1.msra.mxu0 0.0
  %5926 = vmatprep.subr.mxu0 0.0
  %5927 = vmatpush1.msra.mxu0 0.0
  %5928 = vmatprep.subr.mxu0 0.0
  %5929 = vmatpush1.msra.mxu0 0.0
  %5930 = vmatprep.subr.mxu0 0.0
  %5931 = vmatpush1.msra.mxu0 0.0
  %5932 = vmatprep.subr.mxu0 0.0
  %5933 = vmatpush1.msra.mxu0 0.0
  %5934 = vmatprep.subr.mxu0 0.0
  %5935 = vmatpush1.msra.mxu0 0.0
  %5936 = vmatprep.subr.mxu0 0.0
  %5937 = vmatpush1.msra.mxu0 0.0
  %5938 = vmatprep.subr.mxu0 0.0
  %5939 = vmatpush1.msra.mxu0 0.0
  %5940 = vmatprep.subr.mxu0 0.0
  %5941 = vmatpush1.msra.mxu0 0.0
  %5942 = vmatprep.mubr.f32.mxu0 0.0
  %v5943 = vand.u32 %v4435, 4294901760
  %5944 = vmatmul.mubr.f32.gmra.mrb[0].mxu0 %v5943
  %v5945 = vpop.f32.mrb[0].mxu0
  %v5946 = vadd.f32 %v5603, %v5945
  %v5947 = vpop.f32.mrb[0].mxu0
  %5948 = vmatprep.mubr.f32.mxu0 0.0
  %v5949 = vand.u32 %v4438, 4294901760
  %5950 = vmatmul.mubr.f32.gmra.mrb[0].mxu0 %v5949
  %v5951 = vpop.f32.mrb[0].mxu0
  %v5952 = vadd.f32 %v5611, %v5951
  %v5953 = vpop.f32.mrb[0].mxu0
  %5954 = vmatprep.mubr.f32.mxu0 0.0
  %v5955 = vand.u32 %v4441, 4294901760
  %5956 = vmatmul.mubr.f32.gmra.mrb[0].mxu0 %v5955
  %v5957 = vpop.f32.mrb[0].mxu0
  %v5958 = vadd.f32 %v5619, %v5957
  %v5959 = vpop.f32.mrb[0].mxu0
  %5960 = vmatprep.mubr.f32.mxu0 0.0
  %v5961 = vand.u32 %v4444, 4294901760
  %5962 = vmatmul.mubr.f32.gmra.mrb[0].mxu0 %v5961
  %v5963 = vpop.f32.mrb[0].mxu0
  %v5964 = vadd.f32 %v5627, %v5963
  %v5965 = vpop.f32.mrb[0].mxu0
  %5966 = vmatprep.mubr.f32.mxu0 0.0
  %v5967 = vand.u32 %v4447, 4294901760
  %5968 = vmatmul.mubr.f32.gmra.mrb[0].mxu0 %v5967
  %v5969 = vpop.f32.mrb[0].mxu0
  %v5970 = vadd.f32 %v5635, %v5969
  %v5971 = vpop.f32.mrb[0].mxu0
  %5972 = vmatprep.mubr.f32.mxu0 0.0
  %v5973 = vand.u32 %v4450, 4294901760
  %5974 = vmatmul.mubr.f32.gmra.mrb[0].mxu0 %v5973
  %v5975 = vpop.f32.mrb[0].mxu0
  %v5976 = vadd.f32 %v5643, %v5975
  %v5977 = vpop.f32.mrb[0].mxu0
  %5978 = vmatprep.mubr.f32.mxu0 0.0
  %v5979 = vand.u32 %v4453, 4294901760
  %5980 = vmatmul.mubr.f32.gmra.mrb[0].mxu0 %v5979
  %v5981 = vpop.f32.mrb[0].mxu0
  %v5982 = vadd.f32 %v5651, %v5981
  %v5983 = vpop.f32.mrb[0].mxu0
  %5984 = vmatprep.mubr.f32.mxu0 0.0
  %v5985 = vand.u32 %v4456, 4294901760
  %5986 = vmatmul.mubr.f32.gmra.mrb[0].mxu0 %v5985
  %v5987 = vpop.f32.mrb[0].mxu0
  %v5988 = vadd.f32 %v5659, %v5987
  %v5989 = vpop.f32.mrb[0].mxu0
  %5990 = vmatprep.mubr.f32.mxu0 0.0
  %v5991 = vand.u32 %v4459, 4294901760
  %5992 = vmatmul.mubr.f32.gmra.mrb[0].mxu0 %v5991
  %v5993 = vpop.f32.mrb[0].mxu0
  %v5994 = vadd.f32 %v5667, %v5993
  %v5995 = vpop.f32.mrb[0].mxu0
  %5996 = vmatprep.mubr.f32.mxu0 0.0
  %v5997 = vand.u32 %v4462, 4294901760
  %5998 = vmatmul.mubr.f32.gmra.mrb[0].mxu0 %v5997
  %v5999 = vpop.f32.mrb[0].mxu0
  %v6000 = vadd.f32 %v5675, %v5999
  %v6001 = vpop.f32.mrb[0].mxu0
  %6002 = vmatprep.mubr.f32.mxu0 0.0
  %v6003 = vand.u32 %v4465, 4294901760
  %6004 = vmatmul.mubr.f32.gmra.mrb[0].mxu0 %v6003
  %v6005 = vpop.f32.mrb[0].mxu0
  %v6006 = vadd.f32 %v5683, %v6005
  %v6007 = vpop.f32.mrb[0].mxu0
  %6008 = vmatprep.mubr.f32.mxu0 0.0
  %v6009 = vand.u32 %v4468, 4294901760
  %6010 = vmatmul.mubr.f32.gmra.mrb[0].mxu0 %v6009
  %v6011 = vpop.f32.mrb[0].mxu0
  %v6012 = vadd.f32 %v5691, %v6011
  %v6013 = vpop.f32.mrb[0].mxu0
  %6014 = vmatprep.mubr.f32.mxu0 0.0
  %v6015 = vand.u32 %v4471, 4294901760
  %6016 = vmatmul.mubr.f32.gmra.mrb[0].mxu0 %v6015
  %v6017 = vpop.f32.mrb[0].mxu0
  %v6018 = vadd.f32 %v5699, %v6017
  %v6019 = vpop.f32.mrb[0].mxu0
  %6020 = vmatprep.mubr.f32.mxu0 0.0
  %v6021 = vand.u32 %v4474, 4294901760
  %6022 = vmatmul.mubr.f32.gmra.mrb[0].mxu0 %v6021
  %v6023 = vpop.f32.mrb[0].mxu0
  %v6024 = vadd.f32 %v5707, %v6023
  %v6025 = vpop.f32.mrb[0].mxu0
  %6026 = vmatprep.mubr.f32.mxu0 0.0
  %v6027 = vand.u32 %v4477, 4294901760
  %6028 = vmatmul.mubr.f32.gmra.mrb[0].mxu0 %v6027
  %v6029 = vpop.f32.mrb[0].mxu0
  %v6030 = vadd.f32 %v5715, %v6029
  %v6031 = vpop.f32.mrb[0].mxu0
  %6032 = vmatprep.mubr.f32.mxu0 0.0
  %v6033 = vand.u32 %v4480, 4294901760
  %6034 = vmatmul.mubr.f32.gmra.mrb[0].mxu0 %v6033
  %v6035 = vpop.f32.mrb[0].mxu0
  %v6036 = vadd.f32 %v5723, %v6035
  %v6037 = vpop.f32.mrb[0].mxu0
  %6038 = vmatprep.mubr.f32.mxu0 0.0
  %v6039 = vand.u32 %v4483, 4294901760
  %6040 = vmatmul.mubr.f32.gmra.mrb[0].mxu0 %v6039
  %v6041 = vpop.f32.mrb[0].mxu0
  %v6042 = vadd.f32 %v5731, %v6041
  %v6043 = vpop.f32.mrb[0].mxu0
  %6044 = vmatprep.mubr.f32.mxu0 0.0
  %v6045 = vand.u32 %v4486, 4294901760
  %6046 = vmatmul.mubr.f32.gmra.mrb[0].mxu0 %v6045
  %v6047 = vpop.f32.mrb[0].mxu0
  %v6048 = vadd.f32 %v5739, %v6047
  %v6049 = vpop.f32.mrb[0].mxu0
  %6050 = vmatprep.mubr.f32.mxu0 0.0
  %v6051 = vand.u32 %v4489, 4294901760
  %6052 = vmatmul.mubr.f32.gmra.mrb[0].mxu0 %v6051
  %v6053 = vpop.f32.mrb[0].mxu0
  %v6054 = vadd.f32 %v5747, %v6053
  %v6055 = vpop.f32.mrb[0].mxu0
  %6056 = vmatprep.mubr.f32.mxu0 0.0
  %v6057 = vand.u32 %v4492, 4294901760
  %6058 = vmatmul.mubr.f32.gmra.mrb[0].mxu0 %v6057
  %v6059 = vpop.f32.mrb[0].mxu0
  %v6060 = vadd.f32 %v5755, %v6059
  %v6061 = vpop.f32.mrb[0].mxu0
  %6062 = vmatprep.mubr.f32.mxu0 0.0
  %v6063 = vand.u32 %v4495, 4294901760
  %6064 = vmatmul.mubr.f32.gmra.mrb[0].mxu0 %v6063
  %v6065 = vpop.f32.mrb[0].mxu0
  %v6066 = vadd.f32 %v5763, %v6065
  %v6067 = vpop.f32.mrb[0].mxu0
  %6068 = vmatprep.mubr.f32.mxu0 0.0
  %v6069 = vand.u32 %v4498, 4294901760
  %6070 = vmatmul.mubr.f32.gmra.mrb[0].mxu0 %v6069
  %v6071 = vpop.f32.mrb[0].mxu0
  %v6072 = vadd.f32 %v5771, %v6071
  %v6073 = vpop.f32.mrb[0].mxu0
  %6074 = vmatprep.mubr.f32.mxu0 0.0
  %v6075 = vand.u32 %v4501, 4294901760
  %6076 = vmatmul.mubr.f32.gmra.mrb[0].mxu0 %v6075
  %v6077 = vpop.f32.mrb[0].mxu0
  %v6078 = vadd.f32 %v5779, %v6077
  %v6079 = vpop.f32.mrb[0].mxu0
  %6080 = vmatprep.mubr.f32.mxu0 0.0
  %v6081 = vand.u32 %v4504, 4294901760
  %6082 = vmatmul.mubr.f32.gmra.mrb[0].mxu0 %v6081
  %v6083 = vpop.f32.mrb[0].mxu0
  %v6084 = vadd.f32 %v5787, %v6083
  %v6085 = vpop.f32.mrb[0].mxu0
  %6086 = vmatprep.mubr.f32.mxu0 0.0
  %v6087 = vand.u32 %v4507, 4294901760
  %6088 = vmatmul.mubr.f32.gmra.mrb[0].mxu0 %v6087
  %v6089 = vpop.f32.mrb[0].mxu0
  %v6090 = vadd.f32 %v5795, %v6089
  %v6091 = vpop.f32.mrb[0].mxu0
  %6092 = vmatprep.mubr.f32.mxu0 0.0
  %v6093 = vand.u32 %v4510, 4294901760
  %6094 = vmatmul.mubr.f32.gmra.mrb[0].mxu0 %v6093
  %v6095 = vpop.f32.mrb[0].mxu0
  %v6096 = vadd.f32 %v5803, %v6095
  %v6097 = vpop.f32.mrb[0].mxu0
  %6098 = vmatprep.mubr.f32.mxu0 0.0
  %v6099 = vand.u32 %v4513, 4294901760
  %6100 = vmatmul.mubr.f32.gmra.mrb[0].mxu0 %v6099
  %v6101 = vpop.f32.mrb[0].mxu0
  %v6102 = vadd.f32 %v5811, %v6101
  %v6103 = vpop.f32.mrb[0].mxu0
  %6104 = vmatprep.mubr.f32.mxu0 0.0
  %v6105 = vand.u32 %v4516, 4294901760
  %6106 = vmatmul.mubr.f32.gmra.mrb[0].mxu0 %v6105
  %v6107 = vpop.f32.mrb[0].mxu0
  %v6108 = vadd.f32 %v5819, %v6107
  %v6109 = vpop.f32.mrb[0].mxu0
  %6110 = vmatprep.mubr.f32.mxu0 0.0
  %v6111 = vand.u32 %v4519, 4294901760
  %6112 = vmatmul.mubr.f32.gmra.mrb[0].mxu0 %v6111
  %v6113 = vpop.f32.mrb[0].mxu0
  %v6114 = vadd.f32 %v5827, %v6113
  %v6115 = vpop.f32.mrb[0].mxu0
  %6116 = vmatprep.mubr.f32.mxu0 0.0
  %v6117 = vand.u32 %v4522, 4294901760
  %6118 = vmatmul.mubr.f32.gmra.mrb[0].mxu0 %v6117
  %v6119 = vpop.f32.mrb[0].mxu0
  %v6120 = vadd.f32 %v5835, %v6119
  %v6121 = vpop.f32.mrb[0].mxu0
  %6122 = vmatprep.mubr.f32.mxu0 0.0
  %v6123 = vand.u32 %v4525, 4294901760
  %6124 = vmatmul.mubr.f32.gmra.mrb[0].mxu0 %v6123
  %v6125 = vpop.f32.mrb[0].mxu0
  %v6126 = vadd.f32 %v5843, %v6125
  %v6127 = vpop.f32.mrb[0].mxu0
  %6128 = vmatprep.mubr.f32.mxu0 0.0
  %v6129 = vand.u32 %v4528, 4294901760
  %6130 = vmatmul.mubr.f32.gmra.mrb[0].mxu0 %v6129
  %v6131 = vpop.f32.mrb[0].mxu0
  %v6132 = vadd.f32 %v5851, %v6131
  %v6133 = vpop.f32.mrb[0].mxu0
  %6134 = vdwg.mxu0
  %6135 = vmatprep.subr.mxu0 0.0
  %v6136 = vand.u32 %v4421, 4294901760
  %6137 = vmatpush1.msra.mxu0 %v6136
  %6138 = vmatprep.subr.mxu0 0.0
  %v6139 = vand.u32 %v4422, 4294901760
  %6140 = vmatpush1.msra.mxu0 %v6139
  %6141 = vmatprep.subr.mxu0 0.0
  %v6142 = vand.u32 %v4423, 4294901760
  %6143 = vmatpush1.msra.mxu0 %v6142
  %6144 = vmatprep.subr.mxu0 0.0
  %v6145 = vand.u32 %v4424, 4294901760
  %6146 = vmatpush1.msra.mxu0 %v6145
  %6147 = vmatprep.subr.mxu0 0.0
  %v6148 = vand.u32 %v4425, 4294901760
  %6149 = vmatpush1.msra.mxu0 %v6148
  %6150 = vmatprep.subr.mxu0 0.0
  %v6151 = vand.u32 %v4426, 4294901760
  %6152 = vmatpush1.msra.mxu0 %v6151
  %6153 = vmatprep.subr.mxu0 0.0
  %v6154 = vand.u32 %v4427, 4294901760
  %6155 = vmatpush1.msra.mxu0 %v6154
  %6156 = vmatprep.subr.mxu0 0.0
  %v6157 = vand.u32 %v4428, 4294901760
  %6158 = vmatpush1.msra.mxu0 %v6157
  %6159 = vmatprep.subr.mxu0 0.0
  %6160 = vmatpush1.msra.mxu0 0.0
  %6161 = vmatprep.subr.mxu0 0.0
  %6162 = vmatpush1.msra.mxu0 0.0
  %6163 = vmatprep.subr.mxu0 0.0
  %6164 = vmatpush1.msra.mxu0 0.0
  %6165 = vmatprep.subr.mxu0 0.0
  %6166 = vmatpush1.msra.mxu0 0.0
  %6167 = vmatprep.subr.mxu0 0.0
  %6168 = vmatpush1.msra.mxu0 0.0
  %6169 = vmatprep.subr.mxu0 0.0
  %6170 = vmatpush1.msra.mxu0 0.0
  %6171 = vmatprep.subr.mxu0 0.0
  %6172 = vmatpush1.msra.mxu0 0.0
  %6173 = vmatprep.subr.mxu0 0.0
  %6174 = vmatpush1.msra.mxu0 0.0
  %6175 = vmatprep.subr.mxu0 0.0
  %6176 = vmatpush1.msra.mxu0 0.0
  %6177 = vmatprep.subr.mxu0 0.0
  %6178 = vmatpush1.msra.mxu0 0.0
  %6179 = vmatprep.subr.mxu0 0.0
  %6180 = vmatpush1.msra.mxu0 0.0
  %6181 = vmatprep.subr.mxu0 0.0
  %6182 = vmatpush1.msra.mxu0 0.0
  %6183 = vmatprep.subr.mxu0 0.0
  %6184 = vmatpush1.msra.mxu0 0.0
  %6185 = vmatprep.subr.mxu0 0.0
  %6186 = vmatpush1.msra.mxu0 0.0
  %6187 = vmatprep.subr.mxu0 0.0
  %6188 = vmatpush1.msra.mxu0 0.0
  %6189 = vmatprep.subr.mxu0 0.0
  %6190 = vmatpush1.msra.mxu0 0.0
  %6191 = vmatprep.subr.mxu0 0.0
  %6192 = vmatpush1.msra.mxu0 0.0
  %6193 = vmatprep.subr.mxu0 0.0
  %6194 = vmatpush1.msra.mxu0 0.0
  %6195 = vmatprep.subr.mxu0 0.0
  %6196 = vmatpush1.msra.mxu0 0.0
  %6197 = vmatprep.subr.mxu0 0.0
  %6198 = vmatpush1.msra.mxu0 0.0
  %6199 = vmatprep.subr.mxu0 0.0
  %6200 = vmatpush1.msra.mxu0 0.0
  %6201 = vmatprep.subr.mxu0 0.0
  %6202 = vmatpush1.msra.mxu0 0.0
  %6203 = vmatprep.subr.mxu0 0.0
  %6204 = vmatpush1.msra.mxu0 0.0
  %6205 = vmatprep.subr.mxu0 0.0
  %6206 = vmatpush1.msra.mxu0 0.0
  %6207 = vmatprep.mubr.f32.mxu0 0.0
  %v6208 = vand.u32 %v4435, 4294901760
  %6209 = vmatmul.mubr.f32.gmra.mrb[0].mxu0 %v6208
  %v6210 = vpop.f32.mrb[0].mxu0
  %v6211 = vadd.f32 %v5946, %v6210
  %v6212 = vpop.f32.mrb[0].mxu0
  %6213 = vmatprep.mubr.f32.mxu0 0.0
  %v6214 = vand.u32 %v4438, 4294901760
  %6215 = vmatmul.mubr.f32.gmra.mrb[0].mxu0 %v6214
  %v6216 = vpop.f32.mrb[0].mxu0
  %v6217 = vadd.f32 %v5952, %v6216
  %v6218 = vpop.f32.mrb[0].mxu0
  %6219 = vmatprep.mubr.f32.mxu0 0.0
  %v6220 = vand.u32 %v4441, 4294901760
  %6221 = vmatmul.mubr.f32.gmra.mrb[0].mxu0 %v6220
  %v6222 = vpop.f32.mrb[0].mxu0
  %v6223 = vadd.f32 %v5958, %v6222
  %v6224 = vpop.f32.mrb[0].mxu0
  %6225 = vmatprep.mubr.f32.mxu0 0.0
  %v6226 = vand.u32 %v4444, 4294901760
  %6227 = vmatmul.mubr.f32.gmra.mrb[0].mxu0 %v6226
  %v6228 = vpop.f32.mrb[0].mxu0
  %v6229 = vadd.f32 %v5964, %v6228
  %v6230 = vpop.f32.mrb[0].mxu0
  %6231 = vmatprep.mubr.f32.mxu0 0.0
  %v6232 = vand.u32 %v4447, 4294901760
  %6233 = vmatmul.mubr.f32.gmra.mrb[0].mxu0 %v6232
  %v6234 = vpop.f32.mrb[0].mxu0
  %v6235 = vadd.f32 %v5970, %v6234
  %v6236 = vpop.f32.mrb[0].mxu0
  %6237 = vmatprep.mubr.f32.mxu0 0.0
  %v6238 = vand.u32 %v4450, 4294901760
  %6239 = vmatmul.mubr.f32.gmra.mrb[0].mxu0 %v6238
  %v6240 = vpop.f32.mrb[0].mxu0
  %v6241 = vadd.f32 %v5976, %v6240
  %v6242 = vpop.f32.mrb[0].mxu0
  %6243 = vmatprep.mubr.f32.mxu0 0.0
  %v6244 = vand.u32 %v4453, 4294901760
  %6245 = vmatmul.mubr.f32.gmra.mrb[0].mxu0 %v6244
  %v6246 = vpop.f32.mrb[0].mxu0
  %v6247 = vadd.f32 %v5982, %v6246
  %v6248 = vpop.f32.mrb[0].mxu0
  %6249 = vmatprep.mubr.f32.mxu0 0.0
  %v6250 = vand.u32 %v4456, 4294901760
  %6251 = vmatmul.mubr.f32.gmra.mrb[0].mxu0 %v6250
  %v6252 = vpop.f32.mrb[0].mxu0
  %v6253 = vadd.f32 %v5988, %v6252
  %v6254 = vpop.f32.mrb[0].mxu0
  %6255 = vmatprep.mubr.f32.mxu0 0.0
  %v6256 = vand.u32 %v4459, 4294901760
  %6257 = vmatmul.mubr.f32.gmra.mrb[0].mxu0 %v6256
  %v6258 = vpop.f32.mrb[0].mxu0
  %v6259 = vadd.f32 %v5994, %v6258
  %v6260 = vpop.f32.mrb[0].mxu0
  %6261 = vmatprep.mubr.f32.mxu0 0.0
  %v6262 = vand.u32 %v4462, 4294901760
  %6263 = vmatmul.mubr.f32.gmra.mrb[0].mxu0 %v6262
  %v6264 = vpop.f32.mrb[0].mxu0
  %v6265 = vadd.f32 %v6000, %v6264
  %v6266 = vpop.f32.mrb[0].mxu0
  %6267 = vmatprep.mubr.f32.mxu0 0.0
  %v6268 = vand.u32 %v4465, 4294901760
  %6269 = vmatmul.mubr.f32.gmra.mrb[0].mxu0 %v6268
  %v6270 = vpop.f32.mrb[0].mxu0
  %v6271 = vadd.f32 %v6006, %v6270
  %v6272 = vpop.f32.mrb[0].mxu0
  %6273 = vmatprep.mubr.f32.mxu0 0.0
  %v6274 = vand.u32 %v4468, 4294901760
  %6275 = vmatmul.mubr.f32.gmra.mrb[0].mxu0 %v6274
  %v6276 = vpop.f32.mrb[0].mxu0
  %v6277 = vadd.f32 %v6012, %v6276
  %v6278 = vpop.f32.mrb[0].mxu0
  %6279 = vmatprep.mubr.f32.mxu0 0.0
  %v6280 = vand.u32 %v4471, 4294901760
  %6281 = vmatmul.mubr.f32.gmra.mrb[0].mxu0 %v6280
  %v6282 = vpop.f32.mrb[0].mxu0
  %v6283 = vadd.f32 %v6018, %v6282
  %v6284 = vpop.f32.mrb[0].mxu0
  %6285 = vmatprep.mubr.f32.mxu0 0.0
  %v6286 = vand.u32 %v4474, 4294901760
  %6287 = vmatmul.mubr.f32.gmra.mrb[0].mxu0 %v6286
  %v6288 = vpop.f32.mrb[0].mxu0
  %v6289 = vadd.f32 %v6024, %v6288
  %v6290 = vpop.f32.mrb[0].mxu0
  %6291 = vmatprep.mubr.f32.mxu0 0.0
  %v6292 = vand.u32 %v4477, 4294901760
  %6293 = vmatmul.mubr.f32.gmra.mrb[0].mxu0 %v6292
  %v6294 = vpop.f32.mrb[0].mxu0
  %v6295 = vadd.f32 %v6030, %v6294
  %v6296 = vpop.f32.mrb[0].mxu0
  %6297 = vmatprep.mubr.f32.mxu0 0.0
  %v6298 = vand.u32 %v4480, 4294901760
  %6299 = vmatmul.mubr.f32.gmra.mrb[0].mxu0 %v6298
  %v6300 = vpop.f32.mrb[0].mxu0
  %v6301 = vadd.f32 %v6036, %v6300
  %v6302 = vpop.f32.mrb[0].mxu0
  %6303 = vmatprep.mubr.f32.mxu0 0.0
  %v6304 = vand.u32 %v4483, 4294901760
  %6305 = vmatmul.mubr.f32.gmra.mrb[0].mxu0 %v6304
  %v6306 = vpop.f32.mrb[0].mxu0
  %v6307 = vadd.f32 %v6042, %v6306
  %v6308 = vpop.f32.mrb[0].mxu0
  %6309 = vmatprep.mubr.f32.mxu0 0.0
  %v6310 = vand.u32 %v4486, 4294901760
  %6311 = vmatmul.mubr.f32.gmra.mrb[0].mxu0 %v6310
  %v6312 = vpop.f32.mrb[0].mxu0
  %v6313 = vadd.f32 %v6048, %v6312
  %v6314 = vpop.f32.mrb[0].mxu0
  %6315 = vmatprep.mubr.f32.mxu0 0.0
  %v6316 = vand.u32 %v4489, 4294901760
  %6317 = vmatmul.mubr.f32.gmra.mrb[0].mxu0 %v6316
  %v6318 = vpop.f32.mrb[0].mxu0
  %v6319 = vadd.f32 %v6054, %v6318
  %v6320 = vpop.f32.mrb[0].mxu0
  %6321 = vmatprep.mubr.f32.mxu0 0.0
  %v6322 = vand.u32 %v4492, 4294901760
  %6323 = vmatmul.mubr.f32.gmra.mrb[0].mxu0 %v6322
  %v6324 = vpop.f32.mrb[0].mxu0
  %v6325 = vadd.f32 %v6060, %v6324
  %v6326 = vpop.f32.mrb[0].mxu0
  %6327 = vmatprep.mubr.f32.mxu0 0.0
  %v6328 = vand.u32 %v4495, 4294901760
  %6329 = vmatmul.mubr.f32.gmra.mrb[0].mxu0 %v6328
  %v6330 = vpop.f32.mrb[0].mxu0
  %v6331 = vadd.f32 %v6066, %v6330
  %v6332 = vpop.f32.mrb[0].mxu0
  %6333 = vmatprep.mubr.f32.mxu0 0.0
  %v6334 = vand.u32 %v4498, 4294901760
  %6335 = vmatmul.mubr.f32.gmra.mrb[0].mxu0 %v6334
  %v6336 = vpop.f32.mrb[0].mxu0
  %v6337 = vadd.f32 %v6072, %v6336
  %v6338 = vpop.f32.mrb[0].mxu0
  %6339 = vmatprep.mubr.f32.mxu0 0.0
  %v6340 = vand.u32 %v4501, 4294901760
  %6341 = vmatmul.mubr.f32.gmra.mrb[0].mxu0 %v6340
  %v6342 = vpop.f32.mrb[0].mxu0
  %v6343 = vadd.f32 %v6078, %v6342
  %v6344 = vpop.f32.mrb[0].mxu0
  %6345 = vmatprep.mubr.f32.mxu0 0.0
  %v6346 = vand.u32 %v4504, 4294901760
  %6347 = vmatmul.mubr.f32.gmra.mrb[0].mxu0 %v6346
  %v6348 = vpop.f32.mrb[0].mxu0
  %v6349 = vadd.f32 %v6084, %v6348
  %v6350 = vpop.f32.mrb[0].mxu0
  %6351 = vmatprep.mubr.f32.mxu0 0.0
  %v6352 = vand.u32 %v4507, 4294901760
  %6353 = vmatmul.mubr.f32.gmra.mrb[0].mxu0 %v6352
  %v6354 = vpop.f32.mrb[0].mxu0
  %v6355 = vadd.f32 %v6090, %v6354
  %v6356 = vpop.f32.mrb[0].mxu0
  %6357 = vmatprep.mubr.f32.mxu0 0.0
  %v6358 = vand.u32 %v4510, 4294901760
  %6359 = vmatmul.mubr.f32.gmra.mrb[0].mxu0 %v6358
  %v6360 = vpop.f32.mrb[0].mxu0
  %v6361 = vadd.f32 %v6096, %v6360
  %v6362 = vpop.f32.mrb[0].mxu0
  %6363 = vmatprep.mubr.f32.mxu0 0.0
  %v6364 = vand.u32 %v4513, 4294901760
  %6365 = vmatmul.mubr.f32.gmra.mrb[0].mxu0 %v6364
  %v6366 = vpop.f32.mrb[0].mxu0
  %v6367 = vadd.f32 %v6102, %v6366
  %v6368 = vpop.f32.mrb[0].mxu0
  %6369 = vmatprep.mubr.f32.mxu0 0.0
  %v6370 = vand.u32 %v4516, 4294901760
  %6371 = vmatmul.mubr.f32.gmra.mrb[0].mxu0 %v6370
  %v6372 = vpop.f32.mrb[0].mxu0
  %v6373 = vadd.f32 %v6108, %v6372
  %v6374 = vpop.f32.mrb[0].mxu0
  %6375 = vmatprep.mubr.f32.mxu0 0.0
  %v6376 = vand.u32 %v4519, 4294901760
  %6377 = vmatmul.mubr.f32.gmra.mrb[0].mxu0 %v6376
  %v6378 = vpop.f32.mrb[0].mxu0
  %v6379 = vadd.f32 %v6114, %v6378
  %v6380 = vpop.f32.mrb[0].mxu0
  %6381 = vmatprep.mubr.f32.mxu0 0.0
  %v6382 = vand.u32 %v4522, 4294901760
  %6383 = vmatmul.mubr.f32.gmra.mrb[0].mxu0 %v6382
  %v6384 = vpop.f32.mrb[0].mxu0
  %v6385 = vadd.f32 %v6120, %v6384
  %v6386 = vpop.f32.mrb[0].mxu0
  %6387 = vmatprep.mubr.f32.mxu0 0.0
  %v6388 = vand.u32 %v4525, 4294901760
  %6389 = vmatmul.mubr.f32.gmra.mrb[0].mxu0 %v6388
  %v6390 = vpop.f32.mrb[0].mxu0
  %v6391 = vadd.f32 %v6126, %v6390
  %v6392 = vpop.f32.mrb[0].mxu0
  %6393 = vmatprep.mubr.f32.mxu0 0.0
  %v6394 = vand.u32 %v4528, 4294901760
  %6395 = vmatmul.mubr.f32.gmra.mrb[0].mxu0 %v6394
  %v6396 = vpop.f32.mrb[0].mxu0
  %v6397 = vadd.f32 %v6132, %v6396
  %v6398 = vpop.f32.mrb[0].mxu0
  %6399 = vdwg.mxu0
  %vm6400 = vcmp.gt.f32.partialorder %v6211, 0.0
  %vm6401 = vcmp.gt.f32.partialorder %v6217, 0.0
  %vm6402 = vcmp.gt.f32.partialorder %v6223, 0.0
  %vm6403 = vcmp.gt.f32.partialorder %v6229, 0.0
  %vm6404 = vcmp.gt.f32.partialorder %v6235, 0.0
  %vm6405 = vcmp.gt.f32.partialorder %v6241, 0.0
  %vm6406 = vcmp.gt.f32.partialorder %v6247, 0.0
  %vm6407 = vcmp.gt.f32.partialorder %v6253, 0.0
  %vm6408 = vcmp.gt.f32.partialorder %v6259, 0.0
  %vm6409 = vcmp.gt.f32.partialorder %v6265, 0.0
  %vm6410 = vcmp.gt.f32.partialorder %v6271, 0.0
  %vm6411 = vcmp.gt.f32.partialorder %v6277, 0.0
  %vm6412 = vcmp.gt.f32.partialorder %v6283, 0.0
  %vm6413 = vcmp.gt.f32.partialorder %v6289, 0.0
  %vm6414 = vcmp.gt.f32.partialorder %v6295, 0.0
  %vm6415 = vcmp.gt.f32.partialorder %v6301, 0.0
  %vm6416 = vcmp.gt.f32.partialorder %v6307, 0.0
  %vm6417 = vcmp.gt.f32.partialorder %v6313, 0.0
  %vm6418 = vcmp.gt.f32.partialorder %v6319, 0.0
  %vm6419 = vcmp.gt.f32.partialorder %v6325, 0.0
  %vm6420 = vcmp.gt.f32.partialorder %v6331, 0.0
  %vm6421 = vcmp.gt.f32.partialorder %v6337, 0.0
  %vm6422 = vcmp.gt.f32.partialorder %v6343, 0.0
  %vm6423 = vcmp.gt.f32.partialorder %v6349, 0.0
  %vm6424 = vcmp.gt.f32.partialorder %v6355, 0.0
  %vm6425 = vcmp.gt.f32.partialorder %v6361, 0.0
  %vm6426 = vcmp.gt.f32.partialorder %v6367, 0.0
  %vm6427 = vcmp.gt.f32.partialorder %v6373, 0.0
  %vm6428 = vcmp.gt.f32.partialorder %v6379, 0.0
  %vm6429 = vcmp.gt.f32.partialorder %v6385, 0.0
  %vm6430 = vcmp.gt.f32.partialorder %v6391, 0.0
  %vm6431 = vcmp.gt.f32.partialorder %v6397, 0.0
  %v6432 = vmul.f32 %v6211, 1.442695
  %v6433 = vpow.pop %v6432
  %v6434 = vmul.f32 %v6217, 1.442695
  %v6435 = vpow.pop %v6434
  %v6436 = vmul.f32 %v6223, 1.442695
  %v6437 = vpow.pop %v6436
  %v6438 = vmul.f32 %v6229, 1.442695
  %v6439 = vpow.pop %v6438
  %v6440 = vmul.f32 %v6235, 1.442695
  %v6441 = vpow.pop %v6440
  %v6442 = vmul.f32 %v6241, 1.442695
  %v6443 = vpow.pop %v6442
  %v6444 = vmul.f32 %v6247, 1.442695
  %v6445 = vpow.pop %v6444
  %v6446 = vmul.f32 %v6253, 1.442695
  %v6447 = vpow.pop %v6446
  %v6448 = vmul.f32 %v6259, 1.442695
  %v6449 = vpow.pop %v6448
  %v6450 = vmul.f32 %v6265, 1.442695
  %v6451 = vpow.pop %v6450
  %v6452 = vmul.f32 %v6271, 1.442695
  %v6453 = vpow.pop %v6452
  %v6454 = vmul.f32 %v6277, 1.442695
  %v6455 = vpow.pop %v6454
  %v6456 = vmul.f32 %v6283, 1.442695
  %v6457 = vpow.pop %v6456
  %v6458 = vmul.f32 %v6289, 1.442695
  %v6459 = vpow.pop %v6458
  %v6460 = vmul.f32 %v6295, 1.442695
  %v6461 = vpow.pop %v6460
  %v6462 = vmul.f32 %v6301, 1.442695
  %v6463 = vpow.pop %v6462
  %v6464 = vmul.f32 %v6307, 1.442695
  %v6465 = vpow.pop %v6464
  %v6466 = vmul.f32 %v6313, 1.442695
  %v6467 = vpow.pop %v6466
  %v6468 = vmul.f32 %v6319, 1.442695
  %v6469 = vpow.pop %v6468
  %v6470 = vmul.f32 %v6325, 1.442695
  %v6471 = vpow.pop %v6470
  %v6472 = vmul.f32 %v6331, 1.442695
  %v6473 = vpow.pop %v6472
  %v6474 = vmul.f32 %v6337, 1.442695
  %v6475 = vpow.pop %v6474
  %v6476 = vmul.f32 %v6343, 1.442695
  %v6477 = vpow.pop %v6476
  %v6478 = vmul.f32 %v6349, 1.442695
  %v6479 = vpow.pop %v6478
  %v6480 = vmul.f32 %v6355, 1.442695
  %v6481 = vpow.pop %v6480
  %v6482 = vmul.f32 %v6361, 1.442695
  %v6483 = vpow.pop %v6482
  %v6484 = vmul.f32 %v6367, 1.442695
  %v6485 = vpow.pop %v6484
  %v6486 = vmul.f32 %v6373, 1.442695
  %v6487 = vpow.pop %v6486
  %v6488 = vmul.f32 %v6379, 1.442695
  %v6489 = vpow.pop %v6488
  %v6490 = vmul.f32 %v6385, 1.442695
  %v6491 = vpow.pop %v6490
  %v6492 = vmul.f32 %v6391, 1.442695
  %v6493 = vpow.pop %v6492
  %v6494 = vmul.f32 %v6397, 1.442695
  %v6495 = vpow.pop %v6494
  %v6496 = vsub.f32 %v6433, 1.0
  %v6497 = vsub.f32 %v6435, 1.0
  %v6498 = vsub.f32 %v6437, 1.0
  %v6499 = vsub.f32 %v6439, 1.0
  %v6500 = vsub.f32 %v6441, 1.0
  %v6501 = vsub.f32 %v6443, 1.0
  %v6502 = vsub.f32 %v6445, 1.0
  %v6503 = vsub.f32 %v6447, 1.0
  %v6504 = vsub.f32 %v6449, 1.0
  %v6505 = vsub.f32 %v6451, 1.0
  %v6506 = vsub.f32 %v6453, 1.0
  %v6507 = vsub.f32 %v6455, 1.0
  %v6508 = vsub.f32 %v6457, 1.0
  %v6509 = vsub.f32 %v6459, 1.0
  %v6510 = vsub.f32 %v6461, 1.0
  %v6511 = vsub.f32 %v6463, 1.0
  %v6512 = vsub.f32 %v6465, 1.0
  %v6513 = vsub.f32 %v6467, 1.0
  %v6514 = vsub.f32 %v6469, 1.0
  %v6515 = vsub.f32 %v6471, 1.0
  %v6516 = vsub.f32 %v6473, 1.0
  %v6517 = vsub.f32 %v6475, 1.0
  %v6518 = vsub.f32 %v6477, 1.0
  %v6519 = vsub.f32 %v6479, 1.0
  %v6520 = vsub.f32 %v6481, 1.0
  %v6521 = vsub.f32 %v6483, 1.0
  %v6522 = vsub.f32 %v6485, 1.0
  %v6523 = vsub.f32 %v6487, 1.0
  %v6524 = vsub.f32 %v6489, 1.0
  %v6525 = vsub.f32 %v6491, 1.0
  %v6526 = vsub.f32 %v6493, 1.0
  %v6527 = vsub.f32 %v6495, 1.0
  %v6528 = vsel %vm6400, %v6211, %v6496
  %v6529 = vsel %vm6401, %v6217, %v6497
  %v6530 = vsel %vm6402, %v6223, %v6498
  %v6531 = vsel %vm6403, %v6229, %v6499
  %v6532 = vsel %vm6404, %v6235, %v6500
  %v6533 = vsel %vm6405, %v6241, %v6501
  %v6534 = vsel %vm6406, %v6247, %v6502
  %v6535 = vsel %vm6407, %v6253, %v6503
  %v6536 = vsel %vm6408, %v6259, %v6504
  %v6537 = vsel %vm6409, %v6265, %v6505
  %v6538 = vsel %vm6410, %v6271, %v6506
  %v6539 = vsel %vm6411, %v6277, %v6507
  %v6540 = vsel %vm6412, %v6283, %v6508
  %v6541 = vsel %vm6413, %v6289, %v6509
  %v6542 = vsel %vm6414, %v6295, %v6510
  %v6543 = vsel %vm6415, %v6301, %v6511
  %v6544 = vsel %vm6416, %v6307, %v6512
  %v6545 = vsel %vm6417, %v6313, %v6513
  %v6546 = vsel %vm6418, %v6319, %v6514
  %v6547 = vsel %vm6419, %v6325, %v6515
  %v6548 = vsel %vm6420, %v6331, %v6516
  %v6549 = vsel %vm6421, %v6337, %v6517
  %v6550 = vsel %vm6422, %v6343, %v6518
  %v6551 = vsel %vm6423, %v6349, %v6519
  %v6552 = vsel %vm6424, %v6355, %v6520
  %v6553 = vsel %vm6425, %v6361, %v6521
  %v6554 = vsel %vm6426, %v6367, %v6522
  %v6555 = vsel %vm6427, %v6373, %v6523
  %v6556 = vsel %vm6428, %v6379, %v6524
  %v6557 = vsel %vm6429, %v6385, %v6525
  %v6558 = vsel %vm6430, %v6391, %v6526
  %v6559 = vsel %vm6431, %v6397, %v6527
  %6560 = vst.msk [vmem:[%s8] sm:$0xff] %vm2217, %v6528
  %6561 = vst.msk [vmem:[%s8 + $0x8] sm:$0xff] %vm2217, %v6529
  %6562 = vst.msk [vmem:[%s8 + $0x10] sm:$0xff] %vm2217, %v6530
  %6563 = vst.msk [vmem:[%s8 + $0x18] sm:$0xff] %vm2217, %v6531
  %6564 = vst.msk [vmem:[%s8 + $0x20] sm:$0xff] %vm2217, %v6532
  %6565 = vst.msk [vmem:[%s8 + $0x28] sm:$0xff] %vm2217, %v6533
  %6566 = vst.msk [vmem:[%s8 + $0x30] sm:$0xff] %vm2217, %v6534
  %6567 = vst.msk [vmem:[%s8 + $0x38] sm:$0xff] %vm2217, %v6535
  %6568 = vst.msk [vmem:[%s8 + $0x40] sm:$0xff] %vm2217, %v6536
  %6569 = vst.msk [vmem:[%s8 + $0x48] sm:$0xff] %vm2217, %v6537
  %6570 = vst.msk [vmem:[%s8 + $0x50] sm:$0xff] %vm2217, %v6538
  %6571 = vst.msk [vmem:[%s8 + $0x58] sm:$0xff] %vm2217, %v6539
  %6572 = vst.msk [vmem:[%s8 + $0x60] sm:$0xff] %vm2217, %v6540
  %6573 = vst.msk [vmem:[%s8 + $0x68] sm:$0xff] %vm2217, %v6541
  %6574 = vst.msk [vmem:[%s8 + $0x70] sm:$0xff] %vm2217, %v6542
  %6575 = vst.msk [vmem:[%s8 + $0x78] sm:$0xff] %vm2217, %v6543
  %6576 = vst.msk [vmem:[%s8 + $0x80] sm:$0xff] %vm2217, %v6544
  %6577 = vst.msk [vmem:[%s8 + $0x88] sm:$0xff] %vm2217, %v6545
  %6578 = vst.msk [vmem:[%s8 + $0x90] sm:$0xff] %vm2217, %v6546
  %6579 = vst.msk [vmem:[%s8 + $0x98] sm:$0xff] %vm2217, %v6547
  %6580 = vst.msk [vmem:[%s8 + $0xa0] sm:$0xff] %vm2217, %v6548
  %6581 = vst.msk [vmem:[%s8 + $0xa8] sm:$0xff] %vm2217, %v6549
  %6582 = vst.msk [vmem:[%s8 + $0xb0] sm:$0xff] %vm2217, %v6550
  %6583 = vst.msk [vmem:[%s8 + $0xb8] sm:$0xff] %vm2217, %v6551
  %6584 = vst.msk [vmem:[%s8 + $0xc0] sm:$0xff] %vm2217, %v6552
  %6585 = vst.msk [vmem:[%s8 + $0xc8] sm:$0xff] %vm2217, %v6553
  %6586 = vst.msk [vmem:[%s8 + $0xd0] sm:$0xff] %vm2217, %v6554
  %6587 = vst.msk [vmem:[%s8 + $0xd8] sm:$0xff] %vm2217, %v6555
  %6588 = vst.msk [vmem:[%s8 + $0xe0] sm:$0xff] %vm2217, %v6556
  %6589 = vst.msk [vmem:[%s8 + $0xe8] sm:$0xff] %vm2217, %v6557
  %6590 = vst.msk [vmem:[%s8 + $0xf0] sm:$0xff] %vm2217, %v6558
  %6591 = vst.msk [vmem:[%s8 + $0xf8] sm:$0xff] %vm2217, %v6559
  %v6592 = vld [vmem:[%s4] sm:$0xff]
  %v6593 = vld [vmem:[%s4 + $0x8] sm:$0xff]
  %v6594 = vld [vmem:[%s4 + $0x10] sm:$0xff]
  %v6595 = vld [vmem:[%s4 + $0x18] sm:$0xff]
  %v6596 = vld [vmem:[%s4 + $0x20] sm:$0xff]
  %v6597 = vld [vmem:[%s4 + $0x28] sm:$0xff]
  %v6598 = vld [vmem:[%s4 + $0x30] sm:$0xff]
  %v6599 = vld [vmem:[%s4 + $0x38] sm:$0xff]
  %v6600 = vld [vmem:[%s5 + $0x3] sm:$0x1]
  %v6601 = vlaneseq
  %v6602 = vshrl.u32 %v6601, 7
  %v6603 = vsub.s32 0, %v6602
  %v6604 = vrot.slane %v6600, %v6603
  %v6606 = vsel %vm2217, %v6528, 0
  %v6609 = vsel %vm2217, %v6529, 0
  %v6612 = vsel %vm2217, %v6530, 0
  %v6615 = vsel %vm2217, %v6531, 0
  %v6618 = vsel %vm2217, %v6532, 0
  %v6621 = vsel %vm2217, %v6533, 0
  %v6624 = vsel %vm2217, %v6534, 0
  %v6627 = vsel %vm2217, %v6535, 0
  %v6630 = vsel %vm2217, %v6536, 0
  %v6633 = vsel %vm2217, %v6537, 0
  %v6636 = vsel %vm2217, %v6538, 0
  %v6639 = vsel %vm2217, %v6539, 0
  %v6642 = vsel %vm2217, %v6540, 0
  %v6645 = vsel %vm2217, %v6541, 0
  %v6648 = vsel %vm2217, %v6542, 0
  %v6651 = vsel %vm2217, %v6543, 0
  %v6654 = vsel %vm2217, %v6544, 0
  %v6657 = vsel %vm2217, %v6545, 0
  %v6660 = vsel %vm2217, %v6546, 0
  %v6663 = vsel %vm2217, %v6547, 0
  %v6666 = vsel %vm2217, %v6548, 0
  %v6669 = vsel %vm2217, %v6549, 0
  %v6672 = vsel %vm2217, %v6550, 0
  %v6675 = vsel %vm2217, %v6551, 0
  %v6678 = vsel %vm2217, %v6552, 0
  %v6681 = vsel %vm2217, %v6553, 0
  %v6684 = vsel %vm2217, %v6554, 0
  %v6687 = vsel %vm2217, %v6555, 0
  %v6690 = vsel %vm2217, %v6556, 0
  %v6693 = vsel %vm2217, %v6557, 0
  %v6696 = vsel %vm2217, %v6558, 0
  %v6699 = vsel %vm2217, %v6559, 0
  %6701 = vmatprep.subr.mxu0 0.0
  %v6702 = vand.u32 %v6592, 4294901760
  %6703 = vmatpush1.msra.mxu0 %v6702
  %6704 = vmatprep.subr.mxu0 0.0
  %v6705 = vand.u32 %v6593, 4294901760
  %6706 = vmatpush1.msra.mxu0 %v6705
  %6707 = vmatprep.subr.mxu0 0.0
  %v6708 = vand.u32 %v6594, 4294901760
  %6709 = vmatpush1.msra.mxu0 %v6708
  %6710 = vmatprep.subr.mxu0 0.0
  %v6711 = vand.u32 %v6595, 4294901760
  %6712 = vmatpush1.msra.mxu0 %v6711
  %6713 = vmatprep.subr.mxu0 0.0
  %v6714 = vand.u32 %v6596, 4294901760
  %6715 = vmatpush1.msra.mxu0 %v6714
  %6716 = vmatprep.subr.mxu0 0.0
  %v6717 = vand.u32 %v6597, 4294901760
  %6718 = vmatpush1.msra.mxu0 %v6717
  %6719 = vmatprep.subr.mxu0 0.0
  %v6720 = vand.u32 %v6598, 4294901760
  %6721 = vmatpush1.msra.mxu0 %v6720
  %6722 = vmatprep.subr.mxu0 0.0
  %v6723 = vand.u32 %v6599, 4294901760
  %6724 = vmatpush1.msra.mxu0 %v6723
  %6725 = vmatprep.subr.mxu0 0.0
  %6726 = vmatpush1.msra.mxu0 0.0
  %6727 = vmatprep.subr.mxu0 0.0
  %6728 = vmatpush1.msra.mxu0 0.0
  %6729 = vmatprep.subr.mxu0 0.0
  %6730 = vmatpush1.msra.mxu0 0.0
  %6731 = vmatprep.subr.mxu0 0.0
  %6732 = vmatpush1.msra.mxu0 0.0
  %6733 = vmatprep.subr.mxu0 0.0
  %6734 = vmatpush1.msra.mxu0 0.0
  %6735 = vmatprep.subr.mxu0 0.0
  %6736 = vmatpush1.msra.mxu0 0.0
  %6737 = vmatprep.subr.mxu0 0.0
  %6738 = vmatpush1.msra.mxu0 0.0
  %6739 = vmatprep.subr.mxu0 0.0
  %6740 = vmatpush1.msra.mxu0 0.0
  %6741 = vmatprep.subr.mxu0 0.0
  %6742 = vmatpush1.msra.mxu0 0.0
  %6743 = vmatprep.subr.mxu0 0.0
  %6744 = vmatpush1.msra.mxu0 0.0
  %6745 = vmatprep.subr.mxu0 0.0
  %6746 = vmatpush1.msra.mxu0 0.0
  %6747 = vmatprep.subr.mxu0 0.0
  %6748 = vmatpush1.msra.mxu0 0.0
  %6749 = vmatprep.subr.mxu0 0.0
  %6750 = vmatpush1.msra.mxu0 0.0
  %6751 = vmatprep.subr.mxu0 0.0
  %6752 = vmatpush1.msra.mxu0 0.0
  %6753 = vmatprep.subr.mxu0 0.0
  %6754 = vmatpush1.msra.mxu0 0.0
  %6755 = vmatprep.subr.mxu0 0.0
  %6756 = vmatpush1.msra.mxu0 0.0
  %6757 = vmatprep.subr.mxu0 0.0
  %6758 = vmatpush1.msra.mxu0 0.0
  %6759 = vmatprep.subr.mxu0 0.0
  %6760 = vmatpush1.msra.mxu0 0.0
  %6761 = vmatprep.subr.mxu0 0.0
  %6762 = vmatpush1.msra.mxu0 0.0
  %6763 = vmatprep.subr.mxu0 0.0
  %6764 = vmatpush1.msra.mxu0 0.0
  %6765 = vmatprep.subr.mxu0 0.0
  %6766 = vmatpush1.msra.mxu0 0.0
  %6767 = vmatprep.subr.mxu0 0.0
  %6768 = vmatpush1.msra.mxu0 0.0
  %6769 = vmatprep.subr.mxu0 0.0
  %6770 = vmatpush1.msra.mxu0 0.0
  %6771 = vmatprep.subr.mxu0 0.0
  %6772 = vmatpush1.msra.mxu0 0.0
  %6773 = vmatprep.mubr.f32.mxu0 0.0
  %v6774 = vand.u32 %v6606, 4294901760
  %v6775 = vsub.f32 %v6606, %v6774
  %v6776 = vand.u32 %v6775, 4294901760
  %v6777 = vsub.f32 %v6775, %v6776
  %v6778 = vand.u32 %v6777, 4294901760
  %6779 = vmatmul.mubr.f32.gmra.mrb[0].mxu0 %v6778
  %v6780 = vpop.f32.mrb[0].mxu0
  %v6781 = vadd.f32 %v6604, %v6780
  %v6782 = vpop.f32.mrb[0].mxu0
  %6783 = vmatprep.mubr.f32.mxu0 0.0
  %v6784 = vand.u32 %v6609, 4294901760
  %v6785 = vsub.f32 %v6609, %v6784
  %v6786 = vand.u32 %v6785, 4294901760
  %v6787 = vsub.f32 %v6785, %v6786
  %v6788 = vand.u32 %v6787, 4294901760
  %6789 = vmatmul.mubr.f32.gmra.mrb[0].mxu0 %v6788
  %v6790 = vpop.f32.mrb[0].mxu0
  %v6791 = vadd.f32 %v6604, %v6790
  %v6792 = vpop.f32.mrb[0].mxu0
  %6793 = vmatprep.mubr.f32.mxu0 0.0
  %v6794 = vand.u32 %v6612, 4294901760
  %v6795 = vsub.f32 %v6612, %v6794
  %v6796 = vand.u32 %v6795, 4294901760
  %v6797 = vsub.f32 %v6795, %v6796
  %v6798 = vand.u32 %v6797, 4294901760
  %6799 = vmatmul.mubr.f32.gmra.mrb[0].mxu0 %v6798
  %v6800 = vpop.f32.mrb[0].mxu0
  %v6801 = vadd.f32 %v6604, %v6800
  %v6802 = vpop.f32.mrb[0].mxu0
  %6803 = vmatprep.mubr.f32.mxu0 0.0
  %v6804 = vand.u32 %v6615, 4294901760
  %v6805 = vsub.f32 %v6615, %v6804
  %v6806 = vand.u32 %v6805, 4294901760
  %v6807 = vsub.f32 %v6805, %v6806
  %v6808 = vand.u32 %v6807, 4294901760
  %6809 = vmatmul.mubr.f32.gmra.mrb[0].mxu0 %v6808
  %v6810 = vpop.f32.mrb[0].mxu0
  %v6811 = vadd.f32 %v6604, %v6810
  %v6812 = vpop.f32.mrb[0].mxu0
  %6813 = vmatprep.mubr.f32.mxu0 0.0
  %v6814 = vand.u32 %v6618, 4294901760
  %v6815 = vsub.f32 %v6618, %v6814
  %v6816 = vand.u32 %v6815, 4294901760
  %v6817 = vsub.f32 %v6815, %v6816
  %v6818 = vand.u32 %v6817, 4294901760
  %6819 = vmatmul.mubr.f32.gmra.mrb[0].mxu0 %v6818
  %v6820 = vpop.f32.mrb[0].mxu0
  %v6821 = vadd.f32 %v6604, %v6820
  %v6822 = vpop.f32.mrb[0].mxu0
  %6823 = vmatprep.mubr.f32.mxu0 0.0
  %v6824 = vand.u32 %v6621, 4294901760
  %v6825 = vsub.f32 %v6621, %v6824
  %v6826 = vand.u32 %v6825, 4294901760
  %v6827 = vsub.f32 %v6825, %v6826
  %v6828 = vand.u32 %v6827, 4294901760
  %6829 = vmatmul.mubr.f32.gmra.mrb[0].mxu0 %v6828
  %v6830 = vpop.f32.mrb[0].mxu0
  %v6831 = vadd.f32 %v6604, %v6830
  %v6832 = vpop.f32.mrb[0].mxu0
  %6833 = vmatprep.mubr.f32.mxu0 0.0
  %v6834 = vand.u32 %v6624, 4294901760
  %v6835 = vsub.f32 %v6624, %v6834
  %v6836 = vand.u32 %v6835, 4294901760
  %v6837 = vsub.f32 %v6835, %v6836
  %v6838 = vand.u32 %v6837, 4294901760
  %6839 = vmatmul.mubr.f32.gmra.mrb[0].mxu0 %v6838
  %v6840 = vpop.f32.mrb[0].mxu0
  %v6841 = vadd.f32 %v6604, %v6840
  %v6842 = vpop.f32.mrb[0].mxu0
  %6843 = vmatprep.mubr.f32.mxu0 0.0
  %v6844 = vand.u32 %v6627, 4294901760
  %v6845 = vsub.f32 %v6627, %v6844
  %v6846 = vand.u32 %v6845, 4294901760
  %v6847 = vsub.f32 %v6845, %v6846
  %v6848 = vand.u32 %v6847, 4294901760
  %6849 = vmatmul.mubr.f32.gmra.mrb[0].mxu0 %v6848
  %v6850 = vpop.f32.mrb[0].mxu0
  %v6851 = vadd.f32 %v6604, %v6850
  %v6852 = vpop.f32.mrb[0].mxu0
  %6853 = vmatprep.mubr.f32.mxu0 0.0
  %v6854 = vand.u32 %v6630, 4294901760
  %v6855 = vsub.f32 %v6630, %v6854
  %v6856 = vand.u32 %v6855, 4294901760
  %v6857 = vsub.f32 %v6855, %v6856
  %v6858 = vand.u32 %v6857, 4294901760
  %6859 = vmatmul.mubr.f32.gmra.mrb[0].mxu0 %v6858
  %v6860 = vpop.f32.mrb[0].mxu0
  %v6861 = vadd.f32 %v6604, %v6860
  %v6862 = vpop.f32.mrb[0].mxu0
  %6863 = vmatprep.mubr.f32.mxu0 0.0
  %v6864 = vand.u32 %v6633, 4294901760
  %v6865 = vsub.f32 %v6633, %v6864
  %v6866 = vand.u32 %v6865, 4294901760
  %v6867 = vsub.f32 %v6865, %v6866
  %v6868 = vand.u32 %v6867, 4294901760
  %6869 = vmatmul.mubr.f32.gmra.mrb[0].mxu0 %v6868
  %v6870 = vpop.f32.mrb[0].mxu0
  %v6871 = vadd.f32 %v6604, %v6870
  %v6872 = vpop.f32.mrb[0].mxu0
  %6873 = vmatprep.mubr.f32.mxu0 0.0
  %v6874 = vand.u32 %v6636, 4294901760
  %v6875 = vsub.f32 %v6636, %v6874
  %v6876 = vand.u32 %v6875, 4294901760
  %v6877 = vsub.f32 %v6875, %v6876
  %v6878 = vand.u32 %v6877, 4294901760
  %6879 = vmatmul.mubr.f32.gmra.mrb[0].mxu0 %v6878
  %v6880 = vpop.f32.mrb[0].mxu0
  %v6881 = vadd.f32 %v6604, %v6880
  %v6882 = vpop.f32.mrb[0].mxu0
  %6883 = vmatprep.mubr.f32.mxu0 0.0
  %v6884 = vand.u32 %v6639, 4294901760
  %v6885 = vsub.f32 %v6639, %v6884
  %v6886 = vand.u32 %v6885, 4294901760
  %v6887 = vsub.f32 %v6885, %v6886
  %v6888 = vand.u32 %v6887, 4294901760
  %6889 = vmatmul.mubr.f32.gmra.mrb[0].mxu0 %v6888
  %v6890 = vpop.f32.mrb[0].mxu0
  %v6891 = vadd.f32 %v6604, %v6890
  %v6892 = vpop.f32.mrb[0].mxu0
  %6893 = vmatprep.mubr.f32.mxu0 0.0
  %v6894 = vand.u32 %v6642, 4294901760
  %v6895 = vsub.f32 %v6642, %v6894
  %v6896 = vand.u32 %v6895, 4294901760
  %v6897 = vsub.f32 %v6895, %v6896
  %v6898 = vand.u32 %v6897, 4294901760
  %6899 = vmatmul.mubr.f32.gmra.mrb[0].mxu0 %v6898
  %v6900 = vpop.f32.mrb[0].mxu0
  %v6901 = vadd.f32 %v6604, %v6900
  %v6902 = vpop.f32.mrb[0].mxu0
  %6903 = vmatprep.mubr.f32.mxu0 0.0
  %v6904 = vand.u32 %v6645, 4294901760
  %v6905 = vsub.f32 %v6645, %v6904
  %v6906 = vand.u32 %v6905, 4294901760
  %v6907 = vsub.f32 %v6905, %v6906
  %v6908 = vand.u32 %v6907, 4294901760
  %6909 = vmatmul.mubr.f32.gmra.mrb[0].mxu0 %v6908
  %v6910 = vpop.f32.mrb[0].mxu0
  %v6911 = vadd.f32 %v6604, %v6910
  %v6912 = vpop.f32.mrb[0].mxu0
  %6913 = vmatprep.mubr.f32.mxu0 0.0
  %v6914 = vand.u32 %v6648, 4294901760
  %v6915 = vsub.f32 %v6648, %v6914
  %v6916 = vand.u32 %v6915, 4294901760
  %v6917 = vsub.f32 %v6915, %v6916
  %v6918 = vand.u32 %v6917, 4294901760
  %6919 = vmatmul.mubr.f32.gmra.mrb[0].mxu0 %v6918
  %v6920 = vpop.f32.mrb[0].mxu0
  %v6921 = vadd.f32 %v6604, %v6920
  %v6922 = vpop.f32.mrb[0].mxu0
  %6923 = vmatprep.mubr.f32.mxu0 0.0
  %v6924 = vand.u32 %v6651, 4294901760
  %v6925 = vsub.f32 %v6651, %v6924
  %v6926 = vand.u32 %v6925, 4294901760
  %v6927 = vsub.f32 %v6925, %v6926
  %v6928 = vand.u32 %v6927, 4294901760
  %6929 = vmatmul.mubr.f32.gmra.mrb[0].mxu0 %v6928
  %v6930 = vpop.f32.mrb[0].mxu0
  %v6931 = vadd.f32 %v6604, %v6930
  %v6932 = vpop.f32.mrb[0].mxu0
  %6933 = vmatprep.mubr.f32.mxu0 0.0
  %v6934 = vand.u32 %v6654, 4294901760
  %v6935 = vsub.f32 %v6654, %v6934
  %v6936 = vand.u32 %v6935, 4294901760
  %v6937 = vsub.f32 %v6935, %v6936
  %v6938 = vand.u32 %v6937, 4294901760
  %6939 = vmatmul.mubr.f32.gmra.mrb[0].mxu0 %v6938
  %v6940 = vpop.f32.mrb[0].mxu0
  %v6941 = vadd.f32 %v6604, %v6940
  %v6942 = vpop.f32.mrb[0].mxu0
  %6943 = vmatprep.mubr.f32.mxu0 0.0
  %v6944 = vand.u32 %v6657, 4294901760
  %v6945 = vsub.f32 %v6657, %v6944
  %v6946 = vand.u32 %v6945, 4294901760
  %v6947 = vsub.f32 %v6945, %v6946
  %v6948 = vand.u32 %v6947, 4294901760
  %6949 = vmatmul.mubr.f32.gmra.mrb[0].mxu0 %v6948
  %v6950 = vpop.f32.mrb[0].mxu0
  %v6951 = vadd.f32 %v6604, %v6950
  %v6952 = vpop.f32.mrb[0].mxu0
  %6953 = vmatprep.mubr.f32.mxu0 0.0
  %v6954 = vand.u32 %v6660, 4294901760
  %v6955 = vsub.f32 %v6660, %v6954
  %v6956 = vand.u32 %v6955, 4294901760
  %v6957 = vsub.f32 %v6955, %v6956
  %v6958 = vand.u32 %v6957, 4294901760
  %6959 = vmatmul.mubr.f32.gmra.mrb[0].mxu0 %v6958
  %v6960 = vpop.f32.mrb[0].mxu0
  %v6961 = vadd.f32 %v6604, %v6960
  %v6962 = vpop.f32.mrb[0].mxu0
  %6963 = vmatprep.mubr.f32.mxu0 0.0
  %v6964 = vand.u32 %v6663, 4294901760
  %v6965 = vsub.f32 %v6663, %v6964
  %v6966 = vand.u32 %v6965, 4294901760
  %v6967 = vsub.f32 %v6965, %v6966
  %v6968 = vand.u32 %v6967, 4294901760
  %6969 = vmatmul.mubr.f32.gmra.mrb[0].mxu0 %v6968
  %v6970 = vpop.f32.mrb[0].mxu0
  %v6971 = vadd.f32 %v6604, %v6970
  %v6972 = vpop.f32.mrb[0].mxu0
  %6973 = vmatprep.mubr.f32.mxu0 0.0
  %v6974 = vand.u32 %v6666, 4294901760
  %v6975 = vsub.f32 %v6666, %v6974
  %v6976 = vand.u32 %v6975, 4294901760
  %v6977 = vsub.f32 %v6975, %v6976
  %v6978 = vand.u32 %v6977, 4294901760
  %6979 = vmatmul.mubr.f32.gmra.mrb[0].mxu0 %v6978
  %v6980 = vpop.f32.mrb[0].mxu0
  %v6981 = vadd.f32 %v6604, %v6980
  %v6982 = vpop.f32.mrb[0].mxu0
  %6983 = vmatprep.mubr.f32.mxu0 0.0
  %v6984 = vand.u32 %v6669, 4294901760
  %v6985 = vsub.f32 %v6669, %v6984
  %v6986 = vand.u32 %v6985, 4294901760
  %v6987 = vsub.f32 %v6985, %v6986
  %v6988 = vand.u32 %v6987, 4294901760
  %6989 = vmatmul.mubr.f32.gmra.mrb[0].mxu0 %v6988
  %v6990 = vpop.f32.mrb[0].mxu0
  %v6991 = vadd.f32 %v6604, %v6990
  %v6992 = vpop.f32.mrb[0].mxu0
  %6993 = vmatprep.mubr.f32.mxu0 0.0
  %v6994 = vand.u32 %v6672, 4294901760
  %v6995 = vsub.f32 %v6672, %v6994
  %v6996 = vand.u32 %v6995, 4294901760
  %v6997 = vsub.f32 %v6995, %v6996
  %v6998 = vand.u32 %v6997, 4294901760
  %6999 = vmatmul.mubr.f32.gmra.mrb[0].mxu0 %v6998
  %v7000 = vpop.f32.mrb[0].mxu0
  %v7001 = vadd.f32 %v6604, %v7000
  %v7002 = vpop.f32.mrb[0].mxu0
  %7003 = vmatprep.mubr.f32.mxu0 0.0
  %v7004 = vand.u32 %v6675, 4294901760
  %v7005 = vsub.f32 %v6675, %v7004
  %v7006 = vand.u32 %v7005, 4294901760
  %v7007 = vsub.f32 %v7005, %v7006
  %v7008 = vand.u32 %v7007, 4294901760
  %7009 = vmatmul.mubr.f32.gmra.mrb[0].mxu0 %v7008
  %v7010 = vpop.f32.mrb[0].mxu0
  %v7011 = vadd.f32 %v6604, %v7010
  %v7012 = vpop.f32.mrb[0].mxu0
  %7013 = vmatprep.mubr.f32.mxu0 0.0
  %v7014 = vand.u32 %v6678, 4294901760
  %v7015 = vsub.f32 %v6678, %v7014
  %v7016 = vand.u32 %v7015, 4294901760
  %v7017 = vsub.f32 %v7015, %v7016
  %v7018 = vand.u32 %v7017, 4294901760
  %7019 = vmatmul.mubr.f32.gmra.mrb[0].mxu0 %v7018
  %v7020 = vpop.f32.mrb[0].mxu0
  %v7021 = vadd.f32 %v6604, %v7020
  %v7022 = vpop.f32.mrb[0].mxu0
  %7023 = vmatprep.mubr.f32.mxu0 0.0
  %v7024 = vand.u32 %v6681, 4294901760
  %v7025 = vsub.f32 %v6681, %v7024
  %v7026 = vand.u32 %v7025, 4294901760
  %v7027 = vsub.f32 %v7025, %v7026
  %v7028 = vand.u32 %v7027, 4294901760
  %7029 = vmatmul.mubr.f32.gmra.mrb[0].mxu0 %v7028
  %v7030 = vpop.f32.mrb[0].mxu0
  %v7031 = vadd.f32 %v6604, %v7030
  %v7032 = vpop.f32.mrb[0].mxu0
  %7033 = vmatprep.mubr.f32.mxu0 0.0
  %v7034 = vand.u32 %v6684, 4294901760
  %v7035 = vsub.f32 %v6684, %v7034
  %v7036 = vand.u32 %v7035, 4294901760
  %v7037 = vsub.f32 %v7035, %v7036
  %v7038 = vand.u32 %v7037, 4294901760
  %7039 = vmatmul.mubr.f32.gmra.mrb[0].mxu0 %v7038
  %v7040 = vpop.f32.mrb[0].mxu0
  %v7041 = vadd.f32 %v6604, %v7040
  %v7042 = vpop.f32.mrb[0].mxu0
  %7043 = vmatprep.mubr.f32.mxu0 0.0
  %v7044 = vand.u32 %v6687, 4294901760
  %v7045 = vsub.f32 %v6687, %v7044
  %v7046 = vand.u32 %v7045, 4294901760
  %v7047 = vsub.f32 %v7045, %v7046
  %v7048 = vand.u32 %v7047, 4294901760
  %7049 = vmatmul.mubr.f32.gmra.mrb[0].mxu0 %v7048
  %v7050 = vpop.f32.mrb[0].mxu0
  %v7051 = vadd.f32 %v6604, %v7050
  %v7052 = vpop.f32.mrb[0].mxu0
  %7053 = vmatprep.mubr.f32.mxu0 0.0
  %v7054 = vand.u32 %v6690, 4294901760
  %v7055 = vsub.f32 %v6690, %v7054
  %v7056 = vand.u32 %v7055, 4294901760
  %v7057 = vsub.f32 %v7055, %v7056
  %v7058 = vand.u32 %v7057, 4294901760
  %7059 = vmatmul.mubr.f32.gmra.mrb[0].mxu0 %v7058
  %v7060 = vpop.f32.mrb[0].mxu0
  %v7061 = vadd.f32 %v6604, %v7060
  %v7062 = vpop.f32.mrb[0].mxu0
  %7063 = vmatprep.mubr.f32.mxu0 0.0
  %v7064 = vand.u32 %v6693, 4294901760
  %v7065 = vsub.f32 %v6693, %v7064
  %v7066 = vand.u32 %v7065, 4294901760
  %v7067 = vsub.f32 %v7065, %v7066
  %v7068 = vand.u32 %v7067, 4294901760
  %7069 = vmatmul.mubr.f32.gmra.mrb[0].mxu0 %v7068
  %v7070 = vpop.f32.mrb[0].mxu0
  %v7071 = vadd.f32 %v6604, %v7070
  %v7072 = vpop.f32.mrb[0].mxu0
  %7073 = vmatprep.mubr.f32.mxu0 0.0
  %v7074 = vand.u32 %v6696, 4294901760
  %v7075 = vsub.f32 %v6696, %v7074
  %v7076 = vand.u32 %v7075, 4294901760
  %v7077 = vsub.f32 %v7075, %v7076
  %v7078 = vand.u32 %v7077, 4294901760
  %7079 = vmatmul.mubr.f32.gmra.mrb[0].mxu0 %v7078
  %v7080 = vpop.f32.mrb[0].mxu0
  %v7081 = vadd.f32 %v6604, %v7080
  %v7082 = vpop.f32.mrb[0].mxu0
  %7083 = vmatprep.mubr.f32.mxu0 0.0
  %v7084 = vand.u32 %v6699, 4294901760
  %v7085 = vsub.f32 %v6699, %v7084
  %v7086 = vand.u32 %v7085, 4294901760
  %v7087 = vsub.f32 %v7085, %v7086
  %v7088 = vand.u32 %v7087, 4294901760
  %7089 = vmatmul.mubr.f32.gmra.mrb[0].mxu0 %v7088
  %v7090 = vpop.f32.mrb[0].mxu0
  %v7091 = vadd.f32 %v6604, %v7090
  %v7092 = vpop.f32.mrb[0].mxu0
  %7093 = vdwg.mxu0
  %7094 = vmatprep.subr.mxu0 0.0
  %v7095 = vand.u32 %v6592, 4294901760
  %v7096 = vsub.f32 %v6592, %v7095
  %v7097 = vand.u32 %v7096, 4294901760
  %v7098 = vsub.f32 %v7096, %v7097
  %v7099 = vand.u32 %v7098, 4294901760
  %7100 = vmatpush1.msra.mxu0 %v7099
  %7101 = vmatprep.subr.mxu0 0.0
  %v7102 = vand.u32 %v6593, 4294901760
  %v7103 = vsub.f32 %v6593, %v7102
  %v7104 = vand.u32 %v7103, 4294901760
  %v7105 = vsub.f32 %v7103, %v7104
  %v7106 = vand.u32 %v7105, 4294901760
  %7107 = vmatpush1.msra.mxu0 %v7106
  %7108 = vmatprep.subr.mxu0 0.0
  %v7109 = vand.u32 %v6594, 4294901760
  %v7110 = vsub.f32 %v6594, %v7109
  %v7111 = vand.u32 %v7110, 4294901760
  %v7112 = vsub.f32 %v7110, %v7111
  %v7113 = vand.u32 %v7112, 4294901760
  %7114 = vmatpush1.msra.mxu0 %v7113
  %7115 = vmatprep.subr.mxu0 0.0
  %v7116 = vand.u32 %v6595, 4294901760
  %v7117 = vsub.f32 %v6595, %v7116
  %v7118 = vand.u32 %v7117, 4294901760
  %v7119 = vsub.f32 %v7117, %v7118
  %v7120 = vand.u32 %v7119, 4294901760
  %7121 = vmatpush1.msra.mxu0 %v7120
  %7122 = vmatprep.subr.mxu0 0.0
  %v7123 = vand.u32 %v6596, 4294901760
  %v7124 = vsub.f32 %v6596, %v7123
  %v7125 = vand.u32 %v7124, 4294901760
  %v7126 = vsub.f32 %v7124, %v7125
  %v7127 = vand.u32 %v7126, 4294901760
  %7128 = vmatpush1.msra.mxu0 %v7127
  %7129 = vmatprep.subr.mxu0 0.0
  %v7130 = vand.u32 %v6597, 4294901760
  %v7131 = vsub.f32 %v6597, %v7130
  %v7132 = vand.u32 %v7131, 4294901760
  %v7133 = vsub.f32 %v7131, %v7132
  %v7134 = vand.u32 %v7133, 4294901760
  %7135 = vmatpush1.msra.mxu0 %v7134
  %7136 = vmatprep.subr.mxu0 0.0
  %v7137 = vand.u32 %v6598, 4294901760
  %v7138 = vsub.f32 %v6598, %v7137
  %v7139 = vand.u32 %v7138, 4294901760
  %v7140 = vsub.f32 %v7138, %v7139
  %v7141 = vand.u32 %v7140, 4294901760
  %7142 = vmatpush1.msra.mxu0 %v7141
  %7143 = vmatprep.subr.mxu0 0.0
  %v7144 = vand.u32 %v6599, 4294901760
  %v7145 = vsub.f32 %v6599, %v7144
  %v7146 = vand.u32 %v7145, 4294901760
  %v7147 = vsub.f32 %v7145, %v7146
  %v7148 = vand.u32 %v7147, 4294901760
  %7149 = vmatpush1.msra.mxu0 %v7148
  %7150 = vmatprep.subr.mxu0 0.0
  %7151 = vmatpush1.msra.mxu0 0.0
  %7152 = vmatprep.subr.mxu0 0.0
  %7153 = vmatpush1.msra.mxu0 0.0
  %7154 = vmatprep.subr.mxu0 0.0
  %7155 = vmatpush1.msra.mxu0 0.0
  %7156 = vmatprep.subr.mxu0 0.0
  %7157 = vmatpush1.msra.mxu0 0.0
  %7158 = vmatprep.subr.mxu0 0.0
  %7159 = vmatpush1.msra.mxu0 0.0
  %7160 = vmatprep.subr.mxu0 0.0
  %7161 = vmatpush1.msra.mxu0 0.0
  %7162 = vmatprep.subr.mxu0 0.0
  %7163 = vmatpush1.msra.mxu0 0.0
  %7164 = vmatprep.subr.mxu0 0.0
  %7165 = vmatpush1.msra.mxu0 0.0
  %7166 = vmatprep.subr.mxu0 0.0
  %7167 = vmatpush1.msra.mxu0 0.0
  %7168 = vmatprep.subr.mxu0 0.0
  %7169 = vmatpush1.msra.mxu0 0.0
  %7170 = vmatprep.subr.mxu0 0.0
  %7171 = vmatpush1.msra.mxu0 0.0
  %7172 = vmatprep.subr.mxu0 0.0
  %7173 = vmatpush1.msra.mxu0 0.0
  %7174 = vmatprep.subr.mxu0 0.0
  %7175 = vmatpush1.msra.mxu0 0.0
  %7176 = vmatprep.subr.mxu0 0.0
  %7177 = vmatpush1.msra.mxu0 0.0
  %7178 = vmatprep.subr.mxu0 0.0
  %7179 = vmatpush1.msra.mxu0 0.0
  %7180 = vmatprep.subr.mxu0 0.0
  %7181 = vmatpush1.msra.mxu0 0.0
  %7182 = vmatprep.subr.mxu0 0.0
  %7183 = vmatpush1.msra.mxu0 0.0
  %7184 = vmatprep.subr.mxu0 0.0
  %7185 = vmatpush1.msra.mxu0 0.0
  %7186 = vmatprep.subr.mxu0 0.0
  %7187 = vmatpush1.msra.mxu0 0.0
  %7188 = vmatprep.subr.mxu0 0.0
  %7189 = vmatpush1.msra.mxu0 0.0
  %7190 = vmatprep.subr.mxu0 0.0
  %7191 = vmatpush1.msra.mxu0 0.0
  %7192 = vmatprep.subr.mxu0 0.0
  %7193 = vmatpush1.msra.mxu0 0.0
  %7194 = vmatprep.subr.mxu0 0.0
  %7195 = vmatpush1.msra.mxu0 0.0
  %7196 = vmatprep.subr.mxu0 0.0
  %7197 = vmatpush1.msra.mxu0 0.0
  %7198 = vmatprep.mubr.f32.mxu0 0.0
  %v7199 = vand.u32 %v6606, 4294901760
  %7200 = vmatmul.mubr.f32.gmra.mrb[0].mxu0 %v7199
  %v7201 = vpop.f32.mrb[0].mxu0
  %v7202 = vadd.f32 %v6781, %v7201
  %v7203 = vpop.f32.mrb[0].mxu0
  %7204 = vmatprep.mubr.f32.mxu0 0.0
  %v7205 = vand.u32 %v6609, 4294901760
  %7206 = vmatmul.mubr.f32.gmra.mrb[0].mxu0 %v7205
  %v7207 = vpop.f32.mrb[0].mxu0
  %v7208 = vadd.f32 %v6791, %v7207
  %v7209 = vpop.f32.mrb[0].mxu0
  %7210 = vmatprep.mubr.f32.mxu0 0.0
  %v7211 = vand.u32 %v6612, 4294901760
  %7212 = vmatmul.mubr.f32.gmra.mrb[0].mxu0 %v7211
  %v7213 = vpop.f32.mrb[0].mxu0
  %v7214 = vadd.f32 %v6801, %v7213
  %v7215 = vpop.f32.mrb[0].mxu0
  %7216 = vmatprep.mubr.f32.mxu0 0.0
  %v7217 = vand.u32 %v6615, 4294901760
  %7218 = vmatmul.mubr.f32.gmra.mrb[0].mxu0 %v7217
  %v7219 = vpop.f32.mrb[0].mxu0
  %v7220 = vadd.f32 %v6811, %v7219
  %v7221 = vpop.f32.mrb[0].mxu0
  %7222 = vmatprep.mubr.f32.mxu0 0.0
  %v7223 = vand.u32 %v6618, 4294901760
  %7224 = vmatmul.mubr.f32.gmra.mrb[0].mxu0 %v7223
  %v7225 = vpop.f32.mrb[0].mxu0
  %v7226 = vadd.f32 %v6821, %v7225
  %v7227 = vpop.f32.mrb[0].mxu0
  %7228 = vmatprep.mubr.f32.mxu0 0.0
  %v7229 = vand.u32 %v6621, 4294901760
  %7230 = vmatmul.mubr.f32.gmra.mrb[0].mxu0 %v7229
  %v7231 = vpop.f32.mrb[0].mxu0
  %v7232 = vadd.f32 %v6831, %v7231
  %v7233 = vpop.f32.mrb[0].mxu0
  %7234 = vmatprep.mubr.f32.mxu0 0.0
  %v7235 = vand.u32 %v6624, 4294901760
  %7236 = vmatmul.mubr.f32.gmra.mrb[0].mxu0 %v7235
  %v7237 = vpop.f32.mrb[0].mxu0
  %v7238 = vadd.f32 %v6841, %v7237
  %v7239 = vpop.f32.mrb[0].mxu0
  %7240 = vmatprep.mubr.f32.mxu0 0.0
  %v7241 = vand.u32 %v6627, 4294901760
  %7242 = vmatmul.mubr.f32.gmra.mrb[0].mxu0 %v7241
  %v7243 = vpop.f32.mrb[0].mxu0
  %v7244 = vadd.f32 %v6851, %v7243
  %v7245 = vpop.f32.mrb[0].mxu0
  %7246 = vmatprep.mubr.f32.mxu0 0.0
  %v7247 = vand.u32 %v6630, 4294901760
  %7248 = vmatmul.mubr.f32.gmra.mrb[0].mxu0 %v7247
  %v7249 = vpop.f32.mrb[0].mxu0
  %v7250 = vadd.f32 %v6861, %v7249
  %v7251 = vpop.f32.mrb[0].mxu0
  %7252 = vmatprep.mubr.f32.mxu0 0.0
  %v7253 = vand.u32 %v6633, 4294901760
  %7254 = vmatmul.mubr.f32.gmra.mrb[0].mxu0 %v7253
  %v7255 = vpop.f32.mrb[0].mxu0
  %v7256 = vadd.f32 %v6871, %v7255
  %v7257 = vpop.f32.mrb[0].mxu0
  %7258 = vmatprep.mubr.f32.mxu0 0.0
  %v7259 = vand.u32 %v6636, 4294901760
  %7260 = vmatmul.mubr.f32.gmra.mrb[0].mxu0 %v7259
  %v7261 = vpop.f32.mrb[0].mxu0
  %v7262 = vadd.f32 %v6881, %v7261
  %v7263 = vpop.f32.mrb[0].mxu0
  %7264 = vmatprep.mubr.f32.mxu0 0.0
  %v7265 = vand.u32 %v6639, 4294901760
  %7266 = vmatmul.mubr.f32.gmra.mrb[0].mxu0 %v7265
  %v7267 = vpop.f32.mrb[0].mxu0
  %v7268 = vadd.f32 %v6891, %v7267
  %v7269 = vpop.f32.mrb[0].mxu0
  %7270 = vmatprep.mubr.f32.mxu0 0.0
  %v7271 = vand.u32 %v6642, 4294901760
  %7272 = vmatmul.mubr.f32.gmra.mrb[0].mxu0 %v7271
  %v7273 = vpop.f32.mrb[0].mxu0
  %v7274 = vadd.f32 %v6901, %v7273
  %v7275 = vpop.f32.mrb[0].mxu0
  %7276 = vmatprep.mubr.f32.mxu0 0.0
  %v7277 = vand.u32 %v6645, 4294901760
  %7278 = vmatmul.mubr.f32.gmra.mrb[0].mxu0 %v7277
  %v7279 = vpop.f32.mrb[0].mxu0
  %v7280 = vadd.f32 %v6911, %v7279
  %v7281 = vpop.f32.mrb[0].mxu0
  %7282 = vmatprep.mubr.f32.mxu0 0.0
  %v7283 = vand.u32 %v6648, 4294901760
  %7284 = vmatmul.mubr.f32.gmra.mrb[0].mxu0 %v7283
  %v7285 = vpop.f32.mrb[0].mxu0
  %v7286 = vadd.f32 %v6921, %v7285
  %v7287 = vpop.f32.mrb[0].mxu0
  %7288 = vmatprep.mubr.f32.mxu0 0.0
  %v7289 = vand.u32 %v6651, 4294901760
  %7290 = vmatmul.mubr.f32.gmra.mrb[0].mxu0 %v7289
  %v7291 = vpop.f32.mrb[0].mxu0
  %v7292 = vadd.f32 %v6931, %v7291
  %v7293 = vpop.f32.mrb[0].mxu0
  %7294 = vmatprep.mubr.f32.mxu0 0.0
  %v7295 = vand.u32 %v6654, 4294901760
  %7296 = vmatmul.mubr.f32.gmra.mrb[0].mxu0 %v7295
  %v7297 = vpop.f32.mrb[0].mxu0
  %v7298 = vadd.f32 %v6941, %v7297
  %v7299 = vpop.f32.mrb[0].mxu0
  %7300 = vmatprep.mubr.f32.mxu0 0.0
  %v7301 = vand.u32 %v6657, 4294901760
  %7302 = vmatmul.mubr.f32.gmra.mrb[0].mxu0 %v7301
  %v7303 = vpop.f32.mrb[0].mxu0
  %v7304 = vadd.f32 %v6951, %v7303
  %v7305 = vpop.f32.mrb[0].mxu0
  %7306 = vmatprep.mubr.f32.mxu0 0.0
  %v7307 = vand.u32 %v6660, 4294901760
  %7308 = vmatmul.mubr.f32.gmra.mrb[0].mxu0 %v7307
  %v7309 = vpop.f32.mrb[0].mxu0
  %v7310 = vadd.f32 %v6961, %v7309
  %v7311 = vpop.f32.mrb[0].mxu0
  %7312 = vmatprep.mubr.f32.mxu0 0.0
  %v7313 = vand.u32 %v6663, 4294901760
  %7314 = vmatmul.mubr.f32.gmra.mrb[0].mxu0 %v7313
  %v7315 = vpop.f32.mrb[0].mxu0
  %v7316 = vadd.f32 %v6971, %v7315
  %v7317 = vpop.f32.mrb[0].mxu0
  %7318 = vmatprep.mubr.f32.mxu0 0.0
  %v7319 = vand.u32 %v6666, 4294901760
  %7320 = vmatmul.mubr.f32.gmra.mrb[0].mxu0 %v7319
  %v7321 = vpop.f32.mrb[0].mxu0
  %v7322 = vadd.f32 %v6981, %v7321
  %v7323 = vpop.f32.mrb[0].mxu0
  %7324 = vmatprep.mubr.f32.mxu0 0.0
  %v7325 = vand.u32 %v6669, 4294901760
  %7326 = vmatmul.mubr.f32.gmra.mrb[0].mxu0 %v7325
  %v7327 = vpop.f32.mrb[0].mxu0
  %v7328 = vadd.f32 %v6991, %v7327
  %v7329 = vpop.f32.mrb[0].mxu0
  %7330 = vmatprep.mubr.f32.mxu0 0.0
  %v7331 = vand.u32 %v6672, 4294901760
  %7332 = vmatmul.mubr.f32.gmra.mrb[0].mxu0 %v7331
  %v7333 = vpop.f32.mrb[0].mxu0
  %v7334 = vadd.f32 %v7001, %v7333
  %v7335 = vpop.f32.mrb[0].mxu0
  %7336 = vmatprep.mubr.f32.mxu0 0.0
  %v7337 = vand.u32 %v6675, 4294901760
  %7338 = vmatmul.mubr.f32.gmra.mrb[0].mxu0 %v7337
  %v7339 = vpop.f32.mrb[0].mxu0
  %v7340 = vadd.f32 %v7011, %v7339
  %v7341 = vpop.f32.mrb[0].mxu0
  %7342 = vmatprep.mubr.f32.mxu0 0.0
  %v7343 = vand.u32 %v6678, 4294901760
  %7344 = vmatmul.mubr.f32.gmra.mrb[0].mxu0 %v7343
  %v7345 = vpop.f32.mrb[0].mxu0
  %v7346 = vadd.f32 %v7021, %v7345
  %v7347 = vpop.f32.mrb[0].mxu0
  %7348 = vmatprep.mubr.f32.mxu0 0.0
  %v7349 = vand.u32 %v6681, 4294901760
  %7350 = vmatmul.mubr.f32.gmra.mrb[0].mxu0 %v7349
  %v7351 = vpop.f32.mrb[0].mxu0
  %v7352 = vadd.f32 %v7031, %v7351
  %v7353 = vpop.f32.mrb[0].mxu0
  %7354 = vmatprep.mubr.f32.mxu0 0.0
  %v7355 = vand.u32 %v6684, 4294901760
  %7356 = vmatmul.mubr.f32.gmra.mrb[0].mxu0 %v7355
  %v7357 = vpop.f32.mrb[0].mxu0
  %v7358 = vadd.f32 %v7041, %v7357
  %v7359 = vpop.f32.mrb[0].mxu0
  %7360 = vmatprep.mubr.f32.mxu0 0.0
  %v7361 = vand.u32 %v6687, 4294901760
  %7362 = vmatmul.mubr.f32.gmra.mrb[0].mxu0 %v7361
  %v7363 = vpop.f32.mrb[0].mxu0
  %v7364 = vadd.f32 %v7051, %v7363
  %v7365 = vpop.f32.mrb[0].mxu0
  %7366 = vmatprep.mubr.f32.mxu0 0.0
  %v7367 = vand.u32 %v6690, 4294901760
  %7368 = vmatmul.mubr.f32.gmra.mrb[0].mxu0 %v7367
  %v7369 = vpop.f32.mrb[0].mxu0
  %v7370 = vadd.f32 %v7061, %v7369
  %v7371 = vpop.f32.mrb[0].mxu0
  %7372 = vmatprep.mubr.f32.mxu0 0.0
  %v7373 = vand.u32 %v6693, 4294901760
  %7374 = vmatmul.mubr.f32.gmra.mrb[0].mxu0 %v7373
  %v7375 = vpop.f32.mrb[0].mxu0
  %v7376 = vadd.f32 %v7071, %v7375
  %v7377 = vpop.f32.mrb[0].mxu0
  %7378 = vmatprep.mubr.f32.mxu0 0.0
  %v7379 = vand.u32 %v6696, 4294901760
  %7380 = vmatmul.mubr.f32.gmra.mrb[0].mxu0 %v7379
  %v7381 = vpop.f32.mrb[0].mxu0
  %v7382 = vadd.f32 %v7081, %v7381
  %v7383 = vpop.f32.mrb[0].mxu0
  %7384 = vmatprep.mubr.f32.mxu0 0.0
  %v7385 = vand.u32 %v6699, 4294901760
  %7386 = vmatmul.mubr.f32.gmra.mrb[0].mxu0 %v7385
  %v7387 = vpop.f32.mrb[0].mxu0
  %v7388 = vadd.f32 %v7091, %v7387
  %v7389 = vpop.f32.mrb[0].mxu0
  %7390 = vdwg.mxu0
  %7391 = vmatprep.subr.mxu0 0.0
  %v7392 = vand.u32 %v6592, 4294901760
  %v7393 = vsub.f32 %v6592, %v7392
  %7394 = vmatpush1.msra.mxu0 %v7393
  %7395 = vmatprep.subr.mxu0 0.0
  %v7396 = vand.u32 %v6593, 4294901760
  %v7397 = vsub.f32 %v6593, %v7396
  %7398 = vmatpush1.msra.mxu0 %v7397
  %7399 = vmatprep.subr.mxu0 0.0
  %v7400 = vand.u32 %v6594, 4294901760
  %v7401 = vsub.f32 %v6594, %v7400
  %7402 = vmatpush1.msra.mxu0 %v7401
  %7403 = vmatprep.subr.mxu0 0.0
  %v7404 = vand.u32 %v6595, 4294901760
  %v7405 = vsub.f32 %v6595, %v7404
  %7406 = vmatpush1.msra.mxu0 %v7405
  %7407 = vmatprep.subr.mxu0 0.0
  %v7408 = vand.u32 %v6596, 4294901760
  %v7409 = vsub.f32 %v6596, %v7408
  %7410 = vmatpush1.msra.mxu0 %v7409
  %7411 = vmatprep.subr.mxu0 0.0
  %v7412 = vand.u32 %v6597, 4294901760
  %v7413 = vsub.f32 %v6597, %v7412
  %7414 = vmatpush1.msra.mxu0 %v7413
  %7415 = vmatprep.subr.mxu0 0.0
  %v7416 = vand.u32 %v6598, 4294901760
  %v7417 = vsub.f32 %v6598, %v7416
  %7418 = vmatpush1.msra.mxu0 %v7417
  %7419 = vmatprep.subr.mxu0 0.0
  %v7420 = vand.u32 %v6599, 4294901760
  %v7421 = vsub.f32 %v6599, %v7420
  %7422 = vmatpush1.msra.mxu0 %v7421
  %7423 = vmatprep.subr.mxu0 0.0
  %7424 = vmatpush1.msra.mxu0 0.0
  %7425 = vmatprep.subr.mxu0 0.0
  %7426 = vmatpush1.msra.mxu0 0.0
  %7427 = vmatprep.subr.mxu0 0.0
  %7428 = vmatpush1.msra.mxu0 0.0
  %7429 = vmatprep.subr.mxu0 0.0
  %7430 = vmatpush1.msra.mxu0 0.0
  %7431 = vmatprep.subr.mxu0 0.0
  %7432 = vmatpush1.msra.mxu0 0.0
  %7433 = vmatprep.subr.mxu0 0.0
  %7434 = vmatpush1.msra.mxu0 0.0
  %7435 = vmatprep.subr.mxu0 0.0
  %7436 = vmatpush1.msra.mxu0 0.0
  %7437 = vmatprep.subr.mxu0 0.0
  %7438 = vmatpush1.msra.mxu0 0.0
  %7439 = vmatprep.subr.mxu0 0.0
  %7440 = vmatpush1.msra.mxu0 0.0
  %7441 = vmatprep.subr.mxu0 0.0
  %7442 = vmatpush1.msra.mxu0 0.0
  %7443 = vmatprep.subr.mxu0 0.0
  %7444 = vmatpush1.msra.mxu0 0.0
  %7445 = vmatprep.subr.mxu0 0.0
  %7446 = vmatpush1.msra.mxu0 0.0
  %7447 = vmatprep.subr.mxu0 0.0
  %7448 = vmatpush1.msra.mxu0 0.0
  %7449 = vmatprep.subr.mxu0 0.0
  %7450 = vmatpush1.msra.mxu0 0.0
  %7451 = vmatprep.subr.mxu0 0.0
  %7452 = vmatpush1.msra.mxu0 0.0
  %7453 = vmatprep.subr.mxu0 0.0
  %7454 = vmatpush1.msra.mxu0 0.0
  %7455 = vmatprep.subr.mxu0 0.0
  %7456 = vmatpush1.msra.mxu0 0.0
  %7457 = vmatprep.subr.mxu0 0.0
  %7458 = vmatpush1.msra.mxu0 0.0
  %7459 = vmatprep.subr.mxu0 0.0
  %7460 = vmatpush1.msra.mxu0 0.0
  %7461 = vmatprep.subr.mxu0 0.0
  %7462 = vmatpush1.msra.mxu0 0.0
  %7463 = vmatprep.subr.mxu0 0.0
  %7464 = vmatpush1.msra.mxu0 0.0
  %7465 = vmatprep.subr.mxu0 0.0
  %7466 = vmatpush1.msra.mxu0 0.0
  %7467 = vmatprep.subr.mxu0 0.0
  %7468 = vmatpush1.msra.mxu0 0.0
  %7469 = vmatprep.subr.mxu0 0.0
  %7470 = vmatpush1.msra.mxu0 0.0
  %7471 = vmatprep.mubr.f32.mxu0 0.0
  %v7472 = vand.u32 %v6606, 4294901760
  %v7473 = vsub.f32 %v6606, %v7472
  %7474 = vmatmul.mubr.f32.gmra.mrb[0].mxu0 %v7473
  %v7475 = vpop.f32.mrb[0].mxu0
  %v7476 = vadd.f32 %v7202, %v7475
  %v7477 = vpop.f32.mrb[0].mxu0
  %7478 = vmatprep.mubr.f32.mxu0 0.0
  %v7479 = vand.u32 %v6609, 4294901760
  %v7480 = vsub.f32 %v6609, %v7479
  %7481 = vmatmul.mubr.f32.gmra.mrb[0].mxu0 %v7480
  %v7482 = vpop.f32.mrb[0].mxu0
  %v7483 = vadd.f32 %v7208, %v7482
  %v7484 = vpop.f32.mrb[0].mxu0
  %7485 = vmatprep.mubr.f32.mxu0 0.0
  %v7486 = vand.u32 %v6612, 4294901760
  %v7487 = vsub.f32 %v6612, %v7486
  %7488 = vmatmul.mubr.f32.gmra.mrb[0].mxu0 %v7487
  %v7489 = vpop.f32.mrb[0].mxu0
  %v7490 = vadd.f32 %v7214, %v7489
  %v7491 = vpop.f32.mrb[0].mxu0
  %7492 = vmatprep.mubr.f32.mxu0 0.0
  %v7493 = vand.u32 %v6615, 4294901760
  %v7494 = vsub.f32 %v6615, %v7493
  %7495 = vmatmul.mubr.f32.gmra.mrb[0].mxu0 %v7494
  %v7496 = vpop.f32.mrb[0].mxu0
  %v7497 = vadd.f32 %v7220, %v7496
  %v7498 = vpop.f32.mrb[0].mxu0
  %7499 = vmatprep.mubr.f32.mxu0 0.0
  %v7500 = vand.u32 %v6618, 4294901760
  %v7501 = vsub.f32 %v6618, %v7500
  %7502 = vmatmul.mubr.f32.gmra.mrb[0].mxu0 %v7501
  %v7503 = vpop.f32.mrb[0].mxu0
  %v7504 = vadd.f32 %v7226, %v7503
  %v7505 = vpop.f32.mrb[0].mxu0
  %7506 = vmatprep.mubr.f32.mxu0 0.0
  %v7507 = vand.u32 %v6621, 4294901760
  %v7508 = vsub.f32 %v6621, %v7507
  %7509 = vmatmul.mubr.f32.gmra.mrb[0].mxu0 %v7508
  %v7510 = vpop.f32.mrb[0].mxu0
  %v7511 = vadd.f32 %v7232, %v7510
  %v7512 = vpop.f32.mrb[0].mxu0
  %7513 = vmatprep.mubr.f32.mxu0 0.0
  %v7514 = vand.u32 %v6624, 4294901760
  %v7515 = vsub.f32 %v6624, %v7514
  %7516 = vmatmul.mubr.f32.gmra.mrb[0].mxu0 %v7515
  %v7517 = vpop.f32.mrb[0].mxu0
  %v7518 = vadd.f32 %v7238, %v7517
  %v7519 = vpop.f32.mrb[0].mxu0
  %7520 = vmatprep.mubr.f32.mxu0 0.0
  %v7521 = vand.u32 %v6627, 4294901760
  %v7522 = vsub.f32 %v6627, %v7521
  %7523 = vmatmul.mubr.f32.gmra.mrb[0].mxu0 %v7522
  %v7524 = vpop.f32.mrb[0].mxu0
  %v7525 = vadd.f32 %v7244, %v7524
  %v7526 = vpop.f32.mrb[0].mxu0
  %7527 = vmatprep.mubr.f32.mxu0 0.0
  %v7528 = vand.u32 %v6630, 4294901760
  %v7529 = vsub.f32 %v6630, %v7528
  %7530 = vmatmul.mubr.f32.gmra.mrb[0].mxu0 %v7529
  %v7531 = vpop.f32.mrb[0].mxu0
  %v7532 = vadd.f32 %v7250, %v7531
  %v7533 = vpop.f32.mrb[0].mxu0
  %7534 = vmatprep.mubr.f32.mxu0 0.0
  %v7535 = vand.u32 %v6633, 4294901760
  %v7536 = vsub.f32 %v6633, %v7535
  %7537 = vmatmul.mubr.f32.gmra.mrb[0].mxu0 %v7536
  %v7538 = vpop.f32.mrb[0].mxu0
  %v7539 = vadd.f32 %v7256, %v7538
  %v7540 = vpop.f32.mrb[0].mxu0
  %7541 = vmatprep.mubr.f32.mxu0 0.0
  %v7542 = vand.u32 %v6636, 4294901760
  %v7543 = vsub.f32 %v6636, %v7542
  %7544 = vmatmul.mubr.f32.gmra.mrb[0].mxu0 %v7543
  %v7545 = vpop.f32.mrb[0].mxu0
  %v7546 = vadd.f32 %v7262, %v7545
  %v7547 = vpop.f32.mrb[0].mxu0
  %7548 = vmatprep.mubr.f32.mxu0 0.0
  %v7549 = vand.u32 %v6639, 4294901760
  %v7550 = vsub.f32 %v6639, %v7549
  %7551 = vmatmul.mubr.f32.gmra.mrb[0].mxu0 %v7550
  %v7552 = vpop.f32.mrb[0].mxu0
  %v7553 = vadd.f32 %v7268, %v7552
  %v7554 = vpop.f32.mrb[0].mxu0
  %7555 = vmatprep.mubr.f32.mxu0 0.0
  %v7556 = vand.u32 %v6642, 4294901760
  %v7557 = vsub.f32 %v6642, %v7556
  %7558 = vmatmul.mubr.f32.gmra.mrb[0].mxu0 %v7557
  %v7559 = vpop.f32.mrb[0].mxu0
  %v7560 = vadd.f32 %v7274, %v7559
  %v7561 = vpop.f32.mrb[0].mxu0
  %7562 = vmatprep.mubr.f32.mxu0 0.0
  %v7563 = vand.u32 %v6645, 4294901760
  %v7564 = vsub.f32 %v6645, %v7563
  %7565 = vmatmul.mubr.f32.gmra.mrb[0].mxu0 %v7564
  %v7566 = vpop.f32.mrb[0].mxu0
  %v7567 = vadd.f32 %v7280, %v7566
  %v7568 = vpop.f32.mrb[0].mxu0
  %7569 = vmatprep.mubr.f32.mxu0 0.0
  %v7570 = vand.u32 %v6648, 4294901760
  %v7571 = vsub.f32 %v6648, %v7570
  %7572 = vmatmul.mubr.f32.gmra.mrb[0].mxu0 %v7571
  %v7573 = vpop.f32.mrb[0].mxu0
  %v7574 = vadd.f32 %v7286, %v7573
  %v7575 = vpop.f32.mrb[0].mxu0
  %7576 = vmatprep.mubr.f32.mxu0 0.0
  %v7577 = vand.u32 %v6651, 4294901760
  %v7578 = vsub.f32 %v6651, %v7577
  %7579 = vmatmul.mubr.f32.gmra.mrb[0].mxu0 %v7578
  %v7580 = vpop.f32.mrb[0].mxu0
  %v7581 = vadd.f32 %v7292, %v7580
  %v7582 = vpop.f32.mrb[0].mxu0
  %7583 = vmatprep.mubr.f32.mxu0 0.0
  %v7584 = vand.u32 %v6654, 4294901760
  %v7585 = vsub.f32 %v6654, %v7584
  %7586 = vmatmul.mubr.f32.gmra.mrb[0].mxu0 %v7585
  %v7587 = vpop.f32.mrb[0].mxu0
  %v7588 = vadd.f32 %v7298, %v7587
  %v7589 = vpop.f32.mrb[0].mxu0
  %7590 = vmatprep.mubr.f32.mxu0 0.0
  %v7591 = vand.u32 %v6657, 4294901760
  %v7592 = vsub.f32 %v6657, %v7591
  %7593 = vmatmul.mubr.f32.gmra.mrb[0].mxu0 %v7592
  %v7594 = vpop.f32.mrb[0].mxu0
  %v7595 = vadd.f32 %v7304, %v7594
  %v7596 = vpop.f32.mrb[0].mxu0
  %7597 = vmatprep.mubr.f32.mxu0 0.0
  %v7598 = vand.u32 %v6660, 4294901760
  %v7599 = vsub.f32 %v6660, %v7598
  %7600 = vmatmul.mubr.f32.gmra.mrb[0].mxu0 %v7599
  %v7601 = vpop.f32.mrb[0].mxu0
  %v7602 = vadd.f32 %v7310, %v7601
  %v7603 = vpop.f32.mrb[0].mxu0
  %7604 = vmatprep.mubr.f32.mxu0 0.0
  %v7605 = vand.u32 %v6663, 4294901760
  %v7606 = vsub.f32 %v6663, %v7605
  %7607 = vmatmul.mubr.f32.gmra.mrb[0].mxu0 %v7606
  %v7608 = vpop.f32.mrb[0].mxu0
  %v7609 = vadd.f32 %v7316, %v7608
  %v7610 = vpop.f32.mrb[0].mxu0
  %7611 = vmatprep.mubr.f32.mxu0 0.0
  %v7612 = vand.u32 %v6666, 4294901760
  %v7613 = vsub.f32 %v6666, %v7612
  %7614 = vmatmul.mubr.f32.gmra.mrb[0].mxu0 %v7613
  %v7615 = vpop.f32.mrb[0].mxu0
  %v7616 = vadd.f32 %v7322, %v7615
  %v7617 = vpop.f32.mrb[0].mxu0
  %7618 = vmatprep.mubr.f32.mxu0 0.0
  %v7619 = vand.u32 %v6669, 4294901760
  %v7620 = vsub.f32 %v6669, %v7619
  %7621 = vmatmul.mubr.f32.gmra.mrb[0].mxu0 %v7620
  %v7622 = vpop.f32.mrb[0].mxu0
  %v7623 = vadd.f32 %v7328, %v7622
  %v7624 = vpop.f32.mrb[0].mxu0
  %7625 = vmatprep.mubr.f32.mxu0 0.0
  %v7626 = vand.u32 %v6672, 4294901760
  %v7627 = vsub.f32 %v6672, %v7626
  %7628 = vmatmul.mubr.f32.gmra.mrb[0].mxu0 %v7627
  %v7629 = vpop.f32.mrb[0].mxu0
  %v7630 = vadd.f32 %v7334, %v7629
  %v7631 = vpop.f32.mrb[0].mxu0
  %7632 = vmatprep.mubr.f32.mxu0 0.0
  %v7633 = vand.u32 %v6675, 4294901760
  %v7634 = vsub.f32 %v6675, %v7633
  %7635 = vmatmul.mubr.f32.gmra.mrb[0].mxu0 %v7634
  %v7636 = vpop.f32.mrb[0].mxu0
  %v7637 = vadd.f32 %v7340, %v7636
  %v7638 = vpop.f32.mrb[0].mxu0
  %7639 = vmatprep.mubr.f32.mxu0 0.0
  %v7640 = vand.u32 %v6678, 4294901760
  %v7641 = vsub.f32 %v6678, %v7640
  %7642 = vmatmul.mubr.f32.gmra.mrb[0].mxu0 %v7641
  %v7643 = vpop.f32.mrb[0].mxu0
  %v7644 = vadd.f32 %v7346, %v7643
  %v7645 = vpop.f32.mrb[0].mxu0
  %7646 = vmatprep.mubr.f32.mxu0 0.0
  %v7647 = vand.u32 %v6681, 4294901760
  %v7648 = vsub.f32 %v6681, %v7647
  %7649 = vmatmul.mubr.f32.gmra.mrb[0].mxu0 %v7648
  %v7650 = vpop.f32.mrb[0].mxu0
  %v7651 = vadd.f32 %v7352, %v7650
  %v7652 = vpop.f32.mrb[0].mxu0
  %7653 = vmatprep.mubr.f32.mxu0 0.0
  %v7654 = vand.u32 %v6684, 4294901760
  %v7655 = vsub.f32 %v6684, %v7654
  %7656 = vmatmul.mubr.f32.gmra.mrb[0].mxu0 %v7655
  %v7657 = vpop.f32.mrb[0].mxu0
  %v7658 = vadd.f32 %v7358, %v7657
  %v7659 = vpop.f32.mrb[0].mxu0
  %7660 = vmatprep.mubr.f32.mxu0 0.0
  %v7661 = vand.u32 %v6687, 4294901760
  %v7662 = vsub.f32 %v6687, %v7661
  %7663 = vmatmul.mubr.f32.gmra.mrb[0].mxu0 %v7662
  %v7664 = vpop.f32.mrb[0].mxu0
  %v7665 = vadd.f32 %v7364, %v7664
  %v7666 = vpop.f32.mrb[0].mxu0
  %7667 = vmatprep.mubr.f32.mxu0 0.0
  %v7668 = vand.u32 %v6690, 4294901760
  %v7669 = vsub.f32 %v6690, %v7668
  %7670 = vmatmul.mubr.f32.gmra.mrb[0].mxu0 %v7669
  %v7671 = vpop.f32.mrb[0].mxu0
  %v7672 = vadd.f32 %v7370, %v7671
  %v7673 = vpop.f32.mrb[0].mxu0
  %7674 = vmatprep.mubr.f32.mxu0 0.0
  %v7675 = vand.u32 %v6693, 4294901760
  %v7676 = vsub.f32 %v6693, %v7675
  %7677 = vmatmul.mubr.f32.gmra.mrb[0].mxu0 %v7676
  %v7678 = vpop.f32.mrb[0].mxu0
  %v7679 = vadd.f32 %v7376, %v7678
  %v7680 = vpop.f32.mrb[0].mxu0
  %7681 = vmatprep.mubr.f32.mxu0 0.0
  %v7682 = vand.u32 %v6696, 4294901760
  %v7683 = vsub.f32 %v6696, %v7682
  %7684 = vmatmul.mubr.f32.gmra.mrb[0].mxu0 %v7683
  %v7685 = vpop.f32.mrb[0].mxu0
  %v7686 = vadd.f32 %v7382, %v7685
  %v7687 = vpop.f32.mrb[0].mxu0
  %7688 = vmatprep.mubr.f32.mxu0 0.0
  %v7689 = vand.u32 %v6699, 4294901760
  %v7690 = vsub.f32 %v6699, %v7689
  %7691 = vmatmul.mubr.f32.gmra.mrb[0].mxu0 %v7690
  %v7692 = vpop.f32.mrb[0].mxu0
  %v7693 = vadd.f32 %v7388, %v7692
  %v7694 = vpop.f32.mrb[0].mxu0
  %7695 = vdwg.mxu0
  %7696 = vmatprep.subr.mxu0 0.0
  %v7697 = vand.u32 %v6592, 4294901760
  %7698 = vmatpush1.msra.mxu0 %v7697
  %7699 = vmatprep.subr.mxu0 0.0
  %v7700 = vand.u32 %v6593, 4294901760
  %7701 = vmatpush1.msra.mxu0 %v7700
  %7702 = vmatprep.subr.mxu0 0.0
  %v7703 = vand.u32 %v6594, 4294901760
  %7704 = vmatpush1.msra.mxu0 %v7703
  %7705 = vmatprep.subr.mxu0 0.0
  %v7706 = vand.u32 %v6595, 4294901760
  %7707 = vmatpush1.msra.mxu0 %v7706
  %7708 = vmatprep.subr.mxu0 0.0
  %v7709 = vand.u32 %v6596, 4294901760
  %7710 = vmatpush1.msra.mxu0 %v7709
  %7711 = vmatprep.subr.mxu0 0.0
  %v7712 = vand.u32 %v6597, 4294901760
  %7713 = vmatpush1.msra.mxu0 %v7712
  %7714 = vmatprep.subr.mxu0 0.0
  %v7715 = vand.u32 %v6598, 4294901760
  %7716 = vmatpush1.msra.mxu0 %v7715
  %7717 = vmatprep.subr.mxu0 0.0
  %v7718 = vand.u32 %v6599, 4294901760
  %7719 = vmatpush1.msra.mxu0 %v7718
  %7720 = vmatprep.subr.mxu0 0.0
  %7721 = vmatpush1.msra.mxu0 0.0
  %7722 = vmatprep.subr.mxu0 0.0
  %7723 = vmatpush1.msra.mxu0 0.0
  %7724 = vmatprep.subr.mxu0 0.0
  %7725 = vmatpush1.msra.mxu0 0.0
  %7726 = vmatprep.subr.mxu0 0.0
  %7727 = vmatpush1.msra.mxu0 0.0
  %7728 = vmatprep.subr.mxu0 0.0
  %7729 = vmatpush1.msra.mxu0 0.0
  %7730 = vmatprep.subr.mxu0 0.0
  %7731 = vmatpush1.msra.mxu0 0.0
  %7732 = vmatprep.subr.mxu0 0.0
  %7733 = vmatpush1.msra.mxu0 0.0
  %7734 = vmatprep.subr.mxu0 0.0
  %7735 = vmatpush1.msra.mxu0 0.0
  %7736 = vmatprep.subr.mxu0 0.0
  %7737 = vmatpush1.msra.mxu0 0.0
  %7738 = vmatprep.subr.mxu0 0.0
  %7739 = vmatpush1.msra.mxu0 0.0
  %7740 = vmatprep.subr.mxu0 0.0
  %7741 = vmatpush1.msra.mxu0 0.0
  %7742 = vmatprep.subr.mxu0 0.0
  %7743 = vmatpush1.msra.mxu0 0.0
  %7744 = vmatprep.subr.mxu0 0.0
  %7745 = vmatpush1.msra.mxu0 0.0
  %7746 = vmatprep.subr.mxu0 0.0
  %7747 = vmatpush1.msra.mxu0 0.0
  %7748 = vmatprep.subr.mxu0 0.0
  %7749 = vmatpush1.msra.mxu0 0.0
  %7750 = vmatprep.subr.mxu0 0.0
  %7751 = vmatpush1.msra.mxu0 0.0
  %7752 = vmatprep.subr.mxu0 0.0
  %7753 = vmatpush1.msra.mxu0 0.0
  %7754 = vmatprep.subr.mxu0 0.0
  %7755 = vmatpush1.msra.mxu0 0.0
  %7756 = vmatprep.subr.mxu0 0.0
  %7757 = vmatpush1.msra.mxu0 0.0
  %7758 = vmatprep.subr.mxu0 0.0
  %7759 = vmatpush1.msra.mxu0 0.0
  %7760 = vmatprep.subr.mxu0 0.0
  %7761 = vmatpush1.msra.mxu0 0.0
  %7762 = vmatprep.subr.mxu0 0.0
  %7763 = vmatpush1.msra.mxu0 0.0
  %7764 = vmatprep.subr.mxu0 0.0
  %7765 = vmatpush1.msra.mxu0 0.0
  %7766 = vmatprep.subr.mxu0 0.0
  %7767 = vmatpush1.msra.mxu0 0.0
  %7768 = vmatprep.mubr.f32.mxu0 0.0
  %v7769 = vand.u32 %v6606, 4294901760
  %v7770 = vsub.f32 %v6606, %v7769
  %v7771 = vand.u32 %v7770, 4294901760
  %7772 = vmatmul.mubr.f32.gmra.mrb[0].mxu0 %v7771
  %v7773 = vpop.f32.mrb[0].mxu0
  %v7774 = vadd.f32 %v7476, %v7773
  %v7775 = vpop.f32.mrb[0].mxu0
  %7776 = vmatprep.mubr.f32.mxu0 0.0
  %v7777 = vand.u32 %v6609, 4294901760
  %v7778 = vsub.f32 %v6609, %v7777
  %v7779 = vand.u32 %v7778, 4294901760
  %7780 = vmatmul.mubr.f32.gmra.mrb[0].mxu0 %v7779
  %v7781 = vpop.f32.mrb[0].mxu0
  %v7782 = vadd.f32 %v7483, %v7781
  %v7783 = vpop.f32.mrb[0].mxu0
  %7784 = vmatprep.mubr.f32.mxu0 0.0
  %v7785 = vand.u32 %v6612, 4294901760
  %v7786 = vsub.f32 %v6612, %v7785
  %v7787 = vand.u32 %v7786, 4294901760
  %7788 = vmatmul.mubr.f32.gmra.mrb[0].mxu0 %v7787
  %v7789 = vpop.f32.mrb[0].mxu0
  %v7790 = vadd.f32 %v7490, %v7789
  %v7791 = vpop.f32.mrb[0].mxu0
  %7792 = vmatprep.mubr.f32.mxu0 0.0
  %v7793 = vand.u32 %v6615, 4294901760
  %v7794 = vsub.f32 %v6615, %v7793
  %v7795 = vand.u32 %v7794, 4294901760
  %7796 = vmatmul.mubr.f32.gmra.mrb[0].mxu0 %v7795
  %v7797 = vpop.f32.mrb[0].mxu0
  %v7798 = vadd.f32 %v7497, %v7797
  %v7799 = vpop.f32.mrb[0].mxu0
  %7800 = vmatprep.mubr.f32.mxu0 0.0
  %v7801 = vand.u32 %v6618, 4294901760
  %v7802 = vsub.f32 %v6618, %v7801
  %v7803 = vand.u32 %v7802, 4294901760
  %7804 = vmatmul.mubr.f32.gmra.mrb[0].mxu0 %v7803
  %v7805 = vpop.f32.mrb[0].mxu0
  %v7806 = vadd.f32 %v7504, %v7805
  %v7807 = vpop.f32.mrb[0].mxu0
  %7808 = vmatprep.mubr.f32.mxu0 0.0
  %v7809 = vand.u32 %v6621, 4294901760
  %v7810 = vsub.f32 %v6621, %v7809
  %v7811 = vand.u32 %v7810, 4294901760
  %7812 = vmatmul.mubr.f32.gmra.mrb[0].mxu0 %v7811
  %v7813 = vpop.f32.mrb[0].mxu0
  %v7814 = vadd.f32 %v7511, %v7813
  %v7815 = vpop.f32.mrb[0].mxu0
  %7816 = vmatprep.mubr.f32.mxu0 0.0
  %v7817 = vand.u32 %v6624, 4294901760
  %v7818 = vsub.f32 %v6624, %v7817
  %v7819 = vand.u32 %v7818, 4294901760
  %7820 = vmatmul.mubr.f32.gmra.mrb[0].mxu0 %v7819
  %v7821 = vpop.f32.mrb[0].mxu0
  %v7822 = vadd.f32 %v7518, %v7821
  %v7823 = vpop.f32.mrb[0].mxu0
  %7824 = vmatprep.mubr.f32.mxu0 0.0
  %v7825 = vand.u32 %v6627, 4294901760
  %v7826 = vsub.f32 %v6627, %v7825
  %v7827 = vand.u32 %v7826, 4294901760
  %7828 = vmatmul.mubr.f32.gmra.mrb[0].mxu0 %v7827
  %v7829 = vpop.f32.mrb[0].mxu0
  %v7830 = vadd.f32 %v7525, %v7829
  %v7831 = vpop.f32.mrb[0].mxu0
  %7832 = vmatprep.mubr.f32.mxu0 0.0
  %v7833 = vand.u32 %v6630, 4294901760
  %v7834 = vsub.f32 %v6630, %v7833
  %v7835 = vand.u32 %v7834, 4294901760
  %7836 = vmatmul.mubr.f32.gmra.mrb[0].mxu0 %v7835
  %v7837 = vpop.f32.mrb[0].mxu0
  %v7838 = vadd.f32 %v7532, %v7837
  %v7839 = vpop.f32.mrb[0].mxu0
  %7840 = vmatprep.mubr.f32.mxu0 0.0
  %v7841 = vand.u32 %v6633, 4294901760
  %v7842 = vsub.f32 %v6633, %v7841
  %v7843 = vand.u32 %v7842, 4294901760
  %7844 = vmatmul.mubr.f32.gmra.mrb[0].mxu0 %v7843
  %v7845 = vpop.f32.mrb[0].mxu0
  %v7846 = vadd.f32 %v7539, %v7845
  %v7847 = vpop.f32.mrb[0].mxu0
  %7848 = vmatprep.mubr.f32.mxu0 0.0
  %v7849 = vand.u32 %v6636, 4294901760
  %v7850 = vsub.f32 %v6636, %v7849
  %v7851 = vand.u32 %v7850, 4294901760
  %7852 = vmatmul.mubr.f32.gmra.mrb[0].mxu0 %v7851
  %v7853 = vpop.f32.mrb[0].mxu0
  %v7854 = vadd.f32 %v7546, %v7853
  %v7855 = vpop.f32.mrb[0].mxu0
  %7856 = vmatprep.mubr.f32.mxu0 0.0
  %v7857 = vand.u32 %v6639, 4294901760
  %v7858 = vsub.f32 %v6639, %v7857
  %v7859 = vand.u32 %v7858, 4294901760
  %7860 = vmatmul.mubr.f32.gmra.mrb[0].mxu0 %v7859
  %v7861 = vpop.f32.mrb[0].mxu0
  %v7862 = vadd.f32 %v7553, %v7861
  %v7863 = vpop.f32.mrb[0].mxu0
  %7864 = vmatprep.mubr.f32.mxu0 0.0
  %v7865 = vand.u32 %v6642, 4294901760
  %v7866 = vsub.f32 %v6642, %v7865
  %v7867 = vand.u32 %v7866, 4294901760
  %7868 = vmatmul.mubr.f32.gmra.mrb[0].mxu0 %v7867
  %v7869 = vpop.f32.mrb[0].mxu0
  %v7870 = vadd.f32 %v7560, %v7869
  %v7871 = vpop.f32.mrb[0].mxu0
  %7872 = vmatprep.mubr.f32.mxu0 0.0
  %v7873 = vand.u32 %v6645, 4294901760
  %v7874 = vsub.f32 %v6645, %v7873
  %v7875 = vand.u32 %v7874, 4294901760
  %7876 = vmatmul.mubr.f32.gmra.mrb[0].mxu0 %v7875
  %v7877 = vpop.f32.mrb[0].mxu0
  %v7878 = vadd.f32 %v7567, %v7877
  %v7879 = vpop.f32.mrb[0].mxu0
  %7880 = vmatprep.mubr.f32.mxu0 0.0
  %v7881 = vand.u32 %v6648, 4294901760
  %v7882 = vsub.f32 %v6648, %v7881
  %v7883 = vand.u32 %v7882, 4294901760
  %7884 = vmatmul.mubr.f32.gmra.mrb[0].mxu0 %v7883
  %v7885 = vpop.f32.mrb[0].mxu0
  %v7886 = vadd.f32 %v7574, %v7885
  %v7887 = vpop.f32.mrb[0].mxu0
  %7888 = vmatprep.mubr.f32.mxu0 0.0
  %v7889 = vand.u32 %v6651, 4294901760
  %v7890 = vsub.f32 %v6651, %v7889
  %v7891 = vand.u32 %v7890, 4294901760
  %7892 = vmatmul.mubr.f32.gmra.mrb[0].mxu0 %v7891
  %v7893 = vpop.f32.mrb[0].mxu0
  %v7894 = vadd.f32 %v7581, %v7893
  %v7895 = vpop.f32.mrb[0].mxu0
  %7896 = vmatprep.mubr.f32.mxu0 0.0
  %v7897 = vand.u32 %v6654, 4294901760
  %v7898 = vsub.f32 %v6654, %v7897
  %v7899 = vand.u32 %v7898, 4294901760
  %7900 = vmatmul.mubr.f32.gmra.mrb[0].mxu0 %v7899
  %v7901 = vpop.f32.mrb[0].mxu0
  %v7902 = vadd.f32 %v7588, %v7901
  %v7903 = vpop.f32.mrb[0].mxu0
  %7904 = vmatprep.mubr.f32.mxu0 0.0
  %v7905 = vand.u32 %v6657, 4294901760
  %v7906 = vsub.f32 %v6657, %v7905
  %v7907 = vand.u32 %v7906, 4294901760
  %7908 = vmatmul.mubr.f32.gmra.mrb[0].mxu0 %v7907
  %v7909 = vpop.f32.mrb[0].mxu0
  %v7910 = vadd.f32 %v7595, %v7909
  %v7911 = vpop.f32.mrb[0].mxu0
  %7912 = vmatprep.mubr.f32.mxu0 0.0
  %v7913 = vand.u32 %v6660, 4294901760
  %v7914 = vsub.f32 %v6660, %v7913
  %v7915 = vand.u32 %v7914, 4294901760
  %7916 = vmatmul.mubr.f32.gmra.mrb[0].mxu0 %v7915
  %v7917 = vpop.f32.mrb[0].mxu0
  %v7918 = vadd.f32 %v7602, %v7917
  %v7919 = vpop.f32.mrb[0].mxu0
  %7920 = vmatprep.mubr.f32.mxu0 0.0
  %v7921 = vand.u32 %v6663, 4294901760
  %v7922 = vsub.f32 %v6663, %v7921
  %v7923 = vand.u32 %v7922, 4294901760
  %7924 = vmatmul.mubr.f32.gmra.mrb[0].mxu0 %v7923
  %v7925 = vpop.f32.mrb[0].mxu0
  %v7926 = vadd.f32 %v7609, %v7925
  %v7927 = vpop.f32.mrb[0].mxu0
  %7928 = vmatprep.mubr.f32.mxu0 0.0
  %v7929 = vand.u32 %v6666, 4294901760
  %v7930 = vsub.f32 %v6666, %v7929
  %v7931 = vand.u32 %v7930, 4294901760
  %7932 = vmatmul.mubr.f32.gmra.mrb[0].mxu0 %v7931
  %v7933 = vpop.f32.mrb[0].mxu0
  %v7934 = vadd.f32 %v7616, %v7933
  %v7935 = vpop.f32.mrb[0].mxu0
  %7936 = vmatprep.mubr.f32.mxu0 0.0
  %v7937 = vand.u32 %v6669, 4294901760
  %v7938 = vsub.f32 %v6669, %v7937
  %v7939 = vand.u32 %v7938, 4294901760
  %7940 = vmatmul.mubr.f32.gmra.mrb[0].mxu0 %v7939
  %v7941 = vpop.f32.mrb[0].mxu0
  %v7942 = vadd.f32 %v7623, %v7941
  %v7943 = vpop.f32.mrb[0].mxu0
  %7944 = vmatprep.mubr.f32.mxu0 0.0
  %v7945 = vand.u32 %v6672, 4294901760
  %v7946 = vsub.f32 %v6672, %v7945
  %v7947 = vand.u32 %v7946, 4294901760
  %7948 = vmatmul.mubr.f32.gmra.mrb[0].mxu0 %v7947
  %v7949 = vpop.f32.mrb[0].mxu0
  %v7950 = vadd.f32 %v7630, %v7949
  %v7951 = vpop.f32.mrb[0].mxu0
  %7952 = vmatprep.mubr.f32.mxu0 0.0
  %v7953 = vand.u32 %v6675, 4294901760
  %v7954 = vsub.f32 %v6675, %v7953
  %v7955 = vand.u32 %v7954, 4294901760
  %7956 = vmatmul.mubr.f32.gmra.mrb[0].mxu0 %v7955
  %v7957 = vpop.f32.mrb[0].mxu0
  %v7958 = vadd.f32 %v7637, %v7957
  %v7959 = vpop.f32.mrb[0].mxu0
  %7960 = vmatprep.mubr.f32.mxu0 0.0
  %v7961 = vand.u32 %v6678, 4294901760
  %v7962 = vsub.f32 %v6678, %v7961
  %v7963 = vand.u32 %v7962, 4294901760
  %7964 = vmatmul.mubr.f32.gmra.mrb[0].mxu0 %v7963
  %v7965 = vpop.f32.mrb[0].mxu0
  %v7966 = vadd.f32 %v7644, %v7965
  %v7967 = vpop.f32.mrb[0].mxu0
  %7968 = vmatprep.mubr.f32.mxu0 0.0
  %v7969 = vand.u32 %v6681, 4294901760
  %v7970 = vsub.f32 %v6681, %v7969
  %v7971 = vand.u32 %v7970, 4294901760
  %7972 = vmatmul.mubr.f32.gmra.mrb[0].mxu0 %v7971
  %v7973 = vpop.f32.mrb[0].mxu0
  %v7974 = vadd.f32 %v7651, %v7973
  %v7975 = vpop.f32.mrb[0].mxu0
  %7976 = vmatprep.mubr.f32.mxu0 0.0
  %v7977 = vand.u32 %v6684, 4294901760
  %v7978 = vsub.f32 %v6684, %v7977
  %v7979 = vand.u32 %v7978, 4294901760
  %7980 = vmatmul.mubr.f32.gmra.mrb[0].mxu0 %v7979
  %v7981 = vpop.f32.mrb[0].mxu0
  %v7982 = vadd.f32 %v7658, %v7981
  %v7983 = vpop.f32.mrb[0].mxu0
  %7984 = vmatprep.mubr.f32.mxu0 0.0
  %v7985 = vand.u32 %v6687, 4294901760
  %v7986 = vsub.f32 %v6687, %v7985
  %v7987 = vand.u32 %v7986, 4294901760
  %7988 = vmatmul.mubr.f32.gmra.mrb[0].mxu0 %v7987
  %v7989 = vpop.f32.mrb[0].mxu0
  %v7990 = vadd.f32 %v7665, %v7989
  %v7991 = vpop.f32.mrb[0].mxu0
  %7992 = vmatprep.mubr.f32.mxu0 0.0
  %v7993 = vand.u32 %v6690, 4294901760
  %v7994 = vsub.f32 %v6690, %v7993
  %v7995 = vand.u32 %v7994, 4294901760
  %7996 = vmatmul.mubr.f32.gmra.mrb[0].mxu0 %v7995
  %v7997 = vpop.f32.mrb[0].mxu0
  %v7998 = vadd.f32 %v7672, %v7997
  %v7999 = vpop.f32.mrb[0].mxu0
  %8000 = vmatprep.mubr.f32.mxu0 0.0
  %v8001 = vand.u32 %v6693, 4294901760
  %v8002 = vsub.f32 %v6693, %v8001
  %v8003 = vand.u32 %v8002, 4294901760
  %8004 = vmatmul.mubr.f32.gmra.mrb[0].mxu0 %v8003
  %v8005 = vpop.f32.mrb[0].mxu0
  %v8006 = vadd.f32 %v7679, %v8005
  %v8007 = vpop.f32.mrb[0].mxu0
  %8008 = vmatprep.mubr.f32.mxu0 0.0
  %v8009 = vand.u32 %v6696, 4294901760
  %v8010 = vsub.f32 %v6696, %v8009
  %v8011 = vand.u32 %v8010, 4294901760
  %8012 = vmatmul.mubr.f32.gmra.mrb[0].mxu0 %v8011
  %v8013 = vpop.f32.mrb[0].mxu0
  %v8014 = vadd.f32 %v7686, %v8013
  %v8015 = vpop.f32.mrb[0].mxu0
  %8016 = vmatprep.mubr.f32.mxu0 0.0
  %v8017 = vand.u32 %v6699, 4294901760
  %v8018 = vsub.f32 %v6699, %v8017
  %v8019 = vand.u32 %v8018, 4294901760
  %8020 = vmatmul.mubr.f32.gmra.mrb[0].mxu0 %v8019
  %v8021 = vpop.f32.mrb[0].mxu0
  %v8022 = vadd.f32 %v7693, %v8021
  %v8023 = vpop.f32.mrb[0].mxu0
  %8024 = vdwg.mxu0
  %8025 = vmatprep.subr.mxu0 0.0
  %v8026 = vand.u32 %v6592, 4294901760
  %v8027 = vsub.f32 %v6592, %v8026
  %v8028 = vand.u32 %v8027, 4294901760
  %8029 = vmatpush1.msra.mxu0 %v8028
  %8030 = vmatprep.subr.mxu0 0.0
  %v8031 = vand.u32 %v6593, 4294901760
  %v8032 = vsub.f32 %v6593, %v8031
  %v8033 = vand.u32 %v8032, 4294901760
  %8034 = vmatpush1.msra.mxu0 %v8033
  %8035 = vmatprep.subr.mxu0 0.0
  %v8036 = vand.u32 %v6594, 4294901760
  %v8037 = vsub.f32 %v6594, %v8036
  %v8038 = vand.u32 %v8037, 4294901760
  %8039 = vmatpush1.msra.mxu0 %v8038
  %8040 = vmatprep.subr.mxu0 0.0
  %v8041 = vand.u32 %v6595, 4294901760
  %v8042 = vsub.f32 %v6595, %v8041
  %v8043 = vand.u32 %v8042, 4294901760
  %8044 = vmatpush1.msra.mxu0 %v8043
  %8045 = vmatprep.subr.mxu0 0.0
  %v8046 = vand.u32 %v6596, 4294901760
  %v8047 = vsub.f32 %v6596, %v8046
  %v8048 = vand.u32 %v8047, 4294901760
  %8049 = vmatpush1.msra.mxu0 %v8048
  %8050 = vmatprep.subr.mxu0 0.0
  %v8051 = vand.u32 %v6597, 4294901760
  %v8052 = vsub.f32 %v6597, %v8051
  %v8053 = vand.u32 %v8052, 4294901760
  %8054 = vmatpush1.msra.mxu0 %v8053
  %8055 = vmatprep.subr.mxu0 0.0
  %v8056 = vand.u32 %v6598, 4294901760
  %v8057 = vsub.f32 %v6598, %v8056
  %v8058 = vand.u32 %v8057, 4294901760
  %8059 = vmatpush1.msra.mxu0 %v8058
  %8060 = vmatprep.subr.mxu0 0.0
  %v8061 = vand.u32 %v6599, 4294901760
  %v8062 = vsub.f32 %v6599, %v8061
  %v8063 = vand.u32 %v8062, 4294901760
  %8064 = vmatpush1.msra.mxu0 %v8063
  %8065 = vmatprep.subr.mxu0 0.0
  %8066 = vmatpush1.msra.mxu0 0.0
  %8067 = vmatprep.subr.mxu0 0.0
  %8068 = vmatpush1.msra.mxu0 0.0
  %8069 = vmatprep.subr.mxu0 0.0
  %8070 = vmatpush1.msra.mxu0 0.0
  %8071 = vmatprep.subr.mxu0 0.0
  %8072 = vmatpush1.msra.mxu0 0.0
  %8073 = vmatprep.subr.mxu0 0.0
  %8074 = vmatpush1.msra.mxu0 0.0
  %8075 = vmatprep.subr.mxu0 0.0
  %8076 = vmatpush1.msra.mxu0 0.0
  %8077 = vmatprep.subr.mxu0 0.0
  %8078 = vmatpush1.msra.mxu0 0.0
  %8079 = vmatprep.subr.mxu0 0.0
  %8080 = vmatpush1.msra.mxu0 0.0
  %8081 = vmatprep.subr.mxu0 0.0
  %8082 = vmatpush1.msra.mxu0 0.0
  %8083 = vmatprep.subr.mxu0 0.0
  %8084 = vmatpush1.msra.mxu0 0.0
  %8085 = vmatprep.subr.mxu0 0.0
  %8086 = vmatpush1.msra.mxu0 0.0
  %8087 = vmatprep.subr.mxu0 0.0
  %8088 = vmatpush1.msra.mxu0 0.0
  %8089 = vmatprep.subr.mxu0 0.0
  %8090 = vmatpush1.msra.mxu0 0.0
  %8091 = vmatprep.subr.mxu0 0.0
  %8092 = vmatpush1.msra.mxu0 0.0
  %8093 = vmatprep.subr.mxu0 0.0
  %8094 = vmatpush1.msra.mxu0 0.0
  %8095 = vmatprep.subr.mxu0 0.0
  %8096 = vmatpush1.msra.mxu0 0.0
  %8097 = vmatprep.subr.mxu0 0.0
  %8098 = vmatpush1.msra.mxu0 0.0
  %8099 = vmatprep.subr.mxu0 0.0
  %8100 = vmatpush1.msra.mxu0 0.0
  %8101 = vmatprep.subr.mxu0 0.0
  %8102 = vmatpush1.msra.mxu0 0.0
  %8103 = vmatprep.subr.mxu0 0.0
  %8104 = vmatpush1.msra.mxu0 0.0
  %8105 = vmatprep.subr.mxu0 0.0
  %8106 = vmatpush1.msra.mxu0 0.0
  %8107 = vmatprep.subr.mxu0 0.0
  %8108 = vmatpush1.msra.mxu0 0.0
  %8109 = vmatprep.subr.mxu0 0.0
  %8110 = vmatpush1.msra.mxu0 0.0
  %8111 = vmatprep.subr.mxu0 0.0
  %8112 = vmatpush1.msra.mxu0 0.0
  %8113 = vmatprep.mubr.f32.mxu0 0.0
  %v8114 = vand.u32 %v6606, 4294901760
  %8115 = vmatmul.mubr.f32.gmra.mrb[0].mxu0 %v8114
  %v8116 = vpop.f32.mrb[0].mxu0
  %v8117 = vadd.f32 %v7774, %v8116
  %v8118 = vpop.f32.mrb[0].mxu0
  %8119 = vmatprep.mubr.f32.mxu0 0.0
  %v8120 = vand.u32 %v6609, 4294901760
  %8121 = vmatmul.mubr.f32.gmra.mrb[0].mxu0 %v8120
  %v8122 = vpop.f32.mrb[0].mxu0
  %v8123 = vadd.f32 %v7782, %v8122
  %v8124 = vpop.f32.mrb[0].mxu0
  %8125 = vmatprep.mubr.f32.mxu0 0.0
  %v8126 = vand.u32 %v6612, 4294901760
  %8127 = vmatmul.mubr.f32.gmra.mrb[0].mxu0 %v8126
  %v8128 = vpop.f32.mrb[0].mxu0
  %v8129 = vadd.f32 %v7790, %v8128
  %v8130 = vpop.f32.mrb[0].mxu0
  %8131 = vmatprep.mubr.f32.mxu0 0.0
  %v8132 = vand.u32 %v6615, 4294901760
  %8133 = vmatmul.mubr.f32.gmra.mrb[0].mxu0 %v8132
  %v8134 = vpop.f32.mrb[0].mxu0
  %v8135 = vadd.f32 %v7798, %v8134
  %v8136 = vpop.f32.mrb[0].mxu0
  %8137 = vmatprep.mubr.f32.mxu0 0.0
  %v8138 = vand.u32 %v6618, 4294901760
  %8139 = vmatmul.mubr.f32.gmra.mrb[0].mxu0 %v8138
  %v8140 = vpop.f32.mrb[0].mxu0
  %v8141 = vadd.f32 %v7806, %v8140
  %v8142 = vpop.f32.mrb[0].mxu0
  %8143 = vmatprep.mubr.f32.mxu0 0.0
  %v8144 = vand.u32 %v6621, 4294901760
  %8145 = vmatmul.mubr.f32.gmra.mrb[0].mxu0 %v8144
  %v8146 = vpop.f32.mrb[0].mxu0
  %v8147 = vadd.f32 %v7814, %v8146
  %v8148 = vpop.f32.mrb[0].mxu0
  %8149 = vmatprep.mubr.f32.mxu0 0.0
  %v8150 = vand.u32 %v6624, 4294901760
  %8151 = vmatmul.mubr.f32.gmra.mrb[0].mxu0 %v8150
  %v8152 = vpop.f32.mrb[0].mxu0
  %v8153 = vadd.f32 %v7822, %v8152
  %v8154 = vpop.f32.mrb[0].mxu0
  %8155 = vmatprep.mubr.f32.mxu0 0.0
  %v8156 = vand.u32 %v6627, 4294901760
  %8157 = vmatmul.mubr.f32.gmra.mrb[0].mxu0 %v8156
  %v8158 = vpop.f32.mrb[0].mxu0
  %v8159 = vadd.f32 %v7830, %v8158
  %v8160 = vpop.f32.mrb[0].mxu0
  %8161 = vmatprep.mubr.f32.mxu0 0.0
  %v8162 = vand.u32 %v6630, 4294901760
  %8163 = vmatmul.mubr.f32.gmra.mrb[0].mxu0 %v8162
  %v8164 = vpop.f32.mrb[0].mxu0
  %v8165 = vadd.f32 %v7838, %v8164
  %v8166 = vpop.f32.mrb[0].mxu0
  %8167 = vmatprep.mubr.f32.mxu0 0.0
  %v8168 = vand.u32 %v6633, 4294901760
  %8169 = vmatmul.mubr.f32.gmra.mrb[0].mxu0 %v8168
  %v8170 = vpop.f32.mrb[0].mxu0
  %v8171 = vadd.f32 %v7846, %v8170
  %v8172 = vpop.f32.mrb[0].mxu0
  %8173 = vmatprep.mubr.f32.mxu0 0.0
  %v8174 = vand.u32 %v6636, 4294901760
  %8175 = vmatmul.mubr.f32.gmra.mrb[0].mxu0 %v8174
  %v8176 = vpop.f32.mrb[0].mxu0
  %v8177 = vadd.f32 %v7854, %v8176
  %v8178 = vpop.f32.mrb[0].mxu0
  %8179 = vmatprep.mubr.f32.mxu0 0.0
  %v8180 = vand.u32 %v6639, 4294901760
  %8181 = vmatmul.mubr.f32.gmra.mrb[0].mxu0 %v8180
  %v8182 = vpop.f32.mrb[0].mxu0
  %v8183 = vadd.f32 %v7862, %v8182
  %v8184 = vpop.f32.mrb[0].mxu0
  %8185 = vmatprep.mubr.f32.mxu0 0.0
  %v8186 = vand.u32 %v6642, 4294901760
  %8187 = vmatmul.mubr.f32.gmra.mrb[0].mxu0 %v8186
  %v8188 = vpop.f32.mrb[0].mxu0
  %v8189 = vadd.f32 %v7870, %v8188
  %v8190 = vpop.f32.mrb[0].mxu0
  %8191 = vmatprep.mubr.f32.mxu0 0.0
  %v8192 = vand.u32 %v6645, 4294901760
  %8193 = vmatmul.mubr.f32.gmra.mrb[0].mxu0 %v8192
  %v8194 = vpop.f32.mrb[0].mxu0
  %v8195 = vadd.f32 %v7878, %v8194
  %v8196 = vpop.f32.mrb[0].mxu0
  %8197 = vmatprep.mubr.f32.mxu0 0.0
  %v8198 = vand.u32 %v6648, 4294901760
  %8199 = vmatmul.mubr.f32.gmra.mrb[0].mxu0 %v8198
  %v8200 = vpop.f32.mrb[0].mxu0
  %v8201 = vadd.f32 %v7886, %v8200
  %v8202 = vpop.f32.mrb[0].mxu0
  %8203 = vmatprep.mubr.f32.mxu0 0.0
  %v8204 = vand.u32 %v6651, 4294901760
  %8205 = vmatmul.mubr.f32.gmra.mrb[0].mxu0 %v8204
  %v8206 = vpop.f32.mrb[0].mxu0
  %v8207 = vadd.f32 %v7894, %v8206
  %v8208 = vpop.f32.mrb[0].mxu0
  %8209 = vmatprep.mubr.f32.mxu0 0.0
  %v8210 = vand.u32 %v6654, 4294901760
  %8211 = vmatmul.mubr.f32.gmra.mrb[0].mxu0 %v8210
  %v8212 = vpop.f32.mrb[0].mxu0
  %v8213 = vadd.f32 %v7902, %v8212
  %v8214 = vpop.f32.mrb[0].mxu0
  %8215 = vmatprep.mubr.f32.mxu0 0.0
  %v8216 = vand.u32 %v6657, 4294901760
  %8217 = vmatmul.mubr.f32.gmra.mrb[0].mxu0 %v8216
  %v8218 = vpop.f32.mrb[0].mxu0
  %v8219 = vadd.f32 %v7910, %v8218
  %v8220 = vpop.f32.mrb[0].mxu0
  %8221 = vmatprep.mubr.f32.mxu0 0.0
  %v8222 = vand.u32 %v6660, 4294901760
  %8223 = vmatmul.mubr.f32.gmra.mrb[0].mxu0 %v8222
  %v8224 = vpop.f32.mrb[0].mxu0
  %v8225 = vadd.f32 %v7918, %v8224
  %v8226 = vpop.f32.mrb[0].mxu0
  %8227 = vmatprep.mubr.f32.mxu0 0.0
  %v8228 = vand.u32 %v6663, 4294901760
  %8229 = vmatmul.mubr.f32.gmra.mrb[0].mxu0 %v8228
  %v8230 = vpop.f32.mrb[0].mxu0
  %v8231 = vadd.f32 %v7926, %v8230
  %v8232 = vpop.f32.mrb[0].mxu0
  %8233 = vmatprep.mubr.f32.mxu0 0.0
  %v8234 = vand.u32 %v6666, 4294901760
  %8235 = vmatmul.mubr.f32.gmra.mrb[0].mxu0 %v8234
  %v8236 = vpop.f32.mrb[0].mxu0
  %v8237 = vadd.f32 %v7934, %v8236
  %v8238 = vpop.f32.mrb[0].mxu0
  %8239 = vmatprep.mubr.f32.mxu0 0.0
  %v8240 = vand.u32 %v6669, 4294901760
  %8241 = vmatmul.mubr.f32.gmra.mrb[0].mxu0 %v8240
  %v8242 = vpop.f32.mrb[0].mxu0
  %v8243 = vadd.f32 %v7942, %v8242
  %v8244 = vpop.f32.mrb[0].mxu0
  %8245 = vmatprep.mubr.f32.mxu0 0.0
  %v8246 = vand.u32 %v6672, 4294901760
  %8247 = vmatmul.mubr.f32.gmra.mrb[0].mxu0 %v8246
  %v8248 = vpop.f32.mrb[0].mxu0
  %v8249 = vadd.f32 %v7950, %v8248
  %v8250 = vpop.f32.mrb[0].mxu0
  %8251 = vmatprep.mubr.f32.mxu0 0.0
  %v8252 = vand.u32 %v6675, 4294901760
  %8253 = vmatmul.mubr.f32.gmra.mrb[0].mxu0 %v8252
  %v8254 = vpop.f32.mrb[0].mxu0
  %v8255 = vadd.f32 %v7958, %v8254
  %v8256 = vpop.f32.mrb[0].mxu0
  %8257 = vmatprep.mubr.f32.mxu0 0.0
  %v8258 = vand.u32 %v6678, 4294901760
  %8259 = vmatmul.mubr.f32.gmra.mrb[0].mxu0 %v8258
  %v8260 = vpop.f32.mrb[0].mxu0
  %v8261 = vadd.f32 %v7966, %v8260
  %v8262 = vpop.f32.mrb[0].mxu0
  %8263 = vmatprep.mubr.f32.mxu0 0.0
  %v8264 = vand.u32 %v6681, 4294901760
  %8265 = vmatmul.mubr.f32.gmra.mrb[0].mxu0 %v8264
  %v8266 = vpop.f32.mrb[0].mxu0
  %v8267 = vadd.f32 %v7974, %v8266
  %v8268 = vpop.f32.mrb[0].mxu0
  %8269 = vmatprep.mubr.f32.mxu0 0.0
  %v8270 = vand.u32 %v6684, 4294901760
  %8271 = vmatmul.mubr.f32.gmra.mrb[0].mxu0 %v8270
  %v8272 = vpop.f32.mrb[0].mxu0
  %v8273 = vadd.f32 %v7982, %v8272
  %v8274 = vpop.f32.mrb[0].mxu0
  %8275 = vmatprep.mubr.f32.mxu0 0.0
  %v8276 = vand.u32 %v6687, 4294901760
  %8277 = vmatmul.mubr.f32.gmra.mrb[0].mxu0 %v8276
  %v8278 = vpop.f32.mrb[0].mxu0
  %v8279 = vadd.f32 %v7990, %v8278
  %v8280 = vpop.f32.mrb[0].mxu0
  %8281 = vmatprep.mubr.f32.mxu0 0.0
  %v8282 = vand.u32 %v6690, 4294901760
  %8283 = vmatmul.mubr.f32.gmra.mrb[0].mxu0 %v8282
  %v8284 = vpop.f32.mrb[0].mxu0
  %v8285 = vadd.f32 %v7998, %v8284
  %v8286 = vpop.f32.mrb[0].mxu0
  %8287 = vmatprep.mubr.f32.mxu0 0.0
  %v8288 = vand.u32 %v6693, 4294901760
  %8289 = vmatmul.mubr.f32.gmra.mrb[0].mxu0 %v8288
  %v8290 = vpop.f32.mrb[0].mxu0
  %v8291 = vadd.f32 %v8006, %v8290
  %v8292 = vpop.f32.mrb[0].mxu0
  %8293 = vmatprep.mubr.f32.mxu0 0.0
  %v8294 = vand.u32 %v6696, 4294901760
  %8295 = vmatmul.mubr.f32.gmra.mrb[0].mxu0 %v8294
  %v8296 = vpop.f32.mrb[0].mxu0
  %v8297 = vadd.f32 %v8014, %v8296
  %v8298 = vpop.f32.mrb[0].mxu0
  %8299 = vmatprep.mubr.f32.mxu0 0.0
  %v8300 = vand.u32 %v6699, 4294901760
  %8301 = vmatmul.mubr.f32.gmra.mrb[0].mxu0 %v8300
  %v8302 = vpop.f32.mrb[0].mxu0
  %v8303 = vadd.f32 %v8022, %v8302
  %v8304 = vpop.f32.mrb[0].mxu0
  %8305 = vdwg.mxu0
  %8306 = vmatprep.subr.mxu0 0.0
  %v8307 = vand.u32 %v6592, 4294901760
  %8308 = vmatpush1.msra.mxu0 %v8307
  %8309 = vmatprep.subr.mxu0 0.0
  %v8310 = vand.u32 %v6593, 4294901760
  %8311 = vmatpush1.msra.mxu0 %v8310
  %8312 = vmatprep.subr.mxu0 0.0
  %v8313 = vand.u32 %v6594, 4294901760
  %8314 = vmatpush1.msra.mxu0 %v8313
  %8315 = vmatprep.subr.mxu0 0.0
  %v8316 = vand.u32 %v6595, 4294901760
  %8317 = vmatpush1.msra.mxu0 %v8316
  %8318 = vmatprep.subr.mxu0 0.0
  %v8319 = vand.u32 %v6596, 4294901760
  %8320 = vmatpush1.msra.mxu0 %v8319
  %8321 = vmatprep.subr.mxu0 0.0
  %v8322 = vand.u32 %v6597, 4294901760
  %8323 = vmatpush1.msra.mxu0 %v8322
  %8324 = vmatprep.subr.mxu0 0.0
  %v8325 = vand.u32 %v6598, 4294901760
  %8326 = vmatpush1.msra.mxu0 %v8325
  %8327 = vmatprep.subr.mxu0 0.0
  %v8328 = vand.u32 %v6599, 4294901760
  %8329 = vmatpush1.msra.mxu0 %v8328
  %8330 = vmatprep.subr.mxu0 0.0
  %8331 = vmatpush1.msra.mxu0 0.0
  %8332 = vmatprep.subr.mxu0 0.0
  %8333 = vmatpush1.msra.mxu0 0.0
  %8334 = vmatprep.subr.mxu0 0.0
  %8335 = vmatpush1.msra.mxu0 0.0
  %8336 = vmatprep.subr.mxu0 0.0
  %8337 = vmatpush1.msra.mxu0 0.0
  %8338 = vmatprep.subr.mxu0 0.0
  %8339 = vmatpush1.msra.mxu0 0.0
  %8340 = vmatprep.subr.mxu0 0.0
  %8341 = vmatpush1.msra.mxu0 0.0
  %8342 = vmatprep.subr.mxu0 0.0
  %8343 = vmatpush1.msra.mxu0 0.0
  %8344 = vmatprep.subr.mxu0 0.0
  %8345 = vmatpush1.msra.mxu0 0.0
  %8346 = vmatprep.subr.mxu0 0.0
  %8347 = vmatpush1.msra.mxu0 0.0
  %8348 = vmatprep.subr.mxu0 0.0
  %8349 = vmatpush1.msra.mxu0 0.0
  %8350 = vmatprep.subr.mxu0 0.0
  %8351 = vmatpush1.msra.mxu0 0.0
  %8352 = vmatprep.subr.mxu0 0.0
  %8353 = vmatpush1.msra.mxu0 0.0
  %8354 = vmatprep.subr.mxu0 0.0
  %8355 = vmatpush1.msra.mxu0 0.0
  %8356 = vmatprep.subr.mxu0 0.0
  %8357 = vmatpush1.msra.mxu0 0.0
  %8358 = vmatprep.subr.mxu0 0.0
  %8359 = vmatpush1.msra.mxu0 0.0
  %8360 = vmatprep.subr.mxu0 0.0
  %8361 = vmatpush1.msra.mxu0 0.0
  %8362 = vmatprep.subr.mxu0 0.0
  %8363 = vmatpush1.msra.mxu0 0.0
  %8364 = vmatprep.subr.mxu0 0.0
  %8365 = vmatpush1.msra.mxu0 0.0
  %8366 = vmatprep.subr.mxu0 0.0
  %8367 = vmatpush1.msra.mxu0 0.0
  %8368 = vmatprep.subr.mxu0 0.0
  %8369 = vmatpush1.msra.mxu0 0.0
  %8370 = vmatprep.subr.mxu0 0.0
  %8371 = vmatpush1.msra.mxu0 0.0
  %8372 = vmatprep.subr.mxu0 0.0
  %8373 = vmatpush1.msra.mxu0 0.0
  %8374 = vmatprep.subr.mxu0 0.0
  %8375 = vmatpush1.msra.mxu0 0.0
  %8376 = vmatprep.subr.mxu0 0.0
  %8377 = vmatpush1.msra.mxu0 0.0
  %8378 = vmatprep.mubr.f32.mxu0 0.0
  %v8379 = vand.u32 %v6606, 4294901760
  %8380 = vmatmul.mubr.f32.gmra.mrb[0].mxu0 %v8379
  %v8381 = vpop.f32.mrb[0].mxu0
  %v8382 = vadd.f32 %v8117, %v8381
  %v8383 = vpop.f32.mrb[0].mxu0
  %8384 = vmatprep.mubr.f32.mxu0 0.0
  %v8385 = vand.u32 %v6609, 4294901760
  %8386 = vmatmul.mubr.f32.gmra.mrb[0].mxu0 %v8385
  %v8387 = vpop.f32.mrb[0].mxu0
  %v8388 = vadd.f32 %v8123, %v8387
  %v8389 = vpop.f32.mrb[0].mxu0
  %8390 = vmatprep.mubr.f32.mxu0 0.0
  %v8391 = vand.u32 %v6612, 4294901760
  %8392 = vmatmul.mubr.f32.gmra.mrb[0].mxu0 %v8391
  %v8393 = vpop.f32.mrb[0].mxu0
  %v8394 = vadd.f32 %v8129, %v8393
  %v8395 = vpop.f32.mrb[0].mxu0
  %8396 = vmatprep.mubr.f32.mxu0 0.0
  %v8397 = vand.u32 %v6615, 4294901760
  %8398 = vmatmul.mubr.f32.gmra.mrb[0].mxu0 %v8397
  %v8399 = vpop.f32.mrb[0].mxu0
  %v8400 = vadd.f32 %v8135, %v8399
  %v8401 = vpop.f32.mrb[0].mxu0
  %8402 = vmatprep.mubr.f32.mxu0 0.0
  %v8403 = vand.u32 %v6618, 4294901760
  %8404 = vmatmul.mubr.f32.gmra.mrb[0].mxu0 %v8403
  %v8405 = vpop.f32.mrb[0].mxu0
  %v8406 = vadd.f32 %v8141, %v8405
  %v8407 = vpop.f32.mrb[0].mxu0
  %8408 = vmatprep.mubr.f32.mxu0 0.0
  %v8409 = vand.u32 %v6621, 4294901760
  %8410 = vmatmul.mubr.f32.gmra.mrb[0].mxu0 %v8409
  %v8411 = vpop.f32.mrb[0].mxu0
  %v8412 = vadd.f32 %v8147, %v8411
  %v8413 = vpop.f32.mrb[0].mxu0
  %8414 = vmatprep.mubr.f32.mxu0 0.0
  %v8415 = vand.u32 %v6624, 4294901760
  %8416 = vmatmul.mubr.f32.gmra.mrb[0].mxu0 %v8415
  %v8417 = vpop.f32.mrb[0].mxu0
  %v8418 = vadd.f32 %v8153, %v8417
  %v8419 = vpop.f32.mrb[0].mxu0
  %8420 = vmatprep.mubr.f32.mxu0 0.0
  %v8421 = vand.u32 %v6627, 4294901760
  %8422 = vmatmul.mubr.f32.gmra.mrb[0].mxu0 %v8421
  %v8423 = vpop.f32.mrb[0].mxu0
  %v8424 = vadd.f32 %v8159, %v8423
  %v8425 = vpop.f32.mrb[0].mxu0
  %8426 = vmatprep.mubr.f32.mxu0 0.0
  %v8427 = vand.u32 %v6630, 4294901760
  %8428 = vmatmul.mubr.f32.gmra.mrb[0].mxu0 %v8427
  %v8429 = vpop.f32.mrb[0].mxu0
  %v8430 = vadd.f32 %v8165, %v8429
  %v8431 = vpop.f32.mrb[0].mxu0
  %8432 = vmatprep.mubr.f32.mxu0 0.0
  %v8433 = vand.u32 %v6633, 4294901760
  %8434 = vmatmul.mubr.f32.gmra.mrb[0].mxu0 %v8433
  %v8435 = vpop.f32.mrb[0].mxu0
  %v8436 = vadd.f32 %v8171, %v8435
  %v8437 = vpop.f32.mrb[0].mxu0
  %8438 = vmatprep.mubr.f32.mxu0 0.0
  %v8439 = vand.u32 %v6636, 4294901760
  %8440 = vmatmul.mubr.f32.gmra.mrb[0].mxu0 %v8439
  %v8441 = vpop.f32.mrb[0].mxu0
  %v8442 = vadd.f32 %v8177, %v8441
  %v8443 = vpop.f32.mrb[0].mxu0
  %8444 = vmatprep.mubr.f32.mxu0 0.0
  %v8445 = vand.u32 %v6639, 4294901760
  %8446 = vmatmul.mubr.f32.gmra.mrb[0].mxu0 %v8445
  %v8447 = vpop.f32.mrb[0].mxu0
  %v8448 = vadd.f32 %v8183, %v8447
  %v8449 = vpop.f32.mrb[0].mxu0
  %8450 = vmatprep.mubr.f32.mxu0 0.0
  %v8451 = vand.u32 %v6642, 4294901760
  %8452 = vmatmul.mubr.f32.gmra.mrb[0].mxu0 %v8451
  %v8453 = vpop.f32.mrb[0].mxu0
  %v8454 = vadd.f32 %v8189, %v8453
  %v8455 = vpop.f32.mrb[0].mxu0
  %8456 = vmatprep.mubr.f32.mxu0 0.0
  %v8457 = vand.u32 %v6645, 4294901760
  %8458 = vmatmul.mubr.f32.gmra.mrb[0].mxu0 %v8457
  %v8459 = vpop.f32.mrb[0].mxu0
  %v8460 = vadd.f32 %v8195, %v8459
  %v8461 = vpop.f32.mrb[0].mxu0
  %8462 = vmatprep.mubr.f32.mxu0 0.0
  %v8463 = vand.u32 %v6648, 4294901760
  %8464 = vmatmul.mubr.f32.gmra.mrb[0].mxu0 %v8463
  %v8465 = vpop.f32.mrb[0].mxu0
  %v8466 = vadd.f32 %v8201, %v8465
  %v8467 = vpop.f32.mrb[0].mxu0
  %8468 = vmatprep.mubr.f32.mxu0 0.0
  %v8469 = vand.u32 %v6651, 4294901760
  %8470 = vmatmul.mubr.f32.gmra.mrb[0].mxu0 %v8469
  %v8471 = vpop.f32.mrb[0].mxu0
  %v8472 = vadd.f32 %v8207, %v8471
  %v8473 = vpop.f32.mrb[0].mxu0
  %8474 = vmatprep.mubr.f32.mxu0 0.0
  %v8475 = vand.u32 %v6654, 4294901760
  %8476 = vmatmul.mubr.f32.gmra.mrb[0].mxu0 %v8475
  %v8477 = vpop.f32.mrb[0].mxu0
  %v8478 = vadd.f32 %v8213, %v8477
  %v8479 = vpop.f32.mrb[0].mxu0
  %8480 = vmatprep.mubr.f32.mxu0 0.0
  %v8481 = vand.u32 %v6657, 4294901760
  %8482 = vmatmul.mubr.f32.gmra.mrb[0].mxu0 %v8481
  %v8483 = vpop.f32.mrb[0].mxu0
  %v8484 = vadd.f32 %v8219, %v8483
  %v8485 = vpop.f32.mrb[0].mxu0
  %8486 = vmatprep.mubr.f32.mxu0 0.0
  %v8487 = vand.u32 %v6660, 4294901760
  %8488 = vmatmul.mubr.f32.gmra.mrb[0].mxu0 %v8487
  %v8489 = vpop.f32.mrb[0].mxu0
  %v8490 = vadd.f32 %v8225, %v8489
  %v8491 = vpop.f32.mrb[0].mxu0
  %8492 = vmatprep.mubr.f32.mxu0 0.0
  %v8493 = vand.u32 %v6663, 4294901760
  %8494 = vmatmul.mubr.f32.gmra.mrb[0].mxu0 %v8493
  %v8495 = vpop.f32.mrb[0].mxu0
  %v8496 = vadd.f32 %v8231, %v8495
  %v8497 = vpop.f32.mrb[0].mxu0
  %8498 = vmatprep.mubr.f32.mxu0 0.0
  %v8499 = vand.u32 %v6666, 4294901760
  %8500 = vmatmul.mubr.f32.gmra.mrb[0].mxu0 %v8499
  %v8501 = vpop.f32.mrb[0].mxu0
  %v8502 = vadd.f32 %v8237, %v8501
  %v8503 = vpop.f32.mrb[0].mxu0
  %8504 = vmatprep.mubr.f32.mxu0 0.0
  %v8505 = vand.u32 %v6669, 4294901760
  %8506 = vmatmul.mubr.f32.gmra.mrb[0].mxu0 %v8505
  %v8507 = vpop.f32.mrb[0].mxu0
  %v8508 = vadd.f32 %v8243, %v8507
  %v8509 = vpop.f32.mrb[0].mxu0
  %8510 = vmatprep.mubr.f32.mxu0 0.0
  %v8511 = vand.u32 %v6672, 4294901760
  %8512 = vmatmul.mubr.f32.gmra.mrb[0].mxu0 %v8511
  %v8513 = vpop.f32.mrb[0].mxu0
  %v8514 = vadd.f32 %v8249, %v8513
  %v8515 = vpop.f32.mrb[0].mxu0
  %8516 = vmatprep.mubr.f32.mxu0 0.0
  %v8517 = vand.u32 %v6675, 4294901760
  %8518 = vmatmul.mubr.f32.gmra.mrb[0].mxu0 %v8517
  %v8519 = vpop.f32.mrb[0].mxu0
  %v8520 = vadd.f32 %v8255, %v8519
  %v8521 = vpop.f32.mrb[0].mxu0
  %8522 = vmatprep.mubr.f32.mxu0 0.0
  %v8523 = vand.u32 %v6678, 4294901760
  %8524 = vmatmul.mubr.f32.gmra.mrb[0].mxu0 %v8523
  %v8525 = vpop.f32.mrb[0].mxu0
  %v8526 = vadd.f32 %v8261, %v8525
  %v8527 = vpop.f32.mrb[0].mxu0
  %8528 = vmatprep.mubr.f32.mxu0 0.0
  %v8529 = vand.u32 %v6681, 4294901760
  %8530 = vmatmul.mubr.f32.gmra.mrb[0].mxu0 %v8529
  %v8531 = vpop.f32.mrb[0].mxu0
  %v8532 = vadd.f32 %v8267, %v8531
  %v8533 = vpop.f32.mrb[0].mxu0
  %8534 = vmatprep.mubr.f32.mxu0 0.0
  %v8535 = vand.u32 %v6684, 4294901760
  %8536 = vmatmul.mubr.f32.gmra.mrb[0].mxu0 %v8535
  %v8537 = vpop.f32.mrb[0].mxu0
  %v8538 = vadd.f32 %v8273, %v8537
  %v8539 = vpop.f32.mrb[0].mxu0
  %8540 = vmatprep.mubr.f32.mxu0 0.0
  %v8541 = vand.u32 %v6687, 4294901760
  %8542 = vmatmul.mubr.f32.gmra.mrb[0].mxu0 %v8541
  %v8543 = vpop.f32.mrb[0].mxu0
  %v8544 = vadd.f32 %v8279, %v8543
  %v8545 = vpop.f32.mrb[0].mxu0
  %8546 = vmatprep.mubr.f32.mxu0 0.0
  %v8547 = vand.u32 %v6690, 4294901760
  %8548 = vmatmul.mubr.f32.gmra.mrb[0].mxu0 %v8547
  %v8549 = vpop.f32.mrb[0].mxu0
  %v8550 = vadd.f32 %v8285, %v8549
  %v8551 = vpop.f32.mrb[0].mxu0
  %8552 = vmatprep.mubr.f32.mxu0 0.0
  %v8553 = vand.u32 %v6693, 4294901760
  %8554 = vmatmul.mubr.f32.gmra.mrb[0].mxu0 %v8553
  %v8555 = vpop.f32.mrb[0].mxu0
  %v8556 = vadd.f32 %v8291, %v8555
  %v8557 = vpop.f32.mrb[0].mxu0
  %8558 = vmatprep.mubr.f32.mxu0 0.0
  %v8559 = vand.u32 %v6696, 4294901760
  %8560 = vmatmul.mubr.f32.gmra.mrb[0].mxu0 %v8559
  %v8561 = vpop.f32.mrb[0].mxu0
  %v8562 = vadd.f32 %v8297, %v8561
  %v8563 = vpop.f32.mrb[0].mxu0
  %8564 = vmatprep.mubr.f32.mxu0 0.0
  %v8565 = vand.u32 %v6699, 4294901760
  %8566 = vmatmul.mubr.f32.gmra.mrb[0].mxu0 %v8565
  %v8567 = vpop.f32.mrb[0].mxu0
  %v8568 = vadd.f32 %v8303, %v8567
  %v8569 = vpop.f32.mrb[0].mxu0
  %8570 = vdwg.mxu0
  %8571 = vst.msk [vmem:[%s9] sm:$0xff] %vm2217, %v8382
  %8572 = vst.msk [vmem:[%s9 + $0x8] sm:$0xff] %vm2217, %v8388
  %8573 = vst.msk [vmem:[%s9 + $0x10] sm:$0xff] %vm2217, %v8394
  %8574 = vst.msk [vmem:[%s9 + $0x18] sm:$0xff] %vm2217, %v8400
  %8575 = vst.msk [vmem:[%s9 + $0x20] sm:$0xff] %vm2217, %v8406
  %8576 = vst.msk [vmem:[%s9 + $0x28] sm:$0xff] %vm2217, %v8412
  %8577 = vst.msk [vmem:[%s9 + $0x30] sm:$0xff] %vm2217, %v8418
  %8578 = vst.msk [vmem:[%s9 + $0x38] sm:$0xff] %vm2217, %v8424
  %8579 = vst.msk [vmem:[%s9 + $0x40] sm:$0xff] %vm2217, %v8430
  %8580 = vst.msk [vmem:[%s9 + $0x48] sm:$0xff] %vm2217, %v8436
  %8581 = vst.msk [vmem:[%s9 + $0x50] sm:$0xff] %vm2217, %v8442
  %8582 = vst.msk [vmem:[%s9 + $0x58] sm:$0xff] %vm2217, %v8448
  %8583 = vst.msk [vmem:[%s9 + $0x60] sm:$0xff] %vm2217, %v8454
  %8584 = vst.msk [vmem:[%s9 + $0x68] sm:$0xff] %vm2217, %v8460
  %8585 = vst.msk [vmem:[%s9 + $0x70] sm:$0xff] %vm2217, %v8466
  %8586 = vst.msk [vmem:[%s9 + $0x78] sm:$0xff] %vm2217, %v8472
  %8587 = vst.msk [vmem:[%s9 + $0x80] sm:$0xff] %vm2217, %v8478
  %8588 = vst.msk [vmem:[%s9 + $0x88] sm:$0xff] %vm2217, %v8484
  %8589 = vst.msk [vmem:[%s9 + $0x90] sm:$0xff] %vm2217, %v8490
  %8590 = vst.msk [vmem:[%s9 + $0x98] sm:$0xff] %vm2217, %v8496
  %8591 = vst.msk [vmem:[%s9 + $0xa0] sm:$0xff] %vm2217, %v8502
  %8592 = vst.msk [vmem:[%s9 + $0xa8] sm:$0xff] %vm2217, %v8508
  %8593 = vst.msk [vmem:[%s9 + $0xb0] sm:$0xff] %vm2217, %v8514
  %8594 = vst.msk [vmem:[%s9 + $0xb8] sm:$0xff] %vm2217, %v8520
  %8595 = vst.msk [vmem:[%s9 + $0xc0] sm:$0xff] %vm2217, %v8526
  %8596 = vst.msk [vmem:[%s9 + $0xc8] sm:$0xff] %vm2217, %v8532
  %8597 = vst.msk [vmem:[%s9 + $0xd0] sm:$0xff] %vm2217, %v8538
  %8598 = vst.msk [vmem:[%s9 + $0xd8] sm:$0xff] %vm2217, %v8544
  %8599 = vst.msk [vmem:[%s9 + $0xe0] sm:$0xff] %vm2217, %v8550
  %8600 = vst.msk [vmem:[%s9 + $0xe8] sm:$0xff] %vm2217, %v8556
  %8601 = vst.msk [vmem:[%s9 + $0xf0] sm:$0xff] %vm2217, %v8562
  %8602 = vst.msk [vmem:[%s9 + $0xf8] sm:$0xff] %vm2217, %v8568
  // Predicated region
  $region26: #{full_band_encoder_forward.1} parent=0 // pred_check
    _
  $region27: #{full_band_encoder_forward.1} parent=0 // pred_check_branch
    %8604 = sbr.rel (0) target = $region29
  $region28: #{full_band_encoder_forward.1} parent=0 // pred_region
    _
  $region29: #{full_band_encoder_forward.1} parent=0 // pred_fallthru
    _
  // Predicated region
  $region30: #{full_band_encoder_forward.1} parent=0 // pred_check
    _
  $region31: #{full_band_encoder_forward.1} parent=0 // pred_check_branch
    %8606 = sbr.rel (0) target = $region33
  $region32: #{full_band_encoder_forward.1} parent=0 // pred_region
    _
  $region33: #{full_band_encoder_forward.1} parent=0 // pred_fallthru
    _
  // Predicated region
  $region34: #{full_band_encoder_forward.1} parent=0 // pred_check
    _
  $region35: #{full_band_encoder_forward.1} parent=0 // pred_check_branch
    %8608 = sbr.rel (0) target = $region37
  $region36: #{full_band_encoder_forward.1} parent=0 // pred_region
    _
  $region37: #{full_band_encoder_forward.1} parent=0 // pred_fallthru
    _
  // Predicated region
  $region38: #{full_band_encoder_forward.1} parent=0 // pred_check
    _
  $region39: #{full_band_encoder_forward.1} parent=0 // pred_check_branch
    %8610 = sbr.rel (0) target = $region41
  $region40: #{full_band_encoder_forward.1} parent=0 // pred_region
    _
  $region41: #{full_band_encoder_forward.1} parent=0 // pred_fallthru
    _
  // Predicated region
  $region42: #{full_band_encoder_forward.1} parent=0 // pred_check
    _
  $region43: #{full_band_encoder_forward.1} parent=0 // pred_check_branch
    %8612 = sbr.rel (0) target = $region45
  $region44: #{full_band_encoder_forward.1} parent=0 // pred_region
    _
  $region45: #{full_band_encoder_forward.1} parent=0 // pred_fallthru
    _
  // Predicated region
  $region46: #{full_band_encoder_forward.1} parent=0 // pred_check
    _
  $region47: #{full_band_encoder_forward.1} parent=0 // pred_check_branch
    %8614 = sbr.rel (0) target = $region49
  $region48: #{full_band_encoder_forward.1} parent=0 // pred_region
    _
  $region49: #{full_band_encoder_forward.1} parent=0 // pred_fallthru
    _
  // Predicated region
  $region50: #{full_band_encoder_forward.1} parent=0 // pred_check
    _
  $region51: #{full_band_encoder_forward.1} parent=0 // pred_check_branch
    %8616 = sbr.rel (0) target = $region53
  $region52: #{full_band_encoder_forward.1} parent=0 // pred_region
    _
  $region53: #{full_band_encoder_forward.1} parent=0 // pred_fallthru
    _
  // Predicated region
  $region54: #{full_band_encoder_forward.1} parent=0 // pred_check
    _
  $region55: #{full_band_encoder_forward.1} parent=0 // pred_check_branch
    %8618 = sbr.rel (0) target = $region57
  $region56: #{full_band_encoder_forward.1} parent=0 // pred_region
    _
  $region57: #{full_band_encoder_forward.1} parent=0 // pred_fallthru
    _

</llo_original>
